<compile_context>
chip_gen: v7x
topology: tpu7x:2x2x1
jax: 0.10.0
libtpu: 0.0.40
codegen_flags: <defaults>
</compile_context>

<pallas_src>
import math
import jax
import jax.numpy as jnp
from jax.experimental import pallas as pl
from jax.experimental.pallas import tpu as pltpu

# ----------------------------- model hyper-params (small, synthetic CLIP) -----------------------------
B          = 2      # batch
IMG_C      = 3
IMG_HW     = 16     # cfg_imsize == clip_imsize
PATCH      = 8      # -> 2x2 = 4 patches, vis seq len = 5 (with class token)
VIS_DIM    = 32     # vision transformer width
VIS_HEADS  = 4
VIS_LAYERS = 2
EMBED      = 32     # clip_model.visual.output_dim (shared image/text embed dim)

CTX_DIM    = 32     # clip_model.ln_final.weight.shape[0]
CTX_LEN    = 8      # text context length
N_CTX      = 4      # cfg.TRAINER.COCOOP.N_CTX
N_CLS      = 3      # number of classnames
TXT_HEADS  = 4
TXT_LAYERS = 2

_VMEM = pl.BlockSpec(memory_space=pltpu.MemorySpace.VMEM)
_SMEM = pl.BlockSpec(memory_space=pltpu.MemorySpace.SMEM)

# fixed argument ordering for the (many) weight refs passed to the fused kernel
_LAYER_KEYS = ('wqkv', 'bqkv', 'wo', 'bo', 'ln1_g', 'ln1_b', 'ln2_g', 'ln2_b',
               'fc_w', 'fc_b', 'pj_w', 'pj_b')
_VIS_KEYS = ('conv_w_aug', 'pos_emb', 'ln_pre_g', 'ln_pre_b') + _LAYER_KEYS + \
            ('ln_post_g', 'ln_post_b', 'proj')
_TXT_KEYS = ('pos_emb',) + _LAYER_KEYS + ('ln_final_g', 'ln_final_b', 'text_projection')


# ----------------------------- in-kernel helpers -----------------------------
def _layernorm2d(x2, g, b):
    # x2: (N, D) f32, g/b: (1, D) f32
    mu = jnp.mean(x2, axis=-1, keepdims=True)
    xc = x2 - mu
    var = jnp.mean(xc * xc, axis=-1, keepdims=True)
    return xc * jax.lax.rsqrt(var + 1e-5) * g + b


def _resblock(x, l, mask, n_heads, w):
    """One CLIP ResidualAttentionBlock, fully in-kernel.

    x: (B, L, D) f32 value.  w: dict of Refs; leading axis of each is the layer index:
      wqkv: (NL, D, 3D) bf16   bqkv: (NL, 1, 3D) f32
      wo:   (NL, D, D)  bf16   bo:   (NL, 1, D)  f32
      fc_w: (NL, D, 4D) bf16   pj_w: (NL, 4D, D) bf16
    """
    bsz, seq, d = x.shape
    dh = d // n_heads
    scale = 1.0 / math.sqrt(dh)
    x2 = x.reshape(bsz * seq, d)

    # ---- multi-head self-attention (pre-LN): single fused QKV matmul, one bf16 cast ----
    h2 = _layernorm2d(x2, w['ln1_g'][l], w['ln1_b'][l]).astype(jnp.bfloat16)
    qkv = jnp.dot(h2, w['wqkv'][l], preferred_element_type=jnp.float32) + w['bqkv'][l]
    qkv = qkv.reshape(bsz, seq, 3 * d)
    q = (qkv[:, :, 0 * d:1 * d] * scale).astype(jnp.bfloat16)
    k = qkv[:, :, 1 * d:2 * d].astype(jnp.bfloat16)
    v = qkv[:, :, 2 * d:3 * d].astype(jnp.bfloat16)

    heads = []
    for h in range(n_heads):
        sl = slice(h * dh, (h + 1) * dh)
        s = jnp.einsum('bqd,bkd->bqk', q[:, :, sl], k[:, :, sl],
                       preferred_element_type=jnp.float32)
        if mask is not None:
            s = s + mask
        m = jnp.max(s, axis=-1, keepdims=True)
        e = jnp.exp(s - m)
        prob = e * pl.reciprocal(jnp.sum(e, axis=-1, keepdims=True), approx=True)
        heads.append(jnp.einsum('bqk,bkd->bqd', prob.astype(jnp.bfloat16), v[:, :, sl],
                                preferred_element_type=jnp.float32))
    # merge heads along lanes -> ONE (D, D) output-projection matmul
    o2 = jnp.concatenate(heads, axis=-1).reshape(bsz * seq, d)
    x2 = x2 + jnp.dot(o2.astype(jnp.bfloat16), w['wo'][l],
                      preferred_element_type=jnp.float32) + w['bo'][l]

    # ---- MLP with QuickGELU (pre-LN) ----
    h2 = _layernorm2d(x2, w['ln2_g'][l], w['ln2_b'][l]).astype(jnp.bfloat16)
    hmid = jnp.dot(h2, w['fc_w'][l], preferred_element_type=jnp.float32) + w['fc_b'][l]
    hmid = hmid * jax.nn.sigmoid(1.702 * hmid)        # CLIP QuickGELU
    x2 = x2 + jnp.dot(hmid.astype(jnp.bfloat16), w['pj_w'][l],
                      preferred_element_type=jnp.float32) + w['pj_b'][l]
    return x2.reshape(bsz, seq, d)


# ----------------------------- single fused Pallas kernel -----------------------------
def _custom_clip_kernel(x_in, prompts, eot_oh, *rest):
    nv, nt = len(_VIS_KEYS), len(_TXT_KEYS)
    vp = dict(zip(_VIS_KEYS, rest[:nv]))
    tp = dict(zip(_TXT_KEYS, rest[nv:nv + nt]))
    scale_ref = rest[nv + nt]          # (1,) f32 in SMEM = logit_scale.exp()
    logits_ref = rest[nv + nt + 1]     # (B, N_CLS) f32 output

    # ---------------- image encoder ----------------
    bsz, vis_len, cin = x_in.shape
    d = VIS_DIM
    # patch embedding; class-token embedding is folded into the augmented conv weight row
    x2 = jnp.dot(x_in[...].reshape(bsz * vis_len, cin).astype(jnp.bfloat16),
                 vp['conv_w_aug'][...], preferred_element_type=jnp.float32)
    x = x2.reshape(bsz, vis_len, d) + vp['pos_emb'][...][None]
    x = _layernorm2d(x.reshape(bsz * vis_len, d),
                     vp['ln_pre_g'][...], vp['ln_pre_b'][...]).reshape(bsz, vis_len, d)
    for l in range(VIS_LAYERS):   # static unroll; TODO(synk): lax.fori_loop for 12/24-layer stacks
        x = _resblock(x, l, None, VIS_HEADS, vp)
    cls_tok = _layernorm2d(x[:, 0, :], vp['ln_post_g'][...], vp['ln_post_b'][...])
    img = jnp.dot(cls_tok.astype(jnp.bfloat16), vp['proj'][...],
                  preferred_element_type=jnp.float32)                     # (B, E)

    # ---------------- text encoder ----------------
    ncls, seq_t, dt = prompts.shape
    t = prompts[...] + tp['pos_emb'][...][None]
    # causal mask built in-kernel (no mask DMA)
    rows = jax.lax.broadcasted_iota(jnp.int32, (seq_t, seq_t), 0)
    cols = jax.lax.broadcasted_iota(jnp.int32, (seq_t, seq_t), 1)
    causal = jnp.where(cols > rows, jnp.float32(-1e30), jnp.float32(0.0))
    for l in range(TXT_LAYERS):
        t = _resblock(t, l, causal, TXT_HEADS, tp)
    t2 = _layernorm2d(t.reshape(ncls * seq_t, dt),
                      tp['ln_final_g'][...], tp['ln_final_b'][...])
    # EOT-token gather as a one-hot weighted sum over the sequence axis
    t_eot = jnp.sum(t2.reshape(ncls, seq_t, dt) * eot_oh[...], axis=1)    # (C, D)
    txt = jnp.dot(t_eot.astype(jnp.bfloat16), tp['text_projection'][...],
                  preferred_element_type=jnp.float32)                     # (C, E)

    # ---------------- CLIP head: L2-normalize + scaled cosine logits ----------------
    img = img * jax.lax.rsqrt(jnp.sum(img * img, axis=-1, keepdims=True) + 1e-12)
    txt = txt * jax.lax.rsqrt(jnp.sum(txt * txt, axis=-1, keepdims=True) + 1e-12)
    logits = jnp.einsum('be,ce->bc', img, txt, preferred_element_type=jnp.float32)
    logits_ref[...] = scale_ref[0] * logits


# ----------------------------- wrapper (forward) -----------------------------
def custom_clip_forward(image, params):
    # image: NCHW (B, 3, 16, 16)
    b, c, hh, ww = image.shape
    p = PATCH
    n_patch = (hh // p) * (ww // p)
    cpp = c * p * p
    # unfold into patches (pure layout plumbing; all dense compute runs in the kernel)
    patches = (image.reshape(b, c, hh // p, p, ww // p, p)
                    .transpose(0, 2, 4, 1, 3, 5)
                    .reshape(b, n_patch, cpp)).astype(jnp.float32)
    # class-token indicator column: one augmented matmul inside the kernel produces
    # [class_emb ; patch_embeds] per image (fuses the class-token concat into the MXU op).
    patches = jnp.pad(patches, ((0, 0), (0, 0), (0, 1)))
    cls_row = jnp.zeros((b, 1, cpp + 1), jnp.float32).at[:, :, -1].set(1.0)  # constant-folded under jit
    x_in = jnp.concatenate([cls_row, patches], axis=1)                        # (B, 1+n_patch, cpp+1)

    vp, tp, cc = params['visual'], params['text'], params['cached']
    args = ((x_in, cc['prompts'], cc['eot_onehot'])
            + tuple(vp[k] for k in _VIS_KEYS)
            + tuple(tp[k] for k in _TXT_KEYS)
            + (cc['scale'],))
    return pl.pallas_call(
        _custom_clip_kernel,
        out_shape=jax.ShapeDtypeStruct((b, N_CLS), jnp.float32),
        in_specs=[_VMEM] * (len(args) - 1) + [_SMEM],
        out_specs=_VMEM,
    )(*args)


# ----------------------------- deterministic parameter init -----------------------------
def _init_encoder_layers(key, d, n_layers):
    s = 0.02
    ks = jax.random.split(key, 4)
    # weights stored (in_features, out_features): kernels compute x @ W + b
    wqkv = jax.random.normal(ks[0], (n_layers, d, 3 * d)) * s
    wo = jax.random.normal(ks[1], (n_layers, d, d)) * s
    fc_w = jax.random.normal(ks[2], (n_layers, d, 4 * d)) * s
    pj_w = jax.random.normal(ks[3], (n_layers, 4 * d, d)) * s
    return dict(
        wqkv=wqkv.astype(jnp.bfloat16),
        bqkv=jnp.zeros((n_layers, 1, 3 * d), jnp.float32),
        wo=wo.astype(jnp.bfloat16),
        bo=jnp.zeros((n_layers, 1, d), jnp.float32),
        ln1_g=jnp.ones((n_layers, 1, d), jnp.float32),
        ln1_b=jnp.zeros((n_layers, 1, d), jnp.float32),
        ln2_g=jnp.ones((n_layers, 1, d), jnp.float32),
        ln2_b=jnp.zeros((n_layers, 1, d), jnp.float32),
        fc_w=fc_w.astype(jnp.bfloat16),
        fc_b=jnp.zeros((n_layers, 1, 4 * d), jnp.float32),
        pj_w=pj_w.astype(jnp.bfloat16),
        pj_b=jnp.zeros((n_layers, 1, d), jnp.float32),
    )


def init_params(key):
    kv, kt, kp = jax.random.split(key, 3)
    s = 0.02
    n_patch = (IMG_HW // PATCH) ** 2
    vis_len = n_patch + 1
    cpp = IMG_C * PATCH * PATCH

    kvs = jax.random.split(kv, 5)
    conv_w = jax.random.normal(kvs[0], (cpp, VIS_DIM)) * s          # conv1 weight, flattened & transposed
    class_emb = jax.random.normal(kvs[1], (1, VIS_DIM)) * s
    visual = dict(
        conv_w_aug=jnp.concatenate([conv_w, class_emb], axis=0).astype(jnp.bfloat16),  # (cpp+1, D)
        pos_emb=(jax.random.normal(kvs[2], (vis_len, VIS_DIM)) * s).astype(jnp.float32),
        ln_pre_g=jnp.ones((1, VIS_DIM), jnp.float32), ln_pre_b=jnp.zeros((1, VIS_DIM), jnp.float32),
        ln_post_g=jnp.ones((1, VIS_DIM), jnp.float32), ln_post_b=jnp.zeros((1, VIS_DIM), jnp.float32),
        proj=(jax.random.normal(kvs[3], (VIS_DIM, EMBED)) * s).astype(jnp.bfloat16),
        **_init_encoder_layers(kvs[4], VIS_DIM, VIS_LAYERS),
    )

    kts = jax.random.split(kt, 3)
    text = dict(
        pos_emb=(jax.random.normal(kts[0], (CTX_LEN, CTX_DIM)) * s).astype(jnp.float32),
        ln_final_g=jnp.ones((1, CTX_DIM), jnp.float32), ln_final_b=jnp.zeros((1, CTX_DIM), jnp.float32),
        text_projection=(jax.random.normal(kts[1], (CTX_DIM, EMBED)) * s).astype(jnp.bfloat16),
        **_init_encoder_layers(kts[2], CTX_DIM, TXT_LAYERS),
    )

    kps = jax.random.split(kp, 3)
    n_suffix = CTX_LEN - 1 - N_CTX
    ctx = (jax.random.normal(kps[0], (N_CTX, CTX_DIM)) * 0.02).astype(jnp.float32)
    token_prefix = (jax.random.normal(kps[1], (N_CLS, 1, CTX_DIM)) * s).astype(jnp.float32)
    token_suffix = (jax.random.normal(kps[2], (N_CLS, n_suffix, CTX_DIM)) * s).astype(jnp.float32)

    # tokenized prompts: [SOS, ctx x N_CTX, name, EOT, pad...]; argmax(-1) hits the EOT slot.
    rows = []
    for c in range(N_CLS):
        row = [49406] + [10 + i for i in range(N_CTX)] + [100 + c, 49407]
        row += [0] * (CTX_LEN - len(row))
        rows.append(row)
    tokenized_prompts = jnp.array(rows, jnp.int32)
    logit_scale = jnp.float32(math.log(1.0 / 0.07))   # CLIP init

    # ---- hoisted forward-path constants (prompt concat, EOT one-hot, exp(logit_scale)) ----
    ctx_b = jnp.broadcast_to(ctx[None], (N_CLS, N_CTX, CTX_DIM))
    prompts = jnp.concatenate([token_prefix, ctx_b, token_suffix], axis=1)   # (C, L, D)
    eot = jnp.argmax(tokenized_prompts, axis=-1)
    eot_onehot = jax.nn.one_hot(eot, CTX_LEN, dtype=jnp.float32)[:, :, None]
    scale = jnp.exp(logit_scale).reshape(1).astype(jnp.float32)              # -> SMEM scalar

    cached = dict(prompts=prompts, eot_onehot=eot_onehot, scale=scale)
    return dict(visual=visual, text=text, cached=cached)


# ----------------------------- main -----------------------------
if __name__ == "__main__":
    key = jax.random.PRNGKey(0)
    k_params, k_img = jax.random.split(key)
    params = init_params(k_params)
    image = jax.random.normal(k_img, (B, IMG_C, IMG_HW, IMG_HW), jnp.float32)  # NCHW

    forward = jax.jit(custom_clip_forward)
    logits = jax.block_until_ready(forward(image, params))

    assert logits.shape == (B, N_CLS), logits.shape
    assert bool(jnp.all(jnp.isfinite(logits)))
    print("KERNEL_OK")
</pallas_src>

<mosaic_0001>
module attributes {stable_mosaic.version = 11 : i64} {
  func.func @_custom_clip_kernel(%arg0: memref<2x5x193xf32, #tpu.memory_space<vmem>>, %arg1: memref<3x8x32xf32, #tpu.memory_space<vmem>>, %arg2: memref<3x8x1xf32, #tpu.memory_space<vmem>>, %arg3: memref<193x32xbf16, #tpu.memory_space<vmem>>, %arg4: memref<5x32xf32, #tpu.memory_space<vmem>>, %arg5: memref<1x32xf32, #tpu.memory_space<vmem>>, %arg6: memref<1x32xf32, #tpu.memory_space<vmem>>, %arg7: memref<2x32x96xbf16, #tpu.memory_space<vmem>>, %arg8: memref<2x1x96xf32, #tpu.memory_space<vmem>>, %arg9: memref<2x32x32xbf16, #tpu.memory_space<vmem>>, %arg10: memref<2x1x32xf32, #tpu.memory_space<vmem>>, %arg11: memref<2x1x32xf32, #tpu.memory_space<vmem>>, %arg12: memref<2x1x32xf32, #tpu.memory_space<vmem>>, %arg13: memref<2x1x32xf32, #tpu.memory_space<vmem>>, %arg14: memref<2x1x32xf32, #tpu.memory_space<vmem>>, %arg15: memref<2x32x128xbf16, #tpu.memory_space<vmem>>, %arg16: memref<2x1x128xf32, #tpu.memory_space<vmem>>, %arg17: memref<2x128x32xbf16, #tpu.memory_space<vmem>>, %arg18: memref<2x1x32xf32, #tpu.memory_space<vmem>>, %arg19: memref<1x32xf32, #tpu.memory_space<vmem>>, %arg20: memref<1x32xf32, #tpu.memory_space<vmem>>, %arg21: memref<32x32xbf16, #tpu.memory_space<vmem>>, %arg22: memref<8x32xf32, #tpu.memory_space<vmem>>, %arg23: memref<2x32x96xbf16, #tpu.memory_space<vmem>>, %arg24: memref<2x1x96xf32, #tpu.memory_space<vmem>>, %arg25: memref<2x32x32xbf16, #tpu.memory_space<vmem>>, %arg26: memref<2x1x32xf32, #tpu.memory_space<vmem>>, %arg27: memref<2x1x32xf32, #tpu.memory_space<vmem>>, %arg28: memref<2x1x32xf32, #tpu.memory_space<vmem>>, %arg29: memref<2x1x32xf32, #tpu.memory_space<vmem>>, %arg30: memref<2x1x32xf32, #tpu.memory_space<vmem>>, %arg31: memref<2x32x128xbf16, #tpu.memory_space<vmem>>, %arg32: memref<2x1x128xf32, #tpu.memory_space<vmem>>, %arg33: memref<2x128x32xbf16, #tpu.memory_space<vmem>>, %arg34: memref<2x1x32xf32, #tpu.memory_space<vmem>>, %arg35: memref<1x32xf32, #tpu.memory_space<vmem>>, %arg36: memref<1x32xf32, #tpu.memory_space<vmem>>, %arg37: memref<32x32xbf16, #tpu.memory_space<vmem>>, %arg38: memref<1xf32, #tpu.memory_space<smem>>, %arg39: memref<2x3xf32, #tpu.memory_space<vmem>>) attributes {dimension_semantics = [], scalar_prefetch = 0 : i64, scratch_operands = 0 : i64, tpu.core_type = #tpu.core_type<tc>} {
    %c0 = arith.constant 0 : index
    %c0_0 = arith.constant 0 : index
    %c0_1 = arith.constant 0 : index
    %0 = vector.load %arg0[%c0, %c0_0, %c0_1] : memref<2x5x193xf32, #tpu.memory_space<vmem>>, vector<2x5x193xf32>
    %1 = vector.shape_cast %0 : vector<2x5x193xf32> to vector<10x193xf32>
    %2 = arith.truncf %1 : vector<10x193xf32> to vector<10x193xbf16>
    %c0_2 = arith.constant 0 : index
    %c0_3 = arith.constant 0 : index
    %3 = vector.load %arg3[%c0_2, %c0_3] : memref<193x32xbf16, #tpu.memory_space<vmem>>, vector<193x32xbf16>
    %cst = arith.constant dense<0.000000e+00> : vector<10x32xf32>
    %4 = tpu.matmul %2, %3, %cst {dimension_numbers = #tpu.dot_dimension_numbers<[1], [0], [0], [1], [0, 0, 1, 1], [], []>} : vector<10x193xbf16>, vector<193x32xbf16>, vector<10x32xf32> -> vector<10x32xf32>
    %5 = vector.shape_cast %4 : vector<10x32xf32> to vector<2x5x32xf32>
    %c0_4 = arith.constant 0 : index
    %c0_5 = arith.constant 0 : index
    %6 = vector.load %arg4[%c0_4, %c0_5] : memref<5x32xf32, #tpu.memory_space<vmem>>, vector<5x32xf32>
    %7 = vector.shape_cast %6 : vector<5x32xf32> to vector<1x5x32xf32>
    %8 = vector.broadcast %7 : vector<1x5x32xf32> to vector<2x5x32xf32>
    %9 = arith.addf %5, %8 : vector<2x5x32xf32>
    %10 = vector.shape_cast %9 : vector<2x5x32xf32> to vector<10x32xf32>
    %c0_6 = arith.constant 0 : index
    %c0_7 = arith.constant 0 : index
    %11 = vector.load %arg5[%c0_6, %c0_7] : memref<1x32xf32, #tpu.memory_space<vmem>>, vector<1x32xf32>
    %c0_8 = arith.constant 0 : index
    %c0_9 = arith.constant 0 : index
    %12 = vector.load %arg6[%c0_8, %c0_9] : memref<1x32xf32, #tpu.memory_space<vmem>>, vector<1x32xf32>
    %cst_10 = arith.constant dense<0.000000e+00> : vector<10xf32>
    %13 = vector.multi_reduction <add>, %10, %cst_10 [1] : vector<10x32xf32> to vector<10xf32>
    %14 = vector.shape_cast %13 : vector<10xf32> to vector<10x1xf32>
    %cst_11 = arith.constant 3.200000e+01 : f32
    %15 = vector.broadcast %cst_11 : f32 to vector<10x1xf32>
    %16 = arith.divf %14, %15 : vector<10x1xf32>
    %17 = vector.broadcast %16 : vector<10x1xf32> to vector<10x32xf32>
    %18 = arith.subf %10, %17 : vector<10x32xf32>
    %19 = arith.mulf %18, %18 : vector<10x32xf32>
    %cst_12 = arith.constant dense<0.000000e+00> : vector<10xf32>
    %20 = vector.multi_reduction <add>, %19, %cst_12 [1] : vector<10x32xf32> to vector<10xf32>
    %21 = vector.shape_cast %20 : vector<10xf32> to vector<10x1xf32>
    %cst_13 = arith.constant 3.200000e+01 : f32
    %22 = vector.broadcast %cst_13 : f32 to vector<10x1xf32>
    %23 = arith.divf %21, %22 : vector<10x1xf32>
    %cst_14 = arith.constant 9.99999974E-6 : f32
    %24 = vector.broadcast %cst_14 : f32 to vector<10x1xf32>
    %25 = arith.addf %23, %24 : vector<10x1xf32>
    %26 = math.rsqrt %25 : vector<10x1xf32>
    %27 = vector.broadcast %26 : vector<10x1xf32> to vector<10x32xf32>
    %28 = arith.mulf %18, %27 : vector<10x32xf32>
    %29 = vector.broadcast %11 : vector<1x32xf32> to vector<10x32xf32>
    %30 = arith.mulf %28, %29 : vector<10x32xf32>
    %31 = vector.broadcast %12 : vector<1x32xf32> to vector<10x32xf32>
    %32 = arith.addf %30, %31 : vector<10x32xf32>
    %33 = vector.shape_cast %32 : vector<10x32xf32> to vector<2x5x32xf32>
    %34 = vector.shape_cast %33 : vector<2x5x32xf32> to vector<10x32xf32>
    %c0_15 = arith.constant 0 : index
    %c0_16 = arith.constant 0 : index
    %c0_17 = arith.constant 0 : index
    %35 = vector.load %arg11[%c0_15, %c0_16, %c0_17] : memref<2x1x32xf32, #tpu.memory_space<vmem>>, vector<1x1x32xf32>
    %36 = vector.shape_cast %35 : vector<1x1x32xf32> to vector<1x32xf32>
    %c0_18 = arith.constant 0 : index
    %c0_19 = arith.constant 0 : index
    %c0_20 = arith.constant 0 : index
    %37 = vector.load %arg12[%c0_18, %c0_19, %c0_20] : memref<2x1x32xf32, #tpu.memory_space<vmem>>, vector<1x1x32xf32>
    %38 = vector.shape_cast %37 : vector<1x1x32xf32> to vector<1x32xf32>
    %cst_21 = arith.constant dense<0.000000e+00> : vector<10xf32>
    %39 = vector.multi_reduction <add>, %34, %cst_21 [1] : vector<10x32xf32> to vector<10xf32>
    %40 = vector.shape_cast %39 : vector<10xf32> to vector<10x1xf32>
    %cst_22 = arith.constant 3.200000e+01 : f32
    %41 = vector.broadcast %cst_22 : f32 to vector<10x1xf32>
    %42 = arith.divf %40, %41 : vector<10x1xf32>
    %43 = vector.broadcast %42 : vector<10x1xf32> to vector<10x32xf32>
    %44 = arith.subf %34, %43 : vector<10x32xf32>
    %45 = arith.mulf %44, %44 : vector<10x32xf32>
    %cst_23 = arith.constant dense<0.000000e+00> : vector<10xf32>
    %46 = vector.multi_reduction <add>, %45, %cst_23 [1] : vector<10x32xf32> to vector<10xf32>
    %47 = vector.shape_cast %46 : vector<10xf32> to vector<10x1xf32>
    %cst_24 = arith.constant 3.200000e+01 : f32
    %48 = vector.broadcast %cst_24 : f32 to vector<10x1xf32>
    %49 = arith.divf %47, %48 : vector<10x1xf32>
    %cst_25 = arith.constant 9.99999974E-6 : f32
    %50 = vector.broadcast %cst_25 : f32 to vector<10x1xf32>
    %51 = arith.addf %49, %50 : vector<10x1xf32>
    %52 = math.rsqrt %51 : vector<10x1xf32>
    %53 = vector.broadcast %52 : vector<10x1xf32> to vector<10x32xf32>
    %54 = arith.mulf %44, %53 : vector<10x32xf32>
    %55 = vector.broadcast %36 : vector<1x32xf32> to vector<10x32xf32>
    %56 = arith.mulf %54, %55 : vector<10x32xf32>
    %57 = vector.broadcast %38 : vector<1x32xf32> to vector<10x32xf32>
    %58 = arith.addf %56, %57 : vector<10x32xf32>
    %59 = arith.truncf %58 : vector<10x32xf32> to vector<10x32xbf16>
    %c0_26 = arith.constant 0 : index
    %c0_27 = arith.constant 0 : index
    %c0_28 = arith.constant 0 : index
    %60 = vector.load %arg7[%c0_26, %c0_27, %c0_28] : memref<2x32x96xbf16, #tpu.memory_space<vmem>>, vector<1x32x96xbf16>
    %61 = vector.shape_cast %60 : vector<1x32x96xbf16> to vector<32x96xbf16>
    %cst_29 = arith.constant dense<0.000000e+00> : vector<10x96xf32>
    %62 = tpu.matmul %59, %61, %cst_29 {dimension_numbers = #tpu.dot_dimension_numbers<[1], [0], [0], [1], [0, 0, 1, 1], [], []>} : vector<10x32xbf16>, vector<32x96xbf16>, vector<10x96xf32> -> vector<10x96xf32>
    %c0_30 = arith.constant 0 : index
    %c0_31 = arith.constant 0 : index
    %c0_32 = arith.constant 0 : index
    %63 = vector.load %arg8[%c0_30, %c0_31, %c0_32] : memref<2x1x96xf32, #tpu.memory_space<vmem>>, vector<1x1x96xf32>
    %64 = vector.shape_cast %63 : vector<1x1x96xf32> to vector<1x96xf32>
    %65 = vector.broadcast %64 : vector<1x96xf32> to vector<10x96xf32>
    %66 = arith.addf %62, %65 : vector<10x96xf32>
    %67 = vector.shape_cast %66 : vector<10x96xf32> to vector<2x5x96xf32>
    %68 = vector.extract_strided_slice %67 {offsets = [0, 0, 0], sizes = [2, 5, 32], strides = [1, 1, 1]} : vector<2x5x96xf32> to vector<2x5x32xf32>
    %cst_33 = arith.constant 0.353553385 : f32
    %69 = vector.broadcast %cst_33 : f32 to vector<2x5x32xf32>
    %70 = arith.mulf %68, %69 : vector<2x5x32xf32>
    %71 = arith.truncf %70 : vector<2x5x32xf32> to vector<2x5x32xbf16>
    %72 = vector.extract_strided_slice %67 {offsets = [0, 0, 32], sizes = [2, 5, 32], strides = [1, 1, 1]} : vector<2x5x96xf32> to vector<2x5x32xf32>
    %73 = arith.truncf %72 : vector<2x5x32xf32> to vector<2x5x32xbf16>
    %74 = vector.extract_strided_slice %67 {offsets = [0, 0, 64], sizes = [2, 5, 32], strides = [1, 1, 1]} : vector<2x5x96xf32> to vector<2x5x32xf32>
    %75 = arith.truncf %74 : vector<2x5x32xf32> to vector<2x5x32xbf16>
    %76 = vector.extract_strided_slice %71 {offsets = [0, 0, 0], sizes = [2, 5, 8], strides = [1, 1, 1]} : vector<2x5x32xbf16> to vector<2x5x8xbf16>
    %77 = vector.extract_strided_slice %73 {offsets = [0, 0, 0], sizes = [2, 5, 8], strides = [1, 1, 1]} : vector<2x5x32xbf16> to vector<2x5x8xbf16>
    "tpu.trace_start"() <{level = 10 : i32, message = "bqd,bkd->bqk"}> : () -> ()
    %cst_34 = arith.constant dense<0.000000e+00> : vector<2x5x5xf32>
    %78 = tpu.matmul %76, %77, %cst_34 {dimension_numbers = #tpu.dot_dimension_numbers<[2], [2], [1], [1], [0, 0, 0, 1, 1, 1], [0], [0]>} : vector<2x5x8xbf16>, vector<2x5x8xbf16>, vector<2x5x5xf32> -> vector<2x5x5xf32>
    "tpu.trace_stop"() : () -> ()
    %cst_35 = arith.constant dense<0xFF800000> : vector<2x5xf32>
    %79 = vector.multi_reduction <maximumf>, %78, %cst_35 [2] : vector<2x5x5xf32> to vector<2x5xf32>
    %80 = vector.shape_cast %79 : vector<2x5xf32> to vector<2x5x1xf32>
    %81 = vector.broadcast %80 : vector<2x5x1xf32> to vector<2x5x5xf32>
    %82 = arith.subf %78, %81 : vector<2x5x5xf32>
    %83 = math.exp %82 : vector<2x5x5xf32>
    %cst_36 = arith.constant dense<0.000000e+00> : vector<2x5xf32>
    %84 = vector.multi_reduction <add>, %83, %cst_36 [2] : vector<2x5x5xf32> to vector<2x5xf32>
    %85 = vector.shape_cast %84 : vector<2x5xf32> to vector<2x5x1xf32>
    %86 = tpu.reciprocal %85 {approx = true} : vector<2x5x1xf32> -> vector<2x5x1xf32>
    %87 = vector.broadcast %86 : vector<2x5x1xf32> to vector<2x5x5xf32>
    %88 = arith.mulf %83, %87 : vector<2x5x5xf32>
    %89 = arith.truncf %88 : vector<2x5x5xf32> to vector<2x5x5xbf16>
    %90 = vector.extract_strided_slice %75 {offsets = [0, 0, 0], sizes = [2, 5, 8], strides = [1, 1, 1]} : vector<2x5x32xbf16> to vector<2x5x8xbf16>
    "tpu.trace_start"() <{level = 10 : i32, message = "bqk,bkd->bqd"}> : () -> ()
    %cst_37 = arith.constant dense<0.000000e+00> : vector<2x5x8xf32>
    %91 = tpu.matmul %89, %90, %cst_37 {dimension_numbers = #tpu.dot_dimension_numbers<[2], [1], [1], [2], [0, 0, 0, 1, 1, 2], [0], [0]>} : vector<2x5x5xbf16>, vector<2x5x8xbf16>, vector<2x5x8xf32> -> vector<2x5x8xf32>
    "tpu.trace_stop"() : () -> ()
    %92 = vector.extract_strided_slice %71 {offsets = [0, 0, 8], sizes = [2, 5, 8], strides = [1, 1, 1]} : vector<2x5x32xbf16> to vector<2x5x8xbf16>
    %93 = vector.extract_strided_slice %73 {offsets = [0, 0, 8], sizes = [2, 5, 8], strides = [1, 1, 1]} : vector<2x5x32xbf16> to vector<2x5x8xbf16>
    "tpu.trace_start"() <{level = 10 : i32, message = "bqd,bkd->bqk"}> : () -> ()
    %cst_38 = arith.constant dense<0.000000e+00> : vector<2x5x5xf32>
    %94 = tpu.matmul %92, %93, %cst_38 {dimension_numbers = #tpu.dot_dimension_numbers<[2], [2], [1], [1], [0, 0, 0, 1, 1, 1], [0], [0]>} : vector<2x5x8xbf16>, vector<2x5x8xbf16>, vector<2x5x5xf32> -> vector<2x5x5xf32>
    "tpu.trace_stop"() : () -> ()
    %cst_39 = arith.constant dense<0xFF800000> : vector<2x5xf32>
    %95 = vector.multi_reduction <maximumf>, %94, %cst_39 [2] : vector<2x5x5xf32> to vector<2x5xf32>
    %96 = vector.shape_cast %95 : vector<2x5xf32> to vector<2x5x1xf32>
    %97 = vector.broadcast %96 : vector<2x5x1xf32> to vector<2x5x5xf32>
    %98 = arith.subf %94, %97 : vector<2x5x5xf32>
    %99 = math.exp %98 : vector<2x5x5xf32>
    %cst_40 = arith.constant dense<0.000000e+00> : vector<2x5xf32>
    %100 = vector.multi_reduction <add>, %99, %cst_40 [2] : vector<2x5x5xf32> to vector<2x5xf32>
    %101 = vector.shape_cast %100 : vector<2x5xf32> to vector<2x5x1xf32>
    %102 = tpu.reciprocal %101 {approx = true} : vector<2x5x1xf32> -> vector<2x5x1xf32>
    %103 = vector.broadcast %102 : vector<2x5x1xf32> to vector<2x5x5xf32>
    %104 = arith.mulf %99, %103 : vector<2x5x5xf32>
    %105 = arith.truncf %104 : vector<2x5x5xf32> to vector<2x5x5xbf16>
    %106 = vector.extract_strided_slice %75 {offsets = [0, 0, 8], sizes = [2, 5, 8], strides = [1, 1, 1]} : vector<2x5x32xbf16> to vector<2x5x8xbf16>
    "tpu.trace_start"() <{level = 10 : i32, message = "bqk,bkd->bqd"}> : () -> ()
    %cst_41 = arith.constant dense<0.000000e+00> : vector<2x5x8xf32>
    %107 = tpu.matmul %105, %106, %cst_41 {dimension_numbers = #tpu.dot_dimension_numbers<[2], [1], [1], [2], [0, 0, 0, 1, 1, 2], [0], [0]>} : vector<2x5x5xbf16>, vector<2x5x8xbf16>, vector<2x5x8xf32> -> vector<2x5x8xf32>
    "tpu.trace_stop"() : () -> ()
    %108 = vector.extract_strided_slice %71 {offsets = [0, 0, 16], sizes = [2, 5, 8], strides = [1, 1, 1]} : vector<2x5x32xbf16> to vector<2x5x8xbf16>
    %109 = vector.extract_strided_slice %73 {offsets = [0, 0, 16], sizes = [2, 5, 8], strides = [1, 1, 1]} : vector<2x5x32xbf16> to vector<2x5x8xbf16>
    "tpu.trace_start"() <{level = 10 : i32, message = "bqd,bkd->bqk"}> : () -> ()
    %cst_42 = arith.constant dense<0.000000e+00> : vector<2x5x5xf32>
    %110 = tpu.matmul %108, %109, %cst_42 {dimension_numbers = #tpu.dot_dimension_numbers<[2], [2], [1], [1], [0, 0, 0, 1, 1, 1], [0], [0]>} : vector<2x5x8xbf16>, vector<2x5x8xbf16>, vector<2x5x5xf32> -> vector<2x5x5xf32>
    "tpu.trace_stop"() : () -> ()
    %cst_43 = arith.constant dense<0xFF800000> : vector<2x5xf32>
    %111 = vector.multi_reduction <maximumf>, %110, %cst_43 [2] : vector<2x5x5xf32> to vector<2x5xf32>
    %112 = vector.shape_cast %111 : vector<2x5xf32> to vector<2x5x1xf32>
    %113 = vector.broadcast %112 : vector<2x5x1xf32> to vector<2x5x5xf32>
    %114 = arith.subf %110, %113 : vector<2x5x5xf32>
    %115 = math.exp %114 : vector<2x5x5xf32>
    %cst_44 = arith.constant dense<0.000000e+00> : vector<2x5xf32>
    %116 = vector.multi_reduction <add>, %115, %cst_44 [2] : vector<2x5x5xf32> to vector<2x5xf32>
    %117 = vector.shape_cast %116 : vector<2x5xf32> to vector<2x5x1xf32>
    %118 = tpu.reciprocal %117 {approx = true} : vector<2x5x1xf32> -> vector<2x5x1xf32>
    %119 = vector.broadcast %118 : vector<2x5x1xf32> to vector<2x5x5xf32>
    %120 = arith.mulf %115, %119 : vector<2x5x5xf32>
    %121 = arith.truncf %120 : vector<2x5x5xf32> to vector<2x5x5xbf16>
    %122 = vector.extract_strided_slice %75 {offsets = [0, 0, 16], sizes = [2, 5, 8], strides = [1, 1, 1]} : vector<2x5x32xbf16> to vector<2x5x8xbf16>
    "tpu.trace_start"() <{level = 10 : i32, message = "bqk,bkd->bqd"}> : () -> ()
    %cst_45 = arith.constant dense<0.000000e+00> : vector<2x5x8xf32>
    %123 = tpu.matmul %121, %122, %cst_45 {dimension_numbers = #tpu.dot_dimension_numbers<[2], [1], [1], [2], [0, 0, 0, 1, 1, 2], [0], [0]>} : vector<2x5x5xbf16>, vector<2x5x8xbf16>, vector<2x5x8xf32> -> vector<2x5x8xf32>
    "tpu.trace_stop"() : () -> ()
    %124 = vector.extract_strided_slice %71 {offsets = [0, 0, 24], sizes = [2, 5, 8], strides = [1, 1, 1]} : vector<2x5x32xbf16> to vector<2x5x8xbf16>
    %125 = vector.extract_strided_slice %73 {offsets = [0, 0, 24], sizes = [2, 5, 8], strides = [1, 1, 1]} : vector<2x5x32xbf16> to vector<2x5x8xbf16>
    "tpu.trace_start"() <{level = 10 : i32, message = "bqd,bkd->bqk"}> : () -> ()
    %cst_46 = arith.constant dense<0.000000e+00> : vector<2x5x5xf32>
    %126 = tpu.matmul %124, %125, %cst_46 {dimension_numbers = #tpu.dot_dimension_numbers<[2], [2], [1], [1], [0, 0, 0, 1, 1, 1], [0], [0]>} : vector<2x5x8xbf16>, vector<2x5x8xbf16>, vector<2x5x5xf32> -> vector<2x5x5xf32>
    "tpu.trace_stop"() : () -> ()
    %cst_47 = arith.constant dense<0xFF800000> : vector<2x5xf32>
    %127 = vector.multi_reduction <maximumf>, %126, %cst_47 [2] : vector<2x5x5xf32> to vector<2x5xf32>
    %128 = vector.shape_cast %127 : vector<2x5xf32> to vector<2x5x1xf32>
    %129 = vector.broadcast %128 : vector<2x5x1xf32> to vector<2x5x5xf32>
    %130 = arith.subf %126, %129 : vector<2x5x5xf32>
    %131 = math.exp %130 : vector<2x5x5xf32>
    %cst_48 = arith.constant dense<0.000000e+00> : vector<2x5xf32>
    %132 = vector.multi_reduction <add>, %131, %cst_48 [2] : vector<2x5x5xf32> to vector<2x5xf32>
    %133 = vector.shape_cast %132 : vector<2x5xf32> to vector<2x5x1xf32>
    %134 = tpu.reciprocal %133 {approx = true} : vector<2x5x1xf32> -> vector<2x5x1xf32>
    %135 = vector.broadcast %134 : vector<2x5x1xf32> to vector<2x5x5xf32>
    %136 = arith.mulf %131, %135 : vector<2x5x5xf32>
    %137 = arith.truncf %136 : vector<2x5x5xf32> to vector<2x5x5xbf16>
    %138 = vector.extract_strided_slice %75 {offsets = [0, 0, 24], sizes = [2, 5, 8], strides = [1, 1, 1]} : vector<2x5x32xbf16> to vector<2x5x8xbf16>
    "tpu.trace_start"() <{level = 10 : i32, message = "bqk,bkd->bqd"}> : () -> ()
    %cst_49 = arith.constant dense<0.000000e+00> : vector<2x5x8xf32>
    %139 = tpu.matmul %137, %138, %cst_49 {dimension_numbers = #tpu.dot_dimension_numbers<[2], [1], [1], [2], [0, 0, 0, 1, 1, 2], [0], [0]>} : vector<2x5x5xbf16>, vector<2x5x8xbf16>, vector<2x5x8xf32> -> vector<2x5x8xf32>
    "tpu.trace_stop"() : () -> ()
    %140 = tpu.concatenate %91, %107, %123, %139 in 2 : vector<2x5x8xf32>, vector<2x5x8xf32>, vector<2x5x8xf32>, vector<2x5x8xf32> -> vector<2x5x32xf32>
    %141 = vector.shape_cast %140 : vector<2x5x32xf32> to vector<10x32xf32>
    %142 = arith.truncf %141 : vector<10x32xf32> to vector<10x32xbf16>
    %c0_50 = arith.constant 0 : index
    %c0_51 = arith.constant 0 : index
    %c0_52 = arith.constant 0 : index
    %143 = vector.load %arg9[%c0_50, %c0_51, %c0_52] : memref<2x32x32xbf16, #tpu.memory_space<vmem>>, vector<1x32x32xbf16>
    %144 = vector.shape_cast %143 : vector<1x32x32xbf16> to vector<32x32xbf16>
    %cst_53 = arith.constant dense<0.000000e+00> : vector<10x32xf32>
    %145 = tpu.matmul %142, %144, %cst_53 {dimension_numbers = #tpu.dot_dimension_numbers<[1], [0], [0], [1], [0, 0, 1, 1], [], []>} : vector<10x32xbf16>, vector<32x32xbf16>, vector<10x32xf32> -> vector<10x32xf32>
    %146 = arith.addf %34, %145 : vector<10x32xf32>
    %c0_54 = arith.constant 0 : index
    %c0_55 = arith.constant 0 : index
    %c0_56 = arith.constant 0 : index
    %147 = vector.load %arg10[%c0_54, %c0_55, %c0_56] : memref<2x1x32xf32, #tpu.memory_space<vmem>>, vector<1x1x32xf32>
    %148 = vector.shape_cast %147 : vector<1x1x32xf32> to vector<1x32xf32>
    %149 = vector.broadcast %148 : vector<1x32xf32> to vector<10x32xf32>
    %150 = arith.addf %146, %149 : vector<10x32xf32>
    %c0_57 = arith.constant 0 : index
    %c0_58 = arith.constant 0 : index
    %c0_59 = arith.constant 0 : index
    %151 = vector.load %arg13[%c0_57, %c0_58, %c0_59] : memref<2x1x32xf32, #tpu.memory_space<vmem>>, vector<1x1x32xf32>
    %152 = vector.shape_cast %151 : vector<1x1x32xf32> to vector<1x32xf32>
    %c0_60 = arith.constant 0 : index
    %c0_61 = arith.constant 0 : index
    %c0_62 = arith.constant 0 : index
    %153 = vector.load %arg14[%c0_60, %c0_61, %c0_62] : memref<2x1x32xf32, #tpu.memory_space<vmem>>, vector<1x1x32xf32>
    %154 = vector.shape_cast %153 : vector<1x1x32xf32> to vector<1x32xf32>
    %cst_63 = arith.constant dense<0.000000e+00> : vector<10xf32>
    %155 = vector.multi_reduction <add>, %150, %cst_63 [1] : vector<10x32xf32> to vector<10xf32>
    %156 = vector.shape_cast %155 : vector<10xf32> to vector<10x1xf32>
    %cst_64 = arith.constant 3.200000e+01 : f32
    %157 = vector.broadcast %cst_64 : f32 to vector<10x1xf32>
    %158 = arith.divf %156, %157 : vector<10x1xf32>
    %159 = vector.broadcast %158 : vector<10x1xf32> to vector<10x32xf32>
    %160 = arith.subf %150, %159 : vector<10x32xf32>
    %161 = arith.mulf %160, %160 : vector<10x32xf32>
    %cst_65 = arith.constant dense<0.000000e+00> : vector<10xf32>
    %162 = vector.multi_reduction <add>, %161, %cst_65 [1] : vector<10x32xf32> to vector<10xf32>
    %163 = vector.shape_cast %162 : vector<10xf32> to vector<10x1xf32>
    %cst_66 = arith.constant 3.200000e+01 : f32
    %164 = vector.broadcast %cst_66 : f32 to vector<10x1xf32>
    %165 = arith.divf %163, %164 : vector<10x1xf32>
    %cst_67 = arith.constant 9.99999974E-6 : f32
    %166 = vector.broadcast %cst_67 : f32 to vector<10x1xf32>
    %167 = arith.addf %165, %166 : vector<10x1xf32>
    %168 = math.rsqrt %167 : vector<10x1xf32>
    %169 = vector.broadcast %168 : vector<10x1xf32> to vector<10x32xf32>
    %170 = arith.mulf %160, %169 : vector<10x32xf32>
    %171 = vector.broadcast %152 : vector<1x32xf32> to vector<10x32xf32>
    %172 = arith.mulf %170, %171 : vector<10x32xf32>
    %173 = vector.broadcast %154 : vector<1x32xf32> to vector<10x32xf32>
    %174 = arith.addf %172, %173 : vector<10x32xf32>
    %175 = arith.truncf %174 : vector<10x32xf32> to vector<10x32xbf16>
    %c0_68 = arith.constant 0 : index
    %c0_69 = arith.constant 0 : index
    %c0_70 = arith.constant 0 : index
    %176 = vector.load %arg15[%c0_68, %c0_69, %c0_70] : memref<2x32x128xbf16, #tpu.memory_space<vmem>>, vector<1x32x128xbf16>
    %177 = vector.shape_cast %176 : vector<1x32x128xbf16> to vector<32x128xbf16>
    %cst_71 = arith.constant dense<0.000000e+00> : vector<10x128xf32>
    %178 = tpu.matmul %175, %177, %cst_71 {dimension_numbers = #tpu.dot_dimension_numbers<[1], [0], [0], [1], [0, 0, 1, 1], [], []>} : vector<10x32xbf16>, vector<32x128xbf16>, vector<10x128xf32> -> vector<10x128xf32>
    %c0_72 = arith.constant 0 : index
    %c0_73 = arith.constant 0 : index
    %c0_74 = arith.constant 0 : index
    %179 = vector.load %arg16[%c0_72, %c0_73, %c0_74] : memref<2x1x128xf32, #tpu.memory_space<vmem>>, vector<1x1x128xf32>
    %180 = vector.shape_cast %179 : vector<1x1x128xf32> to vector<1x128xf32>
    %181 = vector.broadcast %180 : vector<1x128xf32> to vector<10x128xf32>
    %182 = arith.addf %178, %181 : vector<10x128xf32>
    %cst_75 = arith.constant 1.702000e+00 : f32
    %183 = vector.broadcast %cst_75 : f32 to vector<10x128xf32>
    %184 = arith.mulf %183, %182 : vector<10x128xf32>
    %185 = arith.negf %184 : vector<10x128xf32>
    %186 = math.exp %185 : vector<10x128xf32>
    %cst_76 = arith.constant 1.000000e+00 : f32
    %187 = vector.broadcast %cst_76 : f32 to vector<10x128xf32>
    %188 = arith.addf %187, %186 : vector<10x128xf32>
    %189 = arith.divf %187, %188 : vector<10x128xf32>
    %190 = arith.mulf %182, %189 : vector<10x128xf32>
    %191 = arith.truncf %190 : vector<10x128xf32> to vector<10x128xbf16>
    %c0_77 = arith.constant 0 : index
    %c0_78 = arith.constant 0 : index
    %c0_79 = arith.constant 0 : index
    %192 = vector.load %arg17[%c0_77, %c0_78, %c0_79] : memref<2x128x32xbf16, #tpu.memory_space<vmem>>, vector<1x128x32xbf16>
    %193 = vector.shape_cast %192 : vector<1x128x32xbf16> to vector<128x32xbf16>
    %cst_80 = arith.constant dense<0.000000e+00> : vector<10x32xf32>
    %194 = tpu.matmul %191, %193, %cst_80 {dimension_numbers = #tpu.dot_dimension_numbers<[1], [0], [0], [1], [0, 0, 1, 1], [], []>} : vector<10x128xbf16>, vector<128x32xbf16>, vector<10x32xf32> -> vector<10x32xf32>
    %195 = arith.addf %150, %194 : vector<10x32xf32>
    %c0_81 = arith.constant 0 : index
    %c0_82 = arith.constant 0 : index
    %c0_83 = arith.constant 0 : index
    %196 = vector.load %arg18[%c0_81, %c0_82, %c0_83] : memref<2x1x32xf32, #tpu.memory_space<vmem>>, vector<1x1x32xf32>
    %197 = vector.shape_cast %196 : vector<1x1x32xf32> to vector<1x32xf32>
    %198 = vector.broadcast %197 : vector<1x32xf32> to vector<10x32xf32>
    %199 = arith.addf %195, %198 : vector<10x32xf32>
    %200 = vector.shape_cast %199 : vector<10x32xf32> to vector<2x5x32xf32>
    %201 = vector.shape_cast %200 : vector<2x5x32xf32> to vector<10x32xf32>
    %c1 = arith.constant 1 : index
    %c0_84 = arith.constant 0 : index
    %c0_85 = arith.constant 0 : index
    %202 = vector.load %arg11[%c1, %c0_84, %c0_85] : memref<2x1x32xf32, #tpu.memory_space<vmem>>, vector<1x1x32xf32>
    %203 = vector.shape_cast %202 : vector<1x1x32xf32> to vector<1x32xf32>
    %c1_86 = arith.constant 1 : index
    %c0_87 = arith.constant 0 : index
    %c0_88 = arith.constant 0 : index
    %204 = vector.load %arg12[%c1_86, %c0_87, %c0_88] : memref<2x1x32xf32, #tpu.memory_space<vmem>>, vector<1x1x32xf32>
    %205 = vector.shape_cast %204 : vector<1x1x32xf32> to vector<1x32xf32>
    %cst_89 = arith.constant dense<0.000000e+00> : vector<10xf32>
    %206 = vector.multi_reduction <add>, %201, %cst_89 [1] : vector<10x32xf32> to vector<10xf32>
    %207 = vector.shape_cast %206 : vector<10xf32> to vector<10x1xf32>
    %cst_90 = arith.constant 3.200000e+01 : f32
    %208 = vector.broadcast %cst_90 : f32 to vector<10x1xf32>
    %209 = arith.divf %207, %208 : vector<10x1xf32>
    %210 = vector.broadcast %209 : vector<10x1xf32> to vector<10x32xf32>
    %211 = arith.subf %201, %210 : vector<10x32xf32>
    %212 = arith.mulf %211, %211 : vector<10x32xf32>
    %cst_91 = arith.constant dense<0.000000e+00> : vector<10xf32>
    %213 = vector.multi_reduction <add>, %212, %cst_91 [1] : vector<10x32xf32> to vector<10xf32>
    %214 = vector.shape_cast %213 : vector<10xf32> to vector<10x1xf32>
    %cst_92 = arith.constant 3.200000e+01 : f32
    %215 = vector.broadcast %cst_92 : f32 to vector<10x1xf32>
    %216 = arith.divf %214, %215 : vector<10x1xf32>
    %cst_93 = arith.constant 9.99999974E-6 : f32
    %217 = vector.broadcast %cst_93 : f32 to vector<10x1xf32>
    %218 = arith.addf %216, %217 : vector<10x1xf32>
    %219 = math.rsqrt %218 : vector<10x1xf32>
    %220 = vector.broadcast %219 : vector<10x1xf32> to vector<10x32xf32>
    %221 = arith.mulf %211, %220 : vector<10x32xf32>
    %222 = vector.broadcast %203 : vector<1x32xf32> to vector<10x32xf32>
    %223 = arith.mulf %221, %222 : vector<10x32xf32>
    %224 = vector.broadcast %205 : vector<1x32xf32> to vector<10x32xf32>
    %225 = arith.addf %223, %224 : vector<10x32xf32>
    %226 = arith.truncf %225 : vector<10x32xf32> to vector<10x32xbf16>
    %c1_94 = arith.constant 1 : index
    %c0_95 = arith.constant 0 : index
    %c0_96 = arith.constant 0 : index
    %227 = vector.load %arg7[%c1_94, %c0_95, %c0_96] : memref<2x32x96xbf16, #tpu.memory_space<vmem>>, vector<1x32x96xbf16>
    %228 = vector.shape_cast %227 : vector<1x32x96xbf16> to vector<32x96xbf16>
    %cst_97 = arith.constant dense<0.000000e+00> : vector<10x96xf32>
    %229 = tpu.matmul %226, %228, %cst_97 {dimension_numbers = #tpu.dot_dimension_numbers<[1], [0], [0], [1], [0, 0, 1, 1], [], []>} : vector<10x32xbf16>, vector<32x96xbf16>, vector<10x96xf32> -> vector<10x96xf32>
    %c1_98 = arith.constant 1 : index
    %c0_99 = arith.constant 0 : index
    %c0_100 = arith.constant 0 : index
    %230 = vector.load %arg8[%c1_98, %c0_99, %c0_100] : memref<2x1x96xf32, #tpu.memory_space<vmem>>, vector<1x1x96xf32>
    %231 = vector.shape_cast %230 : vector<1x1x96xf32> to vector<1x96xf32>
    %232 = vector.broadcast %231 : vector<1x96xf32> to vector<10x96xf32>
    %233 = arith.addf %229, %232 : vector<10x96xf32>
    %234 = vector.shape_cast %233 : vector<10x96xf32> to vector<2x5x96xf32>
    %235 = vector.extract_strided_slice %234 {offsets = [0, 0, 0], sizes = [2, 5, 32], strides = [1, 1, 1]} : vector<2x5x96xf32> to vector<2x5x32xf32>
    %cst_101 = arith.constant 0.353553385 : f32
    %236 = vector.broadcast %cst_101 : f32 to vector<2x5x32xf32>
    %237 = arith.mulf %235, %236 : vector<2x5x32xf32>
    %238 = arith.truncf %237 : vector<2x5x32xf32> to vector<2x5x32xbf16>
    %239 = vector.extract_strided_slice %234 {offsets = [0, 0, 32], sizes = [2, 5, 32], strides = [1, 1, 1]} : vector<2x5x96xf32> to vector<2x5x32xf32>
    %240 = arith.truncf %239 : vector<2x5x32xf32> to vector<2x5x32xbf16>
    %241 = vector.extract_strided_slice %234 {offsets = [0, 0, 64], sizes = [2, 5, 32], strides = [1, 1, 1]} : vector<2x5x96xf32> to vector<2x5x32xf32>
    %242 = arith.truncf %241 : vector<2x5x32xf32> to vector<2x5x32xbf16>
    %243 = vector.extract_strided_slice %238 {offsets = [0, 0, 0], sizes = [2, 5, 8], strides = [1, 1, 1]} : vector<2x5x32xbf16> to vector<2x5x8xbf16>
    %244 = vector.extract_strided_slice %240 {offsets = [0, 0, 0], sizes = [2, 5, 8], strides = [1, 1, 1]} : vector<2x5x32xbf16> to vector<2x5x8xbf16>
    "tpu.trace_start"() <{level = 10 : i32, message = "bqd,bkd->bqk"}> : () -> ()
    %cst_102 = arith.constant dense<0.000000e+00> : vector<2x5x5xf32>
    %245 = tpu.matmul %243, %244, %cst_102 {dimension_numbers = #tpu.dot_dimension_numbers<[2], [2], [1], [1], [0, 0, 0, 1, 1, 1], [0], [0]>} : vector<2x5x8xbf16>, vector<2x5x8xbf16>, vector<2x5x5xf32> -> vector<2x5x5xf32>
    "tpu.trace_stop"() : () -> ()
    %cst_103 = arith.constant dense<0xFF800000> : vector<2x5xf32>
    %246 = vector.multi_reduction <maximumf>, %245, %cst_103 [2] : vector<2x5x5xf32> to vector<2x5xf32>
    %247 = vector.shape_cast %246 : vector<2x5xf32> to vector<2x5x1xf32>
    %248 = vector.broadcast %247 : vector<2x5x1xf32> to vector<2x5x5xf32>
    %249 = arith.subf %245, %248 : vector<2x5x5xf32>
    %250 = math.exp %249 : vector<2x5x5xf32>
    %cst_104 = arith.constant dense<0.000000e+00> : vector<2x5xf32>
    %251 = vector.multi_reduction <add>, %250, %cst_104 [2] : vector<2x5x5xf32> to vector<2x5xf32>
    %252 = vector.shape_cast %251 : vector<2x5xf32> to vector<2x5x1xf32>
    %253 = tpu.reciprocal %252 {approx = true} : vector<2x5x1xf32> -> vector<2x5x1xf32>
    %254 = vector.broadcast %253 : vector<2x5x1xf32> to vector<2x5x5xf32>
    %255 = arith.mulf %250, %254 : vector<2x5x5xf32>
    %256 = arith.truncf %255 : vector<2x5x5xf32> to vector<2x5x5xbf16>
    %257 = vector.extract_strided_slice %242 {offsets = [0, 0, 0], sizes = [2, 5, 8], strides = [1, 1, 1]} : vector<2x5x32xbf16> to vector<2x5x8xbf16>
    "tpu.trace_start"() <{level = 10 : i32, message = "bqk,bkd->bqd"}> : () -> ()
    %cst_105 = arith.constant dense<0.000000e+00> : vector<2x5x8xf32>
    %258 = tpu.matmul %256, %257, %cst_105 {dimension_numbers = #tpu.dot_dimension_numbers<[2], [1], [1], [2], [0, 0, 0, 1, 1, 2], [0], [0]>} : vector<2x5x5xbf16>, vector<2x5x8xbf16>, vector<2x5x8xf32> -> vector<2x5x8xf32>
    "tpu.trace_stop"() : () -> ()
    %259 = vector.extract_strided_slice %238 {offsets = [0, 0, 8], sizes = [2, 5, 8], strides = [1, 1, 1]} : vector<2x5x32xbf16> to vector<2x5x8xbf16>
    %260 = vector.extract_strided_slice %240 {offsets = [0, 0, 8], sizes = [2, 5, 8], strides = [1, 1, 1]} : vector<2x5x32xbf16> to vector<2x5x8xbf16>
    "tpu.trace_start"() <{level = 10 : i32, message = "bqd,bkd->bqk"}> : () -> ()
    %cst_106 = arith.constant dense<0.000000e+00> : vector<2x5x5xf32>
    %261 = tpu.matmul %259, %260, %cst_106 {dimension_numbers = #tpu.dot_dimension_numbers<[2], [2], [1], [1], [0, 0, 0, 1, 1, 1], [0], [0]>} : vector<2x5x8xbf16>, vector<2x5x8xbf16>, vector<2x5x5xf32> -> vector<2x5x5xf32>
    "tpu.trace_stop"() : () -> ()
    %cst_107 = arith.constant dense<0xFF800000> : vector<2x5xf32>
    %262 = vector.multi_reduction <maximumf>, %261, %cst_107 [2] : vector<2x5x5xf32> to vector<2x5xf32>
    %263 = vector.shape_cast %262 : vector<2x5xf32> to vector<2x5x1xf32>
    %264 = vector.broadcast %263 : vector<2x5x1xf32> to vector<2x5x5xf32>
    %265 = arith.subf %261, %264 : vector<2x5x5xf32>
    %266 = math.exp %265 : vector<2x5x5xf32>
    %cst_108 = arith.constant dense<0.000000e+00> : vector<2x5xf32>
    %267 = vector.multi_reduction <add>, %266, %cst_108 [2] : vector<2x5x5xf32> to vector<2x5xf32>
    %268 = vector.shape_cast %267 : vector<2x5xf32> to vector<2x5x1xf32>
    %269 = tpu.reciprocal %268 {approx = true} : vector<2x5x1xf32> -> vector<2x5x1xf32>
    %270 = vector.broadcast %269 : vector<2x5x1xf32> to vector<2x5x5xf32>
    %271 = arith.mulf %266, %270 : vector<2x5x5xf32>
    %272 = arith.truncf %271 : vector<2x5x5xf32> to vector<2x5x5xbf16>
    %273 = vector.extract_strided_slice %242 {offsets = [0, 0, 8], sizes = [2, 5, 8], strides = [1, 1, 1]} : vector<2x5x32xbf16> to vector<2x5x8xbf16>
    "tpu.trace_start"() <{level = 10 : i32, message = "bqk,bkd->bqd"}> : () -> ()
    %cst_109 = arith.constant dense<0.000000e+00> : vector<2x5x8xf32>
    %274 = tpu.matmul %272, %273, %cst_109 {dimension_numbers = #tpu.dot_dimension_numbers<[2], [1], [1], [2], [0, 0, 0, 1, 1, 2], [0], [0]>} : vector<2x5x5xbf16>, vector<2x5x8xbf16>, vector<2x5x8xf32> -> vector<2x5x8xf32>
    "tpu.trace_stop"() : () -> ()
    %275 = vector.extract_strided_slice %238 {offsets = [0, 0, 16], sizes = [2, 5, 8], strides = [1, 1, 1]} : vector<2x5x32xbf16> to vector<2x5x8xbf16>
    %276 = vector.extract_strided_slice %240 {offsets = [0, 0, 16], sizes = [2, 5, 8], strides = [1, 1, 1]} : vector<2x5x32xbf16> to vector<2x5x8xbf16>
    "tpu.trace_start"() <{level = 10 : i32, message = "bqd,bkd->bqk"}> : () -> ()
    %cst_110 = arith.constant dense<0.000000e+00> : vector<2x5x5xf32>
    %277 = tpu.matmul %275, %276, %cst_110 {dimension_numbers = #tpu.dot_dimension_numbers<[2], [2], [1], [1], [0, 0, 0, 1, 1, 1], [0], [0]>} : vector<2x5x8xbf16>, vector<2x5x8xbf16>, vector<2x5x5xf32> -> vector<2x5x5xf32>
    "tpu.trace_stop"() : () -> ()
    %cst_111 = arith.constant dense<0xFF800000> : vector<2x5xf32>
    %278 = vector.multi_reduction <maximumf>, %277, %cst_111 [2] : vector<2x5x5xf32> to vector<2x5xf32>
    %279 = vector.shape_cast %278 : vector<2x5xf32> to vector<2x5x1xf32>
    %280 = vector.broadcast %279 : vector<2x5x1xf32> to vector<2x5x5xf32>
    %281 = arith.subf %277, %280 : vector<2x5x5xf32>
    %282 = math.exp %281 : vector<2x5x5xf32>
    %cst_112 = arith.constant dense<0.000000e+00> : vector<2x5xf32>
    %283 = vector.multi_reduction <add>, %282, %cst_112 [2] : vector<2x5x5xf32> to vector<2x5xf32>
    %284 = vector.shape_cast %283 : vector<2x5xf32> to vector<2x5x1xf32>
    %285 = tpu.reciprocal %284 {approx = true} : vector<2x5x1xf32> -> vector<2x5x1xf32>
    %286 = vector.broadcast %285 : vector<2x5x1xf32> to vector<2x5x5xf32>
    %287 = arith.mulf %282, %286 : vector<2x5x5xf32>
    %288 = arith.truncf %287 : vector<2x5x5xf32> to vector<2x5x5xbf16>
    %289 = vector.extract_strided_slice %242 {offsets = [0, 0, 16], sizes = [2, 5, 8], strides = [1, 1, 1]} : vector<2x5x32xbf16> to vector<2x5x8xbf16>
    "tpu.trace_start"() <{level = 10 : i32, message = "bqk,bkd->bqd"}> : () -> ()
    %cst_113 = arith.constant dense<0.000000e+00> : vector<2x5x8xf32>
    %290 = tpu.matmul %288, %289, %cst_113 {dimension_numbers = #tpu.dot_dimension_numbers<[2], [1], [1], [2], [0, 0, 0, 1, 1, 2], [0], [0]>} : vector<2x5x5xbf16>, vector<2x5x8xbf16>, vector<2x5x8xf32> -> vector<2x5x8xf32>
    "tpu.trace_stop"() : () -> ()
    %291 = vector.extract_strided_slice %238 {offsets = [0, 0, 24], sizes = [2, 5, 8], strides = [1, 1, 1]} : vector<2x5x32xbf16> to vector<2x5x8xbf16>
    %292 = vector.extract_strided_slice %240 {offsets = [0, 0, 24], sizes = [2, 5, 8], strides = [1, 1, 1]} : vector<2x5x32xbf16> to vector<2x5x8xbf16>
    "tpu.trace_start"() <{level = 10 : i32, message = "bqd,bkd->bqk"}> : () -> ()
    %cst_114 = arith.constant dense<0.000000e+00> : vector<2x5x5xf32>
    %293 = tpu.matmul %291, %292, %cst_114 {dimension_numbers = #tpu.dot_dimension_numbers<[2], [2], [1], [1], [0, 0, 0, 1, 1, 1], [0], [0]>} : vector<2x5x8xbf16>, vector<2x5x8xbf16>, vector<2x5x5xf32> -> vector<2x5x5xf32>
    "tpu.trace_stop"() : () -> ()
    %cst_115 = arith.constant dense<0xFF800000> : vector<2x5xf32>
    %294 = vector.multi_reduction <maximumf>, %293, %cst_115 [2] : vector<2x5x5xf32> to vector<2x5xf32>
    %295 = vector.shape_cast %294 : vector<2x5xf32> to vector<2x5x1xf32>
    %296 = vector.broadcast %295 : vector<2x5x1xf32> to vector<2x5x5xf32>
    %297 = arith.subf %293, %296 : vector<2x5x5xf32>
    %298 = math.exp %297 : vector<2x5x5xf32>
    %cst_116 = arith.constant dense<0.000000e+00> : vector<2x5xf32>
    %299 = vector.multi_reduction <add>, %298, %cst_116 [2] : vector<2x5x5xf32> to vector<2x5xf32>
    %300 = vector.shape_cast %299 : vector<2x5xf32> to vector<2x5x1xf32>
    %301 = tpu.reciprocal %300 {approx = true} : vector<2x5x1xf32> -> vector<2x5x1xf32>
    %302 = vector.broadcast %301 : vector<2x5x1xf32> to vector<2x5x5xf32>
    %303 = arith.mulf %298, %302 : vector<2x5x5xf32>
    %304 = arith.truncf %303 : vector<2x5x5xf32> to vector<2x5x5xbf16>
    %305 = vector.extract_strided_slice %242 {offsets = [0, 0, 24], sizes = [2, 5, 8], strides = [1, 1, 1]} : vector<2x5x32xbf16> to vector<2x5x8xbf16>
    "tpu.trace_start"() <{level = 10 : i32, message = "bqk,bkd->bqd"}> : () -> ()
    %cst_117 = arith.constant dense<0.000000e+00> : vector<2x5x8xf32>
    %306 = tpu.matmul %304, %305, %cst_117 {dimension_numbers = #tpu.dot_dimension_numbers<[2], [1], [1], [2], [0, 0, 0, 1, 1, 2], [0], [0]>} : vector<2x5x5xbf16>, vector<2x5x8xbf16>, vector<2x5x8xf32> -> vector<2x5x8xf32>
    "tpu.trace_stop"() : () -> ()
    %307 = tpu.concatenate %258, %274, %290, %306 in 2 : vector<2x5x8xf32>, vector<2x5x8xf32>, vector<2x5x8xf32>, vector<2x5x8xf32> -> vector<2x5x32xf32>
    %308 = vector.shape_cast %307 : vector<2x5x32xf32> to vector<10x32xf32>
    %309 = arith.truncf %308 : vector<10x32xf32> to vector<10x32xbf16>
    %c1_118 = arith.constant 1 : index
    %c0_119 = arith.constant 0 : index
    %c0_120 = arith.constant 0 : index
    %310 = vector.load %arg9[%c1_118, %c0_119, %c0_120] : memref<2x32x32xbf16, #tpu.memory_space<vmem>>, vector<1x32x32xbf16>
    %311 = vector.shape_cast %310 : vector<1x32x32xbf16> to vector<32x32xbf16>
    %cst_121 = arith.constant dense<0.000000e+00> : vector<10x32xf32>
    %312 = tpu.matmul %309, %311, %cst_121 {dimension_numbers = #tpu.dot_dimension_numbers<[1], [0], [0], [1], [0, 0, 1, 1], [], []>} : vector<10x32xbf16>, vector<32x32xbf16>, vector<10x32xf32> -> vector<10x32xf32>
    %313 = arith.addf %201, %312 : vector<10x32xf32>
    %c1_122 = arith.constant 1 : index
    %c0_123 = arith.constant 0 : index
    %c0_124 = arith.constant 0 : index
    %314 = vector.load %arg10[%c1_122, %c0_123, %c0_124] : memref<2x1x32xf32, #tpu.memory_space<vmem>>, vector<1x1x32xf32>
    %315 = vector.shape_cast %314 : vector<1x1x32xf32> to vector<1x32xf32>
    %316 = vector.broadcast %315 : vector<1x32xf32> to vector<10x32xf32>
    %317 = arith.addf %313, %316 : vector<10x32xf32>
    %c1_125 = arith.constant 1 : index
    %c0_126 = arith.constant 0 : index
    %c0_127 = arith.constant 0 : index
    %318 = vector.load %arg13[%c1_125, %c0_126, %c0_127] : memref<2x1x32xf32, #tpu.memory_space<vmem>>, vector<1x1x32xf32>
    %319 = vector.shape_cast %318 : vector<1x1x32xf32> to vector<1x32xf32>
    %c1_128 = arith.constant 1 : index
    %c0_129 = arith.constant 0 : index
    %c0_130 = arith.constant 0 : index
    %320 = vector.load %arg14[%c1_128, %c0_129, %c0_130] : memref<2x1x32xf32, #tpu.memory_space<vmem>>, vector<1x1x32xf32>
    %321 = vector.shape_cast %320 : vector<1x1x32xf32> to vector<1x32xf32>
    %cst_131 = arith.constant dense<0.000000e+00> : vector<10xf32>
    %322 = vector.multi_reduction <add>, %317, %cst_131 [1] : vector<10x32xf32> to vector<10xf32>
    %323 = vector.shape_cast %322 : vector<10xf32> to vector<10x1xf32>
    %cst_132 = arith.constant 3.200000e+01 : f32
    %324 = vector.broadcast %cst_132 : f32 to vector<10x1xf32>
    %325 = arith.divf %323, %324 : vector<10x1xf32>
    %326 = vector.broadcast %325 : vector<10x1xf32> to vector<10x32xf32>
    %327 = arith.subf %317, %326 : vector<10x32xf32>
    %328 = arith.mulf %327, %327 : vector<10x32xf32>
    %cst_133 = arith.constant dense<0.000000e+00> : vector<10xf32>
    %329 = vector.multi_reduction <add>, %328, %cst_133 [1] : vector<10x32xf32> to vector<10xf32>
    %330 = vector.shape_cast %329 : vector<10xf32> to vector<10x1xf32>
    %cst_134 = arith.constant 3.200000e+01 : f32
    %331 = vector.broadcast %cst_134 : f32 to vector<10x1xf32>
    %332 = arith.divf %330, %331 : vector<10x1xf32>
    %cst_135 = arith.constant 9.99999974E-6 : f32
    %333 = vector.broadcast %cst_135 : f32 to vector<10x1xf32>
    %334 = arith.addf %332, %333 : vector<10x1xf32>
    %335 = math.rsqrt %334 : vector<10x1xf32>
    %336 = vector.broadcast %335 : vector<10x1xf32> to vector<10x32xf32>
    %337 = arith.mulf %327, %336 : vector<10x32xf32>
    %338 = vector.broadcast %319 : vector<1x32xf32> to vector<10x32xf32>
    %339 = arith.mulf %337, %338 : vector<10x32xf32>
    %340 = vector.broadcast %321 : vector<1x32xf32> to vector<10x32xf32>
    %341 = arith.addf %339, %340 : vector<10x32xf32>
    %342 = arith.truncf %341 : vector<10x32xf32> to vector<10x32xbf16>
    %c1_136 = arith.constant 1 : index
    %c0_137 = arith.constant 0 : index
    %c0_138 = arith.constant 0 : index
    %343 = vector.load %arg15[%c1_136, %c0_137, %c0_138] : memref<2x32x128xbf16, #tpu.memory_space<vmem>>, vector<1x32x128xbf16>
    %344 = vector.shape_cast %343 : vector<1x32x128xbf16> to vector<32x128xbf16>
    %cst_139 = arith.constant dense<0.000000e+00> : vector<10x128xf32>
    %345 = tpu.matmul %342, %344, %cst_139 {dimension_numbers = #tpu.dot_dimension_numbers<[1], [0], [0], [1], [0, 0, 1, 1], [], []>} : vector<10x32xbf16>, vector<32x128xbf16>, vector<10x128xf32> -> vector<10x128xf32>
    %c1_140 = arith.constant 1 : index
    %c0_141 = arith.constant 0 : index
    %c0_142 = arith.constant 0 : index
    %346 = vector.load %arg16[%c1_140, %c0_141, %c0_142] : memref<2x1x128xf32, #tpu.memory_space<vmem>>, vector<1x1x128xf32>
    %347 = vector.shape_cast %346 : vector<1x1x128xf32> to vector<1x128xf32>
    %348 = vector.broadcast %347 : vector<1x128xf32> to vector<10x128xf32>
    %349 = arith.addf %345, %348 : vector<10x128xf32>
    %cst_143 = arith.constant 1.702000e+00 : f32
    %350 = vector.broadcast %cst_143 : f32 to vector<10x128xf32>
    %351 = arith.mulf %350, %349 : vector<10x128xf32>
    %352 = arith.negf %351 : vector<10x128xf32>
    %353 = math.exp %352 : vector<10x128xf32>
    %cst_144 = arith.constant 1.000000e+00 : f32
    %354 = vector.broadcast %cst_144 : f32 to vector<10x128xf32>
    %355 = arith.addf %354, %353 : vector<10x128xf32>
    %356 = arith.divf %354, %355 : vector<10x128xf32>
    %357 = arith.mulf %349, %356 : vector<10x128xf32>
    %358 = arith.truncf %357 : vector<10x128xf32> to vector<10x128xbf16>
    %c1_145 = arith.constant 1 : index
    %c0_146 = arith.constant 0 : index
    %c0_147 = arith.constant 0 : index
    %359 = vector.load %arg17[%c1_145, %c0_146, %c0_147] : memref<2x128x32xbf16, #tpu.memory_space<vmem>>, vector<1x128x32xbf16>
    %360 = vector.shape_cast %359 : vector<1x128x32xbf16> to vector<128x32xbf16>
    %cst_148 = arith.constant dense<0.000000e+00> : vector<10x32xf32>
    %361 = tpu.matmul %358, %360, %cst_148 {dimension_numbers = #tpu.dot_dimension_numbers<[1], [0], [0], [1], [0, 0, 1, 1], [], []>} : vector<10x128xbf16>, vector<128x32xbf16>, vector<10x32xf32> -> vector<10x32xf32>
    %362 = arith.addf %317, %361 : vector<10x32xf32>
    %c1_149 = arith.constant 1 : index
    %c0_150 = arith.constant 0 : index
    %c0_151 = arith.constant 0 : index
    %363 = vector.load %arg18[%c1_149, %c0_150, %c0_151] : memref<2x1x32xf32, #tpu.memory_space<vmem>>, vector<1x1x32xf32>
    %364 = vector.shape_cast %363 : vector<1x1x32xf32> to vector<1x32xf32>
    %365 = vector.broadcast %364 : vector<1x32xf32> to vector<10x32xf32>
    %366 = arith.addf %362, %365 : vector<10x32xf32>
    %367 = vector.shape_cast %366 : vector<10x32xf32> to vector<2x5x32xf32>
    %368 = vector.extract_strided_slice %367 {offsets = [0, 0, 0], sizes = [2, 1, 32], strides = [1, 1, 1]} : vector<2x5x32xf32> to vector<2x1x32xf32>
    %369 = vector.shape_cast %368 : vector<2x1x32xf32> to vector<2x32xf32>
    %c0_152 = arith.constant 0 : index
    %c0_153 = arith.constant 0 : index
    %370 = vector.load %arg19[%c0_152, %c0_153] : memref<1x32xf32, #tpu.memory_space<vmem>>, vector<1x32xf32>
    %c0_154 = arith.constant 0 : index
    %c0_155 = arith.constant 0 : index
    %371 = vector.load %arg20[%c0_154, %c0_155] : memref<1x32xf32, #tpu.memory_space<vmem>>, vector<1x32xf32>
    %cst_156 = arith.constant dense<0.000000e+00> : vector<2xf32>
    %372 = vector.multi_reduction <add>, %369, %cst_156 [1] : vector<2x32xf32> to vector<2xf32>
    %373 = vector.shape_cast %372 : vector<2xf32> to vector<2x1xf32>
    %cst_157 = arith.constant 3.200000e+01 : f32
    %374 = vector.broadcast %cst_157 : f32 to vector<2x1xf32>
    %375 = arith.divf %373, %374 : vector<2x1xf32>
    %376 = vector.broadcast %375 : vector<2x1xf32> to vector<2x32xf32>
    %377 = arith.subf %369, %376 : vector<2x32xf32>
    %378 = arith.mulf %377, %377 : vector<2x32xf32>
    %cst_158 = arith.constant dense<0.000000e+00> : vector<2xf32>
    %379 = vector.multi_reduction <add>, %378, %cst_158 [1] : vector<2x32xf32> to vector<2xf32>
    %380 = vector.shape_cast %379 : vector<2xf32> to vector<2x1xf32>
    %cst_159 = arith.constant 3.200000e+01 : f32
    %381 = vector.broadcast %cst_159 : f32 to vector<2x1xf32>
    %382 = arith.divf %380, %381 : vector<2x1xf32>
    %cst_160 = arith.constant 9.99999974E-6 : f32
    %383 = vector.broadcast %cst_160 : f32 to vector<2x1xf32>
    %384 = arith.addf %382, %383 : vector<2x1xf32>
    %385 = math.rsqrt %384 : vector<2x1xf32>
    %386 = vector.broadcast %385 : vector<2x1xf32> to vector<2x32xf32>
    %387 = arith.mulf %377, %386 : vector<2x32xf32>
    %388 = vector.broadcast %370 : vector<1x32xf32> to vector<2x32xf32>
    %389 = arith.mulf %387, %388 : vector<2x32xf32>
    %390 = vector.broadcast %371 : vector<1x32xf32> to vector<2x32xf32>
    %391 = arith.addf %389, %390 : vector<2x32xf32>
    %392 = arith.truncf %391 : vector<2x32xf32> to vector<2x32xbf16>
    %c0_161 = arith.constant 0 : index
    %c0_162 = arith.constant 0 : index
    %393 = vector.load %arg21[%c0_161, %c0_162] : memref<32x32xbf16, #tpu.memory_space<vmem>>, vector<32x32xbf16>
    %cst_163 = arith.constant dense<0.000000e+00> : vector<2x32xf32>
    %394 = tpu.matmul %392, %393, %cst_163 {dimension_numbers = #tpu.dot_dimension_numbers<[1], [0], [0], [1], [0, 0, 1, 1], [], []>} : vector<2x32xbf16>, vector<32x32xbf16>, vector<2x32xf32> -> vector<2x32xf32>
    %c0_164 = arith.constant 0 : index
    %c0_165 = arith.constant 0 : index
    %c0_166 = arith.constant 0 : index
    %395 = vector.load %arg1[%c0_164, %c0_165, %c0_166] : memref<3x8x32xf32, #tpu.memory_space<vmem>>, vector<3x8x32xf32>
    %c0_167 = arith.constant 0 : index
    %c0_168 = arith.constant 0 : index
    %396 = vector.load %arg22[%c0_167, %c0_168] : memref<8x32xf32, #tpu.memory_space<vmem>>, vector<8x32xf32>
    %397 = vector.shape_cast %396 : vector<8x32xf32> to vector<1x8x32xf32>
    %398 = vector.broadcast %397 : vector<1x8x32xf32> to vector<3x8x32xf32>
    %399 = arith.addf %395, %398 : vector<3x8x32xf32>
    %400 = tpu.iota {dimensions = array<i32: 0>} : vector<8x8xi32>
    %401 = tpu.iota {dimensions = array<i32: 1>} : vector<8x8xi32>
    %402 = arith.cmpi sgt, %401, %400 : vector<8x8xi32>
    %cst_169 = arith.constant -1.000000e+30 : f32
    %cst_170 = arith.constant 0.000000e+00 : f32
    %403 = vector.broadcast %cst_169 : f32 to vector<8x8xf32>
    %404 = vector.broadcast %cst_170 : f32 to vector<8x8xf32>
    %405 = arith.select %402, %403, %404 : vector<8x8xi1>, vector<8x8xf32>
    %406 = vector.shape_cast %399 : vector<3x8x32xf32> to vector<24x32xf32>
    %c0_171 = arith.constant 0 : index
    %c0_172 = arith.constant 0 : index
    %c0_173 = arith.constant 0 : index
    %407 = vector.load %arg27[%c0_171, %c0_172, %c0_173] : memref<2x1x32xf32, #tpu.memory_space<vmem>>, vector<1x1x32xf32>
    %408 = vector.shape_cast %407 : vector<1x1x32xf32> to vector<1x32xf32>
    %c0_174 = arith.constant 0 : index
    %c0_175 = arith.constant 0 : index
    %c0_176 = arith.constant 0 : index
    %409 = vector.load %arg28[%c0_174, %c0_175, %c0_176] : memref<2x1x32xf32, #tpu.memory_space<vmem>>, vector<1x1x32xf32>
    %410 = vector.shape_cast %409 : vector<1x1x32xf32> to vector<1x32xf32>
    %cst_177 = arith.constant dense<0.000000e+00> : vector<24xf32>
    %411 = vector.multi_reduction <add>, %406, %cst_177 [1] : vector<24x32xf32> to vector<24xf32>
    %412 = vector.shape_cast %411 : vector<24xf32> to vector<24x1xf32>
    %cst_178 = arith.constant 3.200000e+01 : f32
    %413 = vector.broadcast %cst_178 : f32 to vector<24x1xf32>
    %414 = arith.divf %412, %413 : vector<24x1xf32>
    %415 = vector.broadcast %414 : vector<24x1xf32> to vector<24x32xf32>
    %416 = arith.subf %406, %415 : vector<24x32xf32>
    %417 = arith.mulf %416, %416 : vector<24x32xf32>
    %cst_179 = arith.constant dense<0.000000e+00> : vector<24xf32>
    %418 = vector.multi_reduction <add>, %417, %cst_179 [1] : vector<24x32xf32> to vector<24xf32>
    %419 = vector.shape_cast %418 : vector<24xf32> to vector<24x1xf32>
    %cst_180 = arith.constant 3.200000e+01 : f32
    %420 = vector.broadcast %cst_180 : f32 to vector<24x1xf32>
    %421 = arith.divf %419, %420 : vector<24x1xf32>
    %cst_181 = arith.constant 9.99999974E-6 : f32
    %422 = vector.broadcast %cst_181 : f32 to vector<24x1xf32>
    %423 = arith.addf %421, %422 : vector<24x1xf32>
    %424 = math.rsqrt %423 : vector<24x1xf32>
    %425 = vector.broadcast %424 : vector<24x1xf32> to vector<24x32xf32>
    %426 = arith.mulf %416, %425 : vector<24x32xf32>
    %427 = vector.broadcast %408 : vector<1x32xf32> to vector<24x32xf32>
    %428 = arith.mulf %426, %427 : vector<24x32xf32>
    %429 = vector.broadcast %410 : vector<1x32xf32> to vector<24x32xf32>
    %430 = arith.addf %428, %429 : vector<24x32xf32>
    %431 = arith.truncf %430 : vector<24x32xf32> to vector<24x32xbf16>
    %c0_182 = arith.constant 0 : index
    %c0_183 = arith.constant 0 : index
    %c0_184 = arith.constant 0 : index
    %432 = vector.load %arg23[%c0_182, %c0_183, %c0_184] : memref<2x32x96xbf16, #tpu.memory_space<vmem>>, vector<1x32x96xbf16>
    %433 = vector.shape_cast %432 : vector<1x32x96xbf16> to vector<32x96xbf16>
    %cst_185 = arith.constant dense<0.000000e+00> : vector<24x96xf32>
    %434 = tpu.matmul %431, %433, %cst_185 {dimension_numbers = #tpu.dot_dimension_numbers<[1], [0], [0], [1], [0, 0, 1, 1], [], []>} : vector<24x32xbf16>, vector<32x96xbf16>, vector<24x96xf32> -> vector<24x96xf32>
    %c0_186 = arith.constant 0 : index
    %c0_187 = arith.constant 0 : index
    %c0_188 = arith.constant 0 : index
    %435 = vector.load %arg24[%c0_186, %c0_187, %c0_188] : memref<2x1x96xf32, #tpu.memory_space<vmem>>, vector<1x1x96xf32>
    %436 = vector.shape_cast %435 : vector<1x1x96xf32> to vector<1x96xf32>
    %437 = vector.broadcast %436 : vector<1x96xf32> to vector<24x96xf32>
    %438 = arith.addf %434, %437 : vector<24x96xf32>
    %439 = vector.shape_cast %438 : vector<24x96xf32> to vector<3x8x96xf32>
    %440 = vector.extract_strided_slice %439 {offsets = [0, 0, 0], sizes = [3, 8, 32], strides = [1, 1, 1]} : vector<3x8x96xf32> to vector<3x8x32xf32>
    %cst_189 = arith.constant 0.353553385 : f32
    %441 = vector.broadcast %cst_189 : f32 to vector<3x8x32xf32>
    %442 = arith.mulf %440, %441 : vector<3x8x32xf32>
    %443 = arith.truncf %442 : vector<3x8x32xf32> to vector<3x8x32xbf16>
    %444 = vector.extract_strided_slice %439 {offsets = [0, 0, 32], sizes = [3, 8, 32], strides = [1, 1, 1]} : vector<3x8x96xf32> to vector<3x8x32xf32>
    %445 = arith.truncf %444 : vector<3x8x32xf32> to vector<3x8x32xbf16>
    %446 = vector.extract_strided_slice %439 {offsets = [0, 0, 64], sizes = [3, 8, 32], strides = [1, 1, 1]} : vector<3x8x96xf32> to vector<3x8x32xf32>
    %447 = arith.truncf %446 : vector<3x8x32xf32> to vector<3x8x32xbf16>
    %448 = vector.extract_strided_slice %443 {offsets = [0, 0, 0], sizes = [3, 8, 8], strides = [1, 1, 1]} : vector<3x8x32xbf16> to vector<3x8x8xbf16>
    %449 = vector.extract_strided_slice %445 {offsets = [0, 0, 0], sizes = [3, 8, 8], strides = [1, 1, 1]} : vector<3x8x32xbf16> to vector<3x8x8xbf16>
    "tpu.trace_start"() <{level = 10 : i32, message = "bqd,bkd->bqk"}> : () -> ()
    %cst_190 = arith.constant dense<0.000000e+00> : vector<3x8x8xf32>
    %450 = tpu.matmul %448, %449, %cst_190 {dimension_numbers = #tpu.dot_dimension_numbers<[2], [2], [1], [1], [0, 0, 0, 1, 1, 1], [0], [0]>} : vector<3x8x8xbf16>, vector<3x8x8xbf16>, vector<3x8x8xf32> -> vector<3x8x8xf32>
    "tpu.trace_stop"() : () -> ()
    %451 = vector.shape_cast %405 : vector<8x8xf32> to vector<1x8x8xf32>
    %452 = vector.broadcast %451 : vector<1x8x8xf32> to vector<3x8x8xf32>
    %453 = arith.addf %450, %452 : vector<3x8x8xf32>
    %cst_191 = arith.constant dense<0xFF800000> : vector<3x8xf32>
    %454 = vector.multi_reduction <maximumf>, %453, %cst_191 [2] : vector<3x8x8xf32> to vector<3x8xf32>
    %455 = vector.shape_cast %454 : vector<3x8xf32> to vector<3x8x1xf32>
    %456 = vector.broadcast %455 : vector<3x8x1xf32> to vector<3x8x8xf32>
    %457 = arith.subf %453, %456 : vector<3x8x8xf32>
    %458 = math.exp %457 : vector<3x8x8xf32>
    %cst_192 = arith.constant dense<0.000000e+00> : vector<3x8xf32>
    %459 = vector.multi_reduction <add>, %458, %cst_192 [2] : vector<3x8x8xf32> to vector<3x8xf32>
    %460 = vector.shape_cast %459 : vector<3x8xf32> to vector<3x8x1xf32>
    %461 = tpu.reciprocal %460 {approx = true} : vector<3x8x1xf32> -> vector<3x8x1xf32>
    %462 = vector.broadcast %461 : vector<3x8x1xf32> to vector<3x8x8xf32>
    %463 = arith.mulf %458, %462 : vector<3x8x8xf32>
    %464 = arith.truncf %463 : vector<3x8x8xf32> to vector<3x8x8xbf16>
    %465 = vector.extract_strided_slice %447 {offsets = [0, 0, 0], sizes = [3, 8, 8], strides = [1, 1, 1]} : vector<3x8x32xbf16> to vector<3x8x8xbf16>
    "tpu.trace_start"() <{level = 10 : i32, message = "bqk,bkd->bqd"}> : () -> ()
    %cst_193 = arith.constant dense<0.000000e+00> : vector<3x8x8xf32>
    %466 = tpu.matmul %464, %465, %cst_193 {dimension_numbers = #tpu.dot_dimension_numbers<[2], [1], [1], [2], [0, 0, 0, 1, 1, 2], [0], [0]>} : vector<3x8x8xbf16>, vector<3x8x8xbf16>, vector<3x8x8xf32> -> vector<3x8x8xf32>
    "tpu.trace_stop"() : () -> ()
    %467 = vector.extract_strided_slice %443 {offsets = [0, 0, 8], sizes = [3, 8, 8], strides = [1, 1, 1]} : vector<3x8x32xbf16> to vector<3x8x8xbf16>
    %468 = vector.extract_strided_slice %445 {offsets = [0, 0, 8], sizes = [3, 8, 8], strides = [1, 1, 1]} : vector<3x8x32xbf16> to vector<3x8x8xbf16>
    "tpu.trace_start"() <{level = 10 : i32, message = "bqd,bkd->bqk"}> : () -> ()
    %cst_194 = arith.constant dense<0.000000e+00> : vector<3x8x8xf32>
    %469 = tpu.matmul %467, %468, %cst_194 {dimension_numbers = #tpu.dot_dimension_numbers<[2], [2], [1], [1], [0, 0, 0, 1, 1, 1], [0], [0]>} : vector<3x8x8xbf16>, vector<3x8x8xbf16>, vector<3x8x8xf32> -> vector<3x8x8xf32>
    "tpu.trace_stop"() : () -> ()
    %470 = vector.shape_cast %405 : vector<8x8xf32> to vector<1x8x8xf32>
    %471 = vector.broadcast %470 : vector<1x8x8xf32> to vector<3x8x8xf32>
    %472 = arith.addf %469, %471 : vector<3x8x8xf32>
    %cst_195 = arith.constant dense<0xFF800000> : vector<3x8xf32>
    %473 = vector.multi_reduction <maximumf>, %472, %cst_195 [2] : vector<3x8x8xf32> to vector<3x8xf32>
    %474 = vector.shape_cast %473 : vector<3x8xf32> to vector<3x8x1xf32>
    %475 = vector.broadcast %474 : vector<3x8x1xf32> to vector<3x8x8xf32>
    %476 = arith.subf %472, %475 : vector<3x8x8xf32>
    %477 = math.exp %476 : vector<3x8x8xf32>
    %cst_196 = arith.constant dense<0.000000e+00> : vector<3x8xf32>
    %478 = vector.multi_reduction <add>, %477, %cst_196 [2] : vector<3x8x8xf32> to vector<3x8xf32>
    %479 = vector.shape_cast %478 : vector<3x8xf32> to vector<3x8x1xf32>
    %480 = tpu.reciprocal %479 {approx = true} : vector<3x8x1xf32> -> vector<3x8x1xf32>
    %481 = vector.broadcast %480 : vector<3x8x1xf32> to vector<3x8x8xf32>
    %482 = arith.mulf %477, %481 : vector<3x8x8xf32>
    %483 = arith.truncf %482 : vector<3x8x8xf32> to vector<3x8x8xbf16>
    %484 = vector.extract_strided_slice %447 {offsets = [0, 0, 8], sizes = [3, 8, 8], strides = [1, 1, 1]} : vector<3x8x32xbf16> to vector<3x8x8xbf16>
    "tpu.trace_start"() <{level = 10 : i32, message = "bqk,bkd->bqd"}> : () -> ()
    %cst_197 = arith.constant dense<0.000000e+00> : vector<3x8x8xf32>
    %485 = tpu.matmul %483, %484, %cst_197 {dimension_numbers = #tpu.dot_dimension_numbers<[2], [1], [1], [2], [0, 0, 0, 1, 1, 2], [0], [0]>} : vector<3x8x8xbf16>, vector<3x8x8xbf16>, vector<3x8x8xf32> -> vector<3x8x8xf32>
    "tpu.trace_stop"() : () -> ()
    %486 = vector.extract_strided_slice %443 {offsets = [0, 0, 16], sizes = [3, 8, 8], strides = [1, 1, 1]} : vector<3x8x32xbf16> to vector<3x8x8xbf16>
    %487 = vector.extract_strided_slice %445 {offsets = [0, 0, 16], sizes = [3, 8, 8], strides = [1, 1, 1]} : vector<3x8x32xbf16> to vector<3x8x8xbf16>
    "tpu.trace_start"() <{level = 10 : i32, message = "bqd,bkd->bqk"}> : () -> ()
    %cst_198 = arith.constant dense<0.000000e+00> : vector<3x8x8xf32>
    %488 = tpu.matmul %486, %487, %cst_198 {dimension_numbers = #tpu.dot_dimension_numbers<[2], [2], [1], [1], [0, 0, 0, 1, 1, 1], [0], [0]>} : vector<3x8x8xbf16>, vector<3x8x8xbf16>, vector<3x8x8xf32> -> vector<3x8x8xf32>
    "tpu.trace_stop"() : () -> ()
    %489 = vector.shape_cast %405 : vector<8x8xf32> to vector<1x8x8xf32>
    %490 = vector.broadcast %489 : vector<1x8x8xf32> to vector<3x8x8xf32>
    %491 = arith.addf %488, %490 : vector<3x8x8xf32>
    %cst_199 = arith.constant dense<0xFF800000> : vector<3x8xf32>
    %492 = vector.multi_reduction <maximumf>, %491, %cst_199 [2] : vector<3x8x8xf32> to vector<3x8xf32>
    %493 = vector.shape_cast %492 : vector<3x8xf32> to vector<3x8x1xf32>
    %494 = vector.broadcast %493 : vector<3x8x1xf32> to vector<3x8x8xf32>
    %495 = arith.subf %491, %494 : vector<3x8x8xf32>
    %496 = math.exp %495 : vector<3x8x8xf32>
    %cst_200 = arith.constant dense<0.000000e+00> : vector<3x8xf32>
    %497 = vector.multi_reduction <add>, %496, %cst_200 [2] : vector<3x8x8xf32> to vector<3x8xf32>
    %498 = vector.shape_cast %497 : vector<3x8xf32> to vector<3x8x1xf32>
    %499 = tpu.reciprocal %498 {approx = true} : vector<3x8x1xf32> -> vector<3x8x1xf32>
    %500 = vector.broadcast %499 : vector<3x8x1xf32> to vector<3x8x8xf32>
    %501 = arith.mulf %496, %500 : vector<3x8x8xf32>
    %502 = arith.truncf %501 : vector<3x8x8xf32> to vector<3x8x8xbf16>
    %503 = vector.extract_strided_slice %447 {offsets = [0, 0, 16], sizes = [3, 8, 8], strides = [1, 1, 1]} : vector<3x8x32xbf16> to vector<3x8x8xbf16>
    "tpu.trace_start"() <{level = 10 : i32, message = "bqk,bkd->bqd"}> : () -> ()
    %cst_201 = arith.constant dense<0.000000e+00> : vector<3x8x8xf32>
    %504 = tpu.matmul %502, %503, %cst_201 {dimension_numbers = #tpu.dot_dimension_numbers<[2], [1], [1], [2], [0, 0, 0, 1, 1, 2], [0], [0]>} : vector<3x8x8xbf16>, vector<3x8x8xbf16>, vector<3x8x8xf32> -> vector<3x8x8xf32>
    "tpu.trace_stop"() : () -> ()
    %505 = vector.extract_strided_slice %443 {offsets = [0, 0, 24], sizes = [3, 8, 8], strides = [1, 1, 1]} : vector<3x8x32xbf16> to vector<3x8x8xbf16>
    %506 = vector.extract_strided_slice %445 {offsets = [0, 0, 24], sizes = [3, 8, 8], strides = [1, 1, 1]} : vector<3x8x32xbf16> to vector<3x8x8xbf16>
    "tpu.trace_start"() <{level = 10 : i32, message = "bqd,bkd->bqk"}> : () -> ()
    %cst_202 = arith.constant dense<0.000000e+00> : vector<3x8x8xf32>
    %507 = tpu.matmul %505, %506, %cst_202 {dimension_numbers = #tpu.dot_dimension_numbers<[2], [2], [1], [1], [0, 0, 0, 1, 1, 1], [0], [0]>} : vector<3x8x8xbf16>, vector<3x8x8xbf16>, vector<3x8x8xf32> -> vector<3x8x8xf32>
    "tpu.trace_stop"() : () -> ()
    %508 = vector.shape_cast %405 : vector<8x8xf32> to vector<1x8x8xf32>
    %509 = vector.broadcast %508 : vector<1x8x8xf32> to vector<3x8x8xf32>
    %510 = arith.addf %507, %509 : vector<3x8x8xf32>
    %cst_203 = arith.constant dense<0xFF800000> : vector<3x8xf32>
    %511 = vector.multi_reduction <maximumf>, %510, %cst_203 [2] : vector<3x8x8xf32> to vector<3x8xf32>
    %512 = vector.shape_cast %511 : vector<3x8xf32> to vector<3x8x1xf32>
    %513 = vector.broadcast %512 : vector<3x8x1xf32> to vector<3x8x8xf32>
    %514 = arith.subf %510, %513 : vector<3x8x8xf32>
    %515 = math.exp %514 : vector<3x8x8xf32>
    %cst_204 = arith.constant dense<0.000000e+00> : vector<3x8xf32>
    %516 = vector.multi_reduction <add>, %515, %cst_204 [2] : vector<3x8x8xf32> to vector<3x8xf32>
    %517 = vector.shape_cast %516 : vector<3x8xf32> to vector<3x8x1xf32>
    %518 = tpu.reciprocal %517 {approx = true} : vector<3x8x1xf32> -> vector<3x8x1xf32>
    %519 = vector.broadcast %518 : vector<3x8x1xf32> to vector<3x8x8xf32>
    %520 = arith.mulf %515, %519 : vector<3x8x8xf32>
    %521 = arith.truncf %520 : vector<3x8x8xf32> to vector<3x8x8xbf16>
    %522 = vector.extract_strided_slice %447 {offsets = [0, 0, 24], sizes = [3, 8, 8], strides = [1, 1, 1]} : vector<3x8x32xbf16> to vector<3x8x8xbf16>
    "tpu.trace_start"() <{level = 10 : i32, message = "bqk,bkd->bqd"}> : () -> ()
    %cst_205 = arith.constant dense<0.000000e+00> : vector<3x8x8xf32>
    %523 = tpu.matmul %521, %522, %cst_205 {dimension_numbers = #tpu.dot_dimension_numbers<[2], [1], [1], [2], [0, 0, 0, 1, 1, 2], [0], [0]>} : vector<3x8x8xbf16>, vector<3x8x8xbf16>, vector<3x8x8xf32> -> vector<3x8x8xf32>
    "tpu.trace_stop"() : () -> ()
    %524 = tpu.concatenate %466, %485, %504, %523 in 2 : vector<3x8x8xf32>, vector<3x8x8xf32>, vector<3x8x8xf32>, vector<3x8x8xf32> -> vector<3x8x32xf32>
    %525 = vector.shape_cast %524 : vector<3x8x32xf32> to vector<24x32xf32>
    %526 = arith.truncf %525 : vector<24x32xf32> to vector<24x32xbf16>
    %c0_206 = arith.constant 0 : index
    %c0_207 = arith.constant 0 : index
    %c0_208 = arith.constant 0 : index
    %527 = vector.load %arg25[%c0_206, %c0_207, %c0_208] : memref<2x32x32xbf16, #tpu.memory_space<vmem>>, vector<1x32x32xbf16>
    %528 = vector.shape_cast %527 : vector<1x32x32xbf16> to vector<32x32xbf16>
    %cst_209 = arith.constant dense<0.000000e+00> : vector<24x32xf32>
    %529 = tpu.matmul %526, %528, %cst_209 {dimension_numbers = #tpu.dot_dimension_numbers<[1], [0], [0], [1], [0, 0, 1, 1], [], []>} : vector<24x32xbf16>, vector<32x32xbf16>, vector<24x32xf32> -> vector<24x32xf32>
    %530 = arith.addf %406, %529 : vector<24x32xf32>
    %c0_210 = arith.constant 0 : index
    %c0_211 = arith.constant 0 : index
    %c0_212 = arith.constant 0 : index
    %531 = vector.load %arg26[%c0_210, %c0_211, %c0_212] : memref<2x1x32xf32, #tpu.memory_space<vmem>>, vector<1x1x32xf32>
    %532 = vector.shape_cast %531 : vector<1x1x32xf32> to vector<1x32xf32>
    %533 = vector.broadcast %532 : vector<1x32xf32> to vector<24x32xf32>
    %534 = arith.addf %530, %533 : vector<24x32xf32>
    %c0_213 = arith.constant 0 : index
    %c0_214 = arith.constant 0 : index
    %c0_215 = arith.constant 0 : index
    %535 = vector.load %arg29[%c0_213, %c0_214, %c0_215] : memref<2x1x32xf32, #tpu.memory_space<vmem>>, vector<1x1x32xf32>
    %536 = vector.shape_cast %535 : vector<1x1x32xf32> to vector<1x32xf32>
    %c0_216 = arith.constant 0 : index
    %c0_217 = arith.constant 0 : index
    %c0_218 = arith.constant 0 : index
    %537 = vector.load %arg30[%c0_216, %c0_217, %c0_218] : memref<2x1x32xf32, #tpu.memory_space<vmem>>, vector<1x1x32xf32>
    %538 = vector.shape_cast %537 : vector<1x1x32xf32> to vector<1x32xf32>
    %cst_219 = arith.constant dense<0.000000e+00> : vector<24xf32>
    %539 = vector.multi_reduction <add>, %534, %cst_219 [1] : vector<24x32xf32> to vector<24xf32>
    %540 = vector.shape_cast %539 : vector<24xf32> to vector<24x1xf32>
    %cst_220 = arith.constant 3.200000e+01 : f32
    %541 = vector.broadcast %cst_220 : f32 to vector<24x1xf32>
    %542 = arith.divf %540, %541 : vector<24x1xf32>
    %543 = vector.broadcast %542 : vector<24x1xf32> to vector<24x32xf32>
    %544 = arith.subf %534, %543 : vector<24x32xf32>
    %545 = arith.mulf %544, %544 : vector<24x32xf32>
    %cst_221 = arith.constant dense<0.000000e+00> : vector<24xf32>
    %546 = vector.multi_reduction <add>, %545, %cst_221 [1] : vector<24x32xf32> to vector<24xf32>
    %547 = vector.shape_cast %546 : vector<24xf32> to vector<24x1xf32>
    %cst_222 = arith.constant 3.200000e+01 : f32
    %548 = vector.broadcast %cst_222 : f32 to vector<24x1xf32>
    %549 = arith.divf %547, %548 : vector<24x1xf32>
    %cst_223 = arith.constant 9.99999974E-6 : f32
    %550 = vector.broadcast %cst_223 : f32 to vector<24x1xf32>
    %551 = arith.addf %549, %550 : vector<24x1xf32>
    %552 = math.rsqrt %551 : vector<24x1xf32>
    %553 = vector.broadcast %552 : vector<24x1xf32> to vector<24x32xf32>
    %554 = arith.mulf %544, %553 : vector<24x32xf32>
    %555 = vector.broadcast %536 : vector<1x32xf32> to vector<24x32xf32>
    %556 = arith.mulf %554, %555 : vector<24x32xf32>
    %557 = vector.broadcast %538 : vector<1x32xf32> to vector<24x32xf32>
    %558 = arith.addf %556, %557 : vector<24x32xf32>
    %559 = arith.truncf %558 : vector<24x32xf32> to vector<24x32xbf16>
    %c0_224 = arith.constant 0 : index
    %c0_225 = arith.constant 0 : index
    %c0_226 = arith.constant 0 : index
    %560 = vector.load %arg31[%c0_224, %c0_225, %c0_226] : memref<2x32x128xbf16, #tpu.memory_space<vmem>>, vector<1x32x128xbf16>
    %561 = vector.shape_cast %560 : vector<1x32x128xbf16> to vector<32x128xbf16>
    %cst_227 = arith.constant dense<0.000000e+00> : vector<24x128xf32>
    %562 = tpu.matmul %559, %561, %cst_227 {dimension_numbers = #tpu.dot_dimension_numbers<[1], [0], [0], [1], [0, 0, 1, 1], [], []>} : vector<24x32xbf16>, vector<32x128xbf16>, vector<24x128xf32> -> vector<24x128xf32>
    %c0_228 = arith.constant 0 : index
    %c0_229 = arith.constant 0 : index
    %c0_230 = arith.constant 0 : index
    %563 = vector.load %arg32[%c0_228, %c0_229, %c0_230] : memref<2x1x128xf32, #tpu.memory_space<vmem>>, vector<1x1x128xf32>
    %564 = vector.shape_cast %563 : vector<1x1x128xf32> to vector<1x128xf32>
    %565 = vector.broadcast %564 : vector<1x128xf32> to vector<24x128xf32>
    %566 = arith.addf %562, %565 : vector<24x128xf32>
    %cst_231 = arith.constant 1.702000e+00 : f32
    %567 = vector.broadcast %cst_231 : f32 to vector<24x128xf32>
    %568 = arith.mulf %567, %566 : vector<24x128xf32>
    %569 = arith.negf %568 : vector<24x128xf32>
    %570 = math.exp %569 : vector<24x128xf32>
    %cst_232 = arith.constant 1.000000e+00 : f32
    %571 = vector.broadcast %cst_232 : f32 to vector<24x128xf32>
    %572 = arith.addf %571, %570 : vector<24x128xf32>
    %573 = arith.divf %571, %572 : vector<24x128xf32>
    %574 = arith.mulf %566, %573 : vector<24x128xf32>
    %575 = arith.truncf %574 : vector<24x128xf32> to vector<24x128xbf16>
    %c0_233 = arith.constant 0 : index
    %c0_234 = arith.constant 0 : index
    %c0_235 = arith.constant 0 : index
    %576 = vector.load %arg33[%c0_233, %c0_234, %c0_235] : memref<2x128x32xbf16, #tpu.memory_space<vmem>>, vector<1x128x32xbf16>
    %577 = vector.shape_cast %576 : vector<1x128x32xbf16> to vector<128x32xbf16>
    %cst_236 = arith.constant dense<0.000000e+00> : vector<24x32xf32>
    %578 = tpu.matmul %575, %577, %cst_236 {dimension_numbers = #tpu.dot_dimension_numbers<[1], [0], [0], [1], [0, 0, 1, 1], [], []>} : vector<24x128xbf16>, vector<128x32xbf16>, vector<24x32xf32> -> vector<24x32xf32>
    %579 = arith.addf %534, %578 : vector<24x32xf32>
    %c0_237 = arith.constant 0 : index
    %c0_238 = arith.constant 0 : index
    %c0_239 = arith.constant 0 : index
    %580 = vector.load %arg34[%c0_237, %c0_238, %c0_239] : memref<2x1x32xf32, #tpu.memory_space<vmem>>, vector<1x1x32xf32>
    %581 = vector.shape_cast %580 : vector<1x1x32xf32> to vector<1x32xf32>
    %582 = vector.broadcast %581 : vector<1x32xf32> to vector<24x32xf32>
    %583 = arith.addf %579, %582 : vector<24x32xf32>
    %584 = vector.shape_cast %583 : vector<24x32xf32> to vector<3x8x32xf32>
    %585 = vector.shape_cast %584 : vector<3x8x32xf32> to vector<24x32xf32>
    %c1_240 = arith.constant 1 : index
    %c0_241 = arith.constant 0 : index
    %c0_242 = arith.constant 0 : index
    %586 = vector.load %arg27[%c1_240, %c0_241, %c0_242] : memref<2x1x32xf32, #tpu.memory_space<vmem>>, vector<1x1x32xf32>
    %587 = vector.shape_cast %586 : vector<1x1x32xf32> to vector<1x32xf32>
    %c1_243 = arith.constant 1 : index
    %c0_244 = arith.constant 0 : index
    %c0_245 = arith.constant 0 : index
    %588 = vector.load %arg28[%c1_243, %c0_244, %c0_245] : memref<2x1x32xf32, #tpu.memory_space<vmem>>, vector<1x1x32xf32>
    %589 = vector.shape_cast %588 : vector<1x1x32xf32> to vector<1x32xf32>
    %cst_246 = arith.constant dense<0.000000e+00> : vector<24xf32>
    %590 = vector.multi_reduction <add>, %585, %cst_246 [1] : vector<24x32xf32> to vector<24xf32>
    %591 = vector.shape_cast %590 : vector<24xf32> to vector<24x1xf32>
    %cst_247 = arith.constant 3.200000e+01 : f32
    %592 = vector.broadcast %cst_247 : f32 to vector<24x1xf32>
    %593 = arith.divf %591, %592 : vector<24x1xf32>
    %594 = vector.broadcast %593 : vector<24x1xf32> to vector<24x32xf32>
    %595 = arith.subf %585, %594 : vector<24x32xf32>
    %596 = arith.mulf %595, %595 : vector<24x32xf32>
    %cst_248 = arith.constant dense<0.000000e+00> : vector<24xf32>
    %597 = vector.multi_reduction <add>, %596, %cst_248 [1] : vector<24x32xf32> to vector<24xf32>
    %598 = vector.shape_cast %597 : vector<24xf32> to vector<24x1xf32>
    %cst_249 = arith.constant 3.200000e+01 : f32
    %599 = vector.broadcast %cst_249 : f32 to vector<24x1xf32>
    %600 = arith.divf %598, %599 : vector<24x1xf32>
    %cst_250 = arith.constant 9.99999974E-6 : f32
    %601 = vector.broadcast %cst_250 : f32 to vector<24x1xf32>
    %602 = arith.addf %600, %601 : vector<24x1xf32>
    %603 = math.rsqrt %602 : vector<24x1xf32>
    %604 = vector.broadcast %603 : vector<24x1xf32> to vector<24x32xf32>
    %605 = arith.mulf %595, %604 : vector<24x32xf32>
    %606 = vector.broadcast %587 : vector<1x32xf32> to vector<24x32xf32>
    %607 = arith.mulf %605, %606 : vector<24x32xf32>
    %608 = vector.broadcast %589 : vector<1x32xf32> to vector<24x32xf32>
    %609 = arith.addf %607, %608 : vector<24x32xf32>
    %610 = arith.truncf %609 : vector<24x32xf32> to vector<24x32xbf16>
    %c1_251 = arith.constant 1 : index
    %c0_252 = arith.constant 0 : index
    %c0_253 = arith.constant 0 : index
    %611 = vector.load %arg23[%c1_251, %c0_252, %c0_253] : memref<2x32x96xbf16, #tpu.memory_space<vmem>>, vector<1x32x96xbf16>
    %612 = vector.shape_cast %611 : vector<1x32x96xbf16> to vector<32x96xbf16>
    %cst_254 = arith.constant dense<0.000000e+00> : vector<24x96xf32>
    %613 = tpu.matmul %610, %612, %cst_254 {dimension_numbers = #tpu.dot_dimension_numbers<[1], [0], [0], [1], [0, 0, 1, 1], [], []>} : vector<24x32xbf16>, vector<32x96xbf16>, vector<24x96xf32> -> vector<24x96xf32>
    %c1_255 = arith.constant 1 : index
    %c0_256 = arith.constant 0 : index
    %c0_257 = arith.constant 0 : index
    %614 = vector.load %arg24[%c1_255, %c0_256, %c0_257] : memref<2x1x96xf32, #tpu.memory_space<vmem>>, vector<1x1x96xf32>
    %615 = vector.shape_cast %614 : vector<1x1x96xf32> to vector<1x96xf32>
    %616 = vector.broadcast %615 : vector<1x96xf32> to vector<24x96xf32>
    %617 = arith.addf %613, %616 : vector<24x96xf32>
    %618 = vector.shape_cast %617 : vector<24x96xf32> to vector<3x8x96xf32>
    %619 = vector.extract_strided_slice %618 {offsets = [0, 0, 0], sizes = [3, 8, 32], strides = [1, 1, 1]} : vector<3x8x96xf32> to vector<3x8x32xf32>
    %cst_258 = arith.constant 0.353553385 : f32
    %620 = vector.broadcast %cst_258 : f32 to vector<3x8x32xf32>
    %621 = arith.mulf %619, %620 : vector<3x8x32xf32>
    %622 = arith.truncf %621 : vector<3x8x32xf32> to vector<3x8x32xbf16>
    %623 = vector.extract_strided_slice %618 {offsets = [0, 0, 32], sizes = [3, 8, 32], strides = [1, 1, 1]} : vector<3x8x96xf32> to vector<3x8x32xf32>
    %624 = arith.truncf %623 : vector<3x8x32xf32> to vector<3x8x32xbf16>
    %625 = vector.extract_strided_slice %618 {offsets = [0, 0, 64], sizes = [3, 8, 32], strides = [1, 1, 1]} : vector<3x8x96xf32> to vector<3x8x32xf32>
    %626 = arith.truncf %625 : vector<3x8x32xf32> to vector<3x8x32xbf16>
    %627 = vector.extract_strided_slice %622 {offsets = [0, 0, 0], sizes = [3, 8, 8], strides = [1, 1, 1]} : vector<3x8x32xbf16> to vector<3x8x8xbf16>
    %628 = vector.extract_strided_slice %624 {offsets = [0, 0, 0], sizes = [3, 8, 8], strides = [1, 1, 1]} : vector<3x8x32xbf16> to vector<3x8x8xbf16>
    "tpu.trace_start"() <{level = 10 : i32, message = "bqd,bkd->bqk"}> : () -> ()
    %cst_259 = arith.constant dense<0.000000e+00> : vector<3x8x8xf32>
    %629 = tpu.matmul %627, %628, %cst_259 {dimension_numbers = #tpu.dot_dimension_numbers<[2], [2], [1], [1], [0, 0, 0, 1, 1, 1], [0], [0]>} : vector<3x8x8xbf16>, vector<3x8x8xbf16>, vector<3x8x8xf32> -> vector<3x8x8xf32>
    "tpu.trace_stop"() : () -> ()
    %630 = vector.shape_cast %405 : vector<8x8xf32> to vector<1x8x8xf32>
    %631 = vector.broadcast %630 : vector<1x8x8xf32> to vector<3x8x8xf32>
    %632 = arith.addf %629, %631 : vector<3x8x8xf32>
    %cst_260 = arith.constant dense<0xFF800000> : vector<3x8xf32>
    %633 = vector.multi_reduction <maximumf>, %632, %cst_260 [2] : vector<3x8x8xf32> to vector<3x8xf32>
    %634 = vector.shape_cast %633 : vector<3x8xf32> to vector<3x8x1xf32>
    %635 = vector.broadcast %634 : vector<3x8x1xf32> to vector<3x8x8xf32>
    %636 = arith.subf %632, %635 : vector<3x8x8xf32>
    %637 = math.exp %636 : vector<3x8x8xf32>
    %cst_261 = arith.constant dense<0.000000e+00> : vector<3x8xf32>
    %638 = vector.multi_reduction <add>, %637, %cst_261 [2] : vector<3x8x8xf32> to vector<3x8xf32>
    %639 = vector.shape_cast %638 : vector<3x8xf32> to vector<3x8x1xf32>
    %640 = tpu.reciprocal %639 {approx = true} : vector<3x8x1xf32> -> vector<3x8x1xf32>
    %641 = vector.broadcast %640 : vector<3x8x1xf32> to vector<3x8x8xf32>
    %642 = arith.mulf %637, %641 : vector<3x8x8xf32>
    %643 = arith.truncf %642 : vector<3x8x8xf32> to vector<3x8x8xbf16>
    %644 = vector.extract_strided_slice %626 {offsets = [0, 0, 0], sizes = [3, 8, 8], strides = [1, 1, 1]} : vector<3x8x32xbf16> to vector<3x8x8xbf16>
    "tpu.trace_start"() <{level = 10 : i32, message = "bqk,bkd->bqd"}> : () -> ()
    %cst_262 = arith.constant dense<0.000000e+00> : vector<3x8x8xf32>
    %645 = tpu.matmul %643, %644, %cst_262 {dimension_numbers = #tpu.dot_dimension_numbers<[2], [1], [1], [2], [0, 0, 0, 1, 1, 2], [0], [0]>} : vector<3x8x8xbf16>, vector<3x8x8xbf16>, vector<3x8x8xf32> -> vector<3x8x8xf32>
    "tpu.trace_stop"() : () -> ()
    %646 = vector.extract_strided_slice %622 {offsets = [0, 0, 8], sizes = [3, 8, 8], strides = [1, 1, 1]} : vector<3x8x32xbf16> to vector<3x8x8xbf16>
    %647 = vector.extract_strided_slice %624 {offsets = [0, 0, 8], sizes = [3, 8, 8], strides = [1, 1, 1]} : vector<3x8x32xbf16> to vector<3x8x8xbf16>
    "tpu.trace_start"() <{level = 10 : i32, message = "bqd,bkd->bqk"}> : () -> ()
    %cst_263 = arith.constant dense<0.000000e+00> : vector<3x8x8xf32>
    %648 = tpu.matmul %646, %647, %cst_263 {dimension_numbers = #tpu.dot_dimension_numbers<[2], [2], [1], [1], [0, 0, 0, 1, 1, 1], [0], [0]>} : vector<3x8x8xbf16>, vector<3x8x8xbf16>, vector<3x8x8xf32> -> vector<3x8x8xf32>
    "tpu.trace_stop"() : () -> ()
    %649 = vector.shape_cast %405 : vector<8x8xf32> to vector<1x8x8xf32>
    %650 = vector.broadcast %649 : vector<1x8x8xf32> to vector<3x8x8xf32>
    %651 = arith.addf %648, %650 : vector<3x8x8xf32>
    %cst_264 = arith.constant dense<0xFF800000> : vector<3x8xf32>
    %652 = vector.multi_reduction <maximumf>, %651, %cst_264 [2] : vector<3x8x8xf32> to vector<3x8xf32>
    %653 = vector.shape_cast %652 : vector<3x8xf32> to vector<3x8x1xf32>
    %654 = vector.broadcast %653 : vector<3x8x1xf32> to vector<3x8x8xf32>
    %655 = arith.subf %651, %654 : vector<3x8x8xf32>
    %656 = math.exp %655 : vector<3x8x8xf32>
    %cst_265 = arith.constant dense<0.000000e+00> : vector<3x8xf32>
    %657 = vector.multi_reduction <add>, %656, %cst_265 [2] : vector<3x8x8xf32> to vector<3x8xf32>
    %658 = vector.shape_cast %657 : vector<3x8xf32> to vector<3x8x1xf32>
    %659 = tpu.reciprocal %658 {approx = true} : vector<3x8x1xf32> -> vector<3x8x1xf32>
    %660 = vector.broadcast %659 : vector<3x8x1xf32> to vector<3x8x8xf32>
    %661 = arith.mulf %656, %660 : vector<3x8x8xf32>
    %662 = arith.truncf %661 : vector<3x8x8xf32> to vector<3x8x8xbf16>
    %663 = vector.extract_strided_slice %626 {offsets = [0, 0, 8], sizes = [3, 8, 8], strides = [1, 1, 1]} : vector<3x8x32xbf16> to vector<3x8x8xbf16>
    "tpu.trace_start"() <{level = 10 : i32, message = "bqk,bkd->bqd"}> : () -> ()
    %cst_266 = arith.constant dense<0.000000e+00> : vector<3x8x8xf32>
    %664 = tpu.matmul %662, %663, %cst_266 {dimension_numbers = #tpu.dot_dimension_numbers<[2], [1], [1], [2], [0, 0, 0, 1, 1, 2], [0], [0]>} : vector<3x8x8xbf16>, vector<3x8x8xbf16>, vector<3x8x8xf32> -> vector<3x8x8xf32>
    "tpu.trace_stop"() : () -> ()
    %665 = vector.extract_strided_slice %622 {offsets = [0, 0, 16], sizes = [3, 8, 8], strides = [1, 1, 1]} : vector<3x8x32xbf16> to vector<3x8x8xbf16>
    %666 = vector.extract_strided_slice %624 {offsets = [0, 0, 16], sizes = [3, 8, 8], strides = [1, 1, 1]} : vector<3x8x32xbf16> to vector<3x8x8xbf16>
    "tpu.trace_start"() <{level = 10 : i32, message = "bqd,bkd->bqk"}> : () -> ()
    %cst_267 = arith.constant dense<0.000000e+00> : vector<3x8x8xf32>
    %667 = tpu.matmul %665, %666, %cst_267 {dimension_numbers = #tpu.dot_dimension_numbers<[2], [2], [1], [1], [0, 0, 0, 1, 1, 1], [0], [0]>} : vector<3x8x8xbf16>, vector<3x8x8xbf16>, vector<3x8x8xf32> -> vector<3x8x8xf32>
    "tpu.trace_stop"() : () -> ()
    %668 = vector.shape_cast %405 : vector<8x8xf32> to vector<1x8x8xf32>
    %669 = vector.broadcast %668 : vector<1x8x8xf32> to vector<3x8x8xf32>
    %670 = arith.addf %667, %669 : vector<3x8x8xf32>
    %cst_268 = arith.constant dense<0xFF800000> : vector<3x8xf32>
    %671 = vector.multi_reduction <maximumf>, %670, %cst_268 [2] : vector<3x8x8xf32> to vector<3x8xf32>
    %672 = vector.shape_cast %671 : vector<3x8xf32> to vector<3x8x1xf32>
    %673 = vector.broadcast %672 : vector<3x8x1xf32> to vector<3x8x8xf32>
    %674 = arith.subf %670, %673 : vector<3x8x8xf32>
    %675 = math.exp %674 : vector<3x8x8xf32>
    %cst_269 = arith.constant dense<0.000000e+00> : vector<3x8xf32>
    %676 = vector.multi_reduction <add>, %675, %cst_269 [2] : vector<3x8x8xf32> to vector<3x8xf32>
    %677 = vector.shape_cast %676 : vector<3x8xf32> to vector<3x8x1xf32>
    %678 = tpu.reciprocal %677 {approx = true} : vector<3x8x1xf32> -> vector<3x8x1xf32>
    %679 = vector.broadcast %678 : vector<3x8x1xf32> to vector<3x8x8xf32>
    %680 = arith.mulf %675, %679 : vector<3x8x8xf32>
    %681 = arith.truncf %680 : vector<3x8x8xf32> to vector<3x8x8xbf16>
    %682 = vector.extract_strided_slice %626 {offsets = [0, 0, 16], sizes = [3, 8, 8], strides = [1, 1, 1]} : vector<3x8x32xbf16> to vector<3x8x8xbf16>
    "tpu.trace_start"() <{level = 10 : i32, message = "bqk,bkd->bqd"}> : () -> ()
    %cst_270 = arith.constant dense<0.000000e+00> : vector<3x8x8xf32>
    %683 = tpu.matmul %681, %682, %cst_270 {dimension_numbers = #tpu.dot_dimension_numbers<[2], [1], [1], [2], [0, 0, 0, 1, 1, 2], [0], [0]>} : vector<3x8x8xbf16>, vector<3x8x8xbf16>, vector<3x8x8xf32> -> vector<3x8x8xf32>
    "tpu.trace_stop"() : () -> ()
    %684 = vector.extract_strided_slice %622 {offsets = [0, 0, 24], sizes = [3, 8, 8], strides = [1, 1, 1]} : vector<3x8x32xbf16> to vector<3x8x8xbf16>
    %685 = vector.extract_strided_slice %624 {offsets = [0, 0, 24], sizes = [3, 8, 8], strides = [1, 1, 1]} : vector<3x8x32xbf16> to vector<3x8x8xbf16>
    "tpu.trace_start"() <{level = 10 : i32, message = "bqd,bkd->bqk"}> : () -> ()
    %cst_271 = arith.constant dense<0.000000e+00> : vector<3x8x8xf32>
    %686 = tpu.matmul %684, %685, %cst_271 {dimension_numbers = #tpu.dot_dimension_numbers<[2], [2], [1], [1], [0, 0, 0, 1, 1, 1], [0], [0]>} : vector<3x8x8xbf16>, vector<3x8x8xbf16>, vector<3x8x8xf32> -> vector<3x8x8xf32>
    "tpu.trace_stop"() : () -> ()
    %687 = vector.shape_cast %405 : vector<8x8xf32> to vector<1x8x8xf32>
    %688 = vector.broadcast %687 : vector<1x8x8xf32> to vector<3x8x8xf32>
    %689 = arith.addf %686, %688 : vector<3x8x8xf32>
    %cst_272 = arith.constant dense<0xFF800000> : vector<3x8xf32>
    %690 = vector.multi_reduction <maximumf>, %689, %cst_272 [2] : vector<3x8x8xf32> to vector<3x8xf32>
    %691 = vector.shape_cast %690 : vector<3x8xf32> to vector<3x8x1xf32>
    %692 = vector.broadcast %691 : vector<3x8x1xf32> to vector<3x8x8xf32>
    %693 = arith.subf %689, %692 : vector<3x8x8xf32>
    %694 = math.exp %693 : vector<3x8x8xf32>
    %cst_273 = arith.constant dense<0.000000e+00> : vector<3x8xf32>
    %695 = vector.multi_reduction <add>, %694, %cst_273 [2] : vector<3x8x8xf32> to vector<3x8xf32>
    %696 = vector.shape_cast %695 : vector<3x8xf32> to vector<3x8x1xf32>
    %697 = tpu.reciprocal %696 {approx = true} : vector<3x8x1xf32> -> vector<3x8x1xf32>
    %698 = vector.broadcast %697 : vector<3x8x1xf32> to vector<3x8x8xf32>
    %699 = arith.mulf %694, %698 : vector<3x8x8xf32>
    %700 = arith.truncf %699 : vector<3x8x8xf32> to vector<3x8x8xbf16>
    %701 = vector.extract_strided_slice %626 {offsets = [0, 0, 24], sizes = [3, 8, 8], strides = [1, 1, 1]} : vector<3x8x32xbf16> to vector<3x8x8xbf16>
    "tpu.trace_start"() <{level = 10 : i32, message = "bqk,bkd->bqd"}> : () -> ()
    %cst_274 = arith.constant dense<0.000000e+00> : vector<3x8x8xf32>
    %702 = tpu.matmul %700, %701, %cst_274 {dimension_numbers = #tpu.dot_dimension_numbers<[2], [1], [1], [2], [0, 0, 0, 1, 1, 2], [0], [0]>} : vector<3x8x8xbf16>, vector<3x8x8xbf16>, vector<3x8x8xf32> -> vector<3x8x8xf32>
    "tpu.trace_stop"() : () -> ()
    %703 = tpu.concatenate %645, %664, %683, %702 in 2 : vector<3x8x8xf32>, vector<3x8x8xf32>, vector<3x8x8xf32>, vector<3x8x8xf32> -> vector<3x8x32xf32>
    %704 = vector.shape_cast %703 : vector<3x8x32xf32> to vector<24x32xf32>
    %705 = arith.truncf %704 : vector<24x32xf32> to vector<24x32xbf16>
    %c1_275 = arith.constant 1 : index
    %c0_276 = arith.constant 0 : index
    %c0_277 = arith.constant 0 : index
    %706 = vector.load %arg25[%c1_275, %c0_276, %c0_277] : memref<2x32x32xbf16, #tpu.memory_space<vmem>>, vector<1x32x32xbf16>
    %707 = vector.shape_cast %706 : vector<1x32x32xbf16> to vector<32x32xbf16>
    %cst_278 = arith.constant dense<0.000000e+00> : vector<24x32xf32>
    %708 = tpu.matmul %705, %707, %cst_278 {dimension_numbers = #tpu.dot_dimension_numbers<[1], [0], [0], [1], [0, 0, 1, 1], [], []>} : vector<24x32xbf16>, vector<32x32xbf16>, vector<24x32xf32> -> vector<24x32xf32>
    %709 = arith.addf %585, %708 : vector<24x32xf32>
    %c1_279 = arith.constant 1 : index
    %c0_280 = arith.constant 0 : index
    %c0_281 = arith.constant 0 : index
    %710 = vector.load %arg26[%c1_279, %c0_280, %c0_281] : memref<2x1x32xf32, #tpu.memory_space<vmem>>, vector<1x1x32xf32>
    %711 = vector.shape_cast %710 : vector<1x1x32xf32> to vector<1x32xf32>
    %712 = vector.broadcast %711 : vector<1x32xf32> to vector<24x32xf32>
    %713 = arith.addf %709, %712 : vector<24x32xf32>
    %c1_282 = arith.constant 1 : index
    %c0_283 = arith.constant 0 : index
    %c0_284 = arith.constant 0 : index
    %714 = vector.load %arg29[%c1_282, %c0_283, %c0_284] : memref<2x1x32xf32, #tpu.memory_space<vmem>>, vector<1x1x32xf32>
    %715 = vector.shape_cast %714 : vector<1x1x32xf32> to vector<1x32xf32>
    %c1_285 = arith.constant 1 : index
    %c0_286 = arith.constant 0 : index
    %c0_287 = arith.constant 0 : index
    %716 = vector.load %arg30[%c1_285, %c0_286, %c0_287] : memref<2x1x32xf32, #tpu.memory_space<vmem>>, vector<1x1x32xf32>
    %717 = vector.shape_cast %716 : vector<1x1x32xf32> to vector<1x32xf32>
    %cst_288 = arith.constant dense<0.000000e+00> : vector<24xf32>
    %718 = vector.multi_reduction <add>, %713, %cst_288 [1] : vector<24x32xf32> to vector<24xf32>
    %719 = vector.shape_cast %718 : vector<24xf32> to vector<24x1xf32>
    %cst_289 = arith.constant 3.200000e+01 : f32
    %720 = vector.broadcast %cst_289 : f32 to vector<24x1xf32>
    %721 = arith.divf %719, %720 : vector<24x1xf32>
    %722 = vector.broadcast %721 : vector<24x1xf32> to vector<24x32xf32>
    %723 = arith.subf %713, %722 : vector<24x32xf32>
    %724 = arith.mulf %723, %723 : vector<24x32xf32>
    %cst_290 = arith.constant dense<0.000000e+00> : vector<24xf32>
    %725 = vector.multi_reduction <add>, %724, %cst_290 [1] : vector<24x32xf32> to vector<24xf32>
    %726 = vector.shape_cast %725 : vector<24xf32> to vector<24x1xf32>
    %cst_291 = arith.constant 3.200000e+01 : f32
    %727 = vector.broadcast %cst_291 : f32 to vector<24x1xf32>
    %728 = arith.divf %726, %727 : vector<24x1xf32>
    %cst_292 = arith.constant 9.99999974E-6 : f32
    %729 = vector.broadcast %cst_292 : f32 to vector<24x1xf32>
    %730 = arith.addf %728, %729 : vector<24x1xf32>
    %731 = math.rsqrt %730 : vector<24x1xf32>
    %732 = vector.broadcast %731 : vector<24x1xf32> to vector<24x32xf32>
    %733 = arith.mulf %723, %732 : vector<24x32xf32>
    %734 = vector.broadcast %715 : vector<1x32xf32> to vector<24x32xf32>
    %735 = arith.mulf %733, %734 : vector<24x32xf32>
    %736 = vector.broadcast %717 : vector<1x32xf32> to vector<24x32xf32>
    %737 = arith.addf %735, %736 : vector<24x32xf32>
    %738 = arith.truncf %737 : vector<24x32xf32> to vector<24x32xbf16>
    %c1_293 = arith.constant 1 : index
    %c0_294 = arith.constant 0 : index
    %c0_295 = arith.constant 0 : index
    %739 = vector.load %arg31[%c1_293, %c0_294, %c0_295] : memref<2x32x128xbf16, #tpu.memory_space<vmem>>, vector<1x32x128xbf16>
    %740 = vector.shape_cast %739 : vector<1x32x128xbf16> to vector<32x128xbf16>
    %cst_296 = arith.constant dense<0.000000e+00> : vector<24x128xf32>
    %741 = tpu.matmul %738, %740, %cst_296 {dimension_numbers = #tpu.dot_dimension_numbers<[1], [0], [0], [1], [0, 0, 1, 1], [], []>} : vector<24x32xbf16>, vector<32x128xbf16>, vector<24x128xf32> -> vector<24x128xf32>
    %c1_297 = arith.constant 1 : index
    %c0_298 = arith.constant 0 : index
    %c0_299 = arith.constant 0 : index
    %742 = vector.load %arg32[%c1_297, %c0_298, %c0_299] : memref<2x1x128xf32, #tpu.memory_space<vmem>>, vector<1x1x128xf32>
    %743 = vector.shape_cast %742 : vector<1x1x128xf32> to vector<1x128xf32>
    %744 = vector.broadcast %743 : vector<1x128xf32> to vector<24x128xf32>
    %745 = arith.addf %741, %744 : vector<24x128xf32>
    %cst_300 = arith.constant 1.702000e+00 : f32
    %746 = vector.broadcast %cst_300 : f32 to vector<24x128xf32>
    %747 = arith.mulf %746, %745 : vector<24x128xf32>
    %748 = arith.negf %747 : vector<24x128xf32>
    %749 = math.exp %748 : vector<24x128xf32>
    %cst_301 = arith.constant 1.000000e+00 : f32
    %750 = vector.broadcast %cst_301 : f32 to vector<24x128xf32>
    %751 = arith.addf %750, %749 : vector<24x128xf32>
    %752 = arith.divf %750, %751 : vector<24x128xf32>
    %753 = arith.mulf %745, %752 : vector<24x128xf32>
    %754 = arith.truncf %753 : vector<24x128xf32> to vector<24x128xbf16>
    %c1_302 = arith.constant 1 : index
    %c0_303 = arith.constant 0 : index
    %c0_304 = arith.constant 0 : index
    %755 = vector.load %arg33[%c1_302, %c0_303, %c0_304] : memref<2x128x32xbf16, #tpu.memory_space<vmem>>, vector<1x128x32xbf16>
    %756 = vector.shape_cast %755 : vector<1x128x32xbf16> to vector<128x32xbf16>
    %cst_305 = arith.constant dense<0.000000e+00> : vector<24x32xf32>
    %757 = tpu.matmul %754, %756, %cst_305 {dimension_numbers = #tpu.dot_dimension_numbers<[1], [0], [0], [1], [0, 0, 1, 1], [], []>} : vector<24x128xbf16>, vector<128x32xbf16>, vector<24x32xf32> -> vector<24x32xf32>
    %758 = arith.addf %713, %757 : vector<24x32xf32>
    %c1_306 = arith.constant 1 : index
    %c0_307 = arith.constant 0 : index
    %c0_308 = arith.constant 0 : index
    %759 = vector.load %arg34[%c1_306, %c0_307, %c0_308] : memref<2x1x32xf32, #tpu.memory_space<vmem>>, vector<1x1x32xf32>
    %760 = vector.shape_cast %759 : vector<1x1x32xf32> to vector<1x32xf32>
    %761 = vector.broadcast %760 : vector<1x32xf32> to vector<24x32xf32>
    %762 = arith.addf %758, %761 : vector<24x32xf32>
    %763 = vector.shape_cast %762 : vector<24x32xf32> to vector<3x8x32xf32>
    %764 = vector.shape_cast %763 : vector<3x8x32xf32> to vector<24x32xf32>
    %c0_309 = arith.constant 0 : index
    %c0_310 = arith.constant 0 : index
    %765 = vector.load %arg35[%c0_309, %c0_310] : memref<1x32xf32, #tpu.memory_space<vmem>>, vector<1x32xf32>
    %c0_311 = arith.constant 0 : index
    %c0_312 = arith.constant 0 : index
    %766 = vector.load %arg36[%c0_311, %c0_312] : memref<1x32xf32, #tpu.memory_space<vmem>>, vector<1x32xf32>
    %cst_313 = arith.constant dense<0.000000e+00> : vector<24xf32>
    %767 = vector.multi_reduction <add>, %764, %cst_313 [1] : vector<24x32xf32> to vector<24xf32>
    %768 = vector.shape_cast %767 : vector<24xf32> to vector<24x1xf32>
    %cst_314 = arith.constant 3.200000e+01 : f32
    %769 = vector.broadcast %cst_314 : f32 to vector<24x1xf32>
    %770 = arith.divf %768, %769 : vector<24x1xf32>
    %771 = vector.broadcast %770 : vector<24x1xf32> to vector<24x32xf32>
    %772 = arith.subf %764, %771 : vector<24x32xf32>
    %773 = arith.mulf %772, %772 : vector<24x32xf32>
    %cst_315 = arith.constant dense<0.000000e+00> : vector<24xf32>
    %774 = vector.multi_reduction <add>, %773, %cst_315 [1] : vector<24x32xf32> to vector<24xf32>
    %775 = vector.shape_cast %774 : vector<24xf32> to vector<24x1xf32>
    %cst_316 = arith.constant 3.200000e+01 : f32
    %776 = vector.broadcast %cst_316 : f32 to vector<24x1xf32>
    %777 = arith.divf %775, %776 : vector<24x1xf32>
    %cst_317 = arith.constant 9.99999974E-6 : f32
    %778 = vector.broadcast %cst_317 : f32 to vector<24x1xf32>
    %779 = arith.addf %777, %778 : vector<24x1xf32>
    %780 = math.rsqrt %779 : vector<24x1xf32>
    %781 = vector.broadcast %780 : vector<24x1xf32> to vector<24x32xf32>
    %782 = arith.mulf %772, %781 : vector<24x32xf32>
    %783 = vector.broadcast %765 : vector<1x32xf32> to vector<24x32xf32>
    %784 = arith.mulf %782, %783 : vector<24x32xf32>
    %785 = vector.broadcast %766 : vector<1x32xf32> to vector<24x32xf32>
    %786 = arith.addf %784, %785 : vector<24x32xf32>
    %787 = vector.shape_cast %786 : vector<24x32xf32> to vector<3x8x32xf32>
    %c0_318 = arith.constant 0 : index
    %c0_319 = arith.constant 0 : index
    %c0_320 = arith.constant 0 : index
    %788 = vector.load %arg2[%c0_318, %c0_319, %c0_320] : memref<3x8x1xf32, #tpu.memory_space<vmem>>, vector<3x8x1xf32>
    %789 = vector.broadcast %788 : vector<3x8x1xf32> to vector<3x8x32xf32>
    %790 = arith.mulf %787, %789 : vector<3x8x32xf32>
    %cst_321 = arith.constant dense<0.000000e+00> : vector<3x32xf32>
    %791 = vector.multi_reduction <add>, %790, %cst_321 [1] : vector<3x8x32xf32> to vector<3x32xf32>
    %792 = arith.truncf %791 : vector<3x32xf32> to vector<3x32xbf16>
    %c0_322 = arith.constant 0 : index
    %c0_323 = arith.constant 0 : index
    %793 = vector.load %arg37[%c0_322, %c0_323] : memref<32x32xbf16, #tpu.memory_space<vmem>>, vector<32x32xbf16>
    %cst_324 = arith.constant dense<0.000000e+00> : vector<3x32xf32>
    %794 = tpu.matmul %792, %793, %cst_324 {dimension_numbers = #tpu.dot_dimension_numbers<[1], [0], [0], [1], [0, 0, 1, 1], [], []>} : vector<3x32xbf16>, vector<32x32xbf16>, vector<3x32xf32> -> vector<3x32xf32>
    %795 = arith.mulf %394, %394 : vector<2x32xf32>
    %cst_325 = arith.constant dense<0.000000e+00> : vector<2xf32>
    %796 = vector.multi_reduction <add>, %795, %cst_325 [1] : vector<2x32xf32> to vector<2xf32>
    %797 = vector.shape_cast %796 : vector<2xf32> to vector<2x1xf32>
    %cst_326 = arith.constant 9.99999996E-13 : f32
    %798 = vector.broadcast %cst_326 : f32 to vector<2x1xf32>
    %799 = arith.addf %797, %798 : vector<2x1xf32>
    %800 = math.rsqrt %799 : vector<2x1xf32>
    %801 = vector.broadcast %800 : vector<2x1xf32> to vector<2x32xf32>
    %802 = arith.mulf %394, %801 : vector<2x32xf32>
    %803 = arith.mulf %794, %794 : vector<3x32xf32>
    %cst_327 = arith.constant dense<0.000000e+00> : vector<3xf32>
    %804 = vector.multi_reduction <add>, %803, %cst_327 [1] : vector<3x32xf32> to vector<3xf32>
    %805 = vector.shape_cast %804 : vector<3xf32> to vector<3x1xf32>
    %cst_328 = arith.constant 9.99999996E-13 : f32
    %806 = vector.broadcast %cst_328 : f32 to vector<3x1xf32>
    %807 = arith.addf %805, %806 : vector<3x1xf32>
    %808 = math.rsqrt %807 : vector<3x1xf32>
    %809 = vector.broadcast %808 : vector<3x1xf32> to vector<3x32xf32>
    %810 = arith.mulf %794, %809 : vector<3x32xf32>
    "tpu.trace_start"() <{level = 10 : i32, message = "be,ce->bc"}> : () -> ()
    %cst_329 = arith.constant dense<0.000000e+00> : vector<2x3xf32>
    %811 = tpu.matmul %802, %810, %cst_329 {dimension_numbers = #tpu.dot_dimension_numbers<[1], [1], [0], [0], [0, 0, 1, 0], [], []>} : vector<2x32xf32>, vector<3x32xf32>, vector<2x3xf32> -> vector<2x3xf32>
    "tpu.trace_stop"() : () -> ()
    %c0_330 = arith.constant 0 : index
    %812 = memref.load %arg38[%c0_330] : memref<1xf32, #tpu.memory_space<smem>>
    %813 = vector.broadcast %812 : f32 to vector<2x3xf32>
    %814 = arith.mulf %813, %811 : vector<2x3xf32>
    %c0_331 = arith.constant 0 : index
    %c0_332 = arith.constant 0 : index
    %815 = vector.load %arg39[%c0_331, %c0_332] : memref<2x3xf32, #tpu.memory_space<vmem>>, vector<2x3xf32>
    tpu.vector_store %arg39[%c0_331, %c0_332], %814 {strides = array<i32>} : memref<2x3xf32, #tpu.memory_space<vmem>>, vector<2x3xf32>,
    return
  }
}

</mosaic_0001>

<llo_original>
// kernel: custom_clip_forward.1
$region0: #{custom_clip_forward.1}
  #allocation0 [shape = 'u32[]', space=smem, size = 0x4, offset = 0x4, fixed_abs, tag = 'smem constant byte address 0x4 - core index']
  #allocation1 [shape = 'u32[144,128]{1,0:T(1,128)}', space=vmem, size = 0x12000, scoped, tag = 'internal scratch']
  #allocation2 [shape = 'f32[1]{0:T(128)S(6)}', space=smem, size = 0x200, scoped, tag = 'scoped memory for custom_clip_forward.1']
  %s0 = inlined_call_operand.smem [shape: u32[40], index: -1, kind: input, shape index: {}]
  %s1 = sld [smem:[%s0]]
  %s2 = scalar_lea.smem %s0, 1
  %s3 = sld [smem:[%s2]]
  %s4 = scalar_lea.smem %s0, 2
  %s5 = sld [smem:[%s4]]
  %s6 = scalar_lea.smem %s0, 3
  %s7 = sld [smem:[%s6]]
  %s8 = scalar_lea.smem %s0, 4
  %s9 = sld [smem:[%s8]]
  %s10 = scalar_lea.smem %s0, 5
  %s11 = sld [smem:[%s10]]
  %s12 = scalar_lea.smem %s0, 6
  %s13 = sld [smem:[%s12]]
  %s14 = scalar_lea.smem %s0, 7
  %s15 = sld [smem:[%s14]]
  %s16 = scalar_lea.smem %s0, 8
  %s17 = sld [smem:[%s16]]
  %s18 = scalar_lea.smem %s0, 9
  %s19 = sld [smem:[%s18]]
  %s20 = scalar_lea.smem %s0, 10
  %s21 = sld [smem:[%s20]]
  %s22 = scalar_lea.smem %s0, 11
  %s23 = sld [smem:[%s22]]
  %s24 = scalar_lea.smem %s0, 12
  %s25 = sld [smem:[%s24]]
  %s26 = scalar_lea.smem %s0, 13
  %s27 = sld [smem:[%s26]]
  %s28 = scalar_lea.smem %s0, 14
  %s29 = sld [smem:[%s28]]
  %s30 = scalar_lea.smem %s0, 15
  %s31 = sld [smem:[%s30]]
  %s32 = scalar_lea.smem %s0, 16
  %s33 = sld [smem:[%s32]]
  %s34 = scalar_lea.smem %s0, 17
  %s35 = sld [smem:[%s34]]
  %s36 = scalar_lea.smem %s0, 18
  %s37 = sld [smem:[%s36]]
  %s38 = scalar_lea.smem %s0, 19
  %s39 = sld [smem:[%s38]]
  %s40 = scalar_lea.smem %s0, 20
  %s41 = sld [smem:[%s40]]
  %s42 = scalar_lea.smem %s0, 21
  %s43 = sld [smem:[%s42]]
  %s44 = scalar_lea.smem %s0, 22
  %s45 = sld [smem:[%s44]]
  %s46 = scalar_lea.smem %s0, 23
  %s47 = sld [smem:[%s46]]
  %s48 = scalar_lea.smem %s0, 24
  %s49 = sld [smem:[%s48]]
  %s50 = scalar_lea.smem %s0, 25
  %s51 = sld [smem:[%s50]]
  %s52 = scalar_lea.smem %s0, 26
  %s53 = sld [smem:[%s52]]
  %s54 = scalar_lea.smem %s0, 27
  %s55 = sld [smem:[%s54]]
  %s56 = scalar_lea.smem %s0, 28
  %s57 = sld [smem:[%s56]]
  %s58 = scalar_lea.smem %s0, 29
  %s59 = sld [smem:[%s58]]
  %s60 = scalar_lea.smem %s0, 30
  %s61 = sld [smem:[%s60]]
  %s62 = scalar_lea.smem %s0, 31
  %s63 = sld [smem:[%s62]]
  %s64 = scalar_lea.smem %s0, 32
  %s65 = sld [smem:[%s64]]
  %s66 = scalar_lea.smem %s0, 33
  %s67 = sld [smem:[%s66]]
  %s68 = scalar_lea.smem %s0, 34
  %s69 = sld [smem:[%s68]]
  %s70 = scalar_lea.smem %s0, 35
  %s71 = sld [smem:[%s70]]
  %s72 = scalar_lea.smem %s0, 36
  %s73 = sld [smem:[%s72]]
  %s74 = scalar_lea.smem %s0, 37
  %s75 = sld [smem:[%s74]]
  %s76 = scalar_lea.smem %s0, 38
  %s77 = sld [smem:[%s76]]
  %s78 = scalar_lea.smem %s0, 39
  %s79 = sld [smem:[%s78]]
  %s80 = sld [smem:[#allocation0]]
  $region166: #{custom_clip_forward.1} parent=0
    _
  %s82 = ssub.s32 1, %s80
  %s83 = scalar_select 0, %s82, %s80
  %84 = sst [smem:[#allocation2]] %s77
  $region1: #{custom_clip_forward.1} parent=0
    #allocation3 [shape = 'u8[1024]{0}', space=vmem, size = 0x400, scoped, tag = 'output window, operand 0, single buffered']
    #allocation4 [shape = 's32[1]{0}', space=sflag, size = 0x4, scoped, tag = 'scoped memory for custom_clip_forward.1']
    %85 = vsyncpa [#allocation4], 0
    // Predicated region
    $region2: #{custom_clip_forward.1} parent=1 // pred_check
      _
    $region3: #{custom_clip_forward.1} parent=1 // pred_check_branch
      %87 = sbr.rel (0) target = $region5
    $region4: #{custom_clip_forward.1} parent=1 // pred_region
      _
    $region5: #{custom_clip_forward.1} parent=1 // pred_fallthru
      _
    // Predicated region
    $region6: #{custom_clip_forward.1} parent=1 // pred_check
      _
    $region7: #{custom_clip_forward.1} parent=1 // pred_check_branch
      %89 = sbr.rel (0) target = $region9
    $region8: #{custom_clip_forward.1} parent=1 // pred_region
      _
    $region9: #{custom_clip_forward.1} parent=1 // pred_fallthru
      _
    // Predicated region
    $region10: #{custom_clip_forward.1} parent=1 // pred_check
      _
    $region11: #{custom_clip_forward.1} parent=1 // pred_check_branch
      %91 = sbr.rel (0) target = $region13
    $region12: #{custom_clip_forward.1} parent=1 // pred_region
      _
    $region13: #{custom_clip_forward.1} parent=1 // pred_fallthru
      _
    // Predicated region
    $region14: #{custom_clip_forward.1} parent=1 // pred_check
      _
    $region15: #{custom_clip_forward.1} parent=1 // pred_check_branch
      %93 = sbr.rel (0) target = $region17
    $region16: #{custom_clip_forward.1} parent=1 // pred_region
      _
    $region17: #{custom_clip_forward.1} parent=1 // pred_fallthru
      _
    // Predicated region
    $region18: #{custom_clip_forward.1} parent=1 // pred_check
      _
    $region19: #{custom_clip_forward.1} parent=1 // pred_check_branch
      %95 = sbr.rel (0) target = $region21
    $region20: #{custom_clip_forward.1} parent=1 // pred_region
      _
    $region21: #{custom_clip_forward.1} parent=1 // pred_fallthru
      _
    // Predicated region
    $region22: #{custom_clip_forward.1} parent=1 // pred_check
      _
    $region23: #{custom_clip_forward.1} parent=1 // pred_check_branch
      %97 = sbr.rel (0) target = $region25
    $region24: #{custom_clip_forward.1} parent=1 // pred_region
      _
    $region25: #{custom_clip_forward.1} parent=1 // pred_fallthru
      _
    // Predicated region
    $region26: #{custom_clip_forward.1} parent=1 // pred_check
      _
    $region27: #{custom_clip_forward.1} parent=1 // pred_check_branch
      %99 = sbr.rel (0) target = $region29
    $region28: #{custom_clip_forward.1} parent=1 // pred_region
      _
    $region29: #{custom_clip_forward.1} parent=1 // pred_fallthru
      _
    // Predicated region
    $region30: #{custom_clip_forward.1} parent=1 // pred_check
      _
    $region31: #{custom_clip_forward.1} parent=1 // pred_check_branch
      %101 = sbr.rel (0) target = $region33
    $region32: #{custom_clip_forward.1} parent=1 // pred_region
      _
    $region33: #{custom_clip_forward.1} parent=1 // pred_fallthru
      _
    // Predicated region
    $region34: #{custom_clip_forward.1} parent=1 // pred_check
      _
    $region35: #{custom_clip_forward.1} parent=1 // pred_check_branch
      %103 = sbr.rel (0) target = $region37
    $region36: #{custom_clip_forward.1} parent=1 // pred_region
      _
    $region37: #{custom_clip_forward.1} parent=1 // pred_fallthru
      _
    // Predicated region
    $region38: #{custom_clip_forward.1} parent=1 // pred_check
      _
    $region39: #{custom_clip_forward.1} parent=1 // pred_check_branch
      %105 = sbr.rel (0) target = $region41
    $region40: #{custom_clip_forward.1} parent=1 // pred_region
      _
    $region41: #{custom_clip_forward.1} parent=1 // pred_fallthru
      _
    // Predicated region
    $region42: #{custom_clip_forward.1} parent=1 // pred_check
      _
    $region43: #{custom_clip_forward.1} parent=1 // pred_check_branch
      %107 = sbr.rel (0) target = $region45
    $region44: #{custom_clip_forward.1} parent=1 // pred_region
      _
    $region45: #{custom_clip_forward.1} parent=1 // pred_fallthru
      _
    // Predicated region
    $region46: #{custom_clip_forward.1} parent=1 // pred_check
      _
    $region47: #{custom_clip_forward.1} parent=1 // pred_check_branch
      %109 = sbr.rel (0) target = $region49
    $region48: #{custom_clip_forward.1} parent=1 // pred_region
      _
    $region49: #{custom_clip_forward.1} parent=1 // pred_fallthru
      _
    // Predicated region
    $region50: #{custom_clip_forward.1} parent=1 // pred_check
      _
    $region51: #{custom_clip_forward.1} parent=1 // pred_check_branch
      %111 = sbr.rel (0) target = $region53
    $region52: #{custom_clip_forward.1} parent=1 // pred_region
      _
    $region53: #{custom_clip_forward.1} parent=1 // pred_fallthru
      _
    // Predicated region
    $region54: #{custom_clip_forward.1} parent=1 // pred_check
      _
    $region55: #{custom_clip_forward.1} parent=1 // pred_check_branch
      %113 = sbr.rel (0) target = $region57
    $region56: #{custom_clip_forward.1} parent=1 // pred_region
      _
    $region57: #{custom_clip_forward.1} parent=1 // pred_fallthru
      _
    // Predicated region
    $region58: #{custom_clip_forward.1} parent=1 // pred_check
      _
    $region59: #{custom_clip_forward.1} parent=1 // pred_check_branch
      %115 = sbr.rel (0) target = $region61
    $region60: #{custom_clip_forward.1} parent=1 // pred_region
      _
    $region61: #{custom_clip_forward.1} parent=1 // pred_fallthru
      _
    // Predicated region
    $region62: #{custom_clip_forward.1} parent=1 // pred_check
      _
    $region63: #{custom_clip_forward.1} parent=1 // pred_check_branch
      %117 = sbr.rel (0) target = $region65
    $region64: #{custom_clip_forward.1} parent=1 // pred_region
      _
    $region65: #{custom_clip_forward.1} parent=1 // pred_fallthru
      _
    // Predicated region
    $region66: #{custom_clip_forward.1} parent=1 // pred_check
      _
    $region67: #{custom_clip_forward.1} parent=1 // pred_check_branch
      %119 = sbr.rel (0) target = $region69
    $region68: #{custom_clip_forward.1} parent=1 // pred_region
      _
    $region69: #{custom_clip_forward.1} parent=1 // pred_fallthru
      _
    // Predicated region
    $region70: #{custom_clip_forward.1} parent=1 // pred_check
      _
    $region71: #{custom_clip_forward.1} parent=1 // pred_check_branch
      %121 = sbr.rel (0) target = $region73
    $region72: #{custom_clip_forward.1} parent=1 // pred_region
      _
    $region73: #{custom_clip_forward.1} parent=1 // pred_fallthru
      _
    // Predicated region
    $region74: #{custom_clip_forward.1} parent=1 // pred_check
      _
    $region75: #{custom_clip_forward.1} parent=1 // pred_check_branch
      %123 = sbr.rel (0) target = $region77
    $region76: #{custom_clip_forward.1} parent=1 // pred_region
      _
    $region77: #{custom_clip_forward.1} parent=1 // pred_fallthru
      _
    // Predicated region
    $region78: #{custom_clip_forward.1} parent=1 // pred_check
      _
    $region79: #{custom_clip_forward.1} parent=1 // pred_check_branch
      %125 = sbr.rel (0) target = $region81
    $region80: #{custom_clip_forward.1} parent=1 // pred_region
      _
    $region81: #{custom_clip_forward.1} parent=1 // pred_fallthru
      _
    // Predicated region
    $region82: #{custom_clip_forward.1} parent=1 // pred_check
      _
    $region83: #{custom_clip_forward.1} parent=1 // pred_check_branch
      %127 = sbr.rel (0) target = $region85
    $region84: #{custom_clip_forward.1} parent=1 // pred_region
      _
    $region85: #{custom_clip_forward.1} parent=1 // pred_fallthru
      _
    // Predicated region
    $region86: #{custom_clip_forward.1} parent=1 // pred_check
      _
    $region87: #{custom_clip_forward.1} parent=1 // pred_check_branch
      %129 = sbr.rel (0) target = $region89
    $region88: #{custom_clip_forward.1} parent=1 // pred_region
      _
    $region89: #{custom_clip_forward.1} parent=1 // pred_fallthru
      _
    // Predicated region
    $region90: #{custom_clip_forward.1} parent=1 // pred_check
      _
    $region91: #{custom_clip_forward.1} parent=1 // pred_check_branch
      %131 = sbr.rel (0) target = $region93
    $region92: #{custom_clip_forward.1} parent=1 // pred_region
      _
    $region93: #{custom_clip_forward.1} parent=1 // pred_fallthru
      _
    // Predicated region
    $region94: #{custom_clip_forward.1} parent=1 // pred_check
      _
    $region95: #{custom_clip_forward.1} parent=1 // pred_check_branch
      %133 = sbr.rel (0) target = $region97
    $region96: #{custom_clip_forward.1} parent=1 // pred_region
      _
    $region97: #{custom_clip_forward.1} parent=1 // pred_fallthru
      _
    // Predicated region
    $region98: #{custom_clip_forward.1} parent=1 // pred_check
      _
    $region99: #{custom_clip_forward.1} parent=1 // pred_check_branch
      %135 = sbr.rel (0) target = $region101
    $region100: #{custom_clip_forward.1} parent=1 // pred_region
      _
    $region101: #{custom_clip_forward.1} parent=1 // pred_fallthru
      _
    // Predicated region
    $region102: #{custom_clip_forward.1} parent=1 // pred_check
      _
    $region103: #{custom_clip_forward.1} parent=1 // pred_check_branch
      %137 = sbr.rel (0) target = $region105
    $region104: #{custom_clip_forward.1} parent=1 // pred_region
      _
    $region105: #{custom_clip_forward.1} parent=1 // pred_fallthru
      _
    // Predicated region
    $region106: #{custom_clip_forward.1} parent=1 // pred_check
      _
    $region107: #{custom_clip_forward.1} parent=1 // pred_check_branch
      %139 = sbr.rel (0) target = $region109
    $region108: #{custom_clip_forward.1} parent=1 // pred_region
      _
    $region109: #{custom_clip_forward.1} parent=1 // pred_fallthru
      _
    // Predicated region
    $region110: #{custom_clip_forward.1} parent=1 // pred_check
      _
    $region111: #{custom_clip_forward.1} parent=1 // pred_check_branch
      %141 = sbr.rel (0) target = $region113
    $region112: #{custom_clip_forward.1} parent=1 // pred_region
      _
    $region113: #{custom_clip_forward.1} parent=1 // pred_fallthru
      _
    // Predicated region
    $region114: #{custom_clip_forward.1} parent=1 // pred_check
      _
    $region115: #{custom_clip_forward.1} parent=1 // pred_check_branch
      %143 = sbr.rel (0) target = $region117
    $region116: #{custom_clip_forward.1} parent=1 // pred_region
      _
    $region117: #{custom_clip_forward.1} parent=1 // pred_fallthru
      _
    // Predicated region
    $region118: #{custom_clip_forward.1} parent=1 // pred_check
      _
    $region119: #{custom_clip_forward.1} parent=1 // pred_check_branch
      %145 = sbr.rel (0) target = $region121
    $region120: #{custom_clip_forward.1} parent=1 // pred_region
      _
    $region121: #{custom_clip_forward.1} parent=1 // pred_fallthru
      _
    // Predicated region
    $region122: #{custom_clip_forward.1} parent=1 // pred_check
      _
    $region123: #{custom_clip_forward.1} parent=1 // pred_check_branch
      %147 = sbr.rel (0) target = $region125
    $region124: #{custom_clip_forward.1} parent=1 // pred_region
      _
    $region125: #{custom_clip_forward.1} parent=1 // pred_fallthru
      _
    // Predicated region
    $region126: #{custom_clip_forward.1} parent=1 // pred_check
      _
    $region127: #{custom_clip_forward.1} parent=1 // pred_check_branch
      %149 = sbr.rel (0) target = $region129
    $region128: #{custom_clip_forward.1} parent=1 // pred_region
      _
    $region129: #{custom_clip_forward.1} parent=1 // pred_fallthru
      _
    // Predicated region
    $region130: #{custom_clip_forward.1} parent=1 // pred_check
      _
    $region131: #{custom_clip_forward.1} parent=1 // pred_check_branch
      %151 = sbr.rel (0) target = $region133
    $region132: #{custom_clip_forward.1} parent=1 // pred_region
      _
    $region133: #{custom_clip_forward.1} parent=1 // pred_fallthru
      _
    // Predicated region
    $region134: #{custom_clip_forward.1} parent=1 // pred_check
      _
    $region135: #{custom_clip_forward.1} parent=1 // pred_check_branch
      %153 = sbr.rel (0) target = $region137
    $region136: #{custom_clip_forward.1} parent=1 // pred_region
      _
    $region137: #{custom_clip_forward.1} parent=1 // pred_fallthru
      _
    // Predicated region
    $region138: #{custom_clip_forward.1} parent=1 // pred_check
      _
    $region139: #{custom_clip_forward.1} parent=1 // pred_check_branch
      %155 = sbr.rel (0) target = $region141
    $region140: #{custom_clip_forward.1} parent=1 // pred_region
      _
    $region141: #{custom_clip_forward.1} parent=1 // pred_fallthru
      _
    // Predicated region
    $region142: #{custom_clip_forward.1} parent=1 // pred_check
      _
    $region143: #{custom_clip_forward.1} parent=1 // pred_check_branch
      %157 = sbr.rel (0) target = $region145
    $region144: #{custom_clip_forward.1} parent=1 // pred_region
      _
    $region145: #{custom_clip_forward.1} parent=1 // pred_fallthru
      _
    // Predicated region
    $region146: #{custom_clip_forward.1} parent=1 // pred_check
      _
    $region147: #{custom_clip_forward.1} parent=1 // pred_check_branch
      %159 = sbr.rel (0) target = $region149
    $region148: #{custom_clip_forward.1} parent=1 // pred_region
      _
    $region149: #{custom_clip_forward.1} parent=1 // pred_fallthru
      _
    // Predicated region
    $region150: #{custom_clip_forward.1} parent=1 // pred_check
      _
    $region151: #{custom_clip_forward.1} parent=1 // pred_check_branch
      %161 = sbr.rel (0) target = $region153
    $region152: #{custom_clip_forward.1} parent=1 // pred_region
      _
    $region153: #{custom_clip_forward.1} parent=1 // pred_fallthru
      _
    // Predicated region
    $region154: #{custom_clip_forward.1} parent=1 // pred_check
      _
    $region155: #{custom_clip_forward.1} parent=1 // pred_check_branch
      %163 = sbr.rel (0) target = $region157
    $region156: #{custom_clip_forward.1} parent=1 // pred_region
      _
    $region157: #{custom_clip_forward.1} parent=1 // pred_fallthru
      _
    %v165 = vld [vmem:[%s1] sm:$0x1f]
    %v166 = vld [vmem:[%s1 + $0x8] sm:$0x1f]
    %v167 = vld [vmem:[%s1 + $0x10] sm:$0x1f]
    %v168 = vld [vmem:[%s1 + $0x18] sm:$0x1f]
    %v173 = vcombine.low %v165, %v166
    %v174 = vcombine.high %v165, %v166
    %v176 = vunpack.c.l.s4 1966171168
    %v177 = vunpack.c.0.s8 %v176
    %v178 = vlaneseq
    %v179 = vshrl.u32 %v178, 7
    %v180 = vsub.s32 %v177, %v179
    %v181 = vrot.slane %v173, %v180
    %v183 = vunpack.c.l.s4 1966171168
    %v184 = vunpack.c.0.s8 %v183
    %v185 = vlaneseq
    %v186 = vshrl.u32 %v185, 7
    %v187 = vsub.s32 %v184, %v186
    %v188 = vrot.slane %v174, %v187
    %v189 = vcombine.high %v181, %v181
    %v191 = vunpack.c.l.s4 1966171168
    %v192 = vunpack.c.0.s8 %v191
    %v193 = vlaneseq
    %v194 = vshrl.u32 %v193, 7
    %v195 = vsub.s32 %v192, %v194
    %v196 = vrot.slane %v181, %v195
    %v198 = vunpack.c.l.s4 1966171168
    %v199 = vunpack.c.0.s8 %v198
    %v200 = vlaneseq
    %v201 = vshrl.u32 %v200, 7
    %v202 = vsub.s32 %v199, %v201
    %v203 = vrot.slane %v188, %v202
    %v205 = vunpack.c.l.s4 1966171168
    %v206 = vunpack.c.0.s8 %v205
    %v207 = vlaneseq
    %v208 = vshrl.u32 %v207, 7
    %v209 = vsub.s32 %v206, %v208
    %v210 = vrot.slane %v189, %v209
    %v211 = vcombine.high %v196, %v196
    %v212 = vcombine.high %v210, %v210
    %v213 = vcombine.low %v167, %v168
    %v214 = vcombine.high %v167, %v168
    %v216 = vunpack.c.l.s4 1966171168
    %v217 = vunpack.c.0.s8 %v216
    %v218 = vlaneseq
    %v219 = vshrl.u32 %v218, 7
    %v220 = vsub.s32 %v217, %v219
    %v221 = vrot.slane %v213, %v220
    %v223 = vunpack.c.l.s4 1966171168
    %v224 = vunpack.c.0.s8 %v223
    %v225 = vlaneseq
    %v226 = vshrl.u32 %v225, 7
    %v227 = vsub.s32 %v224, %v226
    %v228 = vrot.slane %v214, %v227
    %v229 = vcombine.high %v221, %v221
    %v231 = vunpack.c.l.s4 1966171168
    %v232 = vunpack.c.0.s8 %v231
    %v233 = vlaneseq
    %v234 = vshrl.u32 %v233, 7
    %v235 = vsub.s32 %v232, %v234
    %v236 = vrot.slane %v221, %v235
    %v238 = vunpack.c.l.s4 1966171168
    %v239 = vunpack.c.0.s8 %v238
    %v240 = vlaneseq
    %v241 = vshrl.u32 %v240, 7
    %v242 = vsub.s32 %v239, %v241
    %v243 = vrot.slane %v228, %v242
    %v245 = vunpack.c.l.s4 1966171168
    %v246 = vunpack.c.0.s8 %v245
    %v247 = vlaneseq
    %v248 = vshrl.u32 %v247, 7
    %v249 = vsub.s32 %v246, %v248
    %v250 = vrot.slane %v229, %v249
    %v251 = vcombine.high %v236, %v236
    %v252 = vcombine.high %v250, %v250
    %v253 = vcombine.low %v196, %v210
    %v254 = vcombine.low %v211, %v212
    %v255 = vcombine.low %v203, %v236
    %v256 = vcombine.low %v250, %v251
    %v258 = vunpack.c.l.s4 1966171168
    %v259 = vunpack.c.0.s8 %v258
    %v260 = vlaneseq
    %v261 = vshrl.u32 %v260, 7
    %v262 = vsub.s32 %v259, %v261
    %v263 = vrot.slane %v253, %v262
    %v265 = vunpack.c.l.s4 1966171168
    %v266 = vunpack.c.0.s8 %v265
    %v267 = vlaneseq
    %v268 = vshrl.u32 %v267, 7
    %v269 = vsub.s32 %v266, %v268
    %v270 = vrot.slane %v254, %v269
    %v272 = vunpack.c.l.s4 1966171168
    %v273 = vunpack.c.0.s8 %v272
    %v274 = vlaneseq
    %v275 = vshrl.u32 %v274, 7
    %v276 = vsub.s32 %v273, %v275
    %v277 = vrot.slane %v255, %v276
    %v279 = vunpack.c.l.s4 1966171168
    %v280 = vunpack.c.0.s8 %v279
    %v281 = vlaneseq
    %v282 = vshrl.u32 %v281, 7
    %v283 = vsub.s32 %v280, %v282
    %v284 = vrot.slane %v256, %v283
    %v285 = vcombine.low %v263, %v270
    %v286 = vcombine.high %v263, %v270
    %v287 = vcombine.low %v277, %v284
    %v288 = vcombine.high %v277, %v284
    %v290 = vunpack.c.l.s4 1966171168
    %v291 = vunpack.c.0.s8 %v290
    %v292 = vlaneseq
    %v293 = vshrl.u32 %v292, 7
    %v294 = vsub.s32 %v291, %v293
    %v295 = vrot.slane %v285, %v294
    %v297 = vunpack.c.l.s4 1966171168
    %v298 = vunpack.c.0.s8 %v297
    %v299 = vlaneseq
    %v300 = vshrl.u32 %v299, 7
    %v301 = vsub.s32 %v298, %v300
    %v302 = vrot.slane %v286, %v301
    %v304 = vunpack.c.l.s4 1966171168
    %v305 = vunpack.c.0.s8 %v304
    %v306 = vlaneseq
    %v307 = vshrl.u32 %v306, 7
    %v308 = vsub.s32 %v305, %v307
    %v309 = vrot.slane %v287, %v308
    %v311 = vunpack.c.l.s4 1966171168
    %v312 = vunpack.c.0.s8 %v311
    %v313 = vlaneseq
    %v314 = vshrl.u32 %v313, 7
    %v315 = vsub.s32 %v312, %v314
    %v316 = vrot.slane %v288, %v315
    %v317 = vcombine.low %v295, %v309
    %v318 = vcombine.low %v302, %v316
    %v319 = vcombine.low %v252, %v243
    %v321 = vunpack.c.l.s4 1966171168
    %v322 = vunpack.c.0.s8 %v321
    %v323 = vlaneseq
    %v324 = vshrl.u32 %v323, 7
    %v325 = vsub.s32 %v322, %v324
    %v326 = vrot.slane %v319, %v325
    %v327 = vcombine.high %v326, %v326
    %v329 = vunpack.c.l.s4 1966171168
    %v330 = vunpack.c.0.s8 %v329
    %v331 = vlaneseq
    %v332 = vshrl.u32 %v331, 7
    %v333 = vsub.s32 %v330, %v332
    %v334 = vrot.slane %v326, %v333
    %v336 = vunpack.c.l.s4 1966171168
    %v337 = vunpack.c.0.s8 %v336
    %v338 = vlaneseq
    %v339 = vshrl.u32 %v338, 7
    %v340 = vsub.s32 %v337, %v339
    %v341 = vrot.slane %v327, %v340
    %v346 = vpack.c.bf16 %v334, %v317
    %v347 = vpack.c.bf16 %v341, %v318
    %v348 = vld [vmem:[%s7] sm:$0xf]
    %v349 = vld [vmem:[%s7 + $0x4] sm:$0xf]
    %v350 = vld [vmem:[%s7 + $0x8] sm:$0xf]
    %v351 = vld [vmem:[%s7 + $0xc] sm:$0xf]
    %v352 = vld [vmem:[%s7 + $0x10] sm:$0xf]
    %v353 = vld [vmem:[%s7 + $0x14] sm:$0xf]
    %v354 = vld [vmem:[%s7 + $0x18] sm:$0xf]
    %v355 = vld [vmem:[%s7 + $0x1c] sm:$0xf]
    %v356 = vld [vmem:[%s7 + $0x20] sm:$0xf]
    %v357 = vld [vmem:[%s7 + $0x24] sm:$0xf]
    %v358 = vld [vmem:[%s7 + $0x28] sm:$0xf]
    %v359 = vld [vmem:[%s7 + $0x2c] sm:$0xf]
    %v360 = vld [vmem:[%s7 + $0x30] sm:$0xf]
    %v361 = vld [vmem:[%s7 + $0x34] sm:$0xf]
    %v362 = vld [vmem:[%s7 + $0x38] sm:$0xf]
    %v363 = vld [vmem:[%s7 + $0x3c] sm:$0xf]
    %v364 = vld [vmem:[%s7 + $0x40] sm:$0xf]
    %v365 = vld [vmem:[%s7 + $0x44] sm:$0xf]
    %v366 = vld [vmem:[%s7 + $0x48] sm:$0xf]
    %v367 = vld [vmem:[%s7 + $0x4c] sm:$0xf]
    %v368 = vld [vmem:[%s7 + $0x50] sm:$0xf]
    %v369 = vld [vmem:[%s7 + $0x54] sm:$0xf]
    %v370 = vld [vmem:[%s7 + $0x58] sm:$0xf]
    %v371 = vld [vmem:[%s7 + $0x5c] sm:$0xf]
    %v372 = vld [vmem:[%s7 + $0x60] sm:$0x1]
    %v398 = vunpack.c.l.b16 %v348
    %v399 = vunpack.c.l.b16 %v349
    %v400 = vunpack.c.l.b16 %v350
    %v401 = vunpack.c.l.b16 %v351
    %v402 = vunpack.c.l.b16 %v352
    %v403 = vunpack.c.l.b16 %v353
    %v404 = vunpack.c.l.b16 %v354
    %v405 = vunpack.c.l.b16 %v355
    %v406 = vunpack.c.l.b16 %v356
    %v407 = vunpack.c.l.b16 %v357
    %v408 = vunpack.c.l.b16 %v358
    %v409 = vunpack.c.l.b16 %v359
    %v410 = vunpack.c.l.b16 %v360
    %v411 = vunpack.c.l.b16 %v361
    %v412 = vunpack.c.l.b16 %v362
    %v413 = vunpack.c.l.b16 %v363
    %v414 = vunpack.c.l.b16 %v364
    %v415 = vunpack.c.l.b16 %v365
    %v416 = vunpack.c.l.b16 %v366
    %v417 = vunpack.c.l.b16 %v367
    %v418 = vunpack.c.l.b16 %v368
    %v419 = vunpack.c.l.b16 %v369
    %v420 = vunpack.c.l.b16 %v370
    %v421 = vunpack.c.l.b16 %v371
    %v422 = vunpack.c.l.b16 %v372
    %v423 = vpack.c.b16 %v399, %v398
    %v424 = vpack.c.b16 %v401, %v400
    %v425 = vpack.c.b16 %v403, %v402
    %v426 = vpack.c.b16 %v405, %v404
    %v427 = vpack.c.b16 %v407, %v406
    %v428 = vpack.c.b16 %v409, %v408
    %v429 = vpack.c.b16 %v411, %v410
    %v430 = vpack.c.b16 %v413, %v412
    %v431 = vpack.c.b16 %v415, %v414
    %v432 = vpack.c.b16 %v417, %v416
    %v433 = vpack.c.b16 %v419, %v418
    %v434 = vpack.c.b16 %v421, %v420
    %v435 = vpack.c.b16 %v422, %v422
    %vm448 = vcmask 531456
    %v450 = vsel %vm448, %v347, 0
    %vm452 = vcmask 1040384
    %v453 = vsel 0, 4294967295, 65535
    %v454 = vsel %vm452, %v453, 0
    %v456 = vand.u32 %v435, %v454
    %458 = vmatprep.subr.bf16.mxu0 0
    %459 = vmatpush1.bf16.msra.mxu0 %v423
    %460 = vmatprep.subr.bf16.mxu0 0
    %461 = vmatpush1.bf16.msra.mxu0 %v424
    %462 = vmatprep.subr.bf16.mxu0 0
    %463 = vmatpush1.bf16.msra.mxu0 %v425
    %464 = vmatprep.subr.bf16.mxu0 0
    %465 = vmatpush1.bf16.msra.mxu0 %v426
    %466 = vmatprep.subr.bf16.mxu0 0
    %467 = vmatpush1.bf16.msra.mxu0 %v427
    %468 = vmatprep.subr.bf16.mxu0 0
    %469 = vmatpush1.bf16.msra.mxu0 %v428
    %470 = vmatprep.subr.bf16.mxu0 0
    %471 = vmatpush1.bf16.msra.mxu0 %v429
    %472 = vmatprep.subr.bf16.mxu0 0
    %473 = vmatpush1.bf16.msra.mxu0 %v430
    %474 = vmatprep.subr.bf16.mxu0 0
    %475 = vmatpush1.bf16.msra.mxu0 %v431
    %476 = vmatprep.subr.bf16.mxu0 0
    %477 = vmatpush1.bf16.msra.mxu0 %v432
    %478 = vmatprep.subr.bf16.mxu0 0
    %479 = vmatpush1.bf16.msra.mxu0 %v433
    %480 = vmatprep.subr.bf16.mxu0 0
    %481 = vmatpush1.bf16.msra.mxu0 %v434
    %482 = vmatprep.subr.bf16.mxu0 0
    %483 = vmatpush1.bf16.msra.mxu0 %v456
    %484 = vmatprep.subr.bf16.mxu0 0
    %485 = vmatpush1.bf16.msra.mxu0 0
    %486 = vmatprep.subr.bf16.mxu0 0
    %487 = vmatpush1.bf16.msra.mxu0 0
    %488 = vmatprep.subr.bf16.mxu0 0
    %489 = vmatpush1.bf16.msra.mxu0 0
    %490 = vmatprep.mubr.bf16.mxu0 %v450
    %491 = vmatmul.mubr.bf16.gmra.mrb[0].mxu0 %v346
    %v492 = vpop.f32.mrb[0].mxu0
    %v493 = vadd.f32 0.0, %v492
    %v494 = vpop.f32.mrb[0].mxu0
    %v495 = vpop.f32.mrb[0].mxu0
    %v496 = vadd.f32 0.0, %v495
    %v497 = vpop.f32.mrb[0].mxu0
    %498 = vdwg.mxu0
    %v501 = vcombine.high %v493, %v493
    %v503 = vunpack.c.l.s4 1966171168
    %v504 = vunpack.c.0.s8 %v503
    %v505 = vlaneseq
    %v506 = vshrl.u32 %v505, 7
    %v507 = vsub.s32 %v504, %v506
    %v508 = vrot.slane %v493, %v507
    %v510 = vunpack.c.l.s4 1966171168
    %v511 = vunpack.c.0.s8 %v510
    %v512 = vlaneseq
    %v513 = vshrl.u32 %v512, 7
    %v514 = vsub.s32 %v511, %v513
    %v515 = vrot.slane %v501, %v514
    %v516 = vcombine.high %v508, %v508
    %v517 = vcombine.high %v515, %v515
    %v519 = vunpack.c.l.s4 1966171168
    %v520 = vunpack.c.0.s8 %v519
    %v521 = vlaneseq
    %v522 = vshrl.u32 %v521, 7
    %v523 = vsub.s32 %v520, %v522
    %v524 = vrot.slane %v508, %v523
    %v526 = vunpack.c.l.s4 1966171168
    %v527 = vunpack.c.0.s8 %v526
    %v528 = vlaneseq
    %v529 = vshrl.u32 %v528, 7
    %v530 = vsub.s32 %v527, %v529
    %v531 = vrot.slane %v515, %v530
    %v533 = vunpack.c.l.s4 1966171168
    %v534 = vunpack.c.0.s8 %v533
    %v535 = vlaneseq
    %v536 = vshrl.u32 %v535, 7
    %v537 = vsub.s32 %v534, %v536
    %v538 = vrot.slane %v516, %v537
    %v540 = vunpack.c.l.s4 1966171168
    %v541 = vunpack.c.0.s8 %v540
    %v542 = vlaneseq
    %v543 = vshrl.u32 %v542, 7
    %v544 = vsub.s32 %v541, %v543
    %v545 = vrot.slane %v517, %v544
    %v546 = vcombine.high %v524, %v524
    %v547 = vcombine.high %v531, %v531
    %v548 = vcombine.high %v538, %v538
    %v549 = vcombine.high %v545, %v545
    %v551 = vunpack.c.l.s4 1966171168
    %v552 = vunpack.c.0.s8 %v551
    %v553 = vlaneseq
    %v554 = vshrl.u32 %v553, 7
    %v555 = vsub.s32 %v552, %v554
    %v556 = vrot.slane %v496, %v555
    %v557 = vcombine.high %v556, %v556
    %v559 = vunpack.c.l.s4 1966171168
    %v560 = vunpack.c.0.s8 %v559
    %v561 = vlaneseq
    %v562 = vshrl.u32 %v561, 7
    %v563 = vsub.s32 %v560, %v562
    %v564 = vrot.slane %v556, %v563
    %v566 = vunpack.c.l.s4 1966171168
    %v567 = vunpack.c.0.s8 %v566
    %v568 = vlaneseq
    %v569 = vshrl.u32 %v568, 7
    %v570 = vsub.s32 %v567, %v569
    %v571 = vrot.slane %v557, %v570
    %v582 = vld [vmem:[%s9] sm:$0x1f]
    %v584 = vcombine.high %v582, %v582
    %v586 = vunpack.c.l.s4 1966171168
    %v587 = vunpack.c.0.s8 %v586
    %v588 = vlaneseq
    %v589 = vshrl.u32 %v588, 7
    %v590 = vsub.s32 %v587, %v589
    %v591 = vrot.slane %v582, %v590
    %v593 = vunpack.c.l.s4 1966171168
    %v594 = vunpack.c.0.s8 %v593
    %v595 = vlaneseq
    %v596 = vshrl.u32 %v595, 7
    %v597 = vsub.s32 %v594, %v596
    %v598 = vrot.slane %v584, %v597
    %v599 = vcombine.high %v591, %v591
    %v601 = vunpack.c.l.s4 1966171168
    %v602 = vunpack.c.0.s8 %v601
    %v603 = vlaneseq
    %v604 = vshrl.u32 %v603, 7
    %v605 = vsub.s32 %v602, %v604
    %v606 = vrot.slane %v591, %v605
    %v608 = vunpack.c.l.s4 1966171168
    %v609 = vunpack.c.0.s8 %v608
    %v610 = vlaneseq
    %v611 = vshrl.u32 %v610, 7
    %v612 = vsub.s32 %v609, %v611
    %v613 = vrot.slane %v598, %v612
    %v615 = vunpack.c.l.s4 1966171168
    %v616 = vunpack.c.0.s8 %v615
    %v617 = vlaneseq
    %v618 = vshrl.u32 %v617, 7
    %v619 = vsub.s32 %v616, %v618
    %v620 = vrot.slane %v599, %v619
    %v621 = vcombine.high %v606, %v606
    %v622 = vcombine.high %v620, %v620
    %v628 = vadd.f32 %v524, %v606
    %v629 = vadd.f32 %v538, %v620
    %v630 = vadd.f32 %v546, %v621
    %v631 = vadd.f32 %v548, %v622
    %v632 = vadd.f32 %v531, %v613
    %v633 = vadd.f32 %v545, %v606
    %v634 = vadd.f32 %v547, %v620
    %v635 = vadd.f32 %v549, %v621
    %v636 = vadd.f32 %v564, %v622
    %v637 = vadd.f32 %v571, %v613
    %v638 = vld [vmem:[%s11] sm:$0x1]
    %v639 = vld [vmem:[%s13] sm:$0x1]
    %v650 = vcombine.low %v628, %v629
    %v651 = vcombine.low %v630, %v631
    %v652 = vcombine.low %v632, %v633
    %v653 = vcombine.low %v634, %v635
    %v655 = vunpack.c.l.s4 1966171168
    %v656 = vunpack.c.0.s8 %v655
    %v657 = vlaneseq
    %v658 = vshrl.u32 %v657, 7
    %v659 = vsub.s32 %v656, %v658
    %v660 = vrot.slane %v650, %v659
    %v662 = vunpack.c.l.s4 1966171168
    %v663 = vunpack.c.0.s8 %v662
    %v664 = vlaneseq
    %v665 = vshrl.u32 %v664, 7
    %v666 = vsub.s32 %v663, %v665
    %v667 = vrot.slane %v651, %v666
    %v669 = vunpack.c.l.s4 1966171168
    %v670 = vunpack.c.0.s8 %v669
    %v671 = vlaneseq
    %v672 = vshrl.u32 %v671, 7
    %v673 = vsub.s32 %v670, %v672
    %v674 = vrot.slane %v652, %v673
    %v676 = vunpack.c.l.s4 1966171168
    %v677 = vunpack.c.0.s8 %v676
    %v678 = vlaneseq
    %v679 = vshrl.u32 %v678, 7
    %v680 = vsub.s32 %v677, %v679
    %v681 = vrot.slane %v653, %v680
    %v682 = vcombine.low %v660, %v667
    %v683 = vcombine.low %v674, %v681
    %v685 = vunpack.c.l.s4 1966171168
    %v686 = vunpack.c.0.s8 %v685
    %v687 = vlaneseq
    %v688 = vshrl.u32 %v687, 7
    %v689 = vsub.s32 %v686, %v688
    %v690 = vrot.slane %v682, %v689
    %v692 = vunpack.c.l.s4 1966171168
    %v693 = vunpack.c.0.s8 %v692
    %v694 = vlaneseq
    %v695 = vshrl.u32 %v694, 7
    %v696 = vsub.s32 %v693, %v695
    %v697 = vrot.slane %v683, %v696
    %v698 = vcombine.low %v690, %v697
    %v699 = vcombine.low %v636, %v637
    %v701 = vunpack.c.l.s4 1966171168
    %v702 = vunpack.c.0.s8 %v701
    %v703 = vlaneseq
    %v704 = vshrl.u32 %v703, 7
    %v705 = vsub.s32 %v702, %v704
    %v706 = vrot.slane %v699, %v705
    %v708 = vunpack.c.l.s4 1966171168
    %v709 = vunpack.c.0.s8 %v708
    %v710 = vlaneseq
    %v711 = vshrl.u32 %v710, 7
    %v712 = vsub.s32 %v709, %v711
    %v713 = vrot.slane %v706, %v712
    %vm716 = vcmask 261120
    %v717 = vsel %vm716, %v698, 0.0
    %718 = vadd.xlane.f32.xlu0 %v717
    %v719 = vpop.xlane.xlu0 %718
    %vm720 = vcmask 254976
    %v721 = vsel %vm720, %v713, 0.0
    %722 = vadd.xlane.f32.xlu0 %v721
    %v723 = vpop.xlane.xlu0 %722
    %v724 = vrcp.pop 32.0
    %v725 = vmul.f32 %v719, %v724
    %v726 = vmul.f32 %v723, %v724
    %v729 = vlaneseq
    %v730 = vshrl.u32 %v729, 7
    %v731 = vsub.s32 0, %v730
    %v732 = vrot.slane %v725, %v731
    %v733 = vlaneseq
    %v734 = vshrl.u32 %v733, 7
    %v735 = vsub.s32 1, %v734
    %v736 = vrot.slane %v725, %v735
    %v737 = vlaneseq
    %v738 = vshrl.u32 %v737, 7
    %v739 = vsub.s32 2, %v738
    %v740 = vrot.slane %v725, %v739
    %v741 = vlaneseq
    %v742 = vshrl.u32 %v741, 7
    %v743 = vsub.s32 3, %v742
    %v744 = vrot.slane %v725, %v743
    %v745 = vlaneseq
    %v746 = vshrl.u32 %v745, 7
    %v747 = vsub.s32 4, %v746
    %v748 = vrot.slane %v725, %v747
    %v749 = vlaneseq
    %v750 = vshrl.u32 %v749, 7
    %v751 = vsub.s32 5, %v750
    %v752 = vrot.slane %v725, %v751
    %v753 = vlaneseq
    %v754 = vshrl.u32 %v753, 7
    %v755 = vsub.s32 6, %v754
    %v756 = vrot.slane %v725, %v755
    %v757 = vlaneseq
    %v758 = vshrl.u32 %v757, 7
    %v759 = vsub.s32 7, %v758
    %v760 = vrot.slane %v725, %v759
    %v761 = vlaneseq
    %v762 = vshrl.u32 %v761, 7
    %v763 = vsub.s32 0, %v762
    %v764 = vrot.slane %v726, %v763
    %v765 = vlaneseq
    %v766 = vshrl.u32 %v765, 7
    %v767 = vsub.s32 1, %v766
    %v768 = vrot.slane %v726, %v767
    %v779 = vsub.f32 %v628, %v732
    %v780 = vsub.f32 %v629, %v736
    %v781 = vsub.f32 %v630, %v740
    %v782 = vsub.f32 %v631, %v744
    %v783 = vsub.f32 %v632, %v748
    %v784 = vsub.f32 %v633, %v752
    %v785 = vsub.f32 %v634, %v756
    %v786 = vsub.f32 %v635, %v760
    %v787 = vsub.f32 %v636, %v764
    %v788 = vsub.f32 %v637, %v768
    %v789 = vmul.f32 %v779, %v779
    %v790 = vmul.f32 %v780, %v780
    %v791 = vmul.f32 %v781, %v781
    %v792 = vmul.f32 %v782, %v782
    %v793 = vmul.f32 %v783, %v783
    %v794 = vmul.f32 %v784, %v784
    %v795 = vmul.f32 %v785, %v785
    %v796 = vmul.f32 %v786, %v786
    %v797 = vmul.f32 %v787, %v787
    %v798 = vmul.f32 %v788, %v788
    %v809 = vcombine.low %v789, %v790
    %v810 = vcombine.low %v791, %v792
    %v811 = vcombine.low %v793, %v794
    %v812 = vcombine.low %v795, %v796
    %v814 = vunpack.c.l.s4 1966171168
    %v815 = vunpack.c.0.s8 %v814
    %v816 = vlaneseq
    %v817 = vshrl.u32 %v816, 7
    %v818 = vsub.s32 %v815, %v817
    %v819 = vrot.slane %v809, %v818
    %v821 = vunpack.c.l.s4 1966171168
    %v822 = vunpack.c.0.s8 %v821
    %v823 = vlaneseq
    %v824 = vshrl.u32 %v823, 7
    %v825 = vsub.s32 %v822, %v824
    %v826 = vrot.slane %v810, %v825
    %v828 = vunpack.c.l.s4 1966171168
    %v829 = vunpack.c.0.s8 %v828
    %v830 = vlaneseq
    %v831 = vshrl.u32 %v830, 7
    %v832 = vsub.s32 %v829, %v831
    %v833 = vrot.slane %v811, %v832
    %v835 = vunpack.c.l.s4 1966171168
    %v836 = vunpack.c.0.s8 %v835
    %v837 = vlaneseq
    %v838 = vshrl.u32 %v837, 7
    %v839 = vsub.s32 %v836, %v838
    %v840 = vrot.slane %v812, %v839
    %v841 = vcombine.low %v819, %v826
    %v842 = vcombine.low %v833, %v840
    %v844 = vunpack.c.l.s4 1966171168
    %v845 = vunpack.c.0.s8 %v844
    %v846 = vlaneseq
    %v847 = vshrl.u32 %v846, 7
    %v848 = vsub.s32 %v845, %v847
    %v849 = vrot.slane %v841, %v848
    %v851 = vunpack.c.l.s4 1966171168
    %v852 = vunpack.c.0.s8 %v851
    %v853 = vlaneseq
    %v854 = vshrl.u32 %v853, 7
    %v855 = vsub.s32 %v852, %v854
    %v856 = vrot.slane %v842, %v855
    %v857 = vcombine.low %v849, %v856
    %v858 = vcombine.low %v797, %v798
    %v860 = vunpack.c.l.s4 1966171168
    %v861 = vunpack.c.0.s8 %v860
    %v862 = vlaneseq
    %v863 = vshrl.u32 %v862, 7
    %v864 = vsub.s32 %v861, %v863
    %v865 = vrot.slane %v858, %v864
    %v867 = vunpack.c.l.s4 1966171168
    %v868 = vunpack.c.0.s8 %v867
    %v869 = vlaneseq
    %v870 = vshrl.u32 %v869, 7
    %v871 = vsub.s32 %v868, %v870
    %v872 = vrot.slane %v865, %v871
    %v875 = vsel %vm716, %v857, 0.0
    %876 = vadd.xlane.f32.xlu0 %v875
    %v877 = vpop.xlane.xlu0 %876
    %v878 = vsel %vm720, %v872, 0.0
    %879 = vadd.xlane.f32.xlu0 %v878
    %v880 = vpop.xlane.xlu0 %879
    %v881 = vmul.f32 %v877, %v724
    %v882 = vmul.f32 %v880, %v724
    %v883 = vadd.f32 %v881, 1e-05
    %v884 = vadd.f32 %v882, 1e-05
    %v885 = vrsqrt.pop %v883
    %v886 = vrsqrt.pop %v884
    %v889 = vlaneseq
    %v890 = vshrl.u32 %v889, 7
    %v891 = vsub.s32 0, %v890
    %v892 = vrot.slane %v885, %v891
    %v893 = vlaneseq
    %v894 = vshrl.u32 %v893, 7
    %v895 = vsub.s32 1, %v894
    %v896 = vrot.slane %v885, %v895
    %v897 = vlaneseq
    %v898 = vshrl.u32 %v897, 7
    %v899 = vsub.s32 2, %v898
    %v900 = vrot.slane %v885, %v899
    %v901 = vlaneseq
    %v902 = vshrl.u32 %v901, 7
    %v903 = vsub.s32 3, %v902
    %v904 = vrot.slane %v885, %v903
    %v905 = vlaneseq
    %v906 = vshrl.u32 %v905, 7
    %v907 = vsub.s32 4, %v906
    %v908 = vrot.slane %v885, %v907
    %v909 = vlaneseq
    %v910 = vshrl.u32 %v909, 7
    %v911 = vsub.s32 5, %v910
    %v912 = vrot.slane %v885, %v911
    %v913 = vlaneseq
    %v914 = vshrl.u32 %v913, 7
    %v915 = vsub.s32 6, %v914
    %v916 = vrot.slane %v885, %v915
    %v917 = vlaneseq
    %v918 = vshrl.u32 %v917, 7
    %v919 = vsub.s32 7, %v918
    %v920 = vrot.slane %v885, %v919
    %v921 = vlaneseq
    %v922 = vshrl.u32 %v921, 7
    %v923 = vsub.s32 0, %v922
    %v924 = vrot.slane %v886, %v923
    %v925 = vlaneseq
    %v926 = vshrl.u32 %v925, 7
    %v927 = vsub.s32 1, %v926
    %v928 = vrot.slane %v886, %v927
    %v939 = vmul.f32 %v779, %v892
    %v940 = vmul.f32 %v780, %v896
    %v941 = vmul.f32 %v781, %v900
    %v942 = vmul.f32 %v782, %v904
    %v943 = vmul.f32 %v783, %v908
    %v944 = vmul.f32 %v784, %v912
    %v945 = vmul.f32 %v785, %v916
    %v946 = vmul.f32 %v786, %v920
    %v947 = vmul.f32 %v787, %v924
    %v948 = vmul.f32 %v788, %v928
    %v950 = vlaneseq
    %v951 = vshrl.u32 %v950, 7
    %v952 = vsub.s32 0, %v951
    %v953 = vrot.slane %v638, %v952
    %v954 = vcombine.high %v953, %v953
    %v956 = vunpack.c.l.s4 1966171168
    %v957 = vunpack.c.0.s8 %v956
    %v958 = vlaneseq
    %v959 = vshrl.u32 %v958, 7
    %v960 = vsub.s32 %v957, %v959
    %v961 = vrot.slane %v953, %v960
    %v963 = vunpack.c.l.s4 1966171168
    %v964 = vunpack.c.0.s8 %v963
    %v965 = vlaneseq
    %v966 = vshrl.u32 %v965, 7
    %v967 = vsub.s32 %v964, %v966
    %v968 = vrot.slane %v954, %v967
    %v969 = vcombine.high %v961, %v961
    %v970 = vcombine.high %v968, %v968
    %v972 = vunpack.c.l.s4 1966171168
    %v973 = vunpack.c.0.s8 %v972
    %v974 = vlaneseq
    %v975 = vshrl.u32 %v974, 7
    %v976 = vsub.s32 %v973, %v975
    %v977 = vrot.slane %v961, %v976
    %v979 = vunpack.c.l.s4 1966171168
    %v980 = vunpack.c.0.s8 %v979
    %v981 = vlaneseq
    %v982 = vshrl.u32 %v981, 7
    %v983 = vsub.s32 %v980, %v982
    %v984 = vrot.slane %v968, %v983
    %v986 = vunpack.c.l.s4 1966171168
    %v987 = vunpack.c.0.s8 %v986
    %v988 = vlaneseq
    %v989 = vshrl.u32 %v988, 7
    %v990 = vsub.s32 %v987, %v989
    %v991 = vrot.slane %v969, %v990
    %v993 = vunpack.c.l.s4 1966171168
    %v994 = vunpack.c.0.s8 %v993
    %v995 = vlaneseq
    %v996 = vshrl.u32 %v995, 7
    %v997 = vsub.s32 %v994, %v996
    %v998 = vrot.slane %v970, %v997
    %v999 = vcombine.high %v977, %v977
    %v1000 = vcombine.high %v984, %v984
    %v1001 = vcombine.high %v991, %v991
    %v1002 = vcombine.high %v998, %v998
    %v1011 = vmul.f32 %v939, %v977
    %v1012 = vmul.f32 %v940, %v991
    %v1013 = vmul.f32 %v941, %v999
    %v1014 = vmul.f32 %v942, %v1001
    %v1015 = vmul.f32 %v943, %v984
    %v1016 = vmul.f32 %v944, %v998
    %v1017 = vmul.f32 %v945, %v1000
    %v1018 = vmul.f32 %v946, %v1002
    %v1019 = vmul.f32 %v947, %v977
    %v1020 = vmul.f32 %v948, %v991
    %v1022 = vlaneseq
    %v1023 = vshrl.u32 %v1022, 7
    %v1024 = vsub.s32 0, %v1023
    %v1025 = vrot.slane %v639, %v1024
    %v1026 = vcombine.high %v1025, %v1025
    %v1028 = vunpack.c.l.s4 1966171168
    %v1029 = vunpack.c.0.s8 %v1028
    %v1030 = vlaneseq
    %v1031 = vshrl.u32 %v1030, 7
    %v1032 = vsub.s32 %v1029, %v1031
    %v1033 = vrot.slane %v1025, %v1032
    %v1035 = vunpack.c.l.s4 1966171168
    %v1036 = vunpack.c.0.s8 %v1035
    %v1037 = vlaneseq
    %v1038 = vshrl.u32 %v1037, 7
    %v1039 = vsub.s32 %v1036, %v1038
    %v1040 = vrot.slane %v1026, %v1039
    %v1041 = vcombine.high %v1033, %v1033
    %v1042 = vcombine.high %v1040, %v1040
    %v1044 = vunpack.c.l.s4 1966171168
    %v1045 = vunpack.c.0.s8 %v1044
    %v1046 = vlaneseq
    %v1047 = vshrl.u32 %v1046, 7
    %v1048 = vsub.s32 %v1045, %v1047
    %v1049 = vrot.slane %v1033, %v1048
    %v1051 = vunpack.c.l.s4 1966171168
    %v1052 = vunpack.c.0.s8 %v1051
    %v1053 = vlaneseq
    %v1054 = vshrl.u32 %v1053, 7
    %v1055 = vsub.s32 %v1052, %v1054
    %v1056 = vrot.slane %v1040, %v1055
    %v1058 = vunpack.c.l.s4 1966171168
    %v1059 = vunpack.c.0.s8 %v1058
    %v1060 = vlaneseq
    %v1061 = vshrl.u32 %v1060, 7
    %v1062 = vsub.s32 %v1059, %v1061
    %v1063 = vrot.slane %v1041, %v1062
    %v1065 = vunpack.c.l.s4 1966171168
    %v1066 = vunpack.c.0.s8 %v1065
    %v1067 = vlaneseq
    %v1068 = vshrl.u32 %v1067, 7
    %v1069 = vsub.s32 %v1066, %v1068
    %v1070 = vrot.slane %v1042, %v1069
    %v1071 = vcombine.high %v1049, %v1049
    %v1072 = vcombine.high %v1056, %v1056
    %v1073 = vcombine.high %v1063, %v1063
    %v1074 = vcombine.high %v1070, %v1070
    %v1083 = vadd.f32 %v1011, %v1049
    %v1084 = vadd.f32 %v1012, %v1063
    %v1085 = vadd.f32 %v1013, %v1071
    %v1086 = vadd.f32 %v1014, %v1073
    %v1087 = vadd.f32 %v1015, %v1056
    %v1088 = vadd.f32 %v1016, %v1070
    %v1089 = vadd.f32 %v1017, %v1072
    %v1090 = vadd.f32 %v1018, %v1074
    %v1091 = vadd.f32 %v1019, %v1049
    %v1092 = vadd.f32 %v1020, %v1063
    %v1093 = vld [vmem:[%s23] sm:$0x1]
    %v1094 = vld [vmem:[%s25] sm:$0x1]
    %v1105 = vcombine.low %v1083, %v1084
    %v1106 = vcombine.low %v1085, %v1086
    %v1107 = vcombine.low %v1087, %v1088
    %v1108 = vcombine.low %v1089, %v1090
    %v1110 = vunpack.c.l.s4 1966171168
    %v1111 = vunpack.c.0.s8 %v1110
    %v1112 = vlaneseq
    %v1113 = vshrl.u32 %v1112, 7
    %v1114 = vsub.s32 %v1111, %v1113
    %v1115 = vrot.slane %v1105, %v1114
    %v1117 = vunpack.c.l.s4 1966171168
    %v1118 = vunpack.c.0.s8 %v1117
    %v1119 = vlaneseq
    %v1120 = vshrl.u32 %v1119, 7
    %v1121 = vsub.s32 %v1118, %v1120
    %v1122 = vrot.slane %v1106, %v1121
    %v1124 = vunpack.c.l.s4 1966171168
    %v1125 = vunpack.c.0.s8 %v1124
    %v1126 = vlaneseq
    %v1127 = vshrl.u32 %v1126, 7
    %v1128 = vsub.s32 %v1125, %v1127
    %v1129 = vrot.slane %v1107, %v1128
    %v1131 = vunpack.c.l.s4 1966171168
    %v1132 = vunpack.c.0.s8 %v1131
    %v1133 = vlaneseq
    %v1134 = vshrl.u32 %v1133, 7
    %v1135 = vsub.s32 %v1132, %v1134
    %v1136 = vrot.slane %v1108, %v1135
    %v1137 = vcombine.low %v1115, %v1122
    %v1138 = vcombine.low %v1129, %v1136
    %v1140 = vunpack.c.l.s4 1966171168
    %v1141 = vunpack.c.0.s8 %v1140
    %v1142 = vlaneseq
    %v1143 = vshrl.u32 %v1142, 7
    %v1144 = vsub.s32 %v1141, %v1143
    %v1145 = vrot.slane %v1137, %v1144
    %v1147 = vunpack.c.l.s4 1966171168
    %v1148 = vunpack.c.0.s8 %v1147
    %v1149 = vlaneseq
    %v1150 = vshrl.u32 %v1149, 7
    %v1151 = vsub.s32 %v1148, %v1150
    %v1152 = vrot.slane %v1138, %v1151
    %v1153 = vcombine.low %v1145, %v1152
    %v1154 = vcombine.low %v1091, %v1092
    %v1156 = vunpack.c.l.s4 1966171168
    %v1157 = vunpack.c.0.s8 %v1156
    %v1158 = vlaneseq
    %v1159 = vshrl.u32 %v1158, 7
    %v1160 = vsub.s32 %v1157, %v1159
    %v1161 = vrot.slane %v1154, %v1160
    %v1163 = vunpack.c.l.s4 1966171168
    %v1164 = vunpack.c.0.s8 %v1163
    %v1165 = vlaneseq
    %v1166 = vshrl.u32 %v1165, 7
    %v1167 = vsub.s32 %v1164, %v1166
    %v1168 = vrot.slane %v1161, %v1167
    %v1171 = vsel %vm716, %v1153, 0.0
    %1172 = vadd.xlane.f32.xlu0 %v1171
    %v1173 = vpop.xlane.xlu0 %1172
    %v1174 = vsel %vm720, %v1168, 0.0
    %1175 = vadd.xlane.f32.xlu0 %v1174
    %v1176 = vpop.xlane.xlu0 %1175
    %v1177 = vmul.f32 %v1173, %v724
    %v1178 = vmul.f32 %v1176, %v724
    %v1181 = vlaneseq
    %v1182 = vshrl.u32 %v1181, 7
    %v1183 = vsub.s32 0, %v1182
    %v1184 = vrot.slane %v1177, %v1183
    %v1185 = vlaneseq
    %v1186 = vshrl.u32 %v1185, 7
    %v1187 = vsub.s32 1, %v1186
    %v1188 = vrot.slane %v1177, %v1187
    %v1189 = vlaneseq
    %v1190 = vshrl.u32 %v1189, 7
    %v1191 = vsub.s32 2, %v1190
    %v1192 = vrot.slane %v1177, %v1191
    %v1193 = vlaneseq
    %v1194 = vshrl.u32 %v1193, 7
    %v1195 = vsub.s32 3, %v1194
    %v1196 = vrot.slane %v1177, %v1195
    %v1197 = vlaneseq
    %v1198 = vshrl.u32 %v1197, 7
    %v1199 = vsub.s32 4, %v1198
    %v1200 = vrot.slane %v1177, %v1199
    %v1201 = vlaneseq
    %v1202 = vshrl.u32 %v1201, 7
    %v1203 = vsub.s32 5, %v1202
    %v1204 = vrot.slane %v1177, %v1203
    %v1205 = vlaneseq
    %v1206 = vshrl.u32 %v1205, 7
    %v1207 = vsub.s32 6, %v1206
    %v1208 = vrot.slane %v1177, %v1207
    %v1209 = vlaneseq
    %v1210 = vshrl.u32 %v1209, 7
    %v1211 = vsub.s32 7, %v1210
    %v1212 = vrot.slane %v1177, %v1211
    %v1213 = vlaneseq
    %v1214 = vshrl.u32 %v1213, 7
    %v1215 = vsub.s32 0, %v1214
    %v1216 = vrot.slane %v1178, %v1215
    %v1217 = vlaneseq
    %v1218 = vshrl.u32 %v1217, 7
    %v1219 = vsub.s32 1, %v1218
    %v1220 = vrot.slane %v1178, %v1219
    %v1231 = vsub.f32 %v1083, %v1184
    %v1232 = vsub.f32 %v1084, %v1188
    %v1233 = vsub.f32 %v1085, %v1192
    %v1234 = vsub.f32 %v1086, %v1196
    %v1235 = vsub.f32 %v1087, %v1200
    %v1236 = vsub.f32 %v1088, %v1204
    %v1237 = vsub.f32 %v1089, %v1208
    %v1238 = vsub.f32 %v1090, %v1212
    %v1239 = vsub.f32 %v1091, %v1216
    %v1240 = vsub.f32 %v1092, %v1220
    %v1241 = vmul.f32 %v1231, %v1231
    %v1242 = vmul.f32 %v1232, %v1232
    %v1243 = vmul.f32 %v1233, %v1233
    %v1244 = vmul.f32 %v1234, %v1234
    %v1245 = vmul.f32 %v1235, %v1235
    %v1246 = vmul.f32 %v1236, %v1236
    %v1247 = vmul.f32 %v1237, %v1237
    %v1248 = vmul.f32 %v1238, %v1238
    %v1249 = vmul.f32 %v1239, %v1239
    %v1250 = vmul.f32 %v1240, %v1240
    %v1261 = vcombine.low %v1241, %v1242
    %v1262 = vcombine.low %v1243, %v1244
    %v1263 = vcombine.low %v1245, %v1246
    %v1264 = vcombine.low %v1247, %v1248
    %v1266 = vunpack.c.l.s4 1966171168
    %v1267 = vunpack.c.0.s8 %v1266
    %v1268 = vlaneseq
    %v1269 = vshrl.u32 %v1268, 7
    %v1270 = vsub.s32 %v1267, %v1269
    %v1271 = vrot.slane %v1261, %v1270
    %v1273 = vunpack.c.l.s4 1966171168
    %v1274 = vunpack.c.0.s8 %v1273
    %v1275 = vlaneseq
    %v1276 = vshrl.u32 %v1275, 7
    %v1277 = vsub.s32 %v1274, %v1276
    %v1278 = vrot.slane %v1262, %v1277
    %v1280 = vunpack.c.l.s4 1966171168
    %v1281 = vunpack.c.0.s8 %v1280
    %v1282 = vlaneseq
    %v1283 = vshrl.u32 %v1282, 7
    %v1284 = vsub.s32 %v1281, %v1283
    %v1285 = vrot.slane %v1263, %v1284
    %v1287 = vunpack.c.l.s4 1966171168
    %v1288 = vunpack.c.0.s8 %v1287
    %v1289 = vlaneseq
    %v1290 = vshrl.u32 %v1289, 7
    %v1291 = vsub.s32 %v1288, %v1290
    %v1292 = vrot.slane %v1264, %v1291
    %v1293 = vcombine.low %v1271, %v1278
    %v1294 = vcombine.low %v1285, %v1292
    %v1296 = vunpack.c.l.s4 1966171168
    %v1297 = vunpack.c.0.s8 %v1296
    %v1298 = vlaneseq
    %v1299 = vshrl.u32 %v1298, 7
    %v1300 = vsub.s32 %v1297, %v1299
    %v1301 = vrot.slane %v1293, %v1300
    %v1303 = vunpack.c.l.s4 1966171168
    %v1304 = vunpack.c.0.s8 %v1303
    %v1305 = vlaneseq
    %v1306 = vshrl.u32 %v1305, 7
    %v1307 = vsub.s32 %v1304, %v1306
    %v1308 = vrot.slane %v1294, %v1307
    %v1309 = vcombine.low %v1301, %v1308
    %v1310 = vcombine.low %v1249, %v1250
    %v1312 = vunpack.c.l.s4 1966171168
    %v1313 = vunpack.c.0.s8 %v1312
    %v1314 = vlaneseq
    %v1315 = vshrl.u32 %v1314, 7
    %v1316 = vsub.s32 %v1313, %v1315
    %v1317 = vrot.slane %v1310, %v1316
    %v1319 = vunpack.c.l.s4 1966171168
    %v1320 = vunpack.c.0.s8 %v1319
    %v1321 = vlaneseq
    %v1322 = vshrl.u32 %v1321, 7
    %v1323 = vsub.s32 %v1320, %v1322
    %v1324 = vrot.slane %v1317, %v1323
    %v1327 = vsel %vm716, %v1309, 0.0
    %1328 = vadd.xlane.f32.xlu0 %v1327
    %v1329 = vpop.xlane.xlu0 %1328
    %v1330 = vsel %vm720, %v1324, 0.0
    %1331 = vadd.xlane.f32.xlu0 %v1330
    %v1332 = vpop.xlane.xlu0 %1331
    %v1333 = vmul.f32 %v1329, %v724
    %v1334 = vmul.f32 %v1332, %v724
    %v1335 = vadd.f32 %v1333, 1e-05
    %v1336 = vadd.f32 %v1334, 1e-05
    %v1337 = vrsqrt.pop %v1335
    %v1338 = vrsqrt.pop %v1336
    %v1341 = vlaneseq
    %v1342 = vshrl.u32 %v1341, 7
    %v1343 = vsub.s32 0, %v1342
    %v1344 = vrot.slane %v1337, %v1343
    %v1345 = vlaneseq
    %v1346 = vshrl.u32 %v1345, 7
    %v1347 = vsub.s32 1, %v1346
    %v1348 = vrot.slane %v1337, %v1347
    %v1349 = vlaneseq
    %v1350 = vshrl.u32 %v1349, 7
    %v1351 = vsub.s32 2, %v1350
    %v1352 = vrot.slane %v1337, %v1351
    %v1353 = vlaneseq
    %v1354 = vshrl.u32 %v1353, 7
    %v1355 = vsub.s32 3, %v1354
    %v1356 = vrot.slane %v1337, %v1355
    %v1357 = vlaneseq
    %v1358 = vshrl.u32 %v1357, 7
    %v1359 = vsub.s32 4, %v1358
    %v1360 = vrot.slane %v1337, %v1359
    %v1361 = vlaneseq
    %v1362 = vshrl.u32 %v1361, 7
    %v1363 = vsub.s32 5, %v1362
    %v1364 = vrot.slane %v1337, %v1363
    %v1365 = vlaneseq
    %v1366 = vshrl.u32 %v1365, 7
    %v1367 = vsub.s32 6, %v1366
    %v1368 = vrot.slane %v1337, %v1367
    %v1369 = vlaneseq
    %v1370 = vshrl.u32 %v1369, 7
    %v1371 = vsub.s32 7, %v1370
    %v1372 = vrot.slane %v1337, %v1371
    %v1373 = vlaneseq
    %v1374 = vshrl.u32 %v1373, 7
    %v1375 = vsub.s32 0, %v1374
    %v1376 = vrot.slane %v1338, %v1375
    %v1377 = vlaneseq
    %v1378 = vshrl.u32 %v1377, 7
    %v1379 = vsub.s32 1, %v1378
    %v1380 = vrot.slane %v1338, %v1379
    %v1391 = vmul.f32 %v1231, %v1344
    %v1392 = vmul.f32 %v1232, %v1348
    %v1393 = vmul.f32 %v1233, %v1352
    %v1394 = vmul.f32 %v1234, %v1356
    %v1395 = vmul.f32 %v1235, %v1360
    %v1396 = vmul.f32 %v1236, %v1364
    %v1397 = vmul.f32 %v1237, %v1368
    %v1398 = vmul.f32 %v1238, %v1372
    %v1399 = vmul.f32 %v1239, %v1376
    %v1400 = vmul.f32 %v1240, %v1380
    %v1402 = vlaneseq
    %v1403 = vshrl.u32 %v1402, 7
    %v1404 = vsub.s32 0, %v1403
    %v1405 = vrot.slane %v1093, %v1404
    %v1406 = vcombine.high %v1405, %v1405
    %v1408 = vunpack.c.l.s4 1966171168
    %v1409 = vunpack.c.0.s8 %v1408
    %v1410 = vlaneseq
    %v1411 = vshrl.u32 %v1410, 7
    %v1412 = vsub.s32 %v1409, %v1411
    %v1413 = vrot.slane %v1405, %v1412
    %v1415 = vunpack.c.l.s4 1966171168
    %v1416 = vunpack.c.0.s8 %v1415
    %v1417 = vlaneseq
    %v1418 = vshrl.u32 %v1417, 7
    %v1419 = vsub.s32 %v1416, %v1418
    %v1420 = vrot.slane %v1406, %v1419
    %v1421 = vcombine.high %v1413, %v1413
    %v1422 = vcombine.high %v1420, %v1420
    %v1424 = vunpack.c.l.s4 1966171168
    %v1425 = vunpack.c.0.s8 %v1424
    %v1426 = vlaneseq
    %v1427 = vshrl.u32 %v1426, 7
    %v1428 = vsub.s32 %v1425, %v1427
    %v1429 = vrot.slane %v1413, %v1428
    %v1431 = vunpack.c.l.s4 1966171168
    %v1432 = vunpack.c.0.s8 %v1431
    %v1433 = vlaneseq
    %v1434 = vshrl.u32 %v1433, 7
    %v1435 = vsub.s32 %v1432, %v1434
    %v1436 = vrot.slane %v1420, %v1435
    %v1438 = vunpack.c.l.s4 1966171168
    %v1439 = vunpack.c.0.s8 %v1438
    %v1440 = vlaneseq
    %v1441 = vshrl.u32 %v1440, 7
    %v1442 = vsub.s32 %v1439, %v1441
    %v1443 = vrot.slane %v1421, %v1442
    %v1445 = vunpack.c.l.s4 1966171168
    %v1446 = vunpack.c.0.s8 %v1445
    %v1447 = vlaneseq
    %v1448 = vshrl.u32 %v1447, 7
    %v1449 = vsub.s32 %v1446, %v1448
    %v1450 = vrot.slane %v1422, %v1449
    %v1451 = vcombine.high %v1429, %v1429
    %v1452 = vcombine.high %v1436, %v1436
    %v1453 = vcombine.high %v1443, %v1443
    %v1454 = vcombine.high %v1450, %v1450
    %v1463 = vmul.f32 %v1391, %v1429
    %v1464 = vmul.f32 %v1392, %v1443
    %v1465 = vmul.f32 %v1393, %v1451
    %v1466 = vmul.f32 %v1394, %v1453
    %v1467 = vmul.f32 %v1395, %v1436
    %v1468 = vmul.f32 %v1396, %v1450
    %v1469 = vmul.f32 %v1397, %v1452
    %v1470 = vmul.f32 %v1398, %v1454
    %v1471 = vmul.f32 %v1399, %v1429
    %v1472 = vmul.f32 %v1400, %v1443
    %v1474 = vlaneseq
    %v1475 = vshrl.u32 %v1474, 7
    %v1476 = vsub.s32 0, %v1475
    %v1477 = vrot.slane %v1094, %v1476
    %v1478 = vcombine.high %v1477, %v1477
    %v1480 = vunpack.c.l.s4 1966171168
    %v1481 = vunpack.c.0.s8 %v1480
    %v1482 = vlaneseq
    %v1483 = vshrl.u32 %v1482, 7
    %v1484 = vsub.s32 %v1481, %v1483
    %v1485 = vrot.slane %v1477, %v1484
    %v1487 = vunpack.c.l.s4 1966171168
    %v1488 = vunpack.c.0.s8 %v1487
    %v1489 = vlaneseq
    %v1490 = vshrl.u32 %v1489, 7
    %v1491 = vsub.s32 %v1488, %v1490
    %v1492 = vrot.slane %v1478, %v1491
    %v1493 = vcombine.high %v1485, %v1485
    %v1494 = vcombine.high %v1492, %v1492
    %v1496 = vunpack.c.l.s4 1966171168
    %v1497 = vunpack.c.0.s8 %v1496
    %v1498 = vlaneseq
    %v1499 = vshrl.u32 %v1498, 7
    %v1500 = vsub.s32 %v1497, %v1499
    %v1501 = vrot.slane %v1485, %v1500
    %v1503 = vunpack.c.l.s4 1966171168
    %v1504 = vunpack.c.0.s8 %v1503
    %v1505 = vlaneseq
    %v1506 = vshrl.u32 %v1505, 7
    %v1507 = vsub.s32 %v1504, %v1506
    %v1508 = vrot.slane %v1492, %v1507
    %v1510 = vunpack.c.l.s4 1966171168
    %v1511 = vunpack.c.0.s8 %v1510
    %v1512 = vlaneseq
    %v1513 = vshrl.u32 %v1512, 7
    %v1514 = vsub.s32 %v1511, %v1513
    %v1515 = vrot.slane %v1493, %v1514
    %v1517 = vunpack.c.l.s4 1966171168
    %v1518 = vunpack.c.0.s8 %v1517
    %v1519 = vlaneseq
    %v1520 = vshrl.u32 %v1519, 7
    %v1521 = vsub.s32 %v1518, %v1520
    %v1522 = vrot.slane %v1494, %v1521
    %v1523 = vcombine.high %v1501, %v1501
    %v1524 = vcombine.high %v1508, %v1508
    %v1525 = vcombine.high %v1515, %v1515
    %v1526 = vcombine.high %v1522, %v1522
    %v1535 = vadd.f32 %v1463, %v1501
    %v1536 = vadd.f32 %v1464, %v1515
    %v1537 = vadd.f32 %v1465, %v1523
    %v1538 = vadd.f32 %v1466, %v1525
    %v1539 = vadd.f32 %v1467, %v1508
    %v1540 = vadd.f32 %v1468, %v1522
    %v1541 = vadd.f32 %v1469, %v1524
    %v1542 = vadd.f32 %v1470, %v1526
    %v1543 = vadd.f32 %v1471, %v1501
    %v1544 = vadd.f32 %v1472, %v1515
    %v1555 = vcombine.low %v1535, %v1536
    %v1556 = vcombine.low %v1537, %v1538
    %v1557 = vcombine.low %v1539, %v1540
    %v1558 = vcombine.low %v1541, %v1542
    %v1560 = vunpack.c.l.s4 1966171168
    %v1561 = vunpack.c.0.s8 %v1560
    %v1562 = vlaneseq
    %v1563 = vshrl.u32 %v1562, 7
    %v1564 = vsub.s32 %v1561, %v1563
    %v1565 = vrot.slane %v1555, %v1564
    %v1567 = vunpack.c.l.s4 1966171168
    %v1568 = vunpack.c.0.s8 %v1567
    %v1569 = vlaneseq
    %v1570 = vshrl.u32 %v1569, 7
    %v1571 = vsub.s32 %v1568, %v1570
    %v1572 = vrot.slane %v1556, %v1571
    %v1574 = vunpack.c.l.s4 1966171168
    %v1575 = vunpack.c.0.s8 %v1574
    %v1576 = vlaneseq
    %v1577 = vshrl.u32 %v1576, 7
    %v1578 = vsub.s32 %v1575, %v1577
    %v1579 = vrot.slane %v1557, %v1578
    %v1581 = vunpack.c.l.s4 1966171168
    %v1582 = vunpack.c.0.s8 %v1581
    %v1583 = vlaneseq
    %v1584 = vshrl.u32 %v1583, 7
    %v1585 = vsub.s32 %v1582, %v1584
    %v1586 = vrot.slane %v1558, %v1585
    %v1587 = vcombine.low %v1565, %v1572
    %v1588 = vcombine.low %v1579, %v1586
    %v1590 = vunpack.c.l.s4 1966171168
    %v1591 = vunpack.c.0.s8 %v1590
    %v1592 = vlaneseq
    %v1593 = vshrl.u32 %v1592, 7
    %v1594 = vsub.s32 %v1591, %v1593
    %v1595 = vrot.slane %v1587, %v1594
    %v1597 = vunpack.c.l.s4 1966171168
    %v1598 = vunpack.c.0.s8 %v1597
    %v1599 = vlaneseq
    %v1600 = vshrl.u32 %v1599, 7
    %v1601 = vsub.s32 %v1598, %v1600
    %v1602 = vrot.slane %v1588, %v1601
    %v1603 = vcombine.low %v1595, %v1602
    %v1604 = vcombine.low %v1543, %v1544
    %v1606 = vunpack.c.l.s4 1966171168
    %v1607 = vunpack.c.0.s8 %v1606
    %v1608 = vlaneseq
    %v1609 = vshrl.u32 %v1608, 7
    %v1610 = vsub.s32 %v1607, %v1609
    %v1611 = vrot.slane %v1604, %v1610
    %v1613 = vunpack.c.l.s4 1966171168
    %v1614 = vunpack.c.0.s8 %v1613
    %v1615 = vlaneseq
    %v1616 = vshrl.u32 %v1615, 7
    %v1617 = vsub.s32 %v1614, %v1616
    %v1618 = vrot.slane %v1611, %v1617
    %v1621 = vpack.c.bf16 %v1618, %v1603
    %v1622 = vld [vmem:[%s15] sm:$0xf]
    %v1623 = vld [vmem:[%s15 + $0x4] sm:$0xf]
    %v1624 = vld [vmem:[%s15 + $0x8] sm:$0xf]
    %v1625 = vld [vmem:[%s15 + $0xc] sm:$0xf]
    %v1626 = vld [vmem:[%s17] sm:$0x1]
    %v1628 = vlaneseq
    %v1629 = vshrl.u32 %v1628, 7
    %v1630 = vsub.s32 0, %v1629
    %v1631 = vrot.slane %v1626, %v1630
    %v1637 = vunpack.c.l.b16 %v1622
    %v1638 = vunpack.c.l.b16 %v1623
    %v1639 = vunpack.c.l.b16 %v1624
    %v1640 = vunpack.c.l.b16 %v1625
    %v1641 = vpack.c.b16 %v1638, %v1637
    %v1642 = vpack.c.b16 %v1640, %v1639
    %v1646 = vsel %vm716, %v1621, 0
    %1648 = vmatprep.subr.bf16.mxu0 0
    %1649 = vmatpush1.bf16.msra.mxu0 %v1641
    %1650 = vmatprep.subr.bf16.mxu0 0
    %1651 = vmatpush1.bf16.msra.mxu0 %v1642
    %1652 = vmatprep.subr.bf16.mxu0 0
    %1653 = vmatpush1.bf16.msra.mxu0 0
    %1654 = vmatprep.subr.bf16.mxu0 0
    %1655 = vmatpush1.bf16.msra.mxu0 0
    %1656 = vmatprep.subr.bf16.mxu0 0
    %1657 = vmatpush1.bf16.msra.mxu0 0
    %1658 = vmatprep.subr.bf16.mxu0 0
    %1659 = vmatpush1.bf16.msra.mxu0 0
    %1660 = vmatprep.subr.bf16.mxu0 0
    %1661 = vmatpush1.bf16.msra.mxu0 0
    %1662 = vmatprep.subr.bf16.mxu0 0
    %1663 = vmatpush1.bf16.msra.mxu0 0
    %1664 = vmatprep.subr.bf16.mxu0 0
    %1665 = vmatpush1.bf16.msra.mxu0 0
    %1666 = vmatprep.subr.bf16.mxu0 0
    %1667 = vmatpush1.bf16.msra.mxu0 0
    %1668 = vmatprep.subr.bf16.mxu0 0
    %1669 = vmatpush1.bf16.msra.mxu0 0
    %1670 = vmatprep.subr.bf16.mxu0 0
    %1671 = vmatpush1.bf16.msra.mxu0 0
    %1672 = vmatprep.subr.bf16.mxu0 0
    %1673 = vmatpush1.bf16.msra.mxu0 0
    %1674 = vmatprep.subr.bf16.mxu0 0
    %1675 = vmatpush1.bf16.msra.mxu0 0
    %1676 = vmatprep.subr.bf16.mxu0 0
    %1677 = vmatpush1.bf16.msra.mxu0 0
    %1678 = vmatprep.subr.bf16.mxu0 0
    %1679 = vmatpush1.bf16.msra.mxu0 0
    %1680 = vmatprep.mubr.bf16.mxu0 0
    %1681 = vmatmul.mubr.bf16.gmra.mrb[0].mxu0 %v1646
    %v1682 = vpop.f32.mrb[0].mxu0
    %v1683 = vadd.f32 %v1631, %v1682
    %v1684 = vpop.f32.mrb[0].mxu0
    %v1685 = vpop.f32.mrb[0].mxu0
    %v1686 = vadd.f32 %v1631, %v1685
    %v1687 = vpop.f32.mrb[0].mxu0
    %1688 = vdwg.mxu0
    %v1691 = vcombine.high %v1683, %v1683
    %v1693 = vunpack.c.l.s4 1966171168
    %v1694 = vunpack.c.0.s8 %v1693
    %v1695 = vlaneseq
    %v1696 = vshrl.u32 %v1695, 7
    %v1697 = vsub.s32 %v1694, %v1696
    %v1698 = vrot.slane %v1683, %v1697
    %v1700 = vunpack.c.l.s4 1966171168
    %v1701 = vunpack.c.0.s8 %v1700
    %v1702 = vlaneseq
    %v1703 = vshrl.u32 %v1702, 7
    %v1704 = vsub.s32 %v1701, %v1703
    %v1705 = vrot.slane %v1691, %v1704
    %v1706 = vcombine.high %v1698, %v1698
    %v1707 = vcombine.high %v1705, %v1705
    %v1709 = vunpack.c.l.s4 1966171168
    %v1710 = vunpack.c.0.s8 %v1709
    %v1711 = vlaneseq
    %v1712 = vshrl.u32 %v1711, 7
    %v1713 = vsub.s32 %v1710, %v1712
    %v1714 = vrot.slane %v1698, %v1713
    %v1716 = vunpack.c.l.s4 1966171168
    %v1717 = vunpack.c.0.s8 %v1716
    %v1718 = vlaneseq
    %v1719 = vshrl.u32 %v1718, 7
    %v1720 = vsub.s32 %v1717, %v1719
    %v1721 = vrot.slane %v1705, %v1720
    %v1723 = vunpack.c.l.s4 1966171168
    %v1724 = vunpack.c.0.s8 %v1723
    %v1725 = vlaneseq
    %v1726 = vshrl.u32 %v1725, 7
    %v1727 = vsub.s32 %v1724, %v1726
    %v1728 = vrot.slane %v1706, %v1727
    %v1730 = vunpack.c.l.s4 1966171168
    %v1731 = vunpack.c.0.s8 %v1730
    %v1732 = vlaneseq
    %v1733 = vshrl.u32 %v1732, 7
    %v1734 = vsub.s32 %v1731, %v1733
    %v1735 = vrot.slane %v1707, %v1734
    %v1736 = vcombine.high %v1714, %v1714
    %v1737 = vcombine.high %v1721, %v1721
    %v1738 = vcombine.high %v1728, %v1728
    %v1739 = vcombine.high %v1735, %v1735
    %v1741 = vunpack.c.l.s4 1966171168
    %v1742 = vunpack.c.0.s8 %v1741
    %v1743 = vlaneseq
    %v1744 = vshrl.u32 %v1743, 7
    %v1745 = vsub.s32 %v1742, %v1744
    %v1746 = vrot.slane %v1686, %v1745
    %v1747 = vcombine.high %v1746, %v1746
    %v1749 = vunpack.c.l.s4 1966171168
    %v1750 = vunpack.c.0.s8 %v1749
    %v1751 = vlaneseq
    %v1752 = vshrl.u32 %v1751, 7
    %v1753 = vsub.s32 %v1750, %v1752
    %v1754 = vrot.slane %v1746, %v1753
    %v1756 = vunpack.c.l.s4 1966171168
    %v1757 = vunpack.c.0.s8 %v1756
    %v1758 = vlaneseq
    %v1759 = vshrl.u32 %v1758, 7
    %v1760 = vsub.s32 %v1757, %v1759
    %v1761 = vrot.slane %v1747, %v1760
    %v1772 = vmul.f32 %v1714, 0.35355338
    %v1773 = vmul.f32 %v1728, 0.35355338
    %v1774 = vmul.f32 %v1736, 0.35355338
    %v1775 = vmul.f32 %v1738, 0.35355338
    %v1776 = vmul.f32 %v1721, 0.35355338
    %v1777 = vmul.f32 %v1735, 0.35355338
    %v1778 = vmul.f32 %v1737, 0.35355338
    %v1779 = vmul.f32 %v1739, 0.35355338
    %v1780 = vmul.f32 %v1754, 0.35355338
    %v1781 = vmul.f32 %v1761, 0.35355338
    %v1792 = vcombine.low %v1772, %v1773
    %v1793 = vcombine.low %v1774, %v1775
    %v1795 = vunpack.c.l.s4 1966171168
    %v1796 = vunpack.c.0.s8 %v1795
    %v1797 = vlaneseq
    %v1798 = vshrl.u32 %v1797, 7
    %v1799 = vsub.s32 %v1796, %v1798
    %v1800 = vrot.slane %v1792, %v1799
    %v1802 = vunpack.c.l.s4 1966171168
    %v1803 = vunpack.c.0.s8 %v1802
    %v1804 = vlaneseq
    %v1805 = vshrl.u32 %v1804, 7
    %v1806 = vsub.s32 %v1803, %v1805
    %v1807 = vrot.slane %v1793, %v1806
    %v1809 = vunpack.c.l.s4 1966171168
    %v1810 = vunpack.c.0.s8 %v1809
    %v1811 = vlaneseq
    %v1812 = vshrl.u32 %v1811, 7
    %v1813 = vsub.s32 %v1810, %v1812
    %v1814 = vrot.slane %v1776, %v1813
    %v1815 = vcombine.low %v1800, %v1807
    %v1817 = vunpack.c.l.s4 1966171168
    %v1818 = vunpack.c.0.s8 %v1817
    %v1819 = vlaneseq
    %v1820 = vshrl.u32 %v1819, 7
    %v1821 = vsub.s32 %v1818, %v1820
    %v1822 = vrot.slane %v1815, %v1821
    %v1824 = vunpack.c.l.s4 1966171168
    %v1825 = vunpack.c.0.s8 %v1824
    %v1826 = vlaneseq
    %v1827 = vshrl.u32 %v1826, 7
    %v1828 = vsub.s32 %v1825, %v1827
    %v1829 = vrot.slane %v1814, %v1828
    %v1830 = vcombine.low %v1822, %v1829
    %v1831 = vcombine.low %v1777, %v1778
    %v1832 = vcombine.low %v1779, %v1780
    %v1834 = vunpack.c.l.s4 1966171168
    %v1835 = vunpack.c.0.s8 %v1834
    %v1836 = vlaneseq
    %v1837 = vshrl.u32 %v1836, 7
    %v1838 = vsub.s32 %v1835, %v1837
    %v1839 = vrot.slane %v1831, %v1838
    %v1841 = vunpack.c.l.s4 1966171168
    %v1842 = vunpack.c.0.s8 %v1841
    %v1843 = vlaneseq
    %v1844 = vshrl.u32 %v1843, 7
    %v1845 = vsub.s32 %v1842, %v1844
    %v1846 = vrot.slane %v1832, %v1845
    %v1848 = vunpack.c.l.s4 1966171168
    %v1849 = vunpack.c.0.s8 %v1848
    %v1850 = vlaneseq
    %v1851 = vshrl.u32 %v1850, 7
    %v1852 = vsub.s32 %v1849, %v1851
    %v1853 = vrot.slane %v1781, %v1852
    %v1854 = vcombine.low %v1839, %v1846
    %v1856 = vunpack.c.l.s4 1966171168
    %v1857 = vunpack.c.0.s8 %v1856
    %v1858 = vlaneseq
    %v1859 = vshrl.u32 %v1858, 7
    %v1860 = vsub.s32 %v1857, %v1859
    %v1861 = vrot.slane %v1854, %v1860
    %v1863 = vunpack.c.l.s4 1966171168
    %v1864 = vunpack.c.0.s8 %v1863
    %v1865 = vlaneseq
    %v1866 = vshrl.u32 %v1865, 7
    %v1867 = vsub.s32 %v1864, %v1866
    %v1868 = vrot.slane %v1853, %v1867
    %v1869 = vcombine.low %v1861, %v1868
    %v1872 = vpack.c.bf16 %v1830, %v1830
    %v1873 = vpack.c.bf16 %v1869, %v1869
    %v1874 = vcombine.low %v1714, %v1728
    %v1875 = vcombine.low %v1736, %v1738
    %v1877 = vunpack.c.l.s4 1966171168
    %v1878 = vunpack.c.0.s8 %v1877
    %v1879 = vlaneseq
    %v1880 = vshrl.u32 %v1879, 7
    %v1881 = vsub.s32 %v1878, %v1880
    %v1882 = vrot.slane %v1874, %v1881
    %v1884 = vunpack.c.l.s4 1966171168
    %v1885 = vunpack.c.0.s8 %v1884
    %v1886 = vlaneseq
    %v1887 = vshrl.u32 %v1886, 7
    %v1888 = vsub.s32 %v1885, %v1887
    %v1889 = vrot.slane %v1875, %v1888
    %v1891 = vunpack.c.l.s4 1966171168
    %v1892 = vunpack.c.0.s8 %v1891
    %v1893 = vlaneseq
    %v1894 = vshrl.u32 %v1893, 7
    %v1895 = vsub.s32 %v1892, %v1894
    %v1896 = vrot.slane %v1721, %v1895
    %v1897 = vcombine.low %v1882, %v1889
    %v1899 = vunpack.c.l.s4 1966171168
    %v1900 = vunpack.c.0.s8 %v1899
    %v1901 = vlaneseq
    %v1902 = vshrl.u32 %v1901, 7
    %v1903 = vsub.s32 %v1900, %v1902
    %v1904 = vrot.slane %v1897, %v1903
    %v1906 = vunpack.c.l.s4 1966171168
    %v1907 = vunpack.c.0.s8 %v1906
    %v1908 = vlaneseq
    %v1909 = vshrl.u32 %v1908, 7
    %v1910 = vsub.s32 %v1907, %v1909
    %v1911 = vrot.slane %v1896, %v1910
    %v1912 = vcombine.low %v1904, %v1911
    %v1913 = vcombine.low %v1735, %v1737
    %v1914 = vcombine.low %v1739, %v1754
    %v1916 = vunpack.c.l.s4 1966171168
    %v1917 = vunpack.c.0.s8 %v1916
    %v1918 = vlaneseq
    %v1919 = vshrl.u32 %v1918, 7
    %v1920 = vsub.s32 %v1917, %v1919
    %v1921 = vrot.slane %v1913, %v1920
    %v1923 = vunpack.c.l.s4 1966171168
    %v1924 = vunpack.c.0.s8 %v1923
    %v1925 = vlaneseq
    %v1926 = vshrl.u32 %v1925, 7
    %v1927 = vsub.s32 %v1924, %v1926
    %v1928 = vrot.slane %v1914, %v1927
    %v1930 = vunpack.c.l.s4 1966171168
    %v1931 = vunpack.c.0.s8 %v1930
    %v1932 = vlaneseq
    %v1933 = vshrl.u32 %v1932, 7
    %v1934 = vsub.s32 %v1931, %v1933
    %v1935 = vrot.slane %v1761, %v1934
    %v1936 = vcombine.low %v1921, %v1928
    %v1938 = vunpack.c.l.s4 1966171168
    %v1939 = vunpack.c.0.s8 %v1938
    %v1940 = vlaneseq
    %v1941 = vshrl.u32 %v1940, 7
    %v1942 = vsub.s32 %v1939, %v1941
    %v1943 = vrot.slane %v1936, %v1942
    %v1945 = vunpack.c.l.s4 1966171168
    %v1946 = vunpack.c.0.s8 %v1945
    %v1947 = vlaneseq
    %v1948 = vshrl.u32 %v1947, 7
    %v1949 = vsub.s32 %v1946, %v1948
    %v1950 = vrot.slane %v1935, %v1949
    %v1951 = vcombine.low %v1943, %v1950
    %v1954 = vpack.c.bf16 %v1912, %v1912
    %v1955 = vpack.c.bf16 %v1951, %v1951
    %1957 = vrot.lane.b32.xlu0 %v1954, 96
    %v1958 = vpop.permute.xlu0 %1957
    %vm1959 = vcmask 64512
    %v1961 = vsel %vm1959, %v1872, 0
    %v1964 = vsel %vm1959, %v1958, 0
    %1966 = vmatprep.subr.bf16.mxu0 0
    %1967 = vmatpush1.bf16.xpose.msra.mxu0 %v1964
    %1968 = vmatprep.subr.bf16.mxu0 0
    %1969 = vmatpush1.bf16.xpose.msra.mxu0 0
    %1970 = vmatprep.subr.bf16.mxu0 0
    %1971 = vmatpush1.bf16.xpose.msra.mxu0 0
    %1972 = vmatprep.subr.bf16.mxu0 0
    %1973 = vmatpush1.bf16.xpose.msra.mxu0 0
    %1974 = vmatprep.subr.bf16.mxu0 0
    %1975 = vmatpush1.bf16.xpose.msra.mxu0 0
    %1976 = vmatprep.subr.bf16.mxu0 0
    %1977 = vmatpush1.bf16.xpose.msra.mxu0 0
    %1978 = vmatprep.subr.bf16.mxu0 0
    %1979 = vmatpush1.bf16.xpose.msra.mxu0 0
    %1980 = vmatprep.subr.bf16.mxu0 0
    %1981 = vmatpush1.bf16.xpose.msra.mxu0 0
    %1982 = vmatprep.subr.bf16.mxu0 0
    %1983 = vmatpush1.bf16.xpose.msra.mxu0 0
    %1984 = vmatprep.subr.bf16.mxu0 0
    %1985 = vmatpush1.bf16.xpose.msra.mxu0 0
    %1986 = vmatprep.subr.bf16.mxu0 0
    %1987 = vmatpush1.bf16.xpose.msra.mxu0 0
    %1988 = vmatprep.subr.bf16.mxu0 0
    %1989 = vmatpush1.bf16.xpose.msra.mxu0 0
    %1990 = vmatprep.subr.bf16.mxu0 0
    %1991 = vmatpush1.bf16.xpose.msra.mxu0 0
    %1992 = vmatprep.subr.bf16.mxu0 0
    %1993 = vmatpush1.bf16.xpose.msra.mxu0 0
    %1994 = vmatprep.subr.bf16.mxu0 0
    %1995 = vmatpush1.bf16.xpose.msra.mxu0 0
    %1996 = vmatprep.subr.bf16.mxu0 0
    %1997 = vmatpush1.bf16.xpose.msra.mxu0 0
    %1998 = vmatprep.mubr.bf16.mxu0 0
    %1999 = vmatmul.mubr.bf16.gmra.mrb[0].mxu0 %v1961
    %v2000 = vpop.f32.mrb[0].mxu0
    %v2001 = vadd.f32 0.0, %v2000
    %v2002 = vpop.f32.mrb[0].mxu0
    %v2003 = vpop.f32.mrb[0].mxu0
    %v2004 = vpop.f32.mrb[0].mxu0
    %2005 = vdwg.mxu0
    %2007 = vrot.lane.b32.xlu0 %v1955, 96
    %v2008 = vpop.permute.xlu0 %2007
    %v2010 = vsel %vm1959, %v1873, 0
    %v2013 = vsel %vm1959, %v2008, 0
    %2015 = vmatprep.subr.bf16.mxu0 0
    %2016 = vmatpush1.bf16.xpose.msra.mxu0 %v2013
    %2017 = vmatprep.subr.bf16.mxu0 0
    %2018 = vmatpush1.bf16.xpose.msra.mxu0 0
    %2019 = vmatprep.subr.bf16.mxu0 0
    %2020 = vmatpush1.bf16.xpose.msra.mxu0 0
    %2021 = vmatprep.subr.bf16.mxu0 0
    %2022 = vmatpush1.bf16.xpose.msra.mxu0 0
    %2023 = vmatprep.subr.bf16.mxu0 0
    %2024 = vmatpush1.bf16.xpose.msra.mxu0 0
    %2025 = vmatprep.subr.bf16.mxu0 0
    %2026 = vmatpush1.bf16.xpose.msra.mxu0 0
    %2027 = vmatprep.subr.bf16.mxu0 0
    %2028 = vmatpush1.bf16.xpose.msra.mxu0 0
    %2029 = vmatprep.subr.bf16.mxu0 0
    %2030 = vmatpush1.bf16.xpose.msra.mxu0 0
    %2031 = vmatprep.subr.bf16.mxu0 0
    %2032 = vmatpush1.bf16.xpose.msra.mxu0 0
    %2033 = vmatprep.subr.bf16.mxu0 0
    %2034 = vmatpush1.bf16.xpose.msra.mxu0 0
    %2035 = vmatprep.subr.bf16.mxu0 0
    %2036 = vmatpush1.bf16.xpose.msra.mxu0 0
    %2037 = vmatprep.subr.bf16.mxu0 0
    %2038 = vmatpush1.bf16.xpose.msra.mxu0 0
    %2039 = vmatprep.subr.bf16.mxu0 0
    %2040 = vmatpush1.bf16.xpose.msra.mxu0 0
    %2041 = vmatprep.subr.bf16.mxu0 0
    %2042 = vmatpush1.bf16.xpose.msra.mxu0 0
    %2043 = vmatprep.subr.bf16.mxu0 0
    %2044 = vmatpush1.bf16.xpose.msra.mxu0 0
    %2045 = vmatprep.subr.bf16.mxu0 0
    %2046 = vmatpush1.bf16.xpose.msra.mxu0 0
    %2047 = vmatprep.mubr.bf16.mxu0 0
    %2048 = vmatmul.mubr.bf16.gmra.mrb[0].mxu0 %v2010
    %v2049 = vpop.f32.mrb[0].mxu0
    %v2050 = vadd.f32 0.0, %v2049
    %v2051 = vpop.f32.mrb[0].mxu0
    %v2052 = vpop.f32.mrb[0].mxu0
    %v2053 = vpop.f32.mrb[0].mxu0
    %2054 = vdwg.mxu0
    %vm2055 = vcmask 36864
    %v2056 = vsel %vm2055, %v2001, -inf
    %2057 = vmax.xlane.f32.xlu0 %v2056
    %v2058 = vpop.xlane.xlu0 %2057
    %v2059 = vsel %vm2055, %v2050, -inf
    %2060 = vmax.xlane.f32.xlu0 %v2059
    %v2061 = vpop.xlane.xlu0 %2060
    %v2062 = vsub.f32 %v2001, %v2058
    %v2063 = vsub.f32 %v2050, %v2061
    %v2064 = vmul.f32 %v2062, 1.442695
    %v2065 = vpow.pop %v2064
    %v2066 = vmul.f32 %v2063, 1.442695
    %v2067 = vpow.pop %v2066
    %v2068 = vsel %vm2055, %v2065, 0.0
    %2069 = vadd.xlane.f32.xlu0 %v2068
    %v2070 = vpop.xlane.xlu0 %2069
    %v2071 = vsel %vm2055, %v2067, 0.0
    %2072 = vadd.xlane.f32.xlu0 %v2071
    %v2073 = vpop.xlane.xlu0 %2072
    %v2074 = vrcp.pop %v2070
    %v2075 = vrcp.pop %v2073
    %v2076 = vmul.f32 %v2065, %v2074
    %v2077 = vmul.f32 %v2067, %v2075
    %v2078 = vpack.c.bf16 %v2076, %v2076
    %v2079 = vpack.c.bf16 %v2077, %v2077
    %2080 = vrot.lane.b32.xlu0 %v1954, 64
    %v2081 = vpop.permute.xlu0 %2080
    %vm2082 = vcmask 39936
    %v2084 = vsel %vm2082, %v2078, 0
    %vm2086 = vcmask 1041408
    %vm2087 = vcmask 1042432
    %v2088 = vsel %vm2086, 4294967295, 65535
    %v2089 = vsel %vm2087, %v2088, 0
    %v2091 = vand.u32 %v2081, %v2089
    %2093 = vmatprep.subr.bf16.mxu0 0
    %2094 = vmatpush1.bf16.msra.mxu0 %v2091
    %2095 = vmatprep.subr.bf16.mxu0 0
    %2096 = vmatpush1.bf16.msra.mxu0 0
    %2097 = vmatprep.subr.bf16.mxu0 0
    %2098 = vmatpush1.bf16.msra.mxu0 0
    %2099 = vmatprep.subr.bf16.mxu0 0
    %2100 = vmatpush1.bf16.msra.mxu0 0
    %2101 = vmatprep.subr.bf16.mxu0 0
    %2102 = vmatpush1.bf16.msra.mxu0 0
    %2103 = vmatprep.subr.bf16.mxu0 0
    %2104 = vmatpush1.bf16.msra.mxu0 0
    %2105 = vmatprep.subr.bf16.mxu0 0
    %2106 = vmatpush1.bf16.msra.mxu0 0
    %2107 = vmatprep.subr.bf16.mxu0 0
    %2108 = vmatpush1.bf16.msra.mxu0 0
    %2109 = vmatprep.subr.bf16.mxu0 0
    %2110 = vmatpush1.bf16.msra.mxu0 0
    %2111 = vmatprep.subr.bf16.mxu0 0
    %2112 = vmatpush1.bf16.msra.mxu0 0
    %2113 = vmatprep.subr.bf16.mxu0 0
    %2114 = vmatpush1.bf16.msra.mxu0 0
    %2115 = vmatprep.subr.bf16.mxu0 0
    %2116 = vmatpush1.bf16.msra.mxu0 0
    %2117 = vmatprep.subr.bf16.mxu0 0
    %2118 = vmatpush1.bf16.msra.mxu0 0
    %2119 = vmatprep.subr.bf16.mxu0 0
    %2120 = vmatpush1.bf16.msra.mxu0 0
    %2121 = vmatprep.subr.bf16.mxu0 0
    %2122 = vmatpush1.bf16.msra.mxu0 0
    %2123 = vmatprep.subr.bf16.mxu0 0
    %2124 = vmatpush1.bf16.msra.mxu0 0
    %2125 = vmatprep.mubr.bf16.mxu0 0
    %2126 = vmatmul.mubr.bf16.gmra.mrb[0].mxu0 %v2084
    %v2127 = vpop.f32.mrb[0].mxu0
    %v2128 = vadd.f32 0.0, %v2127
    %v2129 = vpop.f32.mrb[0].mxu0
    %v2130 = vpop.f32.mrb[0].mxu0
    %v2131 = vpop.f32.mrb[0].mxu0
    %2132 = vdwg.mxu0
    %2133 = vrot.lane.b32.xlu0 %v1955, 64
    %v2134 = vpop.permute.xlu0 %2133
    %v2136 = vsel %vm2082, %v2079, 0
    %v2139 = vand.u32 %v2134, %v2089
    %2141 = vmatprep.subr.bf16.mxu0 0
    %2142 = vmatpush1.bf16.msra.mxu0 %v2139
    %2143 = vmatprep.subr.bf16.mxu0 0
    %2144 = vmatpush1.bf16.msra.mxu0 0
    %2145 = vmatprep.subr.bf16.mxu0 0
    %2146 = vmatpush1.bf16.msra.mxu0 0
    %2147 = vmatprep.subr.bf16.mxu0 0
    %2148 = vmatpush1.bf16.msra.mxu0 0
    %2149 = vmatprep.subr.bf16.mxu0 0
    %2150 = vmatpush1.bf16.msra.mxu0 0
    %2151 = vmatprep.subr.bf16.mxu0 0
    %2152 = vmatpush1.bf16.msra.mxu0 0
    %2153 = vmatprep.subr.bf16.mxu0 0
    %2154 = vmatpush1.bf16.msra.mxu0 0
    %2155 = vmatprep.subr.bf16.mxu0 0
    %2156 = vmatpush1.bf16.msra.mxu0 0
    %2157 = vmatprep.subr.bf16.mxu0 0
    %2158 = vmatpush1.bf16.msra.mxu0 0
    %2159 = vmatprep.subr.bf16.mxu0 0
    %2160 = vmatpush1.bf16.msra.mxu0 0
    %2161 = vmatprep.subr.bf16.mxu0 0
    %2162 = vmatpush1.bf16.msra.mxu0 0
    %2163 = vmatprep.subr.bf16.mxu0 0
    %2164 = vmatpush1.bf16.msra.mxu0 0
    %2165 = vmatprep.subr.bf16.mxu0 0
    %2166 = vmatpush1.bf16.msra.mxu0 0
    %2167 = vmatprep.subr.bf16.mxu0 0
    %2168 = vmatpush1.bf16.msra.mxu0 0
    %2169 = vmatprep.subr.bf16.mxu0 0
    %2170 = vmatpush1.bf16.msra.mxu0 0
    %2171 = vmatprep.subr.bf16.mxu0 0
    %2172 = vmatpush1.bf16.msra.mxu0 0
    %2173 = vmatprep.mubr.bf16.mxu0 0
    %2174 = vmatmul.mubr.bf16.gmra.mrb[0].mxu0 %v2136
    %v2175 = vpop.f32.mrb[0].mxu0
    %v2176 = vadd.f32 0.0, %v2175
    %v2177 = vpop.f32.mrb[0].mxu0
    %v2178 = vpop.f32.mrb[0].mxu0
    %v2179 = vpop.f32.mrb[0].mxu0
    %2180 = vdwg.mxu0
    %2182 = vrot.lane.b32.xlu0 %v1872, 120
    %v2183 = vpop.permute.xlu0 %2182
    %2184 = vrot.lane.b32.xlu0 %v1954, 88
    %v2185 = vpop.permute.xlu0 %2184
    %v2187 = vsel %vm1959, %v2183, 0
    %v2190 = vsel %vm1959, %v2185, 0
    %2192 = vmatprep.subr.bf16.mxu0 0
    %2193 = vmatpush1.bf16.xpose.msra.mxu0 %v2190
    %2194 = vmatprep.subr.bf16.mxu0 0
    %2195 = vmatpush1.bf16.xpose.msra.mxu0 0
    %2196 = vmatprep.subr.bf16.mxu0 0
    %2197 = vmatpush1.bf16.xpose.msra.mxu0 0
    %2198 = vmatprep.subr.bf16.mxu0 0
    %2199 = vmatpush1.bf16.xpose.msra.mxu0 0
    %2200 = vmatprep.subr.bf16.mxu0 0
    %2201 = vmatpush1.bf16.xpose.msra.mxu0 0
    %2202 = vmatprep.subr.bf16.mxu0 0
    %2203 = vmatpush1.bf16.xpose.msra.mxu0 0
    %2204 = vmatprep.subr.bf16.mxu0 0
    %2205 = vmatpush1.bf16.xpose.msra.mxu0 0
    %2206 = vmatprep.subr.bf16.mxu0 0
    %2207 = vmatpush1.bf16.xpose.msra.mxu0 0
    %2208 = vmatprep.subr.bf16.mxu0 0
    %2209 = vmatpush1.bf16.xpose.msra.mxu0 0
    %2210 = vmatprep.subr.bf16.mxu0 0
    %2211 = vmatpush1.bf16.xpose.msra.mxu0 0
    %2212 = vmatprep.subr.bf16.mxu0 0
    %2213 = vmatpush1.bf16.xpose.msra.mxu0 0
    %2214 = vmatprep.subr.bf16.mxu0 0
    %2215 = vmatpush1.bf16.xpose.msra.mxu0 0
    %2216 = vmatprep.subr.bf16.mxu0 0
    %2217 = vmatpush1.bf16.xpose.msra.mxu0 0
    %2218 = vmatprep.subr.bf16.mxu0 0
    %2219 = vmatpush1.bf16.xpose.msra.mxu0 0
    %2220 = vmatprep.subr.bf16.mxu0 0
    %2221 = vmatpush1.bf16.xpose.msra.mxu0 0
    %2222 = vmatprep.subr.bf16.mxu0 0
    %2223 = vmatpush1.bf16.xpose.msra.mxu0 0
    %2224 = vmatprep.mubr.bf16.mxu0 0
    %2225 = vmatmul.mubr.bf16.gmra.mrb[0].mxu0 %v2187
    %v2226 = vpop.f32.mrb[0].mxu0
    %v2227 = vadd.f32 0.0, %v2226
    %v2228 = vpop.f32.mrb[0].mxu0
    %v2229 = vpop.f32.mrb[0].mxu0
    %v2230 = vpop.f32.mrb[0].mxu0
    %2231 = vdwg.mxu0
    %2233 = vrot.lane.b32.xlu0 %v1873, 120
    %v2234 = vpop.permute.xlu0 %2233
    %2235 = vrot.lane.b32.xlu0 %v1955, 88
    %v2236 = vpop.permute.xlu0 %2235
    %v2238 = vsel %vm1959, %v2234, 0
    %v2241 = vsel %vm1959, %v2236, 0
    %2243 = vmatprep.subr.bf16.mxu0 0
    %2244 = vmatpush1.bf16.xpose.msra.mxu0 %v2241
    %2245 = vmatprep.subr.bf16.mxu0 0
    %2246 = vmatpush1.bf16.xpose.msra.mxu0 0
    %2247 = vmatprep.subr.bf16.mxu0 0
    %2248 = vmatpush1.bf16.xpose.msra.mxu0 0
    %2249 = vmatprep.subr.bf16.mxu0 0
    %2250 = vmatpush1.bf16.xpose.msra.mxu0 0
    %2251 = vmatprep.subr.bf16.mxu0 0
    %2252 = vmatpush1.bf16.xpose.msra.mxu0 0
    %2253 = vmatprep.subr.bf16.mxu0 0
    %2254 = vmatpush1.bf16.xpose.msra.mxu0 0
    %2255 = vmatprep.subr.bf16.mxu0 0
    %2256 = vmatpush1.bf16.xpose.msra.mxu0 0
    %2257 = vmatprep.subr.bf16.mxu0 0
    %2258 = vmatpush1.bf16.xpose.msra.mxu0 0
    %2259 = vmatprep.subr.bf16.mxu0 0
    %2260 = vmatpush1.bf16.xpose.msra.mxu0 0
    %2261 = vmatprep.subr.bf16.mxu0 0
    %2262 = vmatpush1.bf16.xpose.msra.mxu0 0
    %2263 = vmatprep.subr.bf16.mxu0 0
    %2264 = vmatpush1.bf16.xpose.msra.mxu0 0
    %2265 = vmatprep.subr.bf16.mxu0 0
    %2266 = vmatpush1.bf16.xpose.msra.mxu0 0
    %2267 = vmatprep.subr.bf16.mxu0 0
    %2268 = vmatpush1.bf16.xpose.msra.mxu0 0
    %2269 = vmatprep.subr.bf16.mxu0 0
    %2270 = vmatpush1.bf16.xpose.msra.mxu0 0
    %2271 = vmatprep.subr.bf16.mxu0 0
    %2272 = vmatpush1.bf16.xpose.msra.mxu0 0
    %2273 = vmatprep.subr.bf16.mxu0 0
    %2274 = vmatpush1.bf16.xpose.msra.mxu0 0
    %2275 = vmatprep.mubr.bf16.mxu0 0
    %2276 = vmatmul.mubr.bf16.gmra.mrb[0].mxu0 %v2238
    %v2277 = vpop.f32.mrb[0].mxu0
    %v2278 = vadd.f32 0.0, %v2277
    %v2279 = vpop.f32.mrb[0].mxu0
    %v2280 = vpop.f32.mrb[0].mxu0
    %v2281 = vpop.f32.mrb[0].mxu0
    %2282 = vdwg.mxu0
    %v2283 = vsel %vm2055, %v2227, -inf
    %2284 = vmax.xlane.f32.xlu0 %v2283
    %v2285 = vpop.xlane.xlu0 %2284
    %v2286 = vsel %vm2055, %v2278, -inf
    %2287 = vmax.xlane.f32.xlu0 %v2286
    %v2288 = vpop.xlane.xlu0 %2287
    %v2289 = vsub.f32 %v2227, %v2285
    %v2290 = vsub.f32 %v2278, %v2288
    %v2291 = vmul.f32 %v2289, 1.442695
    %v2292 = vpow.pop %v2291
    %v2293 = vmul.f32 %v2290, 1.442695
    %v2294 = vpow.pop %v2293
    %v2295 = vsel %vm2055, %v2292, 0.0
    %2296 = vadd.xlane.f32.xlu0 %v2295
    %v2297 = vpop.xlane.xlu0 %2296
    %v2298 = vsel %vm2055, %v2294, 0.0
    %2299 = vadd.xlane.f32.xlu0 %v2298
    %v2300 = vpop.xlane.xlu0 %2299
    %v2301 = vrcp.pop %v2297
    %v2302 = vrcp.pop %v2300
    %v2303 = vmul.f32 %v2292, %v2301
    %v2304 = vmul.f32 %v2294, %v2302
    %v2305 = vpack.c.bf16 %v2303, %v2303
    %v2306 = vpack.c.bf16 %v2304, %v2304
    %2307 = vrot.lane.b32.xlu0 %v1954, 56
    %v2308 = vpop.permute.xlu0 %2307
    %v2310 = vsel %vm2082, %v2305, 0
    %v2313 = vand.u32 %v2308, %v2089
    %2315 = vmatprep.subr.bf16.mxu0 0
    %2316 = vmatpush1.bf16.msra.mxu0 %v2313
    %2317 = vmatprep.subr.bf16.mxu0 0
    %2318 = vmatpush1.bf16.msra.mxu0 0
    %2319 = vmatprep.subr.bf16.mxu0 0
    %2320 = vmatpush1.bf16.msra.mxu0 0
    %2321 = vmatprep.subr.bf16.mxu0 0
    %2322 = vmatpush1.bf16.msra.mxu0 0
    %2323 = vmatprep.subr.bf16.mxu0 0
    %2324 = vmatpush1.bf16.msra.mxu0 0
    %2325 = vmatprep.subr.bf16.mxu0 0
    %2326 = vmatpush1.bf16.msra.mxu0 0
    %2327 = vmatprep.subr.bf16.mxu0 0
    %2328 = vmatpush1.bf16.msra.mxu0 0
    %2329 = vmatprep.subr.bf16.mxu0 0
    %2330 = vmatpush1.bf16.msra.mxu0 0
    %2331 = vmatprep.subr.bf16.mxu0 0
    %2332 = vmatpush1.bf16.msra.mxu0 0
    %2333 = vmatprep.subr.bf16.mxu0 0
    %2334 = vmatpush1.bf16.msra.mxu0 0
    %2335 = vmatprep.subr.bf16.mxu0 0
    %2336 = vmatpush1.bf16.msra.mxu0 0
    %2337 = vmatprep.subr.bf16.mxu0 0
    %2338 = vmatpush1.bf16.msra.mxu0 0
    %2339 = vmatprep.subr.bf16.mxu0 0
    %2340 = vmatpush1.bf16.msra.mxu0 0
    %2341 = vmatprep.subr.bf16.mxu0 0
    %2342 = vmatpush1.bf16.msra.mxu0 0
    %2343 = vmatprep.subr.bf16.mxu0 0
    %2344 = vmatpush1.bf16.msra.mxu0 0
    %2345 = vmatprep.subr.bf16.mxu0 0
    %2346 = vmatpush1.bf16.msra.mxu0 0
    %2347 = vmatprep.mubr.bf16.mxu0 0
    %2348 = vmatmul.mubr.bf16.gmra.mrb[0].mxu0 %v2310
    %v2349 = vpop.f32.mrb[0].mxu0
    %v2350 = vadd.f32 0.0, %v2349
    %v2351 = vpop.f32.mrb[0].mxu0
    %v2352 = vpop.f32.mrb[0].mxu0
    %v2353 = vpop.f32.mrb[0].mxu0
    %2354 = vdwg.mxu0
    %2355 = vrot.lane.b32.xlu0 %v1955, 56
    %v2356 = vpop.permute.xlu0 %2355
    %v2358 = vsel %vm2082, %v2306, 0
    %v2361 = vand.u32 %v2356, %v2089
    %2363 = vmatprep.subr.bf16.mxu0 0
    %2364 = vmatpush1.bf16.msra.mxu0 %v2361
    %2365 = vmatprep.subr.bf16.mxu0 0
    %2366 = vmatpush1.bf16.msra.mxu0 0
    %2367 = vmatprep.subr.bf16.mxu0 0
    %2368 = vmatpush1.bf16.msra.mxu0 0
    %2369 = vmatprep.subr.bf16.mxu0 0
    %2370 = vmatpush1.bf16.msra.mxu0 0
    %2371 = vmatprep.subr.bf16.mxu0 0
    %2372 = vmatpush1.bf16.msra.mxu0 0
    %2373 = vmatprep.subr.bf16.mxu0 0
    %2374 = vmatpush1.bf16.msra.mxu0 0
    %2375 = vmatprep.subr.bf16.mxu0 0
    %2376 = vmatpush1.bf16.msra.mxu0 0
    %2377 = vmatprep.subr.bf16.mxu0 0
    %2378 = vmatpush1.bf16.msra.mxu0 0
    %2379 = vmatprep.subr.bf16.mxu0 0
    %2380 = vmatpush1.bf16.msra.mxu0 0
    %2381 = vmatprep.subr.bf16.mxu0 0
    %2382 = vmatpush1.bf16.msra.mxu0 0
    %2383 = vmatprep.subr.bf16.mxu0 0
    %2384 = vmatpush1.bf16.msra.mxu0 0
    %2385 = vmatprep.subr.bf16.mxu0 0
    %2386 = vmatpush1.bf16.msra.mxu0 0
    %2387 = vmatprep.subr.bf16.mxu0 0
    %2388 = vmatpush1.bf16.msra.mxu0 0
    %2389 = vmatprep.subr.bf16.mxu0 0
    %2390 = vmatpush1.bf16.msra.mxu0 0
    %2391 = vmatprep.subr.bf16.mxu0 0
    %2392 = vmatpush1.bf16.msra.mxu0 0
    %2393 = vmatprep.subr.bf16.mxu0 0
    %2394 = vmatpush1.bf16.msra.mxu0 0
    %2395 = vmatprep.mubr.bf16.mxu0 0
    %2396 = vmatmul.mubr.bf16.gmra.mrb[0].mxu0 %v2358
    %v2397 = vpop.f32.mrb[0].mxu0
    %v2398 = vadd.f32 0.0, %v2397
    %v2399 = vpop.f32.mrb[0].mxu0
    %v2400 = vpop.f32.mrb[0].mxu0
    %v2401 = vpop.f32.mrb[0].mxu0
    %2402 = vdwg.mxu0
    %2403 = vrot.lane.b32.xlu0 %v1872, 112
    %v2404 = vpop.permute.xlu0 %2403
    %2405 = vrot.lane.b32.xlu0 %v1954, 80
    %v2406 = vpop.permute.xlu0 %2405
    %v2408 = vsel %vm1959, %v2404, 0
    %v2411 = vsel %vm1959, %v2406, 0
    %2413 = vmatprep.subr.bf16.mxu0 0
    %2414 = vmatpush1.bf16.xpose.msra.mxu0 %v2411
    %2415 = vmatprep.subr.bf16.mxu0 0
    %2416 = vmatpush1.bf16.xpose.msra.mxu0 0
    %2417 = vmatprep.subr.bf16.mxu0 0
    %2418 = vmatpush1.bf16.xpose.msra.mxu0 0
    %2419 = vmatprep.subr.bf16.mxu0 0
    %2420 = vmatpush1.bf16.xpose.msra.mxu0 0
    %2421 = vmatprep.subr.bf16.mxu0 0
    %2422 = vmatpush1.bf16.xpose.msra.mxu0 0
    %2423 = vmatprep.subr.bf16.mxu0 0
    %2424 = vmatpush1.bf16.xpose.msra.mxu0 0
    %2425 = vmatprep.subr.bf16.mxu0 0
    %2426 = vmatpush1.bf16.xpose.msra.mxu0 0
    %2427 = vmatprep.subr.bf16.mxu0 0
    %2428 = vmatpush1.bf16.xpose.msra.mxu0 0
    %2429 = vmatprep.subr.bf16.mxu0 0
    %2430 = vmatpush1.bf16.xpose.msra.mxu0 0
    %2431 = vmatprep.subr.bf16.mxu0 0
    %2432 = vmatpush1.bf16.xpose.msra.mxu0 0
    %2433 = vmatprep.subr.bf16.mxu0 0
    %2434 = vmatpush1.bf16.xpose.msra.mxu0 0
    %2435 = vmatprep.subr.bf16.mxu0 0
    %2436 = vmatpush1.bf16.xpose.msra.mxu0 0
    %2437 = vmatprep.subr.bf16.mxu0 0
    %2438 = vmatpush1.bf16.xpose.msra.mxu0 0
    %2439 = vmatprep.subr.bf16.mxu0 0
    %2440 = vmatpush1.bf16.xpose.msra.mxu0 0
    %2441 = vmatprep.subr.bf16.mxu0 0
    %2442 = vmatpush1.bf16.xpose.msra.mxu0 0
    %2443 = vmatprep.subr.bf16.mxu0 0
    %2444 = vmatpush1.bf16.xpose.msra.mxu0 0
    %2445 = vmatprep.mubr.bf16.mxu0 0
    %2446 = vmatmul.mubr.bf16.gmra.mrb[0].mxu0 %v2408
    %v2447 = vpop.f32.mrb[0].mxu0
    %v2448 = vadd.f32 0.0, %v2447
    %v2449 = vpop.f32.mrb[0].mxu0
    %v2450 = vpop.f32.mrb[0].mxu0
    %v2451 = vpop.f32.mrb[0].mxu0
    %2452 = vdwg.mxu0
    %2453 = vrot.lane.b32.xlu0 %v1873, 112
    %v2454 = vpop.permute.xlu0 %2453
    %2455 = vrot.lane.b32.xlu0 %v1955, 80
    %v2456 = vpop.permute.xlu0 %2455
    %v2458 = vsel %vm1959, %v2454, 0
    %v2461 = vsel %vm1959, %v2456, 0
    %2463 = vmatprep.subr.bf16.mxu0 0
    %2464 = vmatpush1.bf16.xpose.msra.mxu0 %v2461
    %2465 = vmatprep.subr.bf16.mxu0 0
    %2466 = vmatpush1.bf16.xpose.msra.mxu0 0
    %2467 = vmatprep.subr.bf16.mxu0 0
    %2468 = vmatpush1.bf16.xpose.msra.mxu0 0
    %2469 = vmatprep.subr.bf16.mxu0 0
    %2470 = vmatpush1.bf16.xpose.msra.mxu0 0
    %2471 = vmatprep.subr.bf16.mxu0 0
    %2472 = vmatpush1.bf16.xpose.msra.mxu0 0
    %2473 = vmatprep.subr.bf16.mxu0 0
    %2474 = vmatpush1.bf16.xpose.msra.mxu0 0
    %2475 = vmatprep.subr.bf16.mxu0 0
    %2476 = vmatpush1.bf16.xpose.msra.mxu0 0
    %2477 = vmatprep.subr.bf16.mxu0 0
    %2478 = vmatpush1.bf16.xpose.msra.mxu0 0
    %2479 = vmatprep.subr.bf16.mxu0 0
    %2480 = vmatpush1.bf16.xpose.msra.mxu0 0
    %2481 = vmatprep.subr.bf16.mxu0 0
    %2482 = vmatpush1.bf16.xpose.msra.mxu0 0
    %2483 = vmatprep.subr.bf16.mxu0 0
    %2484 = vmatpush1.bf16.xpose.msra.mxu0 0
    %2485 = vmatprep.subr.bf16.mxu0 0
    %2486 = vmatpush1.bf16.xpose.msra.mxu0 0
    %2487 = vmatprep.subr.bf16.mxu0 0
    %2488 = vmatpush1.bf16.xpose.msra.mxu0 0
    %2489 = vmatprep.subr.bf16.mxu0 0
    %2490 = vmatpush1.bf16.xpose.msra.mxu0 0
    %2491 = vmatprep.subr.bf16.mxu0 0
    %2492 = vmatpush1.bf16.xpose.msra.mxu0 0
    %2493 = vmatprep.subr.bf16.mxu0 0
    %2494 = vmatpush1.bf16.xpose.msra.mxu0 0
    %2495 = vmatprep.mubr.bf16.mxu0 0
    %2496 = vmatmul.mubr.bf16.gmra.mrb[0].mxu0 %v2458
    %v2497 = vpop.f32.mrb[0].mxu0
    %v2498 = vadd.f32 0.0, %v2497
    %v2499 = vpop.f32.mrb[0].mxu0
    %v2500 = vpop.f32.mrb[0].mxu0
    %v2501 = vpop.f32.mrb[0].mxu0
    %2502 = vdwg.mxu0
    %v2503 = vsel %vm2055, %v2448, -inf
    %2504 = vmax.xlane.f32.xlu0 %v2503
    %v2505 = vpop.xlane.xlu0 %2504
    %v2506 = vsel %vm2055, %v2498, -inf
    %2507 = vmax.xlane.f32.xlu0 %v2506
    %v2508 = vpop.xlane.xlu0 %2507
    %v2509 = vsub.f32 %v2448, %v2505
    %v2510 = vsub.f32 %v2498, %v2508
    %v2511 = vmul.f32 %v2509, 1.442695
    %v2512 = vpow.pop %v2511
    %v2513 = vmul.f32 %v2510, 1.442695
    %v2514 = vpow.pop %v2513
    %v2515 = vsel %vm2055, %v2512, 0.0
    %2516 = vadd.xlane.f32.xlu0 %v2515
    %v2517 = vpop.xlane.xlu0 %2516
    %v2518 = vsel %vm2055, %v2514, 0.0
    %2519 = vadd.xlane.f32.xlu0 %v2518
    %v2520 = vpop.xlane.xlu0 %2519
    %v2521 = vrcp.pop %v2517
    %v2522 = vrcp.pop %v2520
    %v2523 = vmul.f32 %v2512, %v2521
    %v2524 = vmul.f32 %v2514, %v2522
    %v2525 = vpack.c.bf16 %v2523, %v2523
    %v2526 = vpack.c.bf16 %v2524, %v2524
    %2527 = vrot.lane.b32.xlu0 %v1954, 48
    %v2528 = vpop.permute.xlu0 %2527
    %v2530 = vsel %vm2082, %v2525, 0
    %v2533 = vand.u32 %v2528, %v2089
    %2535 = vmatprep.subr.bf16.mxu0 0
    %2536 = vmatpush1.bf16.msra.mxu0 %v2533
    %2537 = vmatprep.subr.bf16.mxu0 0
    %2538 = vmatpush1.bf16.msra.mxu0 0
    %2539 = vmatprep.subr.bf16.mxu0 0
    %2540 = vmatpush1.bf16.msra.mxu0 0
    %2541 = vmatprep.subr.bf16.mxu0 0
    %2542 = vmatpush1.bf16.msra.mxu0 0
    %2543 = vmatprep.subr.bf16.mxu0 0
    %2544 = vmatpush1.bf16.msra.mxu0 0
    %2545 = vmatprep.subr.bf16.mxu0 0
    %2546 = vmatpush1.bf16.msra.mxu0 0
    %2547 = vmatprep.subr.bf16.mxu0 0
    %2548 = vmatpush1.bf16.msra.mxu0 0
    %2549 = vmatprep.subr.bf16.mxu0 0
    %2550 = vmatpush1.bf16.msra.mxu0 0
    %2551 = vmatprep.subr.bf16.mxu0 0
    %2552 = vmatpush1.bf16.msra.mxu0 0
    %2553 = vmatprep.subr.bf16.mxu0 0
    %2554 = vmatpush1.bf16.msra.mxu0 0
    %2555 = vmatprep.subr.bf16.mxu0 0
    %2556 = vmatpush1.bf16.msra.mxu0 0
    %2557 = vmatprep.subr.bf16.mxu0 0
    %2558 = vmatpush1.bf16.msra.mxu0 0
    %2559 = vmatprep.subr.bf16.mxu0 0
    %2560 = vmatpush1.bf16.msra.mxu0 0
    %2561 = vmatprep.subr.bf16.mxu0 0
    %2562 = vmatpush1.bf16.msra.mxu0 0
    %2563 = vmatprep.subr.bf16.mxu0 0
    %2564 = vmatpush1.bf16.msra.mxu0 0
    %2565 = vmatprep.subr.bf16.mxu0 0
    %2566 = vmatpush1.bf16.msra.mxu0 0
    %2567 = vmatprep.mubr.bf16.mxu0 0
    %2568 = vmatmul.mubr.bf16.gmra.mrb[0].mxu0 %v2530
    %v2569 = vpop.f32.mrb[0].mxu0
    %v2570 = vadd.f32 0.0, %v2569
    %v2571 = vpop.f32.mrb[0].mxu0
    %v2572 = vpop.f32.mrb[0].mxu0
    %v2573 = vpop.f32.mrb[0].mxu0
    %2574 = vdwg.mxu0
    %2575 = vrot.lane.b32.xlu0 %v1955, 48
    %v2576 = vpop.permute.xlu0 %2575
    %v2578 = vsel %vm2082, %v2526, 0
    %v2581 = vand.u32 %v2576, %v2089
    %2583 = vmatprep.subr.bf16.mxu0 0
    %2584 = vmatpush1.bf16.msra.mxu0 %v2581
    %2585 = vmatprep.subr.bf16.mxu0 0
    %2586 = vmatpush1.bf16.msra.mxu0 0
    %2587 = vmatprep.subr.bf16.mxu0 0
    %2588 = vmatpush1.bf16.msra.mxu0 0
    %2589 = vmatprep.subr.bf16.mxu0 0
    %2590 = vmatpush1.bf16.msra.mxu0 0
    %2591 = vmatprep.subr.bf16.mxu0 0
    %2592 = vmatpush1.bf16.msra.mxu0 0
    %2593 = vmatprep.subr.bf16.mxu0 0
    %2594 = vmatpush1.bf16.msra.mxu0 0
    %2595 = vmatprep.subr.bf16.mxu0 0
    %2596 = vmatpush1.bf16.msra.mxu0 0
    %2597 = vmatprep.subr.bf16.mxu0 0
    %2598 = vmatpush1.bf16.msra.mxu0 0
    %2599 = vmatprep.subr.bf16.mxu0 0
    %2600 = vmatpush1.bf16.msra.mxu0 0
    %2601 = vmatprep.subr.bf16.mxu0 0
    %2602 = vmatpush1.bf16.msra.mxu0 0
    %2603 = vmatprep.subr.bf16.mxu0 0
    %2604 = vmatpush1.bf16.msra.mxu0 0
    %2605 = vmatprep.subr.bf16.mxu0 0
    %2606 = vmatpush1.bf16.msra.mxu0 0
    %2607 = vmatprep.subr.bf16.mxu0 0
    %2608 = vmatpush1.bf16.msra.mxu0 0
    %2609 = vmatprep.subr.bf16.mxu0 0
    %2610 = vmatpush1.bf16.msra.mxu0 0
    %2611 = vmatprep.subr.bf16.mxu0 0
    %2612 = vmatpush1.bf16.msra.mxu0 0
    %2613 = vmatprep.subr.bf16.mxu0 0
    %2614 = vmatpush1.bf16.msra.mxu0 0
    %2615 = vmatprep.mubr.bf16.mxu0 0
    %2616 = vmatmul.mubr.bf16.gmra.mrb[0].mxu0 %v2578
    %v2617 = vpop.f32.mrb[0].mxu0
    %v2618 = vadd.f32 0.0, %v2617
    %v2619 = vpop.f32.mrb[0].mxu0
    %v2620 = vpop.f32.mrb[0].mxu0
    %v2621 = vpop.f32.mrb[0].mxu0
    %2622 = vdwg.mxu0
    %2623 = vrot.lane.b32.xlu0 %v1872, 104
    %v2624 = vpop.permute.xlu0 %2623
    %2625 = vrot.lane.b32.xlu0 %v1954, 72
    %v2626 = vpop.permute.xlu0 %2625
    %v2628 = vsel %vm1959, %v2624, 0
    %v2631 = vsel %vm1959, %v2626, 0
    %2633 = vmatprep.subr.bf16.mxu0 0
    %2634 = vmatpush1.bf16.xpose.msra.mxu0 %v2631
    %2635 = vmatprep.subr.bf16.mxu0 0
    %2636 = vmatpush1.bf16.xpose.msra.mxu0 0
    %2637 = vmatprep.subr.bf16.mxu0 0
    %2638 = vmatpush1.bf16.xpose.msra.mxu0 0
    %2639 = vmatprep.subr.bf16.mxu0 0
    %2640 = vmatpush1.bf16.xpose.msra.mxu0 0
    %2641 = vmatprep.subr.bf16.mxu0 0
    %2642 = vmatpush1.bf16.xpose.msra.mxu0 0
    %2643 = vmatprep.subr.bf16.mxu0 0
    %2644 = vmatpush1.bf16.xpose.msra.mxu0 0
    %2645 = vmatprep.subr.bf16.mxu0 0
    %2646 = vmatpush1.bf16.xpose.msra.mxu0 0
    %2647 = vmatprep.subr.bf16.mxu0 0
    %2648 = vmatpush1.bf16.xpose.msra.mxu0 0
    %2649 = vmatprep.subr.bf16.mxu0 0
    %2650 = vmatpush1.bf16.xpose.msra.mxu0 0
    %2651 = vmatprep.subr.bf16.mxu0 0
    %2652 = vmatpush1.bf16.xpose.msra.mxu0 0
    %2653 = vmatprep.subr.bf16.mxu0 0
    %2654 = vmatpush1.bf16.xpose.msra.mxu0 0
    %2655 = vmatprep.subr.bf16.mxu0 0
    %2656 = vmatpush1.bf16.xpose.msra.mxu0 0
    %2657 = vmatprep.subr.bf16.mxu0 0
    %2658 = vmatpush1.bf16.xpose.msra.mxu0 0
    %2659 = vmatprep.subr.bf16.mxu0 0
    %2660 = vmatpush1.bf16.xpose.msra.mxu0 0
    %2661 = vmatprep.subr.bf16.mxu0 0
    %2662 = vmatpush1.bf16.xpose.msra.mxu0 0
    %2663 = vmatprep.subr.bf16.mxu0 0
    %2664 = vmatpush1.bf16.xpose.msra.mxu0 0
    %2665 = vmatprep.mubr.bf16.mxu0 0
    %2666 = vmatmul.mubr.bf16.gmra.mrb[0].mxu0 %v2628
    %v2667 = vpop.f32.mrb[0].mxu0
    %v2668 = vadd.f32 0.0, %v2667
    %v2669 = vpop.f32.mrb[0].mxu0
    %v2670 = vpop.f32.mrb[0].mxu0
    %v2671 = vpop.f32.mrb[0].mxu0
    %2672 = vdwg.mxu0
    %2673 = vrot.lane.b32.xlu0 %v1873, 104
    %v2674 = vpop.permute.xlu0 %2673
    %2675 = vrot.lane.b32.xlu0 %v1955, 72
    %v2676 = vpop.permute.xlu0 %2675
    %v2678 = vsel %vm1959, %v2674, 0
    %v2681 = vsel %vm1959, %v2676, 0
    %2683 = vmatprep.subr.bf16.mxu0 0
    %2684 = vmatpush1.bf16.xpose.msra.mxu0 %v2681
    %2685 = vmatprep.subr.bf16.mxu0 0
    %2686 = vmatpush1.bf16.xpose.msra.mxu0 0
    %2687 = vmatprep.subr.bf16.mxu0 0
    %2688 = vmatpush1.bf16.xpose.msra.mxu0 0
    %2689 = vmatprep.subr.bf16.mxu0 0
    %2690 = vmatpush1.bf16.xpose.msra.mxu0 0
    %2691 = vmatprep.subr.bf16.mxu0 0
    %2692 = vmatpush1.bf16.xpose.msra.mxu0 0
    %2693 = vmatprep.subr.bf16.mxu0 0
    %2694 = vmatpush1.bf16.xpose.msra.mxu0 0
    %2695 = vmatprep.subr.bf16.mxu0 0
    %2696 = vmatpush1.bf16.xpose.msra.mxu0 0
    %2697 = vmatprep.subr.bf16.mxu0 0
    %2698 = vmatpush1.bf16.xpose.msra.mxu0 0
    %2699 = vmatprep.subr.bf16.mxu0 0
    %2700 = vmatpush1.bf16.xpose.msra.mxu0 0
    %2701 = vmatprep.subr.bf16.mxu0 0
    %2702 = vmatpush1.bf16.xpose.msra.mxu0 0
    %2703 = vmatprep.subr.bf16.mxu0 0
    %2704 = vmatpush1.bf16.xpose.msra.mxu0 0
    %2705 = vmatprep.subr.bf16.mxu0 0
    %2706 = vmatpush1.bf16.xpose.msra.mxu0 0
    %2707 = vmatprep.subr.bf16.mxu0 0
    %2708 = vmatpush1.bf16.xpose.msra.mxu0 0
    %2709 = vmatprep.subr.bf16.mxu0 0
    %2710 = vmatpush1.bf16.xpose.msra.mxu0 0
    %2711 = vmatprep.subr.bf16.mxu0 0
    %2712 = vmatpush1.bf16.xpose.msra.mxu0 0
    %2713 = vmatprep.subr.bf16.mxu0 0
    %2714 = vmatpush1.bf16.xpose.msra.mxu0 0
    %2715 = vmatprep.mubr.bf16.mxu0 0
    %2716 = vmatmul.mubr.bf16.gmra.mrb[0].mxu0 %v2678
    %v2717 = vpop.f32.mrb[0].mxu0
    %v2718 = vadd.f32 0.0, %v2717
    %v2719 = vpop.f32.mrb[0].mxu0
    %v2720 = vpop.f32.mrb[0].mxu0
    %v2721 = vpop.f32.mrb[0].mxu0
    %2722 = vdwg.mxu0
    %v2723 = vsel %vm2055, %v2668, -inf
    %2724 = vmax.xlane.f32.xlu0 %v2723
    %v2725 = vpop.xlane.xlu0 %2724
    %v2726 = vsel %vm2055, %v2718, -inf
    %2727 = vmax.xlane.f32.xlu0 %v2726
    %v2728 = vpop.xlane.xlu0 %2727
    %v2729 = vsub.f32 %v2668, %v2725
    %v2730 = vsub.f32 %v2718, %v2728
    %v2731 = vmul.f32 %v2729, 1.442695
    %v2732 = vpow.pop %v2731
    %v2733 = vmul.f32 %v2730, 1.442695
    %v2734 = vpow.pop %v2733
    %v2735 = vsel %vm2055, %v2732, 0.0
    %2736 = vadd.xlane.f32.xlu0 %v2735
    %v2737 = vpop.xlane.xlu0 %2736
    %v2738 = vsel %vm2055, %v2734, 0.0
    %2739 = vadd.xlane.f32.xlu0 %v2738
    %v2740 = vpop.xlane.xlu0 %2739
    %v2741 = vrcp.pop %v2737
    %v2742 = vrcp.pop %v2740
    %v2743 = vmul.f32 %v2732, %v2741
    %v2744 = vmul.f32 %v2734, %v2742
    %v2745 = vpack.c.bf16 %v2743, %v2743
    %v2746 = vpack.c.bf16 %v2744, %v2744
    %2747 = vrot.lane.b32.xlu0 %v1954, 40
    %v2748 = vpop.permute.xlu0 %2747
    %v2750 = vsel %vm2082, %v2745, 0
    %v2753 = vand.u32 %v2748, %v2089
    %2755 = vmatprep.subr.bf16.mxu0 0
    %2756 = vmatpush1.bf16.msra.mxu0 %v2753
    %2757 = vmatprep.subr.bf16.mxu0 0
    %2758 = vmatpush1.bf16.msra.mxu0 0
    %2759 = vmatprep.subr.bf16.mxu0 0
    %2760 = vmatpush1.bf16.msra.mxu0 0
    %2761 = vmatprep.subr.bf16.mxu0 0
    %2762 = vmatpush1.bf16.msra.mxu0 0
    %2763 = vmatprep.subr.bf16.mxu0 0
    %2764 = vmatpush1.bf16.msra.mxu0 0
    %2765 = vmatprep.subr.bf16.mxu0 0
    %2766 = vmatpush1.bf16.msra.mxu0 0
    %2767 = vmatprep.subr.bf16.mxu0 0
    %2768 = vmatpush1.bf16.msra.mxu0 0
    %2769 = vmatprep.subr.bf16.mxu0 0
    %2770 = vmatpush1.bf16.msra.mxu0 0
    %2771 = vmatprep.subr.bf16.mxu0 0
    %2772 = vmatpush1.bf16.msra.mxu0 0
    %2773 = vmatprep.subr.bf16.mxu0 0
    %2774 = vmatpush1.bf16.msra.mxu0 0
    %2775 = vmatprep.subr.bf16.mxu0 0
    %2776 = vmatpush1.bf16.msra.mxu0 0
    %2777 = vmatprep.subr.bf16.mxu0 0
    %2778 = vmatpush1.bf16.msra.mxu0 0
    %2779 = vmatprep.subr.bf16.mxu0 0
    %2780 = vmatpush1.bf16.msra.mxu0 0
    %2781 = vmatprep.subr.bf16.mxu0 0
    %2782 = vmatpush1.bf16.msra.mxu0 0
    %2783 = vmatprep.subr.bf16.mxu0 0
    %2784 = vmatpush1.bf16.msra.mxu0 0
    %2785 = vmatprep.subr.bf16.mxu0 0
    %2786 = vmatpush1.bf16.msra.mxu0 0
    %2787 = vmatprep.mubr.bf16.mxu0 0
    %2788 = vmatmul.mubr.bf16.gmra.mrb[0].mxu0 %v2750
    %v2789 = vpop.f32.mrb[0].mxu0
    %v2790 = vadd.f32 0.0, %v2789
    %v2791 = vpop.f32.mrb[0].mxu0
    %v2792 = vpop.f32.mrb[0].mxu0
    %v2793 = vpop.f32.mrb[0].mxu0
    %2794 = vdwg.mxu0
    %2795 = vrot.lane.b32.xlu0 %v1955, 40
    %v2796 = vpop.permute.xlu0 %2795
    %v2798 = vsel %vm2082, %v2746, 0
    %v2801 = vand.u32 %v2796, %v2089
    %2803 = vmatprep.subr.bf16.mxu0 0
    %2804 = vmatpush1.bf16.msra.mxu0 %v2801
    %2805 = vmatprep.subr.bf16.mxu0 0
    %2806 = vmatpush1.bf16.msra.mxu0 0
    %2807 = vmatprep.subr.bf16.mxu0 0
    %2808 = vmatpush1.bf16.msra.mxu0 0
    %2809 = vmatprep.subr.bf16.mxu0 0
    %2810 = vmatpush1.bf16.msra.mxu0 0
    %2811 = vmatprep.subr.bf16.mxu0 0
    %2812 = vmatpush1.bf16.msra.mxu0 0
    %2813 = vmatprep.subr.bf16.mxu0 0
    %2814 = vmatpush1.bf16.msra.mxu0 0
    %2815 = vmatprep.subr.bf16.mxu0 0
    %2816 = vmatpush1.bf16.msra.mxu0 0
    %2817 = vmatprep.subr.bf16.mxu0 0
    %2818 = vmatpush1.bf16.msra.mxu0 0
    %2819 = vmatprep.subr.bf16.mxu0 0
    %2820 = vmatpush1.bf16.msra.mxu0 0
    %2821 = vmatprep.subr.bf16.mxu0 0
    %2822 = vmatpush1.bf16.msra.mxu0 0
    %2823 = vmatprep.subr.bf16.mxu0 0
    %2824 = vmatpush1.bf16.msra.mxu0 0
    %2825 = vmatprep.subr.bf16.mxu0 0
    %2826 = vmatpush1.bf16.msra.mxu0 0
    %2827 = vmatprep.subr.bf16.mxu0 0
    %2828 = vmatpush1.bf16.msra.mxu0 0
    %2829 = vmatprep.subr.bf16.mxu0 0
    %2830 = vmatpush1.bf16.msra.mxu0 0
    %2831 = vmatprep.subr.bf16.mxu0 0
    %2832 = vmatpush1.bf16.msra.mxu0 0
    %2833 = vmatprep.subr.bf16.mxu0 0
    %2834 = vmatpush1.bf16.msra.mxu0 0
    %2835 = vmatprep.mubr.bf16.mxu0 0
    %2836 = vmatmul.mubr.bf16.gmra.mrb[0].mxu0 %v2798
    %v2837 = vpop.f32.mrb[0].mxu0
    %v2838 = vadd.f32 0.0, %v2837
    %v2839 = vpop.f32.mrb[0].mxu0
    %v2840 = vpop.f32.mrb[0].mxu0
    %v2841 = vpop.f32.mrb[0].mxu0
    %2842 = vdwg.mxu0
    %2845 = vrot.lane.b32.xlu0 %v2350, 8
    %v2846 = vpop.permute.xlu0 %2845
    %2847 = vrot.lane.b32.xlu0 %v2398, 8
    %v2848 = vpop.permute.xlu0 %2847
    %2853 = vrot.lane.b32.xlu0 %v2570, 16
    %v2854 = vpop.permute.xlu0 %2853
    %2855 = vrot.lane.b32.xlu0 %v2618, 16
    %v2856 = vpop.permute.xlu0 %2855
    %2861 = vrot.lane.b32.xlu0 %v2790, 24
    %v2862 = vpop.permute.xlu0 %2861
    %2863 = vrot.lane.b32.xlu0 %v2838, 24
    %v2864 = vpop.permute.xlu0 %2863
    %v2867 = vsel %vm1959, %v2128, %v2846
    %v2868 = vsel %vm1959, %v2176, %v2848
    %vm2869 = vcmask 130048
    %v2870 = vsel %vm2869, %v2867, %v2854
    %v2871 = vsel %vm2869, %v2868, %v2856
    %vm2872 = vcmask 195584
    %v2873 = vsel %vm2872, %v2870, %v2862
    %v2874 = vsel %vm2872, %v2871, %v2864
    %v2877 = vcombine.high %v2873, %v2873
    %v2879 = vunpack.c.l.s4 1966171168
    %v2880 = vunpack.c.0.s8 %v2879
    %v2881 = vlaneseq
    %v2882 = vshrl.u32 %v2881, 7
    %v2883 = vsub.s32 %v2880, %v2882
    %v2884 = vrot.slane %v2873, %v2883
    %v2886 = vunpack.c.l.s4 1966171168
    %v2887 = vunpack.c.0.s8 %v2886
    %v2888 = vlaneseq
    %v2889 = vshrl.u32 %v2888, 7
    %v2890 = vsub.s32 %v2887, %v2889
    %v2891 = vrot.slane %v2877, %v2890
    %v2892 = vcombine.high %v2884, %v2884
    %v2894 = vunpack.c.l.s4 1966171168
    %v2895 = vunpack.c.0.s8 %v2894
    %v2896 = vlaneseq
    %v2897 = vshrl.u32 %v2896, 7
    %v2898 = vsub.s32 %v2895, %v2897
    %v2899 = vrot.slane %v2884, %v2898
    %v2901 = vunpack.c.l.s4 1966171168
    %v2902 = vunpack.c.0.s8 %v2901
    %v2903 = vlaneseq
    %v2904 = vshrl.u32 %v2903, 7
    %v2905 = vsub.s32 %v2902, %v2904
    %v2906 = vrot.slane %v2891, %v2905
    %v2908 = vunpack.c.l.s4 1966171168
    %v2909 = vunpack.c.0.s8 %v2908
    %v2910 = vlaneseq
    %v2911 = vshrl.u32 %v2910, 7
    %v2912 = vsub.s32 %v2909, %v2911
    %v2913 = vrot.slane %v2892, %v2912
    %v2914 = vcombine.high %v2899, %v2899
    %v2915 = vcombine.high %v2913, %v2913
    %v2916 = vcombine.high %v2874, %v2874
    %v2918 = vunpack.c.l.s4 1966171168
    %v2919 = vunpack.c.0.s8 %v2918
    %v2920 = vlaneseq
    %v2921 = vshrl.u32 %v2920, 7
    %v2922 = vsub.s32 %v2919, %v2921
    %v2923 = vrot.slane %v2874, %v2922
    %v2925 = vunpack.c.l.s4 1966171168
    %v2926 = vunpack.c.0.s8 %v2925
    %v2927 = vlaneseq
    %v2928 = vshrl.u32 %v2927, 7
    %v2929 = vsub.s32 %v2926, %v2928
    %v2930 = vrot.slane %v2916, %v2929
    %v2931 = vcombine.high %v2923, %v2923
    %v2933 = vunpack.c.l.s4 1966171168
    %v2934 = vunpack.c.0.s8 %v2933
    %v2935 = vlaneseq
    %v2936 = vshrl.u32 %v2935, 7
    %v2937 = vsub.s32 %v2934, %v2936
    %v2938 = vrot.slane %v2923, %v2937
    %v2940 = vunpack.c.l.s4 1966171168
    %v2941 = vunpack.c.0.s8 %v2940
    %v2942 = vlaneseq
    %v2943 = vshrl.u32 %v2942, 7
    %v2944 = vsub.s32 %v2941, %v2943
    %v2945 = vrot.slane %v2930, %v2944
    %v2947 = vunpack.c.l.s4 1966171168
    %v2948 = vunpack.c.0.s8 %v2947
    %v2949 = vlaneseq
    %v2950 = vshrl.u32 %v2949, 7
    %v2951 = vsub.s32 %v2948, %v2950
    %v2952 = vrot.slane %v2931, %v2951
    %v2953 = vcombine.high %v2938, %v2938
    %v2954 = vcombine.high %v2952, %v2952
    %v2955 = vcombine.low %v2899, %v2913
    %v2956 = vcombine.low %v2914, %v2915
    %v2957 = vcombine.low %v2906, %v2938
    %v2958 = vcombine.low %v2952, %v2953
    %v2960 = vunpack.c.l.s4 1966171168
    %v2961 = vunpack.c.0.s8 %v2960
    %v2962 = vlaneseq
    %v2963 = vshrl.u32 %v2962, 7
    %v2964 = vsub.s32 %v2961, %v2963
    %v2965 = vrot.slane %v2955, %v2964
    %v2967 = vunpack.c.l.s4 1966171168
    %v2968 = vunpack.c.0.s8 %v2967
    %v2969 = vlaneseq
    %v2970 = vshrl.u32 %v2969, 7
    %v2971 = vsub.s32 %v2968, %v2970
    %v2972 = vrot.slane %v2956, %v2971
    %v2974 = vunpack.c.l.s4 1966171168
    %v2975 = vunpack.c.0.s8 %v2974
    %v2976 = vlaneseq
    %v2977 = vshrl.u32 %v2976, 7
    %v2978 = vsub.s32 %v2975, %v2977
    %v2979 = vrot.slane %v2957, %v2978
    %v2981 = vunpack.c.l.s4 1966171168
    %v2982 = vunpack.c.0.s8 %v2981
    %v2983 = vlaneseq
    %v2984 = vshrl.u32 %v2983, 7
    %v2985 = vsub.s32 %v2982, %v2984
    %v2986 = vrot.slane %v2958, %v2985
    %v2987 = vcombine.low %v2965, %v2972
    %v2988 = vcombine.low %v2979, %v2986
    %v2990 = vunpack.c.l.s4 1966171168
    %v2991 = vunpack.c.0.s8 %v2990
    %v2992 = vlaneseq
    %v2993 = vshrl.u32 %v2992, 7
    %v2994 = vsub.s32 %v2991, %v2993
    %v2995 = vrot.slane %v2987, %v2994
    %v2997 = vunpack.c.l.s4 1966171168
    %v2998 = vunpack.c.0.s8 %v2997
    %v2999 = vlaneseq
    %v3000 = vshrl.u32 %v2999, 7
    %v3001 = vsub.s32 %v2998, %v3000
    %v3002 = vrot.slane %v2988, %v3001
    %v3003 = vcombine.low %v2995, %v3002
    %v3004 = vcombine.low %v2954, %v2945
    %v3006 = vunpack.c.l.s4 1966171168
    %v3007 = vunpack.c.0.s8 %v3006
    %v3008 = vlaneseq
    %v3009 = vshrl.u32 %v3008, 7
    %v3010 = vsub.s32 %v3007, %v3009
    %v3011 = vrot.slane %v3004, %v3010
    %v3013 = vunpack.c.l.s4 1966171168
    %v3014 = vunpack.c.0.s8 %v3013
    %v3015 = vlaneseq
    %v3016 = vshrl.u32 %v3015, 7
    %v3017 = vsub.s32 %v3014, %v3016
    %v3018 = vrot.slane %v3011, %v3017
    %v3021 = vpack.c.bf16 %v3018, %v3003
    %v3022 = vld [vmem:[%s19] sm:$0xf]
    %v3023 = vld [vmem:[%s19 + $0x4] sm:$0xf]
    %v3024 = vld [vmem:[%s19 + $0x8] sm:$0xf]
    %v3025 = vld [vmem:[%s19 + $0xc] sm:$0xf]
    %v3030 = vunpack.c.l.b16 %v3022
    %v3031 = vunpack.c.l.b16 %v3023
    %v3032 = vunpack.c.l.b16 %v3024
    %v3033 = vunpack.c.l.b16 %v3025
    %v3034 = vpack.c.b16 %v3031, %v3030
    %v3035 = vpack.c.b16 %v3033, %v3032
    %v3039 = vsel %vm716, %v3021, 0
    %3041 = vmatprep.subr.bf16.mxu0 0
    %3042 = vmatpush1.bf16.msra.mxu0 %v3034
    %3043 = vmatprep.subr.bf16.mxu0 0
    %3044 = vmatpush1.bf16.msra.mxu0 %v3035
    %3045 = vmatprep.subr.bf16.mxu0 0
    %3046 = vmatpush1.bf16.msra.mxu0 0
    %3047 = vmatprep.subr.bf16.mxu0 0
    %3048 = vmatpush1.bf16.msra.mxu0 0
    %3049 = vmatprep.subr.bf16.mxu0 0
    %3050 = vmatpush1.bf16.msra.mxu0 0
    %3051 = vmatprep.subr.bf16.mxu0 0
    %3052 = vmatpush1.bf16.msra.mxu0 0
    %3053 = vmatprep.subr.bf16.mxu0 0
    %3054 = vmatpush1.bf16.msra.mxu0 0
    %3055 = vmatprep.subr.bf16.mxu0 0
    %3056 = vmatpush1.bf16.msra.mxu0 0
    %3057 = vmatprep.subr.bf16.mxu0 0
    %3058 = vmatpush1.bf16.msra.mxu0 0
    %3059 = vmatprep.subr.bf16.mxu0 0
    %3060 = vmatpush1.bf16.msra.mxu0 0
    %3061 = vmatprep.subr.bf16.mxu0 0
    %3062 = vmatpush1.bf16.msra.mxu0 0
    %3063 = vmatprep.subr.bf16.mxu0 0
    %3064 = vmatpush1.bf16.msra.mxu0 0
    %3065 = vmatprep.subr.bf16.mxu0 0
    %3066 = vmatpush1.bf16.msra.mxu0 0
    %3067 = vmatprep.subr.bf16.mxu0 0
    %3068 = vmatpush1.bf16.msra.mxu0 0
    %3069 = vmatprep.subr.bf16.mxu0 0
    %3070 = vmatpush1.bf16.msra.mxu0 0
    %3071 = vmatprep.subr.bf16.mxu0 0
    %3072 = vmatpush1.bf16.msra.mxu0 0
    %3073 = vmatprep.mubr.bf16.mxu0 0
    %3074 = vmatmul.mubr.bf16.gmra.mrb[0].mxu0 %v3039
    %v3075 = vpop.f32.mrb[0].mxu0
    %v3076 = vadd.f32 0.0, %v3075
    %v3077 = vpop.f32.mrb[0].mxu0
    %v3078 = vpop.f32.mrb[0].mxu0
    %v3079 = vadd.f32 0.0, %v3078
    %v3080 = vpop.f32.mrb[0].mxu0
    %3081 = vdwg.mxu0
    %v3084 = vcombine.high %v3076, %v3076
    %v3086 = vunpack.c.l.s4 1966171168
    %v3087 = vunpack.c.0.s8 %v3086
    %v3088 = vlaneseq
    %v3089 = vshrl.u32 %v3088, 7
    %v3090 = vsub.s32 %v3087, %v3089
    %v3091 = vrot.slane %v3076, %v3090
    %v3093 = vunpack.c.l.s4 1966171168
    %v3094 = vunpack.c.0.s8 %v3093
    %v3095 = vlaneseq
    %v3096 = vshrl.u32 %v3095, 7
    %v3097 = vsub.s32 %v3094, %v3096
    %v3098 = vrot.slane %v3084, %v3097
    %v3099 = vcombine.high %v3091, %v3091
    %v3100 = vcombine.high %v3098, %v3098
    %v3102 = vunpack.c.l.s4 1966171168
    %v3103 = vunpack.c.0.s8 %v3102
    %v3104 = vlaneseq
    %v3105 = vshrl.u32 %v3104, 7
    %v3106 = vsub.s32 %v3103, %v3105
    %v3107 = vrot.slane %v3091, %v3106
    %v3109 = vunpack.c.l.s4 1966171168
    %v3110 = vunpack.c.0.s8 %v3109
    %v3111 = vlaneseq
    %v3112 = vshrl.u32 %v3111, 7
    %v3113 = vsub.s32 %v3110, %v3112
    %v3114 = vrot.slane %v3098, %v3113
    %v3116 = vunpack.c.l.s4 1966171168
    %v3117 = vunpack.c.0.s8 %v3116
    %v3118 = vlaneseq
    %v3119 = vshrl.u32 %v3118, 7
    %v3120 = vsub.s32 %v3117, %v3119
    %v3121 = vrot.slane %v3099, %v3120
    %v3123 = vunpack.c.l.s4 1966171168
    %v3124 = vunpack.c.0.s8 %v3123
    %v3125 = vlaneseq
    %v3126 = vshrl.u32 %v3125, 7
    %v3127 = vsub.s32 %v3124, %v3126
    %v3128 = vrot.slane %v3100, %v3127
    %v3129 = vcombine.high %v3107, %v3107
    %v3130 = vcombine.high %v3114, %v3114
    %v3131 = vcombine.high %v3121, %v3121
    %v3132 = vcombine.high %v3128, %v3128
    %v3134 = vunpack.c.l.s4 1966171168
    %v3135 = vunpack.c.0.s8 %v3134
    %v3136 = vlaneseq
    %v3137 = vshrl.u32 %v3136, 7
    %v3138 = vsub.s32 %v3135, %v3137
    %v3139 = vrot.slane %v3079, %v3138
    %v3140 = vcombine.high %v3139, %v3139
    %v3142 = vunpack.c.l.s4 1966171168
    %v3143 = vunpack.c.0.s8 %v3142
    %v3144 = vlaneseq
    %v3145 = vshrl.u32 %v3144, 7
    %v3146 = vsub.s32 %v3143, %v3145
    %v3147 = vrot.slane %v3139, %v3146
    %v3149 = vunpack.c.l.s4 1966171168
    %v3150 = vunpack.c.0.s8 %v3149
    %v3151 = vlaneseq
    %v3152 = vshrl.u32 %v3151, 7
    %v3153 = vsub.s32 %v3150, %v3152
    %v3154 = vrot.slane %v3140, %v3153
    %v3165 = vadd.f32 %v1083, %v3107
    %v3166 = vadd.f32 %v1084, %v3121
    %v3167 = vadd.f32 %v1085, %v3129
    %v3168 = vadd.f32 %v1086, %v3131
    %v3169 = vadd.f32 %v1087, %v3114
    %v3170 = vadd.f32 %v1088, %v3128
    %v3171 = vadd.f32 %v1089, %v3130
    %v3172 = vadd.f32 %v1090, %v3132
    %v3173 = vadd.f32 %v1091, %v3147
    %v3174 = vadd.f32 %v1092, %v3154
    %v3175 = vld [vmem:[%s21] sm:$0x1]
    %v3177 = vlaneseq
    %v3178 = vshrl.u32 %v3177, 7
    %v3179 = vsub.s32 0, %v3178
    %v3180 = vrot.slane %v3175, %v3179
    %v3181 = vcombine.high %v3180, %v3180
    %v3183 = vunpack.c.l.s4 1966171168
    %v3184 = vunpack.c.0.s8 %v3183
    %v3185 = vlaneseq
    %v3186 = vshrl.u32 %v3185, 7
    %v3187 = vsub.s32 %v3184, %v3186
    %v3188 = vrot.slane %v3180, %v3187
    %v3190 = vunpack.c.l.s4 1966171168
    %v3191 = vunpack.c.0.s8 %v3190
    %v3192 = vlaneseq
    %v3193 = vshrl.u32 %v3192, 7
    %v3194 = vsub.s32 %v3191, %v3193
    %v3195 = vrot.slane %v3181, %v3194
    %v3196 = vcombine.high %v3188, %v3188
    %v3197 = vcombine.high %v3195, %v3195
    %v3199 = vunpack.c.l.s4 1966171168
    %v3200 = vunpack.c.0.s8 %v3199
    %v3201 = vlaneseq
    %v3202 = vshrl.u32 %v3201, 7
    %v3203 = vsub.s32 %v3200, %v3202
    %v3204 = vrot.slane %v3188, %v3203
    %v3206 = vunpack.c.l.s4 1966171168
    %v3207 = vunpack.c.0.s8 %v3206
    %v3208 = vlaneseq
    %v3209 = vshrl.u32 %v3208, 7
    %v3210 = vsub.s32 %v3207, %v3209
    %v3211 = vrot.slane %v3195, %v3210
    %v3213 = vunpack.c.l.s4 1966171168
    %v3214 = vunpack.c.0.s8 %v3213
    %v3215 = vlaneseq
    %v3216 = vshrl.u32 %v3215, 7
    %v3217 = vsub.s32 %v3214, %v3216
    %v3218 = vrot.slane %v3196, %v3217
    %v3220 = vunpack.c.l.s4 1966171168
    %v3221 = vunpack.c.0.s8 %v3220
    %v3222 = vlaneseq
    %v3223 = vshrl.u32 %v3222, 7
    %v3224 = vsub.s32 %v3221, %v3223
    %v3225 = vrot.slane %v3197, %v3224
    %v3226 = vcombine.high %v3204, %v3204
    %v3227 = vcombine.high %v3211, %v3211
    %v3228 = vcombine.high %v3218, %v3218
    %v3229 = vcombine.high %v3225, %v3225
    %v3238 = vadd.f32 %v3165, %v3204
    %v3239 = vadd.f32 %v3166, %v3218
    %v3240 = vadd.f32 %v3167, %v3226
    %v3241 = vadd.f32 %v3168, %v3228
    %v3242 = vadd.f32 %v3169, %v3211
    %v3243 = vadd.f32 %v3170, %v3225
    %v3244 = vadd.f32 %v3171, %v3227
    %v3245 = vadd.f32 %v3172, %v3229
    %v3246 = vadd.f32 %v3173, %v3204
    %v3247 = vadd.f32 %v3174, %v3218
    %v3248 = vld [vmem:[%s27] sm:$0x1]
    %v3249 = vld [vmem:[%s29] sm:$0x1]
    %v3260 = vcombine.low %v3238, %v3239
    %v3261 = vcombine.low %v3240, %v3241
    %v3262 = vcombine.low %v3242, %v3243
    %v3263 = vcombine.low %v3244, %v3245
    %v3265 = vunpack.c.l.s4 1966171168
    %v3266 = vunpack.c.0.s8 %v3265
    %v3267 = vlaneseq
    %v3268 = vshrl.u32 %v3267, 7
    %v3269 = vsub.s32 %v3266, %v3268
    %v3270 = vrot.slane %v3260, %v3269
    %v3272 = vunpack.c.l.s4 1966171168
    %v3273 = vunpack.c.0.s8 %v3272
    %v3274 = vlaneseq
    %v3275 = vshrl.u32 %v3274, 7
    %v3276 = vsub.s32 %v3273, %v3275
    %v3277 = vrot.slane %v3261, %v3276
    %v3279 = vunpack.c.l.s4 1966171168
    %v3280 = vunpack.c.0.s8 %v3279
    %v3281 = vlaneseq
    %v3282 = vshrl.u32 %v3281, 7
    %v3283 = vsub.s32 %v3280, %v3282
    %v3284 = vrot.slane %v3262, %v3283
    %v3286 = vunpack.c.l.s4 1966171168
    %v3287 = vunpack.c.0.s8 %v3286
    %v3288 = vlaneseq
    %v3289 = vshrl.u32 %v3288, 7
    %v3290 = vsub.s32 %v3287, %v3289
    %v3291 = vrot.slane %v3263, %v3290
    %v3292 = vcombine.low %v3270, %v3277
    %v3293 = vcombine.low %v3284, %v3291
    %v3295 = vunpack.c.l.s4 1966171168
    %v3296 = vunpack.c.0.s8 %v3295
    %v3297 = vlaneseq
    %v3298 = vshrl.u32 %v3297, 7
    %v3299 = vsub.s32 %v3296, %v3298
    %v3300 = vrot.slane %v3292, %v3299
    %v3302 = vunpack.c.l.s4 1966171168
    %v3303 = vunpack.c.0.s8 %v3302
    %v3304 = vlaneseq
    %v3305 = vshrl.u32 %v3304, 7
    %v3306 = vsub.s32 %v3303, %v3305
    %v3307 = vrot.slane %v3293, %v3306
    %v3308 = vcombine.low %v3300, %v3307
    %v3309 = vcombine.low %v3246, %v3247
    %v3311 = vunpack.c.l.s4 1966171168
    %v3312 = vunpack.c.0.s8 %v3311
    %v3313 = vlaneseq
    %v3314 = vshrl.u32 %v3313, 7
    %v3315 = vsub.s32 %v3312, %v3314
    %v3316 = vrot.slane %v3309, %v3315
    %v3318 = vunpack.c.l.s4 1966171168
    %v3319 = vunpack.c.0.s8 %v3318
    %v3320 = vlaneseq
    %v3321 = vshrl.u32 %v3320, 7
    %v3322 = vsub.s32 %v3319, %v3321
    %v3323 = vrot.slane %v3316, %v3322
    %v3326 = vsel %vm716, %v3308, 0.0
    %3327 = vadd.xlane.f32.xlu0 %v3326
    %v3328 = vpop.xlane.xlu0 %3327
    %v3329 = vsel %vm720, %v3323, 0.0
    %3330 = vadd.xlane.f32.xlu0 %v3329
    %v3331 = vpop.xlane.xlu0 %3330
    %v3332 = vmul.f32 %v3328, %v724
    %v3333 = vmul.f32 %v3331, %v724
    %v3336 = vlaneseq
    %v3337 = vshrl.u32 %v3336, 7
    %v3338 = vsub.s32 0, %v3337
    %v3339 = vrot.slane %v3332, %v3338
    %v3340 = vlaneseq
    %v3341 = vshrl.u32 %v3340, 7
    %v3342 = vsub.s32 1, %v3341
    %v3343 = vrot.slane %v3332, %v3342
    %v3344 = vlaneseq
    %v3345 = vshrl.u32 %v3344, 7
    %v3346 = vsub.s32 2, %v3345
    %v3347 = vrot.slane %v3332, %v3346
    %v3348 = vlaneseq
    %v3349 = vshrl.u32 %v3348, 7
    %v3350 = vsub.s32 3, %v3349
    %v3351 = vrot.slane %v3332, %v3350
    %v3352 = vlaneseq
    %v3353 = vshrl.u32 %v3352, 7
    %v3354 = vsub.s32 4, %v3353
    %v3355 = vrot.slane %v3332, %v3354
    %v3356 = vlaneseq
    %v3357 = vshrl.u32 %v3356, 7
    %v3358 = vsub.s32 5, %v3357
    %v3359 = vrot.slane %v3332, %v3358
    %v3360 = vlaneseq
    %v3361 = vshrl.u32 %v3360, 7
    %v3362 = vsub.s32 6, %v3361
    %v3363 = vrot.slane %v3332, %v3362
    %v3364 = vlaneseq
    %v3365 = vshrl.u32 %v3364, 7
    %v3366 = vsub.s32 7, %v3365
    %v3367 = vrot.slane %v3332, %v3366
    %v3368 = vlaneseq
    %v3369 = vshrl.u32 %v3368, 7
    %v3370 = vsub.s32 0, %v3369
    %v3371 = vrot.slane %v3333, %v3370
    %v3372 = vlaneseq
    %v3373 = vshrl.u32 %v3372, 7
    %v3374 = vsub.s32 1, %v3373
    %v3375 = vrot.slane %v3333, %v3374
    %v3386 = vsub.f32 %v3238, %v3339
    %v3387 = vsub.f32 %v3239, %v3343
    %v3388 = vsub.f32 %v3240, %v3347
    %v3389 = vsub.f32 %v3241, %v3351
    %v3390 = vsub.f32 %v3242, %v3355
    %v3391 = vsub.f32 %v3243, %v3359
    %v3392 = vsub.f32 %v3244, %v3363
    %v3393 = vsub.f32 %v3245, %v3367
    %v3394 = vsub.f32 %v3246, %v3371
    %v3395 = vsub.f32 %v3247, %v3375
    %v3396 = vmul.f32 %v3386, %v3386
    %v3397 = vmul.f32 %v3387, %v3387
    %v3398 = vmul.f32 %v3388, %v3388
    %v3399 = vmul.f32 %v3389, %v3389
    %v3400 = vmul.f32 %v3390, %v3390
    %v3401 = vmul.f32 %v3391, %v3391
    %v3402 = vmul.f32 %v3392, %v3392
    %v3403 = vmul.f32 %v3393, %v3393
    %v3404 = vmul.f32 %v3394, %v3394
    %v3405 = vmul.f32 %v3395, %v3395
    %v3416 = vcombine.low %v3396, %v3397
    %v3417 = vcombine.low %v3398, %v3399
    %v3418 = vcombine.low %v3400, %v3401
    %v3419 = vcombine.low %v3402, %v3403
    %v3421 = vunpack.c.l.s4 1966171168
    %v3422 = vunpack.c.0.s8 %v3421
    %v3423 = vlaneseq
    %v3424 = vshrl.u32 %v3423, 7
    %v3425 = vsub.s32 %v3422, %v3424
    %v3426 = vrot.slane %v3416, %v3425
    %v3428 = vunpack.c.l.s4 1966171168
    %v3429 = vunpack.c.0.s8 %v3428
    %v3430 = vlaneseq
    %v3431 = vshrl.u32 %v3430, 7
    %v3432 = vsub.s32 %v3429, %v3431
    %v3433 = vrot.slane %v3417, %v3432
    %v3435 = vunpack.c.l.s4 1966171168
    %v3436 = vunpack.c.0.s8 %v3435
    %v3437 = vlaneseq
    %v3438 = vshrl.u32 %v3437, 7
    %v3439 = vsub.s32 %v3436, %v3438
    %v3440 = vrot.slane %v3418, %v3439
    %v3442 = vunpack.c.l.s4 1966171168
    %v3443 = vunpack.c.0.s8 %v3442
    %v3444 = vlaneseq
    %v3445 = vshrl.u32 %v3444, 7
    %v3446 = vsub.s32 %v3443, %v3445
    %v3447 = vrot.slane %v3419, %v3446
    %v3448 = vcombine.low %v3426, %v3433
    %v3449 = vcombine.low %v3440, %v3447
    %v3451 = vunpack.c.l.s4 1966171168
    %v3452 = vunpack.c.0.s8 %v3451
    %v3453 = vlaneseq
    %v3454 = vshrl.u32 %v3453, 7
    %v3455 = vsub.s32 %v3452, %v3454
    %v3456 = vrot.slane %v3448, %v3455
    %v3458 = vunpack.c.l.s4 1966171168
    %v3459 = vunpack.c.0.s8 %v3458
    %v3460 = vlaneseq
    %v3461 = vshrl.u32 %v3460, 7
    %v3462 = vsub.s32 %v3459, %v3461
    %v3463 = vrot.slane %v3449, %v3462
    %v3464 = vcombine.low %v3456, %v3463
    %v3465 = vcombine.low %v3404, %v3405
    %v3467 = vunpack.c.l.s4 1966171168
    %v3468 = vunpack.c.0.s8 %v3467
    %v3469 = vlaneseq
    %v3470 = vshrl.u32 %v3469, 7
    %v3471 = vsub.s32 %v3468, %v3470
    %v3472 = vrot.slane %v3465, %v3471
    %v3474 = vunpack.c.l.s4 1966171168
    %v3475 = vunpack.c.0.s8 %v3474
    %v3476 = vlaneseq
    %v3477 = vshrl.u32 %v3476, 7
    %v3478 = vsub.s32 %v3475, %v3477
    %v3479 = vrot.slane %v3472, %v3478
    %v3482 = vsel %vm716, %v3464, 0.0
    %3483 = vadd.xlane.f32.xlu0 %v3482
    %v3484 = vpop.xlane.xlu0 %3483
    %v3485 = vsel %vm720, %v3479, 0.0
    %3486 = vadd.xlane.f32.xlu0 %v3485
    %v3487 = vpop.xlane.xlu0 %3486
    %v3488 = vmul.f32 %v3484, %v724
    %v3489 = vmul.f32 %v3487, %v724
    %v3490 = vadd.f32 %v3488, 1e-05
    %v3491 = vadd.f32 %v3489, 1e-05
    %v3492 = vrsqrt.pop %v3490
    %v3493 = vrsqrt.pop %v3491
    %v3496 = vlaneseq
    %v3497 = vshrl.u32 %v3496, 7
    %v3498 = vsub.s32 0, %v3497
    %v3499 = vrot.slane %v3492, %v3498
    %v3500 = vlaneseq
    %v3501 = vshrl.u32 %v3500, 7
    %v3502 = vsub.s32 1, %v3501
    %v3503 = vrot.slane %v3492, %v3502
    %v3504 = vlaneseq
    %v3505 = vshrl.u32 %v3504, 7
    %v3506 = vsub.s32 2, %v3505
    %v3507 = vrot.slane %v3492, %v3506
    %v3508 = vlaneseq
    %v3509 = vshrl.u32 %v3508, 7
    %v3510 = vsub.s32 3, %v3509
    %v3511 = vrot.slane %v3492, %v3510
    %v3512 = vlaneseq
    %v3513 = vshrl.u32 %v3512, 7
    %v3514 = vsub.s32 4, %v3513
    %v3515 = vrot.slane %v3492, %v3514
    %v3516 = vlaneseq
    %v3517 = vshrl.u32 %v3516, 7
    %v3518 = vsub.s32 5, %v3517
    %v3519 = vrot.slane %v3492, %v3518
    %v3520 = vlaneseq
    %v3521 = vshrl.u32 %v3520, 7
    %v3522 = vsub.s32 6, %v3521
    %v3523 = vrot.slane %v3492, %v3522
    %v3524 = vlaneseq
    %v3525 = vshrl.u32 %v3524, 7
    %v3526 = vsub.s32 7, %v3525
    %v3527 = vrot.slane %v3492, %v3526
    %v3528 = vlaneseq
    %v3529 = vshrl.u32 %v3528, 7
    %v3530 = vsub.s32 0, %v3529
    %v3531 = vrot.slane %v3493, %v3530
    %v3532 = vlaneseq
    %v3533 = vshrl.u32 %v3532, 7
    %v3534 = vsub.s32 1, %v3533
    %v3535 = vrot.slane %v3493, %v3534
    %v3546 = vmul.f32 %v3386, %v3499
    %v3547 = vmul.f32 %v3387, %v3503
    %v3548 = vmul.f32 %v3388, %v3507
    %v3549 = vmul.f32 %v3389, %v3511
    %v3550 = vmul.f32 %v3390, %v3515
    %v3551 = vmul.f32 %v3391, %v3519
    %v3552 = vmul.f32 %v3392, %v3523
    %v3553 = vmul.f32 %v3393, %v3527
    %v3554 = vmul.f32 %v3394, %v3531
    %v3555 = vmul.f32 %v3395, %v3535
    %v3557 = vlaneseq
    %v3558 = vshrl.u32 %v3557, 7
    %v3559 = vsub.s32 0, %v3558
    %v3560 = vrot.slane %v3248, %v3559
    %v3561 = vcombine.high %v3560, %v3560
    %v3563 = vunpack.c.l.s4 1966171168
    %v3564 = vunpack.c.0.s8 %v3563
    %v3565 = vlaneseq
    %v3566 = vshrl.u32 %v3565, 7
    %v3567 = vsub.s32 %v3564, %v3566
    %v3568 = vrot.slane %v3560, %v3567
    %v3570 = vunpack.c.l.s4 1966171168
    %v3571 = vunpack.c.0.s8 %v3570
    %v3572 = vlaneseq
    %v3573 = vshrl.u32 %v3572, 7
    %v3574 = vsub.s32 %v3571, %v3573
    %v3575 = vrot.slane %v3561, %v3574
    %v3576 = vcombine.high %v3568, %v3568
    %v3577 = vcombine.high %v3575, %v3575
    %v3579 = vunpack.c.l.s4 1966171168
    %v3580 = vunpack.c.0.s8 %v3579
    %v3581 = vlaneseq
    %v3582 = vshrl.u32 %v3581, 7
    %v3583 = vsub.s32 %v3580, %v3582
    %v3584 = vrot.slane %v3568, %v3583
    %v3586 = vunpack.c.l.s4 1966171168
    %v3587 = vunpack.c.0.s8 %v3586
    %v3588 = vlaneseq
    %v3589 = vshrl.u32 %v3588, 7
    %v3590 = vsub.s32 %v3587, %v3589
    %v3591 = vrot.slane %v3575, %v3590
    %v3593 = vunpack.c.l.s4 1966171168
    %v3594 = vunpack.c.0.s8 %v3593
    %v3595 = vlaneseq
    %v3596 = vshrl.u32 %v3595, 7
    %v3597 = vsub.s32 %v3594, %v3596
    %v3598 = vrot.slane %v3576, %v3597
    %v3600 = vunpack.c.l.s4 1966171168
    %v3601 = vunpack.c.0.s8 %v3600
    %v3602 = vlaneseq
    %v3603 = vshrl.u32 %v3602, 7
    %v3604 = vsub.s32 %v3601, %v3603
    %v3605 = vrot.slane %v3577, %v3604
    %v3606 = vcombine.high %v3584, %v3584
    %v3607 = vcombine.high %v3591, %v3591
    %v3608 = vcombine.high %v3598, %v3598
    %v3609 = vcombine.high %v3605, %v3605
    %v3618 = vmul.f32 %v3546, %v3584
    %v3619 = vmul.f32 %v3547, %v3598
    %v3620 = vmul.f32 %v3548, %v3606
    %v3621 = vmul.f32 %v3549, %v3608
    %v3622 = vmul.f32 %v3550, %v3591
    %v3623 = vmul.f32 %v3551, %v3605
    %v3624 = vmul.f32 %v3552, %v3607
    %v3625 = vmul.f32 %v3553, %v3609
    %v3626 = vmul.f32 %v3554, %v3584
    %v3627 = vmul.f32 %v3555, %v3598
    %v3629 = vlaneseq
    %v3630 = vshrl.u32 %v3629, 7
    %v3631 = vsub.s32 0, %v3630
    %v3632 = vrot.slane %v3249, %v3631
    %v3633 = vcombine.high %v3632, %v3632
    %v3635 = vunpack.c.l.s4 1966171168
    %v3636 = vunpack.c.0.s8 %v3635
    %v3637 = vlaneseq
    %v3638 = vshrl.u32 %v3637, 7
    %v3639 = vsub.s32 %v3636, %v3638
    %v3640 = vrot.slane %v3632, %v3639
    %v3642 = vunpack.c.l.s4 1966171168
    %v3643 = vunpack.c.0.s8 %v3642
    %v3644 = vlaneseq
    %v3645 = vshrl.u32 %v3644, 7
    %v3646 = vsub.s32 %v3643, %v3645
    %v3647 = vrot.slane %v3633, %v3646
    %v3648 = vcombine.high %v3640, %v3640
    %v3649 = vcombine.high %v3647, %v3647
    %v3651 = vunpack.c.l.s4 1966171168
    %v3652 = vunpack.c.0.s8 %v3651
    %v3653 = vlaneseq
    %v3654 = vshrl.u32 %v3653, 7
    %v3655 = vsub.s32 %v3652, %v3654
    %v3656 = vrot.slane %v3640, %v3655
    %v3658 = vunpack.c.l.s4 1966171168
    %v3659 = vunpack.c.0.s8 %v3658
    %v3660 = vlaneseq
    %v3661 = vshrl.u32 %v3660, 7
    %v3662 = vsub.s32 %v3659, %v3661
    %v3663 = vrot.slane %v3647, %v3662
    %v3665 = vunpack.c.l.s4 1966171168
    %v3666 = vunpack.c.0.s8 %v3665
    %v3667 = vlaneseq
    %v3668 = vshrl.u32 %v3667, 7
    %v3669 = vsub.s32 %v3666, %v3668
    %v3670 = vrot.slane %v3648, %v3669
    %v3672 = vunpack.c.l.s4 1966171168
    %v3673 = vunpack.c.0.s8 %v3672
    %v3674 = vlaneseq
    %v3675 = vshrl.u32 %v3674, 7
    %v3676 = vsub.s32 %v3673, %v3675
    %v3677 = vrot.slane %v3649, %v3676
    %v3678 = vcombine.high %v3656, %v3656
    %v3679 = vcombine.high %v3663, %v3663
    %v3680 = vcombine.high %v3670, %v3670
    %v3681 = vcombine.high %v3677, %v3677
    %v3690 = vadd.f32 %v3618, %v3656
    %v3691 = vadd.f32 %v3619, %v3670
    %v3692 = vadd.f32 %v3620, %v3678
    %v3693 = vadd.f32 %v3621, %v3680
    %v3694 = vadd.f32 %v3622, %v3663
    %v3695 = vadd.f32 %v3623, %v3677
    %v3696 = vadd.f32 %v3624, %v3679
    %v3697 = vadd.f32 %v3625, %v3681
    %v3698 = vadd.f32 %v3626, %v3656
    %v3699 = vadd.f32 %v3627, %v3670
    %v3710 = vcombine.low %v3690, %v3691
    %v3711 = vcombine.low %v3692, %v3693
    %v3712 = vcombine.low %v3694, %v3695
    %v3713 = vcombine.low %v3696, %v3697
    %v3715 = vunpack.c.l.s4 1966171168
    %v3716 = vunpack.c.0.s8 %v3715
    %v3717 = vlaneseq
    %v3718 = vshrl.u32 %v3717, 7
    %v3719 = vsub.s32 %v3716, %v3718
    %v3720 = vrot.slane %v3710, %v3719
    %v3722 = vunpack.c.l.s4 1966171168
    %v3723 = vunpack.c.0.s8 %v3722
    %v3724 = vlaneseq
    %v3725 = vshrl.u32 %v3724, 7
    %v3726 = vsub.s32 %v3723, %v3725
    %v3727 = vrot.slane %v3711, %v3726
    %v3729 = vunpack.c.l.s4 1966171168
    %v3730 = vunpack.c.0.s8 %v3729
    %v3731 = vlaneseq
    %v3732 = vshrl.u32 %v3731, 7
    %v3733 = vsub.s32 %v3730, %v3732
    %v3734 = vrot.slane %v3712, %v3733
    %v3736 = vunpack.c.l.s4 1966171168
    %v3737 = vunpack.c.0.s8 %v3736
    %v3738 = vlaneseq
    %v3739 = vshrl.u32 %v3738, 7
    %v3740 = vsub.s32 %v3737, %v3739
    %v3741 = vrot.slane %v3713, %v3740
    %v3742 = vcombine.low %v3720, %v3727
    %v3743 = vcombine.low %v3734, %v3741
    %v3745 = vunpack.c.l.s4 1966171168
    %v3746 = vunpack.c.0.s8 %v3745
    %v3747 = vlaneseq
    %v3748 = vshrl.u32 %v3747, 7
    %v3749 = vsub.s32 %v3746, %v3748
    %v3750 = vrot.slane %v3742, %v3749
    %v3752 = vunpack.c.l.s4 1966171168
    %v3753 = vunpack.c.0.s8 %v3752
    %v3754 = vlaneseq
    %v3755 = vshrl.u32 %v3754, 7
    %v3756 = vsub.s32 %v3753, %v3755
    %v3757 = vrot.slane %v3743, %v3756
    %v3758 = vcombine.low %v3750, %v3757
    %v3759 = vcombine.low %v3698, %v3699
    %v3761 = vunpack.c.l.s4 1966171168
    %v3762 = vunpack.c.0.s8 %v3761
    %v3763 = vlaneseq
    %v3764 = vshrl.u32 %v3763, 7
    %v3765 = vsub.s32 %v3762, %v3764
    %v3766 = vrot.slane %v3759, %v3765
    %v3768 = vunpack.c.l.s4 1966171168
    %v3769 = vunpack.c.0.s8 %v3768
    %v3770 = vlaneseq
    %v3771 = vshrl.u32 %v3770, 7
    %v3772 = vsub.s32 %v3769, %v3771
    %v3773 = vrot.slane %v3766, %v3772
    %v3776 = vpack.c.bf16 %v3773, %v3758
    %v3777 = vld [vmem:[%s31] sm:$0xf]
    %v3778 = vld [vmem:[%s31 + $0x4] sm:$0xf]
    %v3779 = vld [vmem:[%s31 + $0x8] sm:$0xf]
    %v3780 = vld [vmem:[%s31 + $0xc] sm:$0xf]
    %v3781 = vld [vmem:[%s33] sm:$0x1]
    %v3783 = vlaneseq
    %v3784 = vshrl.u32 %v3783, 7
    %v3785 = vsub.s32 0, %v3784
    %v3786 = vrot.slane %v3781, %v3785
    %v3792 = vunpack.c.l.b16 %v3777
    %v3793 = vunpack.c.l.b16 %v3778
    %v3794 = vunpack.c.l.b16 %v3779
    %v3795 = vunpack.c.l.b16 %v3780
    %v3796 = vpack.c.b16 %v3793, %v3792
    %v3797 = vpack.c.b16 %v3795, %v3794
    %v3801 = vsel %vm716, %v3776, 0
    %3803 = vmatprep.subr.bf16.mxu0 0
    %3804 = vmatpush1.bf16.msra.mxu0 %v3796
    %3805 = vmatprep.subr.bf16.mxu0 0
    %3806 = vmatpush1.bf16.msra.mxu0 %v3797
    %3807 = vmatprep.subr.bf16.mxu0 0
    %3808 = vmatpush1.bf16.msra.mxu0 0
    %3809 = vmatprep.subr.bf16.mxu0 0
    %3810 = vmatpush1.bf16.msra.mxu0 0
    %3811 = vmatprep.subr.bf16.mxu0 0
    %3812 = vmatpush1.bf16.msra.mxu0 0
    %3813 = vmatprep.subr.bf16.mxu0 0
    %3814 = vmatpush1.bf16.msra.mxu0 0
    %3815 = vmatprep.subr.bf16.mxu0 0
    %3816 = vmatpush1.bf16.msra.mxu0 0
    %3817 = vmatprep.subr.bf16.mxu0 0
    %3818 = vmatpush1.bf16.msra.mxu0 0
    %3819 = vmatprep.subr.bf16.mxu0 0
    %3820 = vmatpush1.bf16.msra.mxu0 0
    %3821 = vmatprep.subr.bf16.mxu0 0
    %3822 = vmatpush1.bf16.msra.mxu0 0
    %3823 = vmatprep.subr.bf16.mxu0 0
    %3824 = vmatpush1.bf16.msra.mxu0 0
    %3825 = vmatprep.subr.bf16.mxu0 0
    %3826 = vmatpush1.bf16.msra.mxu0 0
    %3827 = vmatprep.subr.bf16.mxu0 0
    %3828 = vmatpush1.bf16.msra.mxu0 0
    %3829 = vmatprep.subr.bf16.mxu0 0
    %3830 = vmatpush1.bf16.msra.mxu0 0
    %3831 = vmatprep.subr.bf16.mxu0 0
    %3832 = vmatpush1.bf16.msra.mxu0 0
    %3833 = vmatprep.subr.bf16.mxu0 0
    %3834 = vmatpush1.bf16.msra.mxu0 0
    %3835 = vmatprep.mubr.bf16.mxu0 0
    %3836 = vmatmul.mubr.bf16.gmra.mrb[0].mxu0 %v3801
    %v3837 = vpop.f32.mrb[0].mxu0
    %v3838 = vadd.f32 %v3786, %v3837
    %v3839 = vpop.f32.mrb[0].mxu0
    %v3840 = vpop.f32.mrb[0].mxu0
    %v3841 = vadd.f32 %v3786, %v3840
    %v3842 = vpop.f32.mrb[0].mxu0
    %3843 = vdwg.mxu0
    %v3844 = vmul.f32 %v3838, 1.702
    %v3845 = vmul.f32 %v3841, 1.702
    %v3846 = vxor.u32 %v3844, 2147483648
    %v3847 = vxor.u32 %v3845, 2147483648
    %v3848 = vmul.f32 %v3846, 1.442695
    %v3849 = vpow.pop %v3848
    %v3850 = vmul.f32 %v3847, 1.442695
    %v3851 = vpow.pop %v3850
    %v3852 = vadd.f32 %v3849, 1.0
    %v3853 = vadd.f32 %v3851, 1.0
    %v3854 = vrcp.pop %v3852
    %v3855 = vmul.f32 1.0, %v3854
    %v3856 = vrcp.pop %v3853
    %v3857 = vmul.f32 1.0, %v3856
    %v3858 = vmul.f32 %v3838, %v3855
    %v3859 = vmul.f32 %v3841, %v3857
    %v3860 = vpack.c.bf16 %v3859, %v3858
    %v3861 = vld [vmem:[%s35] sm:$0xf]
    %v3862 = vld [vmem:[%s35 + $0x4] sm:$0xf]
    %v3863 = vld [vmem:[%s35 + $0x8] sm:$0xf]
    %v3864 = vld [vmem:[%s35 + $0xc] sm:$0xf]
    %v3865 = vld [vmem:[%s35 + $0x10] sm:$0xf]
    %v3866 = vld [vmem:[%s35 + $0x14] sm:$0xf]
    %v3867 = vld [vmem:[%s35 + $0x18] sm:$0xf]
    %v3868 = vld [vmem:[%s35 + $0x1c] sm:$0xf]
    %v3869 = vld [vmem:[%s35 + $0x20] sm:$0xf]
    %v3870 = vld [vmem:[%s35 + $0x24] sm:$0xf]
    %v3871 = vld [vmem:[%s35 + $0x28] sm:$0xf]
    %v3872 = vld [vmem:[%s35 + $0x2c] sm:$0xf]
    %v3873 = vld [vmem:[%s35 + $0x30] sm:$0xf]
    %v3874 = vld [vmem:[%s35 + $0x34] sm:$0xf]
    %v3875 = vld [vmem:[%s35 + $0x38] sm:$0xf]
    %v3876 = vld [vmem:[%s35 + $0x3c] sm:$0xf]
    %v3893 = vunpack.c.l.b16 %v3861
    %v3894 = vunpack.c.l.b16 %v3862
    %v3895 = vunpack.c.l.b16 %v3863
    %v3896 = vunpack.c.l.b16 %v3864
    %v3897 = vunpack.c.l.b16 %v3865
    %v3898 = vunpack.c.l.b16 %v3866
    %v3899 = vunpack.c.l.b16 %v3867
    %v3900 = vunpack.c.l.b16 %v3868
    %v3901 = vunpack.c.l.b16 %v3869
    %v3902 = vunpack.c.l.b16 %v3870
    %v3903 = vunpack.c.l.b16 %v3871
    %v3904 = vunpack.c.l.b16 %v3872
    %v3905 = vunpack.c.l.b16 %v3873
    %v3906 = vunpack.c.l.b16 %v3874
    %v3907 = vunpack.c.l.b16 %v3875
    %v3908 = vunpack.c.l.b16 %v3876
    %v3909 = vpack.c.b16 %v3894, %v3893
    %v3910 = vpack.c.b16 %v3896, %v3895
    %v3911 = vpack.c.b16 %v3898, %v3897
    %v3912 = vpack.c.b16 %v3900, %v3899
    %v3913 = vpack.c.b16 %v3902, %v3901
    %v3914 = vpack.c.b16 %v3904, %v3903
    %v3915 = vpack.c.b16 %v3906, %v3905
    %v3916 = vpack.c.b16 %v3908, %v3907
    %3925 = vmatprep.subr.bf16.mxu0 0
    %3926 = vmatpush1.bf16.msra.mxu0 %v3909
    %3927 = vmatprep.subr.bf16.mxu0 0
    %3928 = vmatpush1.bf16.msra.mxu0 %v3910
    %3929 = vmatprep.subr.bf16.mxu0 0
    %3930 = vmatpush1.bf16.msra.mxu0 %v3911
    %3931 = vmatprep.subr.bf16.mxu0 0
    %3932 = vmatpush1.bf16.msra.mxu0 %v3912
    %3933 = vmatprep.subr.bf16.mxu0 0
    %3934 = vmatpush1.bf16.msra.mxu0 %v3913
    %3935 = vmatprep.subr.bf16.mxu0 0
    %3936 = vmatpush1.bf16.msra.mxu0 %v3914
    %3937 = vmatprep.subr.bf16.mxu0 0
    %3938 = vmatpush1.bf16.msra.mxu0 %v3915
    %3939 = vmatprep.subr.bf16.mxu0 0
    %3940 = vmatpush1.bf16.msra.mxu0 %v3916
    %3941 = vmatprep.subr.bf16.mxu0 0
    %3942 = vmatpush1.bf16.msra.mxu0 0
    %3943 = vmatprep.subr.bf16.mxu0 0
    %3944 = vmatpush1.bf16.msra.mxu0 0
    %3945 = vmatprep.subr.bf16.mxu0 0
    %3946 = vmatpush1.bf16.msra.mxu0 0
    %3947 = vmatprep.subr.bf16.mxu0 0
    %3948 = vmatpush1.bf16.msra.mxu0 0
    %3949 = vmatprep.subr.bf16.mxu0 0
    %3950 = vmatpush1.bf16.msra.mxu0 0
    %3951 = vmatprep.subr.bf16.mxu0 0
    %3952 = vmatpush1.bf16.msra.mxu0 0
    %3953 = vmatprep.subr.bf16.mxu0 0
    %3954 = vmatpush1.bf16.msra.mxu0 0
    %3955 = vmatprep.subr.bf16.mxu0 0
    %3956 = vmatpush1.bf16.msra.mxu0 0
    %3957 = vmatprep.mubr.bf16.mxu0 0
    %3958 = vmatmul.mubr.bf16.gmra.mrb[0].mxu0 %v3860
    %v3959 = vpop.f32.mrb[0].mxu0
    %v3960 = vadd.f32 0.0, %v3959
    %v3961 = vpop.f32.mrb[0].mxu0
    %v3962 = vpop.f32.mrb[0].mxu0
    %v3963 = vadd.f32 0.0, %v3962
    %v3964 = vpop.f32.mrb[0].mxu0
    %3965 = vdwg.mxu0
    %v3968 = vcombine.high %v3960, %v3960
    %v3970 = vunpack.c.l.s4 1966171168
    %v3971 = vunpack.c.0.s8 %v3970
    %v3972 = vlaneseq
    %v3973 = vshrl.u32 %v3972, 7
    %v3974 = vsub.s32 %v3971, %v3973
    %v3975 = vrot.slane %v3960, %v3974
    %v3977 = vunpack.c.l.s4 1966171168
    %v3978 = vunpack.c.0.s8 %v3977
    %v3979 = vlaneseq
    %v3980 = vshrl.u32 %v3979, 7
    %v3981 = vsub.s32 %v3978, %v3980
    %v3982 = vrot.slane %v3968, %v3981
    %v3983 = vcombine.high %v3975, %v3975
    %v3984 = vcombine.high %v3982, %v3982
    %v3986 = vunpack.c.l.s4 1966171168
    %v3987 = vunpack.c.0.s8 %v3986
    %v3988 = vlaneseq
    %v3989 = vshrl.u32 %v3988, 7
    %v3990 = vsub.s32 %v3987, %v3989
    %v3991 = vrot.slane %v3975, %v3990
    %v3993 = vunpack.c.l.s4 1966171168
    %v3994 = vunpack.c.0.s8 %v3993
    %v3995 = vlaneseq
    %v3996 = vshrl.u32 %v3995, 7
    %v3997 = vsub.s32 %v3994, %v3996
    %v3998 = vrot.slane %v3982, %v3997
    %v4000 = vunpack.c.l.s4 1966171168
    %v4001 = vunpack.c.0.s8 %v4000
    %v4002 = vlaneseq
    %v4003 = vshrl.u32 %v4002, 7
    %v4004 = vsub.s32 %v4001, %v4003
    %v4005 = vrot.slane %v3983, %v4004
    %v4007 = vunpack.c.l.s4 1966171168
    %v4008 = vunpack.c.0.s8 %v4007
    %v4009 = vlaneseq
    %v4010 = vshrl.u32 %v4009, 7
    %v4011 = vsub.s32 %v4008, %v4010
    %v4012 = vrot.slane %v3984, %v4011
    %v4013 = vcombine.high %v3991, %v3991
    %v4014 = vcombine.high %v3998, %v3998
    %v4015 = vcombine.high %v4005, %v4005
    %v4016 = vcombine.high %v4012, %v4012
    %v4018 = vunpack.c.l.s4 1966171168
    %v4019 = vunpack.c.0.s8 %v4018
    %v4020 = vlaneseq
    %v4021 = vshrl.u32 %v4020, 7
    %v4022 = vsub.s32 %v4019, %v4021
    %v4023 = vrot.slane %v3963, %v4022
    %v4024 = vcombine.high %v4023, %v4023
    %v4026 = vunpack.c.l.s4 1966171168
    %v4027 = vunpack.c.0.s8 %v4026
    %v4028 = vlaneseq
    %v4029 = vshrl.u32 %v4028, 7
    %v4030 = vsub.s32 %v4027, %v4029
    %v4031 = vrot.slane %v4023, %v4030
    %v4033 = vunpack.c.l.s4 1966171168
    %v4034 = vunpack.c.0.s8 %v4033
    %v4035 = vlaneseq
    %v4036 = vshrl.u32 %v4035, 7
    %v4037 = vsub.s32 %v4034, %v4036
    %v4038 = vrot.slane %v4024, %v4037
    %v4049 = vadd.f32 %v3238, %v3991
    %v4050 = vadd.f32 %v3239, %v4005
    %v4051 = vadd.f32 %v3240, %v4013
    %v4052 = vadd.f32 %v3241, %v4015
    %v4053 = vadd.f32 %v3242, %v3998
    %v4054 = vadd.f32 %v3243, %v4012
    %v4055 = vadd.f32 %v3244, %v4014
    %v4056 = vadd.f32 %v3245, %v4016
    %v4057 = vadd.f32 %v3246, %v4031
    %v4058 = vadd.f32 %v3247, %v4038
    %v4059 = vld [vmem:[%s37] sm:$0x1]
    %v4061 = vlaneseq
    %v4062 = vshrl.u32 %v4061, 7
    %v4063 = vsub.s32 0, %v4062
    %v4064 = vrot.slane %v4059, %v4063
    %v4065 = vcombine.high %v4064, %v4064
    %v4067 = vunpack.c.l.s4 1966171168
    %v4068 = vunpack.c.0.s8 %v4067
    %v4069 = vlaneseq
    %v4070 = vshrl.u32 %v4069, 7
    %v4071 = vsub.s32 %v4068, %v4070
    %v4072 = vrot.slane %v4064, %v4071
    %v4074 = vunpack.c.l.s4 1966171168
    %v4075 = vunpack.c.0.s8 %v4074
    %v4076 = vlaneseq
    %v4077 = vshrl.u32 %v4076, 7
    %v4078 = vsub.s32 %v4075, %v4077
    %v4079 = vrot.slane %v4065, %v4078
    %v4080 = vcombine.high %v4072, %v4072
    %v4081 = vcombine.high %v4079, %v4079
    %v4083 = vunpack.c.l.s4 1966171168
    %v4084 = vunpack.c.0.s8 %v4083
    %v4085 = vlaneseq
    %v4086 = vshrl.u32 %v4085, 7
    %v4087 = vsub.s32 %v4084, %v4086
    %v4088 = vrot.slane %v4072, %v4087
    %v4090 = vunpack.c.l.s4 1966171168
    %v4091 = vunpack.c.0.s8 %v4090
    %v4092 = vlaneseq
    %v4093 = vshrl.u32 %v4092, 7
    %v4094 = vsub.s32 %v4091, %v4093
    %v4095 = vrot.slane %v4079, %v4094
    %v4097 = vunpack.c.l.s4 1966171168
    %v4098 = vunpack.c.0.s8 %v4097
    %v4099 = vlaneseq
    %v4100 = vshrl.u32 %v4099, 7
    %v4101 = vsub.s32 %v4098, %v4100
    %v4102 = vrot.slane %v4080, %v4101
    %v4104 = vunpack.c.l.s4 1966171168
    %v4105 = vunpack.c.0.s8 %v4104
    %v4106 = vlaneseq
    %v4107 = vshrl.u32 %v4106, 7
    %v4108 = vsub.s32 %v4105, %v4107
    %v4109 = vrot.slane %v4081, %v4108
    %v4110 = vcombine.high %v4088, %v4088
    %v4111 = vcombine.high %v4095, %v4095
    %v4112 = vcombine.high %v4102, %v4102
    %v4113 = vcombine.high %v4109, %v4109
    %v4122 = vadd.f32 %v4049, %v4088
    %v4123 = vadd.f32 %v4050, %v4102
    %v4124 = vadd.f32 %v4051, %v4110
    %v4125 = vadd.f32 %v4052, %v4112
    %v4126 = vadd.f32 %v4053, %v4095
    %v4127 = vadd.f32 %v4054, %v4109
    %v4128 = vadd.f32 %v4055, %v4111
    %v4129 = vadd.f32 %v4056, %v4113
    %v4130 = vadd.f32 %v4057, %v4088
    %v4131 = vadd.f32 %v4058, %v4102
    %s4132 = scalar_lea.vmem %s23, 1
    %v4133 = vld [vmem:[%s4132] sm:$0x1]
    %s4134 = scalar_lea.vmem %s25, 1
    %v4135 = vld [vmem:[%s4134] sm:$0x1]
    %v4146 = vcombine.low %v4122, %v4123
    %v4147 = vcombine.low %v4124, %v4125
    %v4148 = vcombine.low %v4126, %v4127
    %v4149 = vcombine.low %v4128, %v4129
    %v4151 = vunpack.c.l.s4 1966171168
    %v4152 = vunpack.c.0.s8 %v4151
    %v4153 = vlaneseq
    %v4154 = vshrl.u32 %v4153, 7
    %v4155 = vsub.s32 %v4152, %v4154
    %v4156 = vrot.slane %v4146, %v4155
    %v4158 = vunpack.c.l.s4 1966171168
    %v4159 = vunpack.c.0.s8 %v4158
    %v4160 = vlaneseq
    %v4161 = vshrl.u32 %v4160, 7
    %v4162 = vsub.s32 %v4159, %v4161
    %v4163 = vrot.slane %v4147, %v4162
    %v4165 = vunpack.c.l.s4 1966171168
    %v4166 = vunpack.c.0.s8 %v4165
    %v4167 = vlaneseq
    %v4168 = vshrl.u32 %v4167, 7
    %v4169 = vsub.s32 %v4166, %v4168
    %v4170 = vrot.slane %v4148, %v4169
    %v4172 = vunpack.c.l.s4 1966171168
    %v4173 = vunpack.c.0.s8 %v4172
    %v4174 = vlaneseq
    %v4175 = vshrl.u32 %v4174, 7
    %v4176 = vsub.s32 %v4173, %v4175
    %v4177 = vrot.slane %v4149, %v4176
    %v4178 = vcombine.low %v4156, %v4163
    %v4179 = vcombine.low %v4170, %v4177
    %v4181 = vunpack.c.l.s4 1966171168
    %v4182 = vunpack.c.0.s8 %v4181
    %v4183 = vlaneseq
    %v4184 = vshrl.u32 %v4183, 7
    %v4185 = vsub.s32 %v4182, %v4184
    %v4186 = vrot.slane %v4178, %v4185
    %v4188 = vunpack.c.l.s4 1966171168
    %v4189 = vunpack.c.0.s8 %v4188
    %v4190 = vlaneseq
    %v4191 = vshrl.u32 %v4190, 7
    %v4192 = vsub.s32 %v4189, %v4191
    %v4193 = vrot.slane %v4179, %v4192
    %v4194 = vcombine.low %v4186, %v4193
    %v4195 = vcombine.low %v4130, %v4131
    %v4197 = vunpack.c.l.s4 1966171168
    %v4198 = vunpack.c.0.s8 %v4197
    %v4199 = vlaneseq
    %v4200 = vshrl.u32 %v4199, 7
    %v4201 = vsub.s32 %v4198, %v4200
    %v4202 = vrot.slane %v4195, %v4201
    %v4204 = vunpack.c.l.s4 1966171168
    %v4205 = vunpack.c.0.s8 %v4204
    %v4206 = vlaneseq
    %v4207 = vshrl.u32 %v4206, 7
    %v4208 = vsub.s32 %v4205, %v4207
    %v4209 = vrot.slane %v4202, %v4208
    %v4212 = vsel %vm716, %v4194, 0.0
    %4213 = vadd.xlane.f32.xlu0 %v4212
    %v4214 = vpop.xlane.xlu0 %4213
    %v4215 = vsel %vm720, %v4209, 0.0
    %4216 = vadd.xlane.f32.xlu0 %v4215
    %v4217 = vpop.xlane.xlu0 %4216
    %v4218 = vmul.f32 %v4214, %v724
    %v4219 = vmul.f32 %v4217, %v724
    %v4222 = vlaneseq
    %v4223 = vshrl.u32 %v4222, 7
    %v4224 = vsub.s32 0, %v4223
    %v4225 = vrot.slane %v4218, %v4224
    %v4226 = vlaneseq
    %v4227 = vshrl.u32 %v4226, 7
    %v4228 = vsub.s32 1, %v4227
    %v4229 = vrot.slane %v4218, %v4228
    %v4230 = vlaneseq
    %v4231 = vshrl.u32 %v4230, 7
    %v4232 = vsub.s32 2, %v4231
    %v4233 = vrot.slane %v4218, %v4232
    %v4234 = vlaneseq
    %v4235 = vshrl.u32 %v4234, 7
    %v4236 = vsub.s32 3, %v4235
    %v4237 = vrot.slane %v4218, %v4236
    %v4238 = vlaneseq
    %v4239 = vshrl.u32 %v4238, 7
    %v4240 = vsub.s32 4, %v4239
    %v4241 = vrot.slane %v4218, %v4240
    %v4242 = vlaneseq
    %v4243 = vshrl.u32 %v4242, 7
    %v4244 = vsub.s32 5, %v4243
    %v4245 = vrot.slane %v4218, %v4244
    %v4246 = vlaneseq
    %v4247 = vshrl.u32 %v4246, 7
    %v4248 = vsub.s32 6, %v4247
    %v4249 = vrot.slane %v4218, %v4248
    %v4250 = vlaneseq
    %v4251 = vshrl.u32 %v4250, 7
    %v4252 = vsub.s32 7, %v4251
    %v4253 = vrot.slane %v4218, %v4252
    %v4254 = vlaneseq
    %v4255 = vshrl.u32 %v4254, 7
    %v4256 = vsub.s32 0, %v4255
    %v4257 = vrot.slane %v4219, %v4256
    %v4258 = vlaneseq
    %v4259 = vshrl.u32 %v4258, 7
    %v4260 = vsub.s32 1, %v4259
    %v4261 = vrot.slane %v4219, %v4260
    %v4272 = vsub.f32 %v4122, %v4225
    %v4273 = vsub.f32 %v4123, %v4229
    %v4274 = vsub.f32 %v4124, %v4233
    %v4275 = vsub.f32 %v4125, %v4237
    %v4276 = vsub.f32 %v4126, %v4241
    %v4277 = vsub.f32 %v4127, %v4245
    %v4278 = vsub.f32 %v4128, %v4249
    %v4279 = vsub.f32 %v4129, %v4253
    %v4280 = vsub.f32 %v4130, %v4257
    %v4281 = vsub.f32 %v4131, %v4261
    %v4282 = vmul.f32 %v4272, %v4272
    %v4283 = vmul.f32 %v4273, %v4273
    %v4284 = vmul.f32 %v4274, %v4274
    %v4285 = vmul.f32 %v4275, %v4275
    %v4286 = vmul.f32 %v4276, %v4276
    %v4287 = vmul.f32 %v4277, %v4277
    %v4288 = vmul.f32 %v4278, %v4278
    %v4289 = vmul.f32 %v4279, %v4279
    %v4290 = vmul.f32 %v4280, %v4280
    %v4291 = vmul.f32 %v4281, %v4281
    %v4302 = vcombine.low %v4282, %v4283
    %v4303 = vcombine.low %v4284, %v4285
    %v4304 = vcombine.low %v4286, %v4287
    %v4305 = vcombine.low %v4288, %v4289
    %v4307 = vunpack.c.l.s4 1966171168
    %v4308 = vunpack.c.0.s8 %v4307
    %v4309 = vlaneseq
    %v4310 = vshrl.u32 %v4309, 7
    %v4311 = vsub.s32 %v4308, %v4310
    %v4312 = vrot.slane %v4302, %v4311
    %v4314 = vunpack.c.l.s4 1966171168
    %v4315 = vunpack.c.0.s8 %v4314
    %v4316 = vlaneseq
    %v4317 = vshrl.u32 %v4316, 7
    %v4318 = vsub.s32 %v4315, %v4317
    %v4319 = vrot.slane %v4303, %v4318
    %v4321 = vunpack.c.l.s4 1966171168
    %v4322 = vunpack.c.0.s8 %v4321
    %v4323 = vlaneseq
    %v4324 = vshrl.u32 %v4323, 7
    %v4325 = vsub.s32 %v4322, %v4324
    %v4326 = vrot.slane %v4304, %v4325
    %v4328 = vunpack.c.l.s4 1966171168
    %v4329 = vunpack.c.0.s8 %v4328
    %v4330 = vlaneseq
    %v4331 = vshrl.u32 %v4330, 7
    %v4332 = vsub.s32 %v4329, %v4331
    %v4333 = vrot.slane %v4305, %v4332
    %v4334 = vcombine.low %v4312, %v4319
    %v4335 = vcombine.low %v4326, %v4333
    %v4337 = vunpack.c.l.s4 1966171168
    %v4338 = vunpack.c.0.s8 %v4337
    %v4339 = vlaneseq
    %v4340 = vshrl.u32 %v4339, 7
    %v4341 = vsub.s32 %v4338, %v4340
    %v4342 = vrot.slane %v4334, %v4341
    %v4344 = vunpack.c.l.s4 1966171168
    %v4345 = vunpack.c.0.s8 %v4344
    %v4346 = vlaneseq
    %v4347 = vshrl.u32 %v4346, 7
    %v4348 = vsub.s32 %v4345, %v4347
    %v4349 = vrot.slane %v4335, %v4348
    %v4350 = vcombine.low %v4342, %v4349
    %v4351 = vcombine.low %v4290, %v4291
    %v4353 = vunpack.c.l.s4 1966171168
    %v4354 = vunpack.c.0.s8 %v4353
    %v4355 = vlaneseq
    %v4356 = vshrl.u32 %v4355, 7
    %v4357 = vsub.s32 %v4354, %v4356
    %v4358 = vrot.slane %v4351, %v4357
    %v4360 = vunpack.c.l.s4 1966171168
    %v4361 = vunpack.c.0.s8 %v4360
    %v4362 = vlaneseq
    %v4363 = vshrl.u32 %v4362, 7
    %v4364 = vsub.s32 %v4361, %v4363
    %v4365 = vrot.slane %v4358, %v4364
    %v4368 = vsel %vm716, %v4350, 0.0
    %4369 = vadd.xlane.f32.xlu0 %v4368
    %v4370 = vpop.xlane.xlu0 %4369
    %v4371 = vsel %vm720, %v4365, 0.0
    %4372 = vadd.xlane.f32.xlu0 %v4371
    %v4373 = vpop.xlane.xlu0 %4372
    %v4374 = vmul.f32 %v4370, %v724
    %v4375 = vmul.f32 %v4373, %v724
    %v4376 = vadd.f32 %v4374, 1e-05
    %v4377 = vadd.f32 %v4375, 1e-05
    %v4378 = vrsqrt.pop %v4376
    %v4379 = vrsqrt.pop %v4377
    %v4382 = vlaneseq
    %v4383 = vshrl.u32 %v4382, 7
    %v4384 = vsub.s32 0, %v4383
    %v4385 = vrot.slane %v4378, %v4384
    %v4386 = vlaneseq
    %v4387 = vshrl.u32 %v4386, 7
    %v4388 = vsub.s32 1, %v4387
    %v4389 = vrot.slane %v4378, %v4388
    %v4390 = vlaneseq
    %v4391 = vshrl.u32 %v4390, 7
    %v4392 = vsub.s32 2, %v4391
    %v4393 = vrot.slane %v4378, %v4392
    %v4394 = vlaneseq
    %v4395 = vshrl.u32 %v4394, 7
    %v4396 = vsub.s32 3, %v4395
    %v4397 = vrot.slane %v4378, %v4396
    %v4398 = vlaneseq
    %v4399 = vshrl.u32 %v4398, 7
    %v4400 = vsub.s32 4, %v4399
    %v4401 = vrot.slane %v4378, %v4400
    %v4402 = vlaneseq
    %v4403 = vshrl.u32 %v4402, 7
    %v4404 = vsub.s32 5, %v4403
    %v4405 = vrot.slane %v4378, %v4404
    %v4406 = vlaneseq
    %v4407 = vshrl.u32 %v4406, 7
    %v4408 = vsub.s32 6, %v4407
    %v4409 = vrot.slane %v4378, %v4408
    %v4410 = vlaneseq
    %v4411 = vshrl.u32 %v4410, 7
    %v4412 = vsub.s32 7, %v4411
    %v4413 = vrot.slane %v4378, %v4412
    %v4414 = vlaneseq
    %v4415 = vshrl.u32 %v4414, 7
    %v4416 = vsub.s32 0, %v4415
    %v4417 = vrot.slane %v4379, %v4416
    %v4418 = vlaneseq
    %v4419 = vshrl.u32 %v4418, 7
    %v4420 = vsub.s32 1, %v4419
    %v4421 = vrot.slane %v4379, %v4420
    %v4432 = vmul.f32 %v4272, %v4385
    %v4433 = vmul.f32 %v4273, %v4389
    %v4434 = vmul.f32 %v4274, %v4393
    %v4435 = vmul.f32 %v4275, %v4397
    %v4436 = vmul.f32 %v4276, %v4401
    %v4437 = vmul.f32 %v4277, %v4405
    %v4438 = vmul.f32 %v4278, %v4409
    %v4439 = vmul.f32 %v4279, %v4413
    %v4440 = vmul.f32 %v4280, %v4417
    %v4441 = vmul.f32 %v4281, %v4421
    %v4443 = vlaneseq
    %v4444 = vshrl.u32 %v4443, 7
    %v4445 = vsub.s32 0, %v4444
    %v4446 = vrot.slane %v4133, %v4445
    %v4447 = vcombine.high %v4446, %v4446
    %v4449 = vunpack.c.l.s4 1966171168
    %v4450 = vunpack.c.0.s8 %v4449
    %v4451 = vlaneseq
    %v4452 = vshrl.u32 %v4451, 7
    %v4453 = vsub.s32 %v4450, %v4452
    %v4454 = vrot.slane %v4446, %v4453
    %v4456 = vunpack.c.l.s4 1966171168
    %v4457 = vunpack.c.0.s8 %v4456
    %v4458 = vlaneseq
    %v4459 = vshrl.u32 %v4458, 7
    %v4460 = vsub.s32 %v4457, %v4459
    %v4461 = vrot.slane %v4447, %v4460
    %v4462 = vcombine.high %v4454, %v4454
    %v4463 = vcombine.high %v4461, %v4461
    %v4465 = vunpack.c.l.s4 1966171168
    %v4466 = vunpack.c.0.s8 %v4465
    %v4467 = vlaneseq
    %v4468 = vshrl.u32 %v4467, 7
    %v4469 = vsub.s32 %v4466, %v4468
    %v4470 = vrot.slane %v4454, %v4469
    %v4472 = vunpack.c.l.s4 1966171168
    %v4473 = vunpack.c.0.s8 %v4472
    %v4474 = vlaneseq
    %v4475 = vshrl.u32 %v4474, 7
    %v4476 = vsub.s32 %v4473, %v4475
    %v4477 = vrot.slane %v4461, %v4476
    %v4479 = vunpack.c.l.s4 1966171168
    %v4480 = vunpack.c.0.s8 %v4479
    %v4481 = vlaneseq
    %v4482 = vshrl.u32 %v4481, 7
    %v4483 = vsub.s32 %v4480, %v4482
    %v4484 = vrot.slane %v4462, %v4483
    %v4486 = vunpack.c.l.s4 1966171168
    %v4487 = vunpack.c.0.s8 %v4486
    %v4488 = vlaneseq
    %v4489 = vshrl.u32 %v4488, 7
    %v4490 = vsub.s32 %v4487, %v4489
    %v4491 = vrot.slane %v4463, %v4490
    %v4492 = vcombine.high %v4470, %v4470
    %v4493 = vcombine.high %v4477, %v4477
    %v4494 = vcombine.high %v4484, %v4484
    %v4495 = vcombine.high %v4491, %v4491
    %v4504 = vmul.f32 %v4432, %v4470
    %v4505 = vmul.f32 %v4433, %v4484
    %v4506 = vmul.f32 %v4434, %v4492
    %v4507 = vmul.f32 %v4435, %v4494
    %v4508 = vmul.f32 %v4436, %v4477
    %v4509 = vmul.f32 %v4437, %v4491
    %v4510 = vmul.f32 %v4438, %v4493
    %v4511 = vmul.f32 %v4439, %v4495
    %v4512 = vmul.f32 %v4440, %v4470
    %v4513 = vmul.f32 %v4441, %v4484
    %v4515 = vlaneseq
    %v4516 = vshrl.u32 %v4515, 7
    %v4517 = vsub.s32 0, %v4516
    %v4518 = vrot.slane %v4135, %v4517
    %v4519 = vcombine.high %v4518, %v4518
    %v4521 = vunpack.c.l.s4 1966171168
    %v4522 = vunpack.c.0.s8 %v4521
    %v4523 = vlaneseq
    %v4524 = vshrl.u32 %v4523, 7
    %v4525 = vsub.s32 %v4522, %v4524
    %v4526 = vrot.slane %v4518, %v4525
    %v4528 = vunpack.c.l.s4 1966171168
    %v4529 = vunpack.c.0.s8 %v4528
    %v4530 = vlaneseq
    %v4531 = vshrl.u32 %v4530, 7
    %v4532 = vsub.s32 %v4529, %v4531
    %v4533 = vrot.slane %v4519, %v4532
    %v4534 = vcombine.high %v4526, %v4526
    %v4535 = vcombine.high %v4533, %v4533
    %v4537 = vunpack.c.l.s4 1966171168
    %v4538 = vunpack.c.0.s8 %v4537
    %v4539 = vlaneseq
    %v4540 = vshrl.u32 %v4539, 7
    %v4541 = vsub.s32 %v4538, %v4540
    %v4542 = vrot.slane %v4526, %v4541
    %v4544 = vunpack.c.l.s4 1966171168
    %v4545 = vunpack.c.0.s8 %v4544
    %v4546 = vlaneseq
    %v4547 = vshrl.u32 %v4546, 7
    %v4548 = vsub.s32 %v4545, %v4547
    %v4549 = vrot.slane %v4533, %v4548
    %v4551 = vunpack.c.l.s4 1966171168
    %v4552 = vunpack.c.0.s8 %v4551
    %v4553 = vlaneseq
    %v4554 = vshrl.u32 %v4553, 7
    %v4555 = vsub.s32 %v4552, %v4554
    %v4556 = vrot.slane %v4534, %v4555
    %v4558 = vunpack.c.l.s4 1966171168
    %v4559 = vunpack.c.0.s8 %v4558
    %v4560 = vlaneseq
    %v4561 = vshrl.u32 %v4560, 7
    %v4562 = vsub.s32 %v4559, %v4561
    %v4563 = vrot.slane %v4535, %v4562
    %v4564 = vcombine.high %v4542, %v4542
    %v4565 = vcombine.high %v4549, %v4549
    %v4566 = vcombine.high %v4556, %v4556
    %v4567 = vcombine.high %v4563, %v4563
    %v4576 = vadd.f32 %v4504, %v4542
    %v4577 = vadd.f32 %v4505, %v4556
    %v4578 = vadd.f32 %v4506, %v4564
    %v4579 = vadd.f32 %v4507, %v4566
    %v4580 = vadd.f32 %v4508, %v4549
    %v4581 = vadd.f32 %v4509, %v4563
    %v4582 = vadd.f32 %v4510, %v4565
    %v4583 = vadd.f32 %v4511, %v4567
    %v4584 = vadd.f32 %v4512, %v4542
    %v4585 = vadd.f32 %v4513, %v4556
    %v4596 = vcombine.low %v4576, %v4577
    %v4597 = vcombine.low %v4578, %v4579
    %v4598 = vcombine.low %v4580, %v4581
    %v4599 = vcombine.low %v4582, %v4583
    %v4601 = vunpack.c.l.s4 1966171168
    %v4602 = vunpack.c.0.s8 %v4601
    %v4603 = vlaneseq
    %v4604 = vshrl.u32 %v4603, 7
    %v4605 = vsub.s32 %v4602, %v4604
    %v4606 = vrot.slane %v4596, %v4605
    %v4608 = vunpack.c.l.s4 1966171168
    %v4609 = vunpack.c.0.s8 %v4608
    %v4610 = vlaneseq
    %v4611 = vshrl.u32 %v4610, 7
    %v4612 = vsub.s32 %v4609, %v4611
    %v4613 = vrot.slane %v4597, %v4612
    %v4615 = vunpack.c.l.s4 1966171168
    %v4616 = vunpack.c.0.s8 %v4615
    %v4617 = vlaneseq
    %v4618 = vshrl.u32 %v4617, 7
    %v4619 = vsub.s32 %v4616, %v4618
    %v4620 = vrot.slane %v4598, %v4619
    %v4622 = vunpack.c.l.s4 1966171168
    %v4623 = vunpack.c.0.s8 %v4622
    %v4624 = vlaneseq
    %v4625 = vshrl.u32 %v4624, 7
    %v4626 = vsub.s32 %v4623, %v4625
    %v4627 = vrot.slane %v4599, %v4626
    %v4628 = vcombine.low %v4606, %v4613
    %v4629 = vcombine.low %v4620, %v4627
    %v4631 = vunpack.c.l.s4 1966171168
    %v4632 = vunpack.c.0.s8 %v4631
    %v4633 = vlaneseq
    %v4634 = vshrl.u32 %v4633, 7
    %v4635 = vsub.s32 %v4632, %v4634
    %v4636 = vrot.slane %v4628, %v4635
    %v4638 = vunpack.c.l.s4 1966171168
    %v4639 = vunpack.c.0.s8 %v4638
    %v4640 = vlaneseq
    %v4641 = vshrl.u32 %v4640, 7
    %v4642 = vsub.s32 %v4639, %v4641
    %v4643 = vrot.slane %v4629, %v4642
    %v4644 = vcombine.low %v4636, %v4643
    %v4645 = vcombine.low %v4584, %v4585
    %v4647 = vunpack.c.l.s4 1966171168
    %v4648 = vunpack.c.0.s8 %v4647
    %v4649 = vlaneseq
    %v4650 = vshrl.u32 %v4649, 7
    %v4651 = vsub.s32 %v4648, %v4650
    %v4652 = vrot.slane %v4645, %v4651
    %v4654 = vunpack.c.l.s4 1966171168
    %v4655 = vunpack.c.0.s8 %v4654
    %v4656 = vlaneseq
    %v4657 = vshrl.u32 %v4656, 7
    %v4658 = vsub.s32 %v4655, %v4657
    %v4659 = vrot.slane %v4652, %v4658
    %v4662 = vpack.c.bf16 %v4659, %v4644
    %s4663 = scalar_lea.vmem %s15, 16
    %v4664 = vld [vmem:[%s4663] sm:$0xf]
    %v4665 = vld [vmem:[%s4663 + $0x4] sm:$0xf]
    %v4666 = vld [vmem:[%s4663 + $0x8] sm:$0xf]
    %v4667 = vld [vmem:[%s4663 + $0xc] sm:$0xf]
    %s4668 = scalar_lea.vmem %s17, 1
    %v4669 = vld [vmem:[%s4668] sm:$0x1]
    %v4671 = vlaneseq
    %v4672 = vshrl.u32 %v4671, 7
    %v4673 = vsub.s32 0, %v4672
    %v4674 = vrot.slane %v4669, %v4673
    %v4680 = vunpack.c.l.b16 %v4664
    %v4681 = vunpack.c.l.b16 %v4665
    %v4682 = vunpack.c.l.b16 %v4666
    %v4683 = vunpack.c.l.b16 %v4667
    %v4684 = vpack.c.b16 %v4681, %v4680
    %v4685 = vpack.c.b16 %v4683, %v4682
    %v4689 = vsel %vm716, %v4662, 0
    %4691 = vmatprep.subr.bf16.mxu0 0
    %4692 = vmatpush1.bf16.msra.mxu0 %v4684
    %4693 = vmatprep.subr.bf16.mxu0 0
    %4694 = vmatpush1.bf16.msra.mxu0 %v4685
    %4695 = vmatprep.subr.bf16.mxu0 0
    %4696 = vmatpush1.bf16.msra.mxu0 0
    %4697 = vmatprep.subr.bf16.mxu0 0
    %4698 = vmatpush1.bf16.msra.mxu0 0
    %4699 = vmatprep.subr.bf16.mxu0 0
    %4700 = vmatpush1.bf16.msra.mxu0 0
    %4701 = vmatprep.subr.bf16.mxu0 0
    %4702 = vmatpush1.bf16.msra.mxu0 0
    %4703 = vmatprep.subr.bf16.mxu0 0
    %4704 = vmatpush1.bf16.msra.mxu0 0
    %4705 = vmatprep.subr.bf16.mxu0 0
    %4706 = vmatpush1.bf16.msra.mxu0 0
    %4707 = vmatprep.subr.bf16.mxu0 0
    %4708 = vmatpush1.bf16.msra.mxu0 0
    %4709 = vmatprep.subr.bf16.mxu0 0
    %4710 = vmatpush1.bf16.msra.mxu0 0
    %4711 = vmatprep.subr.bf16.mxu0 0
    %4712 = vmatpush1.bf16.msra.mxu0 0
    %4713 = vmatprep.subr.bf16.mxu0 0
    %4714 = vmatpush1.bf16.msra.mxu0 0
    %4715 = vmatprep.subr.bf16.mxu0 0
    %4716 = vmatpush1.bf16.msra.mxu0 0
    %4717 = vmatprep.subr.bf16.mxu0 0
    %4718 = vmatpush1.bf16.msra.mxu0 0
    %4719 = vmatprep.subr.bf16.mxu0 0
    %4720 = vmatpush1.bf16.msra.mxu0 0
    %4721 = vmatprep.subr.bf16.mxu0 0
    %4722 = vmatpush1.bf16.msra.mxu0 0
    %4723 = vmatprep.mubr.bf16.mxu0 0
    %4724 = vmatmul.mubr.bf16.gmra.mrb[0].mxu0 %v4689
    %v4725 = vpop.f32.mrb[0].mxu0
    %v4726 = vadd.f32 %v4674, %v4725
    %v4727 = vpop.f32.mrb[0].mxu0
    %v4728 = vpop.f32.mrb[0].mxu0
    %v4729 = vadd.f32 %v4674, %v4728
    %v4730 = vpop.f32.mrb[0].mxu0
    %4731 = vdwg.mxu0
    %v4734 = vcombine.high %v4726, %v4726
    %v4736 = vunpack.c.l.s4 1966171168
    %v4737 = vunpack.c.0.s8 %v4736
    %v4738 = vlaneseq
    %v4739 = vshrl.u32 %v4738, 7
    %v4740 = vsub.s32 %v4737, %v4739
    %v4741 = vrot.slane %v4726, %v4740
    %v4743 = vunpack.c.l.s4 1966171168
    %v4744 = vunpack.c.0.s8 %v4743
    %v4745 = vlaneseq
    %v4746 = vshrl.u32 %v4745, 7
    %v4747 = vsub.s32 %v4744, %v4746
    %v4748 = vrot.slane %v4734, %v4747
    %v4749 = vcombine.high %v4741, %v4741
    %v4750 = vcombine.high %v4748, %v4748
    %v4752 = vunpack.c.l.s4 1966171168
    %v4753 = vunpack.c.0.s8 %v4752
    %v4754 = vlaneseq
    %v4755 = vshrl.u32 %v4754, 7
    %v4756 = vsub.s32 %v4753, %v4755
    %v4757 = vrot.slane %v4741, %v4756
    %v4759 = vunpack.c.l.s4 1966171168
    %v4760 = vunpack.c.0.s8 %v4759
    %v4761 = vlaneseq
    %v4762 = vshrl.u32 %v4761, 7
    %v4763 = vsub.s32 %v4760, %v4762
    %v4764 = vrot.slane %v4748, %v4763
    %v4766 = vunpack.c.l.s4 1966171168
    %v4767 = vunpack.c.0.s8 %v4766
    %v4768 = vlaneseq
    %v4769 = vshrl.u32 %v4768, 7
    %v4770 = vsub.s32 %v4767, %v4769
    %v4771 = vrot.slane %v4749, %v4770
    %v4773 = vunpack.c.l.s4 1966171168
    %v4774 = vunpack.c.0.s8 %v4773
    %v4775 = vlaneseq
    %v4776 = vshrl.u32 %v4775, 7
    %v4777 = vsub.s32 %v4774, %v4776
    %v4778 = vrot.slane %v4750, %v4777
    %v4779 = vcombine.high %v4757, %v4757
    %v4780 = vcombine.high %v4764, %v4764
    %v4781 = vcombine.high %v4771, %v4771
    %v4782 = vcombine.high %v4778, %v4778
    %v4784 = vunpack.c.l.s4 1966171168
    %v4785 = vunpack.c.0.s8 %v4784
    %v4786 = vlaneseq
    %v4787 = vshrl.u32 %v4786, 7
    %v4788 = vsub.s32 %v4785, %v4787
    %v4789 = vrot.slane %v4729, %v4788
    %v4790 = vcombine.high %v4789, %v4789
    %v4792 = vunpack.c.l.s4 1966171168
    %v4793 = vunpack.c.0.s8 %v4792
    %v4794 = vlaneseq
    %v4795 = vshrl.u32 %v4794, 7
    %v4796 = vsub.s32 %v4793, %v4795
    %v4797 = vrot.slane %v4789, %v4796
    %v4799 = vunpack.c.l.s4 1966171168
    %v4800 = vunpack.c.0.s8 %v4799
    %v4801 = vlaneseq
    %v4802 = vshrl.u32 %v4801, 7
    %v4803 = vsub.s32 %v4800, %v4802
    %v4804 = vrot.slane %v4790, %v4803
    %v4815 = vmul.f32 %v4757, 0.35355338
    %v4816 = vmul.f32 %v4771, 0.35355338
    %v4817 = vmul.f32 %v4779, 0.35355338
    %v4818 = vmul.f32 %v4781, 0.35355338
    %v4819 = vmul.f32 %v4764, 0.35355338
    %v4820 = vmul.f32 %v4778, 0.35355338
    %v4821 = vmul.f32 %v4780, 0.35355338
    %v4822 = vmul.f32 %v4782, 0.35355338
    %v4823 = vmul.f32 %v4797, 0.35355338
    %v4824 = vmul.f32 %v4804, 0.35355338
    %v4835 = vcombine.low %v4815, %v4816
    %v4836 = vcombine.low %v4817, %v4818
    %v4838 = vunpack.c.l.s4 1966171168
    %v4839 = vunpack.c.0.s8 %v4838
    %v4840 = vlaneseq
    %v4841 = vshrl.u32 %v4840, 7
    %v4842 = vsub.s32 %v4839, %v4841
    %v4843 = vrot.slane %v4835, %v4842
    %v4845 = vunpack.c.l.s4 1966171168
    %v4846 = vunpack.c.0.s8 %v4845
    %v4847 = vlaneseq
    %v4848 = vshrl.u32 %v4847, 7
    %v4849 = vsub.s32 %v4846, %v4848
    %v4850 = vrot.slane %v4836, %v4849
    %v4852 = vunpack.c.l.s4 1966171168
    %v4853 = vunpack.c.0.s8 %v4852
    %v4854 = vlaneseq
    %v4855 = vshrl.u32 %v4854, 7
    %v4856 = vsub.s32 %v4853, %v4855
    %v4857 = vrot.slane %v4819, %v4856
    %v4858 = vcombine.low %v4843, %v4850
    %v4860 = vunpack.c.l.s4 1966171168
    %v4861 = vunpack.c.0.s8 %v4860
    %v4862 = vlaneseq
    %v4863 = vshrl.u32 %v4862, 7
    %v4864 = vsub.s32 %v4861, %v4863
    %v4865 = vrot.slane %v4858, %v4864
    %v4867 = vunpack.c.l.s4 1966171168
    %v4868 = vunpack.c.0.s8 %v4867
    %v4869 = vlaneseq
    %v4870 = vshrl.u32 %v4869, 7
    %v4871 = vsub.s32 %v4868, %v4870
    %v4872 = vrot.slane %v4857, %v4871
    %v4873 = vcombine.low %v4865, %v4872
    %v4874 = vcombine.low %v4820, %v4821
    %v4875 = vcombine.low %v4822, %v4823
    %v4877 = vunpack.c.l.s4 1966171168
    %v4878 = vunpack.c.0.s8 %v4877
    %v4879 = vlaneseq
    %v4880 = vshrl.u32 %v4879, 7
    %v4881 = vsub.s32 %v4878, %v4880
    %v4882 = vrot.slane %v4874, %v4881
    %v4884 = vunpack.c.l.s4 1966171168
    %v4885 = vunpack.c.0.s8 %v4884
    %v4886 = vlaneseq
    %v4887 = vshrl.u32 %v4886, 7
    %v4888 = vsub.s32 %v4885, %v4887
    %v4889 = vrot.slane %v4875, %v4888
    %v4891 = vunpack.c.l.s4 1966171168
    %v4892 = vunpack.c.0.s8 %v4891
    %v4893 = vlaneseq
    %v4894 = vshrl.u32 %v4893, 7
    %v4895 = vsub.s32 %v4892, %v4894
    %v4896 = vrot.slane %v4824, %v4895
    %v4897 = vcombine.low %v4882, %v4889
    %v4899 = vunpack.c.l.s4 1966171168
    %v4900 = vunpack.c.0.s8 %v4899
    %v4901 = vlaneseq
    %v4902 = vshrl.u32 %v4901, 7
    %v4903 = vsub.s32 %v4900, %v4902
    %v4904 = vrot.slane %v4897, %v4903
    %v4906 = vunpack.c.l.s4 1966171168
    %v4907 = vunpack.c.0.s8 %v4906
    %v4908 = vlaneseq
    %v4909 = vshrl.u32 %v4908, 7
    %v4910 = vsub.s32 %v4907, %v4909
    %v4911 = vrot.slane %v4896, %v4910
    %v4912 = vcombine.low %v4904, %v4911
    %v4915 = vpack.c.bf16 %v4873, %v4873
    %v4916 = vpack.c.bf16 %v4912, %v4912
    %v4917 = vcombine.low %v4757, %v4771
    %v4918 = vcombine.low %v4779, %v4781
    %v4920 = vunpack.c.l.s4 1966171168
    %v4921 = vunpack.c.0.s8 %v4920
    %v4922 = vlaneseq
    %v4923 = vshrl.u32 %v4922, 7
    %v4924 = vsub.s32 %v4921, %v4923
    %v4925 = vrot.slane %v4917, %v4924
    %v4927 = vunpack.c.l.s4 1966171168
    %v4928 = vunpack.c.0.s8 %v4927
    %v4929 = vlaneseq
    %v4930 = vshrl.u32 %v4929, 7
    %v4931 = vsub.s32 %v4928, %v4930
    %v4932 = vrot.slane %v4918, %v4931
    %v4934 = vunpack.c.l.s4 1966171168
    %v4935 = vunpack.c.0.s8 %v4934
    %v4936 = vlaneseq
    %v4937 = vshrl.u32 %v4936, 7
    %v4938 = vsub.s32 %v4935, %v4937
    %v4939 = vrot.slane %v4764, %v4938
    %v4940 = vcombine.low %v4925, %v4932
    %v4942 = vunpack.c.l.s4 1966171168
    %v4943 = vunpack.c.0.s8 %v4942
    %v4944 = vlaneseq
    %v4945 = vshrl.u32 %v4944, 7
    %v4946 = vsub.s32 %v4943, %v4945
    %v4947 = vrot.slane %v4940, %v4946
    %v4949 = vunpack.c.l.s4 1966171168
    %v4950 = vunpack.c.0.s8 %v4949
    %v4951 = vlaneseq
    %v4952 = vshrl.u32 %v4951, 7
    %v4953 = vsub.s32 %v4950, %v4952
    %v4954 = vrot.slane %v4939, %v4953
    %v4955 = vcombine.low %v4947, %v4954
    %v4956 = vcombine.low %v4778, %v4780
    %v4957 = vcombine.low %v4782, %v4797
    %v4959 = vunpack.c.l.s4 1966171168
    %v4960 = vunpack.c.0.s8 %v4959
    %v4961 = vlaneseq
    %v4962 = vshrl.u32 %v4961, 7
    %v4963 = vsub.s32 %v4960, %v4962
    %v4964 = vrot.slane %v4956, %v4963
    %v4966 = vunpack.c.l.s4 1966171168
    %v4967 = vunpack.c.0.s8 %v4966
    %v4968 = vlaneseq
    %v4969 = vshrl.u32 %v4968, 7
    %v4970 = vsub.s32 %v4967, %v4969
    %v4971 = vrot.slane %v4957, %v4970
    %v4973 = vunpack.c.l.s4 1966171168
    %v4974 = vunpack.c.0.s8 %v4973
    %v4975 = vlaneseq
    %v4976 = vshrl.u32 %v4975, 7
    %v4977 = vsub.s32 %v4974, %v4976
    %v4978 = vrot.slane %v4804, %v4977
    %v4979 = vcombine.low %v4964, %v4971
    %v4981 = vunpack.c.l.s4 1966171168
    %v4982 = vunpack.c.0.s8 %v4981
    %v4983 = vlaneseq
    %v4984 = vshrl.u32 %v4983, 7
    %v4985 = vsub.s32 %v4982, %v4984
    %v4986 = vrot.slane %v4979, %v4985
    %v4988 = vunpack.c.l.s4 1966171168
    %v4989 = vunpack.c.0.s8 %v4988
    %v4990 = vlaneseq
    %v4991 = vshrl.u32 %v4990, 7
    %v4992 = vsub.s32 %v4989, %v4991
    %v4993 = vrot.slane %v4978, %v4992
    %v4994 = vcombine.low %v4986, %v4993
    %v4997 = vpack.c.bf16 %v4955, %v4955
    %v4998 = vpack.c.bf16 %v4994, %v4994
    %5000 = vrot.lane.b32.xlu0 %v4997, 96
    %v5001 = vpop.permute.xlu0 %5000
    %v5003 = vsel %vm1959, %v4915, 0
    %v5006 = vsel %vm1959, %v5001, 0
    %5008 = vmatprep.subr.bf16.mxu0 0
    %5009 = vmatpush1.bf16.xpose.msra.mxu0 %v5006
    %5010 = vmatprep.subr.bf16.mxu0 0
    %5011 = vmatpush1.bf16.xpose.msra.mxu0 0
    %5012 = vmatprep.subr.bf16.mxu0 0
    %5013 = vmatpush1.bf16.xpose.msra.mxu0 0
    %5014 = vmatprep.subr.bf16.mxu0 0
    %5015 = vmatpush1.bf16.xpose.msra.mxu0 0
    %5016 = vmatprep.subr.bf16.mxu0 0
    %5017 = vmatpush1.bf16.xpose.msra.mxu0 0
    %5018 = vmatprep.subr.bf16.mxu0 0
    %5019 = vmatpush1.bf16.xpose.msra.mxu0 0
    %5020 = vmatprep.subr.bf16.mxu0 0
    %5021 = vmatpush1.bf16.xpose.msra.mxu0 0
    %5022 = vmatprep.subr.bf16.mxu0 0
    %5023 = vmatpush1.bf16.xpose.msra.mxu0 0
    %5024 = vmatprep.subr.bf16.mxu0 0
    %5025 = vmatpush1.bf16.xpose.msra.mxu0 0
    %5026 = vmatprep.subr.bf16.mxu0 0
    %5027 = vmatpush1.bf16.xpose.msra.mxu0 0
    %5028 = vmatprep.subr.bf16.mxu0 0
    %5029 = vmatpush1.bf16.xpose.msra.mxu0 0
    %5030 = vmatprep.subr.bf16.mxu0 0
    %5031 = vmatpush1.bf16.xpose.msra.mxu0 0
    %5032 = vmatprep.subr.bf16.mxu0 0
    %5033 = vmatpush1.bf16.xpose.msra.mxu0 0
    %5034 = vmatprep.subr.bf16.mxu0 0
    %5035 = vmatpush1.bf16.xpose.msra.mxu0 0
    %5036 = vmatprep.subr.bf16.mxu0 0
    %5037 = vmatpush1.bf16.xpose.msra.mxu0 0
    %5038 = vmatprep.subr.bf16.mxu0 0
    %5039 = vmatpush1.bf16.xpose.msra.mxu0 0
    %5040 = vmatprep.mubr.bf16.mxu0 0
    %5041 = vmatmul.mubr.bf16.gmra.mrb[0].mxu0 %v5003
    %v5042 = vpop.f32.mrb[0].mxu0
    %v5043 = vadd.f32 0.0, %v5042
    %v5044 = vpop.f32.mrb[0].mxu0
    %v5045 = vpop.f32.mrb[0].mxu0
    %v5046 = vpop.f32.mrb[0].mxu0
    %5047 = vdwg.mxu0
    %5049 = vrot.lane.b32.xlu0 %v4998, 96
    %v5050 = vpop.permute.xlu0 %5049
    %v5052 = vsel %vm1959, %v4916, 0
    %v5055 = vsel %vm1959, %v5050, 0
    %5057 = vmatprep.subr.bf16.mxu0 0
    %5058 = vmatpush1.bf16.xpose.msra.mxu0 %v5055
    %5059 = vmatprep.subr.bf16.mxu0 0
    %5060 = vmatpush1.bf16.xpose.msra.mxu0 0
    %5061 = vmatprep.subr.bf16.mxu0 0
    %5062 = vmatpush1.bf16.xpose.msra.mxu0 0
    %5063 = vmatprep.subr.bf16.mxu0 0
    %5064 = vmatpush1.bf16.xpose.msra.mxu0 0
    %5065 = vmatprep.subr.bf16.mxu0 0
    %5066 = vmatpush1.bf16.xpose.msra.mxu0 0
    %5067 = vmatprep.subr.bf16.mxu0 0
    %5068 = vmatpush1.bf16.xpose.msra.mxu0 0
    %5069 = vmatprep.subr.bf16.mxu0 0
    %5070 = vmatpush1.bf16.xpose.msra.mxu0 0
    %5071 = vmatprep.subr.bf16.mxu0 0
    %5072 = vmatpush1.bf16.xpose.msra.mxu0 0
    %5073 = vmatprep.subr.bf16.mxu0 0
    %5074 = vmatpush1.bf16.xpose.msra.mxu0 0
    %5075 = vmatprep.subr.bf16.mxu0 0
    %5076 = vmatpush1.bf16.xpose.msra.mxu0 0
    %5077 = vmatprep.subr.bf16.mxu0 0
    %5078 = vmatpush1.bf16.xpose.msra.mxu0 0
    %5079 = vmatprep.subr.bf16.mxu0 0
    %5080 = vmatpush1.bf16.xpose.msra.mxu0 0
    %5081 = vmatprep.subr.bf16.mxu0 0
    %5082 = vmatpush1.bf16.xpose.msra.mxu0 0
    %5083 = vmatprep.subr.bf16.mxu0 0
    %5084 = vmatpush1.bf16.xpose.msra.mxu0 0
    %5085 = vmatprep.subr.bf16.mxu0 0
    %5086 = vmatpush1.bf16.xpose.msra.mxu0 0
    %5087 = vmatprep.subr.bf16.mxu0 0
    %5088 = vmatpush1.bf16.xpose.msra.mxu0 0
    %5089 = vmatprep.mubr.bf16.mxu0 0
    %5090 = vmatmul.mubr.bf16.gmra.mrb[0].mxu0 %v5052
    %v5091 = vpop.f32.mrb[0].mxu0
    %v5092 = vadd.f32 0.0, %v5091
    %v5093 = vpop.f32.mrb[0].mxu0
    %v5094 = vpop.f32.mrb[0].mxu0
    %v5095 = vpop.f32.mrb[0].mxu0
    %5096 = vdwg.mxu0
    %v5097 = vsel %vm2055, %v5043, -inf
    %5098 = vmax.xlane.f32.xlu0 %v5097
    %v5099 = vpop.xlane.xlu0 %5098
    %v5100 = vsel %vm2055, %v5092, -inf
    %5101 = vmax.xlane.f32.xlu0 %v5100
    %v5102 = vpop.xlane.xlu0 %5101
    %v5103 = vsub.f32 %v5043, %v5099
    %v5104 = vsub.f32 %v5092, %v5102
    %v5105 = vmul.f32 %v5103, 1.442695
    %v5106 = vpow.pop %v5105
    %v5107 = vmul.f32 %v5104, 1.442695
    %v5108 = vpow.pop %v5107
    %v5109 = vsel %vm2055, %v5106, 0.0
    %5110 = vadd.xlane.f32.xlu0 %v5109
    %v5111 = vpop.xlane.xlu0 %5110
    %v5112 = vsel %vm2055, %v5108, 0.0
    %5113 = vadd.xlane.f32.xlu0 %v5112
    %v5114 = vpop.xlane.xlu0 %5113
    %v5115 = vrcp.pop %v5111
    %v5116 = vrcp.pop %v5114
    %v5117 = vmul.f32 %v5106, %v5115
    %v5118 = vmul.f32 %v5108, %v5116
    %v5119 = vpack.c.bf16 %v5117, %v5117
    %v5120 = vpack.c.bf16 %v5118, %v5118
    %5121 = vrot.lane.b32.xlu0 %v4997, 64
    %v5122 = vpop.permute.xlu0 %5121
    %v5124 = vsel %vm2082, %v5119, 0
    %v5127 = vand.u32 %v5122, %v2089
    %5129 = vmatprep.subr.bf16.mxu0 0
    %5130 = vmatpush1.bf16.msra.mxu0 %v5127
    %5131 = vmatprep.subr.bf16.mxu0 0
    %5132 = vmatpush1.bf16.msra.mxu0 0
    %5133 = vmatprep.subr.bf16.mxu0 0
    %5134 = vmatpush1.bf16.msra.mxu0 0
    %5135 = vmatprep.subr.bf16.mxu0 0
    %5136 = vmatpush1.bf16.msra.mxu0 0
    %5137 = vmatprep.subr.bf16.mxu0 0
    %5138 = vmatpush1.bf16.msra.mxu0 0
    %5139 = vmatprep.subr.bf16.mxu0 0
    %5140 = vmatpush1.bf16.msra.mxu0 0
    %5141 = vmatprep.subr.bf16.mxu0 0
    %5142 = vmatpush1.bf16.msra.mxu0 0
    %5143 = vmatprep.subr.bf16.mxu0 0
    %5144 = vmatpush1.bf16.msra.mxu0 0
    %5145 = vmatprep.subr.bf16.mxu0 0
    %5146 = vmatpush1.bf16.msra.mxu0 0
    %5147 = vmatprep.subr.bf16.mxu0 0
    %5148 = vmatpush1.bf16.msra.mxu0 0
    %5149 = vmatprep.subr.bf16.mxu0 0
    %5150 = vmatpush1.bf16.msra.mxu0 0
    %5151 = vmatprep.subr.bf16.mxu0 0
    %5152 = vmatpush1.bf16.msra.mxu0 0
    %5153 = vmatprep.subr.bf16.mxu0 0
    %5154 = vmatpush1.bf16.msra.mxu0 0
    %5155 = vmatprep.subr.bf16.mxu0 0
    %5156 = vmatpush1.bf16.msra.mxu0 0
    %5157 = vmatprep.subr.bf16.mxu0 0
    %5158 = vmatpush1.bf16.msra.mxu0 0
    %5159 = vmatprep.subr.bf16.mxu0 0
    %5160 = vmatpush1.bf16.msra.mxu0 0
    %5161 = vmatprep.mubr.bf16.mxu0 0
    %5162 = vmatmul.mubr.bf16.gmra.mrb[0].mxu0 %v5124
    %v5163 = vpop.f32.mrb[0].mxu0
    %v5164 = vadd.f32 0.0, %v5163
    %v5165 = vpop.f32.mrb[0].mxu0
    %v5166 = vpop.f32.mrb[0].mxu0
    %v5167 = vpop.f32.mrb[0].mxu0
    %5168 = vdwg.mxu0
    %5169 = vrot.lane.b32.xlu0 %v4998, 64
    %v5170 = vpop.permute.xlu0 %5169
    %v5172 = vsel %vm2082, %v5120, 0
    %v5175 = vand.u32 %v5170, %v2089
    %5177 = vmatprep.subr.bf16.mxu0 0
    %5178 = vmatpush1.bf16.msra.mxu0 %v5175
    %5179 = vmatprep.subr.bf16.mxu0 0
    %5180 = vmatpush1.bf16.msra.mxu0 0
    %5181 = vmatprep.subr.bf16.mxu0 0
    %5182 = vmatpush1.bf16.msra.mxu0 0
    %5183 = vmatprep.subr.bf16.mxu0 0
    %5184 = vmatpush1.bf16.msra.mxu0 0
    %5185 = vmatprep.subr.bf16.mxu0 0
    %5186 = vmatpush1.bf16.msra.mxu0 0
    %5187 = vmatprep.subr.bf16.mxu0 0
    %5188 = vmatpush1.bf16.msra.mxu0 0
    %5189 = vmatprep.subr.bf16.mxu0 0
    %5190 = vmatpush1.bf16.msra.mxu0 0
    %5191 = vmatprep.subr.bf16.mxu0 0
    %5192 = vmatpush1.bf16.msra.mxu0 0
    %5193 = vmatprep.subr.bf16.mxu0 0
    %5194 = vmatpush1.bf16.msra.mxu0 0
    %5195 = vmatprep.subr.bf16.mxu0 0
    %5196 = vmatpush1.bf16.msra.mxu0 0
    %5197 = vmatprep.subr.bf16.mxu0 0
    %5198 = vmatpush1.bf16.msra.mxu0 0
    %5199 = vmatprep.subr.bf16.mxu0 0
    %5200 = vmatpush1.bf16.msra.mxu0 0
    %5201 = vmatprep.subr.bf16.mxu0 0
    %5202 = vmatpush1.bf16.msra.mxu0 0
    %5203 = vmatprep.subr.bf16.mxu0 0
    %5204 = vmatpush1.bf16.msra.mxu0 0
    %5205 = vmatprep.subr.bf16.mxu0 0
    %5206 = vmatpush1.bf16.msra.mxu0 0
    %5207 = vmatprep.subr.bf16.mxu0 0
    %5208 = vmatpush1.bf16.msra.mxu0 0
    %5209 = vmatprep.mubr.bf16.mxu0 0
    %5210 = vmatmul.mubr.bf16.gmra.mrb[0].mxu0 %v5172
    %v5211 = vpop.f32.mrb[0].mxu0
    %v5212 = vadd.f32 0.0, %v5211
    %v5213 = vpop.f32.mrb[0].mxu0
    %v5214 = vpop.f32.mrb[0].mxu0
    %v5215 = vpop.f32.mrb[0].mxu0
    %5216 = vdwg.mxu0
    %5218 = vrot.lane.b32.xlu0 %v4915, 120
    %v5219 = vpop.permute.xlu0 %5218
    %5220 = vrot.lane.b32.xlu0 %v4997, 88
    %v5221 = vpop.permute.xlu0 %5220
    %v5223 = vsel %vm1959, %v5219, 0
    %v5226 = vsel %vm1959, %v5221, 0
    %5228 = vmatprep.subr.bf16.mxu0 0
    %5229 = vmatpush1.bf16.xpose.msra.mxu0 %v5226
    %5230 = vmatprep.subr.bf16.mxu0 0
    %5231 = vmatpush1.bf16.xpose.msra.mxu0 0
    %5232 = vmatprep.subr.bf16.mxu0 0
    %5233 = vmatpush1.bf16.xpose.msra.mxu0 0
    %5234 = vmatprep.subr.bf16.mxu0 0
    %5235 = vmatpush1.bf16.xpose.msra.mxu0 0
    %5236 = vmatprep.subr.bf16.mxu0 0
    %5237 = vmatpush1.bf16.xpose.msra.mxu0 0
    %5238 = vmatprep.subr.bf16.mxu0 0
    %5239 = vmatpush1.bf16.xpose.msra.mxu0 0
    %5240 = vmatprep.subr.bf16.mxu0 0
    %5241 = vmatpush1.bf16.xpose.msra.mxu0 0
    %5242 = vmatprep.subr.bf16.mxu0 0
    %5243 = vmatpush1.bf16.xpose.msra.mxu0 0
    %5244 = vmatprep.subr.bf16.mxu0 0
    %5245 = vmatpush1.bf16.xpose.msra.mxu0 0
    %5246 = vmatprep.subr.bf16.mxu0 0
    %5247 = vmatpush1.bf16.xpose.msra.mxu0 0
    %5248 = vmatprep.subr.bf16.mxu0 0
    %5249 = vmatpush1.bf16.xpose.msra.mxu0 0
    %5250 = vmatprep.subr.bf16.mxu0 0
    %5251 = vmatpush1.bf16.xpose.msra.mxu0 0
    %5252 = vmatprep.subr.bf16.mxu0 0
    %5253 = vmatpush1.bf16.xpose.msra.mxu0 0
    %5254 = vmatprep.subr.bf16.mxu0 0
    %5255 = vmatpush1.bf16.xpose.msra.mxu0 0
    %5256 = vmatprep.subr.bf16.mxu0 0
    %5257 = vmatpush1.bf16.xpose.msra.mxu0 0
    %5258 = vmatprep.subr.bf16.mxu0 0
    %5259 = vmatpush1.bf16.xpose.msra.mxu0 0
    %5260 = vmatprep.mubr.bf16.mxu0 0
    %5261 = vmatmul.mubr.bf16.gmra.mrb[0].mxu0 %v5223
    %v5262 = vpop.f32.mrb[0].mxu0
    %v5263 = vadd.f32 0.0, %v5262
    %v5264 = vpop.f32.mrb[0].mxu0
    %v5265 = vpop.f32.mrb[0].mxu0
    %v5266 = vpop.f32.mrb[0].mxu0
    %5267 = vdwg.mxu0
    %5269 = vrot.lane.b32.xlu0 %v4916, 120
    %v5270 = vpop.permute.xlu0 %5269
    %5271 = vrot.lane.b32.xlu0 %v4998, 88
    %v5272 = vpop.permute.xlu0 %5271
    %v5274 = vsel %vm1959, %v5270, 0
    %v5277 = vsel %vm1959, %v5272, 0
    %5279 = vmatprep.subr.bf16.mxu0 0
    %5280 = vmatpush1.bf16.xpose.msra.mxu0 %v5277
    %5281 = vmatprep.subr.bf16.mxu0 0
    %5282 = vmatpush1.bf16.xpose.msra.mxu0 0
    %5283 = vmatprep.subr.bf16.mxu0 0
    %5284 = vmatpush1.bf16.xpose.msra.mxu0 0
    %5285 = vmatprep.subr.bf16.mxu0 0
    %5286 = vmatpush1.bf16.xpose.msra.mxu0 0
    %5287 = vmatprep.subr.bf16.mxu0 0
    %5288 = vmatpush1.bf16.xpose.msra.mxu0 0
    %5289 = vmatprep.subr.bf16.mxu0 0
    %5290 = vmatpush1.bf16.xpose.msra.mxu0 0
    %5291 = vmatprep.subr.bf16.mxu0 0
    %5292 = vmatpush1.bf16.xpose.msra.mxu0 0
    %5293 = vmatprep.subr.bf16.mxu0 0
    %5294 = vmatpush1.bf16.xpose.msra.mxu0 0
    %5295 = vmatprep.subr.bf16.mxu0 0
    %5296 = vmatpush1.bf16.xpose.msra.mxu0 0
    %5297 = vmatprep.subr.bf16.mxu0 0
    %5298 = vmatpush1.bf16.xpose.msra.mxu0 0
    %5299 = vmatprep.subr.bf16.mxu0 0
    %5300 = vmatpush1.bf16.xpose.msra.mxu0 0
    %5301 = vmatprep.subr.bf16.mxu0 0
    %5302 = vmatpush1.bf16.xpose.msra.mxu0 0
    %5303 = vmatprep.subr.bf16.mxu0 0
    %5304 = vmatpush1.bf16.xpose.msra.mxu0 0
    %5305 = vmatprep.subr.bf16.mxu0 0
    %5306 = vmatpush1.bf16.xpose.msra.mxu0 0
    %5307 = vmatprep.subr.bf16.mxu0 0
    %5308 = vmatpush1.bf16.xpose.msra.mxu0 0
    %5309 = vmatprep.subr.bf16.mxu0 0
    %5310 = vmatpush1.bf16.xpose.msra.mxu0 0
    %5311 = vmatprep.mubr.bf16.mxu0 0
    %5312 = vmatmul.mubr.bf16.gmra.mrb[0].mxu0 %v5274
    %v5313 = vpop.f32.mrb[0].mxu0
    %v5314 = vadd.f32 0.0, %v5313
    %v5315 = vpop.f32.mrb[0].mxu0
    %v5316 = vpop.f32.mrb[0].mxu0
    %v5317 = vpop.f32.mrb[0].mxu0
    %5318 = vdwg.mxu0
    %v5319 = vsel %vm2055, %v5263, -inf
    %5320 = vmax.xlane.f32.xlu0 %v5319
    %v5321 = vpop.xlane.xlu0 %5320
    %v5322 = vsel %vm2055, %v5314, -inf
    %5323 = vmax.xlane.f32.xlu0 %v5322
    %v5324 = vpop.xlane.xlu0 %5323
    %v5325 = vsub.f32 %v5263, %v5321
    %v5326 = vsub.f32 %v5314, %v5324
    %v5327 = vmul.f32 %v5325, 1.442695
    %v5328 = vpow.pop %v5327
    %v5329 = vmul.f32 %v5326, 1.442695
    %v5330 = vpow.pop %v5329
    %v5331 = vsel %vm2055, %v5328, 0.0
    %5332 = vadd.xlane.f32.xlu0 %v5331
    %v5333 = vpop.xlane.xlu0 %5332
    %v5334 = vsel %vm2055, %v5330, 0.0
    %5335 = vadd.xlane.f32.xlu0 %v5334
    %v5336 = vpop.xlane.xlu0 %5335
    %v5337 = vrcp.pop %v5333
    %v5338 = vrcp.pop %v5336
    %v5339 = vmul.f32 %v5328, %v5337
    %v5340 = vmul.f32 %v5330, %v5338
    %v5341 = vpack.c.bf16 %v5339, %v5339
    %v5342 = vpack.c.bf16 %v5340, %v5340
    %5343 = vrot.lane.b32.xlu0 %v4997, 56
    %v5344 = vpop.permute.xlu0 %5343
    %v5346 = vsel %vm2082, %v5341, 0
    %v5349 = vand.u32 %v5344, %v2089
    %5351 = vmatprep.subr.bf16.mxu0 0
    %5352 = vmatpush1.bf16.msra.mxu0 %v5349
    %5353 = vmatprep.subr.bf16.mxu0 0
    %5354 = vmatpush1.bf16.msra.mxu0 0
    %5355 = vmatprep.subr.bf16.mxu0 0
    %5356 = vmatpush1.bf16.msra.mxu0 0
    %5357 = vmatprep.subr.bf16.mxu0 0
    %5358 = vmatpush1.bf16.msra.mxu0 0
    %5359 = vmatprep.subr.bf16.mxu0 0
    %5360 = vmatpush1.bf16.msra.mxu0 0
    %5361 = vmatprep.subr.bf16.mxu0 0
    %5362 = vmatpush1.bf16.msra.mxu0 0
    %5363 = vmatprep.subr.bf16.mxu0 0
    %5364 = vmatpush1.bf16.msra.mxu0 0
    %5365 = vmatprep.subr.bf16.mxu0 0
    %5366 = vmatpush1.bf16.msra.mxu0 0
    %5367 = vmatprep.subr.bf16.mxu0 0
    %5368 = vmatpush1.bf16.msra.mxu0 0
    %5369 = vmatprep.subr.bf16.mxu0 0
    %5370 = vmatpush1.bf16.msra.mxu0 0
    %5371 = vmatprep.subr.bf16.mxu0 0
    %5372 = vmatpush1.bf16.msra.mxu0 0
    %5373 = vmatprep.subr.bf16.mxu0 0
    %5374 = vmatpush1.bf16.msra.mxu0 0
    %5375 = vmatprep.subr.bf16.mxu0 0
    %5376 = vmatpush1.bf16.msra.mxu0 0
    %5377 = vmatprep.subr.bf16.mxu0 0
    %5378 = vmatpush1.bf16.msra.mxu0 0
    %5379 = vmatprep.subr.bf16.mxu0 0
    %5380 = vmatpush1.bf16.msra.mxu0 0
    %5381 = vmatprep.subr.bf16.mxu0 0
    %5382 = vmatpush1.bf16.msra.mxu0 0
    %5383 = vmatprep.mubr.bf16.mxu0 0
    %5384 = vmatmul.mubr.bf16.gmra.mrb[0].mxu0 %v5346
    %v5385 = vpop.f32.mrb[0].mxu0
    %v5386 = vadd.f32 0.0, %v5385
    %v5387 = vpop.f32.mrb[0].mxu0
    %v5388 = vpop.f32.mrb[0].mxu0
    %v5389 = vpop.f32.mrb[0].mxu0
    %5390 = vdwg.mxu0
    %5391 = vrot.lane.b32.xlu0 %v4998, 56
    %v5392 = vpop.permute.xlu0 %5391
    %v5394 = vsel %vm2082, %v5342, 0
    %v5397 = vand.u32 %v5392, %v2089
    %5399 = vmatprep.subr.bf16.mxu0 0
    %5400 = vmatpush1.bf16.msra.mxu0 %v5397
    %5401 = vmatprep.subr.bf16.mxu0 0
    %5402 = vmatpush1.bf16.msra.mxu0 0
    %5403 = vmatprep.subr.bf16.mxu0 0
    %5404 = vmatpush1.bf16.msra.mxu0 0
    %5405 = vmatprep.subr.bf16.mxu0 0
    %5406 = vmatpush1.bf16.msra.mxu0 0
    %5407 = vmatprep.subr.bf16.mxu0 0
    %5408 = vmatpush1.bf16.msra.mxu0 0
    %5409 = vmatprep.subr.bf16.mxu0 0
    %5410 = vmatpush1.bf16.msra.mxu0 0
    %5411 = vmatprep.subr.bf16.mxu0 0
    %5412 = vmatpush1.bf16.msra.mxu0 0
    %5413 = vmatprep.subr.bf16.mxu0 0
    %5414 = vmatpush1.bf16.msra.mxu0 0
    %5415 = vmatprep.subr.bf16.mxu0 0
    %5416 = vmatpush1.bf16.msra.mxu0 0
    %5417 = vmatprep.subr.bf16.mxu0 0
    %5418 = vmatpush1.bf16.msra.mxu0 0
    %5419 = vmatprep.subr.bf16.mxu0 0
    %5420 = vmatpush1.bf16.msra.mxu0 0
    %5421 = vmatprep.subr.bf16.mxu0 0
    %5422 = vmatpush1.bf16.msra.mxu0 0
    %5423 = vmatprep.subr.bf16.mxu0 0
    %5424 = vmatpush1.bf16.msra.mxu0 0
    %5425 = vmatprep.subr.bf16.mxu0 0
    %5426 = vmatpush1.bf16.msra.mxu0 0
    %5427 = vmatprep.subr.bf16.mxu0 0
    %5428 = vmatpush1.bf16.msra.mxu0 0
    %5429 = vmatprep.subr.bf16.mxu0 0
    %5430 = vmatpush1.bf16.msra.mxu0 0
    %5431 = vmatprep.mubr.bf16.mxu0 0
    %5432 = vmatmul.mubr.bf16.gmra.mrb[0].mxu0 %v5394
    %v5433 = vpop.f32.mrb[0].mxu0
    %v5434 = vadd.f32 0.0, %v5433
    %v5435 = vpop.f32.mrb[0].mxu0
    %v5436 = vpop.f32.mrb[0].mxu0
    %v5437 = vpop.f32.mrb[0].mxu0
    %5438 = vdwg.mxu0
    %5439 = vrot.lane.b32.xlu0 %v4915, 112
    %v5440 = vpop.permute.xlu0 %5439
    %5441 = vrot.lane.b32.xlu0 %v4997, 80
    %v5442 = vpop.permute.xlu0 %5441
    %v5444 = vsel %vm1959, %v5440, 0
    %v5447 = vsel %vm1959, %v5442, 0
    %5449 = vmatprep.subr.bf16.mxu0 0
    %5450 = vmatpush1.bf16.xpose.msra.mxu0 %v5447
    %5451 = vmatprep.subr.bf16.mxu0 0
    %5452 = vmatpush1.bf16.xpose.msra.mxu0 0
    %5453 = vmatprep.subr.bf16.mxu0 0
    %5454 = vmatpush1.bf16.xpose.msra.mxu0 0
    %5455 = vmatprep.subr.bf16.mxu0 0
    %5456 = vmatpush1.bf16.xpose.msra.mxu0 0
    %5457 = vmatprep.subr.bf16.mxu0 0
    %5458 = vmatpush1.bf16.xpose.msra.mxu0 0
    %5459 = vmatprep.subr.bf16.mxu0 0
    %5460 = vmatpush1.bf16.xpose.msra.mxu0 0
    %5461 = vmatprep.subr.bf16.mxu0 0
    %5462 = vmatpush1.bf16.xpose.msra.mxu0 0
    %5463 = vmatprep.subr.bf16.mxu0 0
    %5464 = vmatpush1.bf16.xpose.msra.mxu0 0
    %5465 = vmatprep.subr.bf16.mxu0 0
    %5466 = vmatpush1.bf16.xpose.msra.mxu0 0
    %5467 = vmatprep.subr.bf16.mxu0 0
    %5468 = vmatpush1.bf16.xpose.msra.mxu0 0
    %5469 = vmatprep.subr.bf16.mxu0 0
    %5470 = vmatpush1.bf16.xpose.msra.mxu0 0
    %5471 = vmatprep.subr.bf16.mxu0 0
    %5472 = vmatpush1.bf16.xpose.msra.mxu0 0
    %5473 = vmatprep.subr.bf16.mxu0 0
    %5474 = vmatpush1.bf16.xpose.msra.mxu0 0
    %5475 = vmatprep.subr.bf16.mxu0 0
    %5476 = vmatpush1.bf16.xpose.msra.mxu0 0
    %5477 = vmatprep.subr.bf16.mxu0 0
    %5478 = vmatpush1.bf16.xpose.msra.mxu0 0
    %5479 = vmatprep.subr.bf16.mxu0 0
    %5480 = vmatpush1.bf16.xpose.msra.mxu0 0
    %5481 = vmatprep.mubr.bf16.mxu0 0
    %5482 = vmatmul.mubr.bf16.gmra.mrb[0].mxu0 %v5444
    %v5483 = vpop.f32.mrb[0].mxu0
    %v5484 = vadd.f32 0.0, %v5483
    %v5485 = vpop.f32.mrb[0].mxu0
    %v5486 = vpop.f32.mrb[0].mxu0
    %v5487 = vpop.f32.mrb[0].mxu0
    %5488 = vdwg.mxu0
    %5489 = vrot.lane.b32.xlu0 %v4916, 112
    %v5490 = vpop.permute.xlu0 %5489
    %5491 = vrot.lane.b32.xlu0 %v4998, 80
    %v5492 = vpop.permute.xlu0 %5491
    %v5494 = vsel %vm1959, %v5490, 0
    %v5497 = vsel %vm1959, %v5492, 0
    %5499 = vmatprep.subr.bf16.mxu0 0
    %5500 = vmatpush1.bf16.xpose.msra.mxu0 %v5497
    %5501 = vmatprep.subr.bf16.mxu0 0
    %5502 = vmatpush1.bf16.xpose.msra.mxu0 0
    %5503 = vmatprep.subr.bf16.mxu0 0
    %5504 = vmatpush1.bf16.xpose.msra.mxu0 0
    %5505 = vmatprep.subr.bf16.mxu0 0
    %5506 = vmatpush1.bf16.xpose.msra.mxu0 0
    %5507 = vmatprep.subr.bf16.mxu0 0
    %5508 = vmatpush1.bf16.xpose.msra.mxu0 0
    %5509 = vmatprep.subr.bf16.mxu0 0
    %5510 = vmatpush1.bf16.xpose.msra.mxu0 0
    %5511 = vmatprep.subr.bf16.mxu0 0
    %5512 = vmatpush1.bf16.xpose.msra.mxu0 0
    %5513 = vmatprep.subr.bf16.mxu0 0
    %5514 = vmatpush1.bf16.xpose.msra.mxu0 0
    %5515 = vmatprep.subr.bf16.mxu0 0
    %5516 = vmatpush1.bf16.xpose.msra.mxu0 0
    %5517 = vmatprep.subr.bf16.mxu0 0
    %5518 = vmatpush1.bf16.xpose.msra.mxu0 0
    %5519 = vmatprep.subr.bf16.mxu0 0
    %5520 = vmatpush1.bf16.xpose.msra.mxu0 0
    %5521 = vmatprep.subr.bf16.mxu0 0
    %5522 = vmatpush1.bf16.xpose.msra.mxu0 0
    %5523 = vmatprep.subr.bf16.mxu0 0
    %5524 = vmatpush1.bf16.xpose.msra.mxu0 0
    %5525 = vmatprep.subr.bf16.mxu0 0
    %5526 = vmatpush1.bf16.xpose.msra.mxu0 0
    %5527 = vmatprep.subr.bf16.mxu0 0
    %5528 = vmatpush1.bf16.xpose.msra.mxu0 0
    %5529 = vmatprep.subr.bf16.mxu0 0
    %5530 = vmatpush1.bf16.xpose.msra.mxu0 0
    %5531 = vmatprep.mubr.bf16.mxu0 0
    %5532 = vmatmul.mubr.bf16.gmra.mrb[0].mxu0 %v5494
    %v5533 = vpop.f32.mrb[0].mxu0
    %v5534 = vadd.f32 0.0, %v5533
    %v5535 = vpop.f32.mrb[0].mxu0
    %v5536 = vpop.f32.mrb[0].mxu0
    %v5537 = vpop.f32.mrb[0].mxu0
    %5538 = vdwg.mxu0
    %v5539 = vsel %vm2055, %v5484, -inf
    %5540 = vmax.xlane.f32.xlu0 %v5539
    %v5541 = vpop.xlane.xlu0 %5540
    %v5542 = vsel %vm2055, %v5534, -inf
    %5543 = vmax.xlane.f32.xlu0 %v5542
    %v5544 = vpop.xlane.xlu0 %5543
    %v5545 = vsub.f32 %v5484, %v5541
    %v5546 = vsub.f32 %v5534, %v5544
    %v5547 = vmul.f32 %v5545, 1.442695
    %v5548 = vpow.pop %v5547
    %v5549 = vmul.f32 %v5546, 1.442695
    %v5550 = vpow.pop %v5549
    %v5551 = vsel %vm2055, %v5548, 0.0
    %5552 = vadd.xlane.f32.xlu0 %v5551
    %v5553 = vpop.xlane.xlu0 %5552
    %v5554 = vsel %vm2055, %v5550, 0.0
    %5555 = vadd.xlane.f32.xlu0 %v5554
    %v5556 = vpop.xlane.xlu0 %5555
    %v5557 = vrcp.pop %v5553
    %v5558 = vrcp.pop %v5556
    %v5559 = vmul.f32 %v5548, %v5557
    %v5560 = vmul.f32 %v5550, %v5558
    %v5561 = vpack.c.bf16 %v5559, %v5559
    %v5562 = vpack.c.bf16 %v5560, %v5560
    %5563 = vrot.lane.b32.xlu0 %v4997, 48
    %v5564 = vpop.permute.xlu0 %5563
    %v5566 = vsel %vm2082, %v5561, 0
    %v5569 = vand.u32 %v5564, %v2089
    %5571 = vmatprep.subr.bf16.mxu0 0
    %5572 = vmatpush1.bf16.msra.mxu0 %v5569
    %5573 = vmatprep.subr.bf16.mxu0 0
    %5574 = vmatpush1.bf16.msra.mxu0 0
    %5575 = vmatprep.subr.bf16.mxu0 0
    %5576 = vmatpush1.bf16.msra.mxu0 0
    %5577 = vmatprep.subr.bf16.mxu0 0
    %5578 = vmatpush1.bf16.msra.mxu0 0
    %5579 = vmatprep.subr.bf16.mxu0 0
    %5580 = vmatpush1.bf16.msra.mxu0 0
    %5581 = vmatprep.subr.bf16.mxu0 0
    %5582 = vmatpush1.bf16.msra.mxu0 0
    %5583 = vmatprep.subr.bf16.mxu0 0
    %5584 = vmatpush1.bf16.msra.mxu0 0
    %5585 = vmatprep.subr.bf16.mxu0 0
    %5586 = vmatpush1.bf16.msra.mxu0 0
    %5587 = vmatprep.subr.bf16.mxu0 0
    %5588 = vmatpush1.bf16.msra.mxu0 0
    %5589 = vmatprep.subr.bf16.mxu0 0
    %5590 = vmatpush1.bf16.msra.mxu0 0
    %5591 = vmatprep.subr.bf16.mxu0 0
    %5592 = vmatpush1.bf16.msra.mxu0 0
    %5593 = vmatprep.subr.bf16.mxu0 0
    %5594 = vmatpush1.bf16.msra.mxu0 0
    %5595 = vmatprep.subr.bf16.mxu0 0
    %5596 = vmatpush1.bf16.msra.mxu0 0
    %5597 = vmatprep.subr.bf16.mxu0 0
    %5598 = vmatpush1.bf16.msra.mxu0 0
    %5599 = vmatprep.subr.bf16.mxu0 0
    %5600 = vmatpush1.bf16.msra.mxu0 0
    %5601 = vmatprep.subr.bf16.mxu0 0
    %5602 = vmatpush1.bf16.msra.mxu0 0
    %5603 = vmatprep.mubr.bf16.mxu0 0
    %5604 = vmatmul.mubr.bf16.gmra.mrb[0].mxu0 %v5566
    %v5605 = vpop.f32.mrb[0].mxu0
    %v5606 = vadd.f32 0.0, %v5605
    %v5607 = vpop.f32.mrb[0].mxu0
    %v5608 = vpop.f32.mrb[0].mxu0
    %v5609 = vpop.f32.mrb[0].mxu0
    %5610 = vdwg.mxu0
    %5611 = vrot.lane.b32.xlu0 %v4998, 48
    %v5612 = vpop.permute.xlu0 %5611
    %v5614 = vsel %vm2082, %v5562, 0
    %v5617 = vand.u32 %v5612, %v2089
    %5619 = vmatprep.subr.bf16.mxu0 0
    %5620 = vmatpush1.bf16.msra.mxu0 %v5617
    %5621 = vmatprep.subr.bf16.mxu0 0
    %5622 = vmatpush1.bf16.msra.mxu0 0
    %5623 = vmatprep.subr.bf16.mxu0 0
    %5624 = vmatpush1.bf16.msra.mxu0 0
    %5625 = vmatprep.subr.bf16.mxu0 0
    %5626 = vmatpush1.bf16.msra.mxu0 0
    %5627 = vmatprep.subr.bf16.mxu0 0
    %5628 = vmatpush1.bf16.msra.mxu0 0
    %5629 = vmatprep.subr.bf16.mxu0 0
    %5630 = vmatpush1.bf16.msra.mxu0 0
    %5631 = vmatprep.subr.bf16.mxu0 0
    %5632 = vmatpush1.bf16.msra.mxu0 0
    %5633 = vmatprep.subr.bf16.mxu0 0
    %5634 = vmatpush1.bf16.msra.mxu0 0
    %5635 = vmatprep.subr.bf16.mxu0 0
    %5636 = vmatpush1.bf16.msra.mxu0 0
    %5637 = vmatprep.subr.bf16.mxu0 0
    %5638 = vmatpush1.bf16.msra.mxu0 0
    %5639 = vmatprep.subr.bf16.mxu0 0
    %5640 = vmatpush1.bf16.msra.mxu0 0
    %5641 = vmatprep.subr.bf16.mxu0 0
    %5642 = vmatpush1.bf16.msra.mxu0 0
    %5643 = vmatprep.subr.bf16.mxu0 0
    %5644 = vmatpush1.bf16.msra.mxu0 0
    %5645 = vmatprep.subr.bf16.mxu0 0
    %5646 = vmatpush1.bf16.msra.mxu0 0
    %5647 = vmatprep.subr.bf16.mxu0 0
    %5648 = vmatpush1.bf16.msra.mxu0 0
    %5649 = vmatprep.subr.bf16.mxu0 0
    %5650 = vmatpush1.bf16.msra.mxu0 0
    %5651 = vmatprep.mubr.bf16.mxu0 0
    %5652 = vmatmul.mubr.bf16.gmra.mrb[0].mxu0 %v5614
    %v5653 = vpop.f32.mrb[0].mxu0
    %v5654 = vadd.f32 0.0, %v5653
    %v5655 = vpop.f32.mrb[0].mxu0
    %v5656 = vpop.f32.mrb[0].mxu0
    %v5657 = vpop.f32.mrb[0].mxu0
    %5658 = vdwg.mxu0
    %5659 = vrot.lane.b32.xlu0 %v4915, 104
    %v5660 = vpop.permute.xlu0 %5659
    %5661 = vrot.lane.b32.xlu0 %v4997, 72
    %v5662 = vpop.permute.xlu0 %5661
    %v5664 = vsel %vm1959, %v5660, 0
    %v5667 = vsel %vm1959, %v5662, 0
    %5669 = vmatprep.subr.bf16.mxu0 0
    %5670 = vmatpush1.bf16.xpose.msra.mxu0 %v5667
    %5671 = vmatprep.subr.bf16.mxu0 0
    %5672 = vmatpush1.bf16.xpose.msra.mxu0 0
    %5673 = vmatprep.subr.bf16.mxu0 0
    %5674 = vmatpush1.bf16.xpose.msra.mxu0 0
    %5675 = vmatprep.subr.bf16.mxu0 0
    %5676 = vmatpush1.bf16.xpose.msra.mxu0 0
    %5677 = vmatprep.subr.bf16.mxu0 0
    %5678 = vmatpush1.bf16.xpose.msra.mxu0 0
    %5679 = vmatprep.subr.bf16.mxu0 0
    %5680 = vmatpush1.bf16.xpose.msra.mxu0 0
    %5681 = vmatprep.subr.bf16.mxu0 0
    %5682 = vmatpush1.bf16.xpose.msra.mxu0 0
    %5683 = vmatprep.subr.bf16.mxu0 0
    %5684 = vmatpush1.bf16.xpose.msra.mxu0 0
    %5685 = vmatprep.subr.bf16.mxu0 0
    %5686 = vmatpush1.bf16.xpose.msra.mxu0 0
    %5687 = vmatprep.subr.bf16.mxu0 0
    %5688 = vmatpush1.bf16.xpose.msra.mxu0 0
    %5689 = vmatprep.subr.bf16.mxu0 0
    %5690 = vmatpush1.bf16.xpose.msra.mxu0 0
    %5691 = vmatprep.subr.bf16.mxu0 0
    %5692 = vmatpush1.bf16.xpose.msra.mxu0 0
    %5693 = vmatprep.subr.bf16.mxu0 0
    %5694 = vmatpush1.bf16.xpose.msra.mxu0 0
    %5695 = vmatprep.subr.bf16.mxu0 0
    %5696 = vmatpush1.bf16.xpose.msra.mxu0 0
    %5697 = vmatprep.subr.bf16.mxu0 0
    %5698 = vmatpush1.bf16.xpose.msra.mxu0 0
    %5699 = vmatprep.subr.bf16.mxu0 0
    %5700 = vmatpush1.bf16.xpose.msra.mxu0 0
    %5701 = vmatprep.mubr.bf16.mxu0 0
    %5702 = vmatmul.mubr.bf16.gmra.mrb[0].mxu0 %v5664
    %v5703 = vpop.f32.mrb[0].mxu0
    %v5704 = vadd.f32 0.0, %v5703
    %v5705 = vpop.f32.mrb[0].mxu0
    %v5706 = vpop.f32.mrb[0].mxu0
    %v5707 = vpop.f32.mrb[0].mxu0
    %5708 = vdwg.mxu0
    %5709 = vrot.lane.b32.xlu0 %v4916, 104
    %v5710 = vpop.permute.xlu0 %5709
    %5711 = vrot.lane.b32.xlu0 %v4998, 72
    %v5712 = vpop.permute.xlu0 %5711
    %v5714 = vsel %vm1959, %v5710, 0
    %v5717 = vsel %vm1959, %v5712, 0
    %5719 = vmatprep.subr.bf16.mxu0 0
    %5720 = vmatpush1.bf16.xpose.msra.mxu0 %v5717
    %5721 = vmatprep.subr.bf16.mxu0 0
    %5722 = vmatpush1.bf16.xpose.msra.mxu0 0
    %5723 = vmatprep.subr.bf16.mxu0 0
    %5724 = vmatpush1.bf16.xpose.msra.mxu0 0
    %5725 = vmatprep.subr.bf16.mxu0 0
    %5726 = vmatpush1.bf16.xpose.msra.mxu0 0
    %5727 = vmatprep.subr.bf16.mxu0 0
    %5728 = vmatpush1.bf16.xpose.msra.mxu0 0
    %5729 = vmatprep.subr.bf16.mxu0 0
    %5730 = vmatpush1.bf16.xpose.msra.mxu0 0
    %5731 = vmatprep.subr.bf16.mxu0 0
    %5732 = vmatpush1.bf16.xpose.msra.mxu0 0
    %5733 = vmatprep.subr.bf16.mxu0 0
    %5734 = vmatpush1.bf16.xpose.msra.mxu0 0
    %5735 = vmatprep.subr.bf16.mxu0 0
    %5736 = vmatpush1.bf16.xpose.msra.mxu0 0
    %5737 = vmatprep.subr.bf16.mxu0 0
    %5738 = vmatpush1.bf16.xpose.msra.mxu0 0
    %5739 = vmatprep.subr.bf16.mxu0 0
    %5740 = vmatpush1.bf16.xpose.msra.mxu0 0
    %5741 = vmatprep.subr.bf16.mxu0 0
    %5742 = vmatpush1.bf16.xpose.msra.mxu0 0
    %5743 = vmatprep.subr.bf16.mxu0 0
    %5744 = vmatpush1.bf16.xpose.msra.mxu0 0
    %5745 = vmatprep.subr.bf16.mxu0 0
    %5746 = vmatpush1.bf16.xpose.msra.mxu0 0
    %5747 = vmatprep.subr.bf16.mxu0 0
    %5748 = vmatpush1.bf16.xpose.msra.mxu0 0
    %5749 = vmatprep.subr.bf16.mxu0 0
    %5750 = vmatpush1.bf16.xpose.msra.mxu0 0
    %5751 = vmatprep.mubr.bf16.mxu0 0
    %5752 = vmatmul.mubr.bf16.gmra.mrb[0].mxu0 %v5714
    %v5753 = vpop.f32.mrb[0].mxu0
    %v5754 = vadd.f32 0.0, %v5753
    %v5755 = vpop.f32.mrb[0].mxu0
    %v5756 = vpop.f32.mrb[0].mxu0
    %v5757 = vpop.f32.mrb[0].mxu0
    %5758 = vdwg.mxu0
    %v5759 = vsel %vm2055, %v5704, -inf
    %5760 = vmax.xlane.f32.xlu0 %v5759
    %v5761 = vpop.xlane.xlu0 %5760
    %v5762 = vsel %vm2055, %v5754, -inf
    %5763 = vmax.xlane.f32.xlu0 %v5762
    %v5764 = vpop.xlane.xlu0 %5763
    %v5765 = vsub.f32 %v5704, %v5761
    %v5766 = vsub.f32 %v5754, %v5764
    %v5767 = vmul.f32 %v5765, 1.442695
    %v5768 = vpow.pop %v5767
    %v5769 = vmul.f32 %v5766, 1.442695
    %v5770 = vpow.pop %v5769
    %v5771 = vsel %vm2055, %v5768, 0.0
    %5772 = vadd.xlane.f32.xlu0 %v5771
    %v5773 = vpop.xlane.xlu0 %5772
    %v5774 = vsel %vm2055, %v5770, 0.0
    %5775 = vadd.xlane.f32.xlu0 %v5774
    %v5776 = vpop.xlane.xlu0 %5775
    %v5777 = vrcp.pop %v5773
    %v5778 = vrcp.pop %v5776
    %v5779 = vmul.f32 %v5768, %v5777
    %v5780 = vmul.f32 %v5770, %v5778
    %v5781 = vpack.c.bf16 %v5779, %v5779
    %v5782 = vpack.c.bf16 %v5780, %v5780
    %5783 = vrot.lane.b32.xlu0 %v4997, 40
    %v5784 = vpop.permute.xlu0 %5783
    %v5786 = vsel %vm2082, %v5781, 0
    %v5789 = vand.u32 %v5784, %v2089
    %5791 = vmatprep.subr.bf16.mxu0 0
    %5792 = vmatpush1.bf16.msra.mxu0 %v5789
    %5793 = vmatprep.subr.bf16.mxu0 0
    %5794 = vmatpush1.bf16.msra.mxu0 0
    %5795 = vmatprep.subr.bf16.mxu0 0
    %5796 = vmatpush1.bf16.msra.mxu0 0
    %5797 = vmatprep.subr.bf16.mxu0 0
    %5798 = vmatpush1.bf16.msra.mxu0 0
    %5799 = vmatprep.subr.bf16.mxu0 0
    %5800 = vmatpush1.bf16.msra.mxu0 0
    %5801 = vmatprep.subr.bf16.mxu0 0
    %5802 = vmatpush1.bf16.msra.mxu0 0
    %5803 = vmatprep.subr.bf16.mxu0 0
    %5804 = vmatpush1.bf16.msra.mxu0 0
    %5805 = vmatprep.subr.bf16.mxu0 0
    %5806 = vmatpush1.bf16.msra.mxu0 0
    %5807 = vmatprep.subr.bf16.mxu0 0
    %5808 = vmatpush1.bf16.msra.mxu0 0
    %5809 = vmatprep.subr.bf16.mxu0 0
    %5810 = vmatpush1.bf16.msra.mxu0 0
    %5811 = vmatprep.subr.bf16.mxu0 0
    %5812 = vmatpush1.bf16.msra.mxu0 0
    %5813 = vmatprep.subr.bf16.mxu0 0
    %5814 = vmatpush1.bf16.msra.mxu0 0
    %5815 = vmatprep.subr.bf16.mxu0 0
    %5816 = vmatpush1.bf16.msra.mxu0 0
    %5817 = vmatprep.subr.bf16.mxu0 0
    %5818 = vmatpush1.bf16.msra.mxu0 0
    %5819 = vmatprep.subr.bf16.mxu0 0
    %5820 = vmatpush1.bf16.msra.mxu0 0
    %5821 = vmatprep.subr.bf16.mxu0 0
    %5822 = vmatpush1.bf16.msra.mxu0 0
    %5823 = vmatprep.mubr.bf16.mxu0 0
    %5824 = vmatmul.mubr.bf16.gmra.mrb[0].mxu0 %v5786
    %v5825 = vpop.f32.mrb[0].mxu0
    %v5826 = vadd.f32 0.0, %v5825
    %v5827 = vpop.f32.mrb[0].mxu0
    %v5828 = vpop.f32.mrb[0].mxu0
    %v5829 = vpop.f32.mrb[0].mxu0
    %5830 = vdwg.mxu0
    %5831 = vrot.lane.b32.xlu0 %v4998, 40
    %v5832 = vpop.permute.xlu0 %5831
    %v5834 = vsel %vm2082, %v5782, 0
    %v5837 = vand.u32 %v5832, %v2089
    %5839 = vmatprep.subr.bf16.mxu0 0
    %5840 = vmatpush1.bf16.msra.mxu0 %v5837
    %5841 = vmatprep.subr.bf16.mxu0 0
    %5842 = vmatpush1.bf16.msra.mxu0 0
    %5843 = vmatprep.subr.bf16.mxu0 0
    %5844 = vmatpush1.bf16.msra.mxu0 0
    %5845 = vmatprep.subr.bf16.mxu0 0
    %5846 = vmatpush1.bf16.msra.mxu0 0
    %5847 = vmatprep.subr.bf16.mxu0 0
    %5848 = vmatpush1.bf16.msra.mxu0 0
    %5849 = vmatprep.subr.bf16.mxu0 0
    %5850 = vmatpush1.bf16.msra.mxu0 0
    %5851 = vmatprep.subr.bf16.mxu0 0
    %5852 = vmatpush1.bf16.msra.mxu0 0
    %5853 = vmatprep.subr.bf16.mxu0 0
    %5854 = vmatpush1.bf16.msra.mxu0 0
    %5855 = vmatprep.subr.bf16.mxu0 0
    %5856 = vmatpush1.bf16.msra.mxu0 0
    %5857 = vmatprep.subr.bf16.mxu0 0
    %5858 = vmatpush1.bf16.msra.mxu0 0
    %5859 = vmatprep.subr.bf16.mxu0 0
    %5860 = vmatpush1.bf16.msra.mxu0 0
    %5861 = vmatprep.subr.bf16.mxu0 0
    %5862 = vmatpush1.bf16.msra.mxu0 0
    %5863 = vmatprep.subr.bf16.mxu0 0
    %5864 = vmatpush1.bf16.msra.mxu0 0
    %5865 = vmatprep.subr.bf16.mxu0 0
    %5866 = vmatpush1.bf16.msra.mxu0 0
    %5867 = vmatprep.subr.bf16.mxu0 0
    %5868 = vmatpush1.bf16.msra.mxu0 0
    %5869 = vmatprep.subr.bf16.mxu0 0
    %5870 = vmatpush1.bf16.msra.mxu0 0
    %5871 = vmatprep.mubr.bf16.mxu0 0
    %5872 = vmatmul.mubr.bf16.gmra.mrb[0].mxu0 %v5834
    %v5873 = vpop.f32.mrb[0].mxu0
    %v5874 = vadd.f32 0.0, %v5873
    %v5875 = vpop.f32.mrb[0].mxu0
    %v5876 = vpop.f32.mrb[0].mxu0
    %v5877 = vpop.f32.mrb[0].mxu0
    %5878 = vdwg.mxu0
    %5881 = vrot.lane.b32.xlu0 %v5386, 8
    %v5882 = vpop.permute.xlu0 %5881
    %5883 = vrot.lane.b32.xlu0 %v5434, 8
    %v5884 = vpop.permute.xlu0 %5883
    %5889 = vrot.lane.b32.xlu0 %v5606, 16
    %v5890 = vpop.permute.xlu0 %5889
    %5891 = vrot.lane.b32.xlu0 %v5654, 16
    %v5892 = vpop.permute.xlu0 %5891
    %5897 = vrot.lane.b32.xlu0 %v5826, 24
    %v5898 = vpop.permute.xlu0 %5897
    %5899 = vrot.lane.b32.xlu0 %v5874, 24
    %v5900 = vpop.permute.xlu0 %5899
    %v5903 = vsel %vm1959, %v5164, %v5882
    %v5904 = vsel %vm1959, %v5212, %v5884
    %v5905 = vsel %vm2869, %v5903, %v5890
    %v5906 = vsel %vm2869, %v5904, %v5892
    %v5907 = vsel %vm2872, %v5905, %v5898
    %v5908 = vsel %vm2872, %v5906, %v5900
    %v5911 = vcombine.high %v5907, %v5907
    %v5913 = vunpack.c.l.s4 1966171168
    %v5914 = vunpack.c.0.s8 %v5913
    %v5915 = vlaneseq
    %v5916 = vshrl.u32 %v5915, 7
    %v5917 = vsub.s32 %v5914, %v5916
    %v5918 = vrot.slane %v5907, %v5917
    %v5920 = vunpack.c.l.s4 1966171168
    %v5921 = vunpack.c.0.s8 %v5920
    %v5922 = vlaneseq
    %v5923 = vshrl.u32 %v5922, 7
    %v5924 = vsub.s32 %v5921, %v5923
    %v5925 = vrot.slane %v5911, %v5924
    %v5926 = vcombine.high %v5918, %v5918
    %v5928 = vunpack.c.l.s4 1966171168
    %v5929 = vunpack.c.0.s8 %v5928
    %v5930 = vlaneseq
    %v5931 = vshrl.u32 %v5930, 7
    %v5932 = vsub.s32 %v5929, %v5931
    %v5933 = vrot.slane %v5918, %v5932
    %v5935 = vunpack.c.l.s4 1966171168
    %v5936 = vunpack.c.0.s8 %v5935
    %v5937 = vlaneseq
    %v5938 = vshrl.u32 %v5937, 7
    %v5939 = vsub.s32 %v5936, %v5938
    %v5940 = vrot.slane %v5925, %v5939
    %v5942 = vunpack.c.l.s4 1966171168
    %v5943 = vunpack.c.0.s8 %v5942
    %v5944 = vlaneseq
    %v5945 = vshrl.u32 %v5944, 7
    %v5946 = vsub.s32 %v5943, %v5945
    %v5947 = vrot.slane %v5926, %v5946
    %v5948 = vcombine.high %v5933, %v5933
    %v5949 = vcombine.high %v5947, %v5947
    %v5950 = vcombine.high %v5908, %v5908
    %v5952 = vunpack.c.l.s4 1966171168
    %v5953 = vunpack.c.0.s8 %v5952
    %v5954 = vlaneseq
    %v5955 = vshrl.u32 %v5954, 7
    %v5956 = vsub.s32 %v5953, %v5955
    %v5957 = vrot.slane %v5908, %v5956
    %v5959 = vunpack.c.l.s4 1966171168
    %v5960 = vunpack.c.0.s8 %v5959
    %v5961 = vlaneseq
    %v5962 = vshrl.u32 %v5961, 7
    %v5963 = vsub.s32 %v5960, %v5962
    %v5964 = vrot.slane %v5950, %v5963
    %v5965 = vcombine.high %v5957, %v5957
    %v5967 = vunpack.c.l.s4 1966171168
    %v5968 = vunpack.c.0.s8 %v5967
    %v5969 = vlaneseq
    %v5970 = vshrl.u32 %v5969, 7
    %v5971 = vsub.s32 %v5968, %v5970
    %v5972 = vrot.slane %v5957, %v5971
    %v5974 = vunpack.c.l.s4 1966171168
    %v5975 = vunpack.c.0.s8 %v5974
    %v5976 = vlaneseq
    %v5977 = vshrl.u32 %v5976, 7
    %v5978 = vsub.s32 %v5975, %v5977
    %v5979 = vrot.slane %v5964, %v5978
    %v5981 = vunpack.c.l.s4 1966171168
    %v5982 = vunpack.c.0.s8 %v5981
    %v5983 = vlaneseq
    %v5984 = vshrl.u32 %v5983, 7
    %v5985 = vsub.s32 %v5982, %v5984
    %v5986 = vrot.slane %v5965, %v5985
    %v5987 = vcombine.high %v5972, %v5972
    %v5988 = vcombine.high %v5986, %v5986
    %v5989 = vcombine.low %v5933, %v5947
    %v5990 = vcombine.low %v5948, %v5949
    %v5991 = vcombine.low %v5940, %v5972
    %v5992 = vcombine.low %v5986, %v5987
    %v5994 = vunpack.c.l.s4 1966171168
    %v5995 = vunpack.c.0.s8 %v5994
    %v5996 = vlaneseq
    %v5997 = vshrl.u32 %v5996, 7
    %v5998 = vsub.s32 %v5995, %v5997
    %v5999 = vrot.slane %v5989, %v5998
    %v6001 = vunpack.c.l.s4 1966171168
    %v6002 = vunpack.c.0.s8 %v6001
    %v6003 = vlaneseq
    %v6004 = vshrl.u32 %v6003, 7
    %v6005 = vsub.s32 %v6002, %v6004
    %v6006 = vrot.slane %v5990, %v6005
    %v6008 = vunpack.c.l.s4 1966171168
    %v6009 = vunpack.c.0.s8 %v6008
    %v6010 = vlaneseq
    %v6011 = vshrl.u32 %v6010, 7
    %v6012 = vsub.s32 %v6009, %v6011
    %v6013 = vrot.slane %v5991, %v6012
    %v6015 = vunpack.c.l.s4 1966171168
    %v6016 = vunpack.c.0.s8 %v6015
    %v6017 = vlaneseq
    %v6018 = vshrl.u32 %v6017, 7
    %v6019 = vsub.s32 %v6016, %v6018
    %v6020 = vrot.slane %v5992, %v6019
    %v6021 = vcombine.low %v5999, %v6006
    %v6022 = vcombine.low %v6013, %v6020
    %v6024 = vunpack.c.l.s4 1966171168
    %v6025 = vunpack.c.0.s8 %v6024
    %v6026 = vlaneseq
    %v6027 = vshrl.u32 %v6026, 7
    %v6028 = vsub.s32 %v6025, %v6027
    %v6029 = vrot.slane %v6021, %v6028
    %v6031 = vunpack.c.l.s4 1966171168
    %v6032 = vunpack.c.0.s8 %v6031
    %v6033 = vlaneseq
    %v6034 = vshrl.u32 %v6033, 7
    %v6035 = vsub.s32 %v6032, %v6034
    %v6036 = vrot.slane %v6022, %v6035
    %v6037 = vcombine.low %v6029, %v6036
    %v6038 = vcombine.low %v5988, %v5979
    %v6040 = vunpack.c.l.s4 1966171168
    %v6041 = vunpack.c.0.s8 %v6040
    %v6042 = vlaneseq
    %v6043 = vshrl.u32 %v6042, 7
    %v6044 = vsub.s32 %v6041, %v6043
    %v6045 = vrot.slane %v6038, %v6044
    %v6047 = vunpack.c.l.s4 1966171168
    %v6048 = vunpack.c.0.s8 %v6047
    %v6049 = vlaneseq
    %v6050 = vshrl.u32 %v6049, 7
    %v6051 = vsub.s32 %v6048, %v6050
    %v6052 = vrot.slane %v6045, %v6051
    %v6055 = vpack.c.bf16 %v6052, %v6037
    %s6056 = scalar_lea.vmem %s19, 16
    %v6057 = vld [vmem:[%s6056] sm:$0xf]
    %v6058 = vld [vmem:[%s6056 + $0x4] sm:$0xf]
    %v6059 = vld [vmem:[%s6056 + $0x8] sm:$0xf]
    %v6060 = vld [vmem:[%s6056 + $0xc] sm:$0xf]
    %v6065 = vunpack.c.l.b16 %v6057
    %v6066 = vunpack.c.l.b16 %v6058
    %v6067 = vunpack.c.l.b16 %v6059
    %v6068 = vunpack.c.l.b16 %v6060
    %v6069 = vpack.c.b16 %v6066, %v6065
    %v6070 = vpack.c.b16 %v6068, %v6067
    %v6074 = vsel %vm716, %v6055, 0
    %6076 = vmatprep.subr.bf16.mxu0 0
    %6077 = vmatpush1.bf16.msra.mxu0 %v6069
    %6078 = vmatprep.subr.bf16.mxu0 0
    %6079 = vmatpush1.bf16.msra.mxu0 %v6070
    %6080 = vmatprep.subr.bf16.mxu0 0
    %6081 = vmatpush1.bf16.msra.mxu0 0
    %6082 = vmatprep.subr.bf16.mxu0 0
    %6083 = vmatpush1.bf16.msra.mxu0 0
    %6084 = vmatprep.subr.bf16.mxu0 0
    %6085 = vmatpush1.bf16.msra.mxu0 0
    %6086 = vmatprep.subr.bf16.mxu0 0
    %6087 = vmatpush1.bf16.msra.mxu0 0
    %6088 = vmatprep.subr.bf16.mxu0 0
    %6089 = vmatpush1.bf16.msra.mxu0 0
    %6090 = vmatprep.subr.bf16.mxu0 0
    %6091 = vmatpush1.bf16.msra.mxu0 0
    %6092 = vmatprep.subr.bf16.mxu0 0
    %6093 = vmatpush1.bf16.msra.mxu0 0
    %6094 = vmatprep.subr.bf16.mxu0 0
    %6095 = vmatpush1.bf16.msra.mxu0 0
    %6096 = vmatprep.subr.bf16.mxu0 0
    %6097 = vmatpush1.bf16.msra.mxu0 0
    %6098 = vmatprep.subr.bf16.mxu0 0
    %6099 = vmatpush1.bf16.msra.mxu0 0
    %6100 = vmatprep.subr.bf16.mxu0 0
    %6101 = vmatpush1.bf16.msra.mxu0 0
    %6102 = vmatprep.subr.bf16.mxu0 0
    %6103 = vmatpush1.bf16.msra.mxu0 0
    %6104 = vmatprep.subr.bf16.mxu0 0
    %6105 = vmatpush1.bf16.msra.mxu0 0
    %6106 = vmatprep.subr.bf16.mxu0 0
    %6107 = vmatpush1.bf16.msra.mxu0 0
    %6108 = vmatprep.mubr.bf16.mxu0 0
    %6109 = vmatmul.mubr.bf16.gmra.mrb[0].mxu0 %v6074
    %v6110 = vpop.f32.mrb[0].mxu0
    %v6111 = vadd.f32 0.0, %v6110
    %v6112 = vpop.f32.mrb[0].mxu0
    %v6113 = vpop.f32.mrb[0].mxu0
    %v6114 = vadd.f32 0.0, %v6113
    %v6115 = vpop.f32.mrb[0].mxu0
    %6116 = vdwg.mxu0
    %v6119 = vcombine.high %v6111, %v6111
    %v6121 = vunpack.c.l.s4 1966171168
    %v6122 = vunpack.c.0.s8 %v6121
    %v6123 = vlaneseq
    %v6124 = vshrl.u32 %v6123, 7
    %v6125 = vsub.s32 %v6122, %v6124
    %v6126 = vrot.slane %v6111, %v6125
    %v6128 = vunpack.c.l.s4 1966171168
    %v6129 = vunpack.c.0.s8 %v6128
    %v6130 = vlaneseq
    %v6131 = vshrl.u32 %v6130, 7
    %v6132 = vsub.s32 %v6129, %v6131
    %v6133 = vrot.slane %v6119, %v6132
    %v6134 = vcombine.high %v6126, %v6126
    %v6135 = vcombine.high %v6133, %v6133
    %v6137 = vunpack.c.l.s4 1966171168
    %v6138 = vunpack.c.0.s8 %v6137
    %v6139 = vlaneseq
    %v6140 = vshrl.u32 %v6139, 7
    %v6141 = vsub.s32 %v6138, %v6140
    %v6142 = vrot.slane %v6126, %v6141
    %v6144 = vunpack.c.l.s4 1966171168
    %v6145 = vunpack.c.0.s8 %v6144
    %v6146 = vlaneseq
    %v6147 = vshrl.u32 %v6146, 7
    %v6148 = vsub.s32 %v6145, %v6147
    %v6149 = vrot.slane %v6133, %v6148
    %v6151 = vunpack.c.l.s4 1966171168
    %v6152 = vunpack.c.0.s8 %v6151
    %v6153 = vlaneseq
    %v6154 = vshrl.u32 %v6153, 7
    %v6155 = vsub.s32 %v6152, %v6154
    %v6156 = vrot.slane %v6134, %v6155
    %v6158 = vunpack.c.l.s4 1966171168
    %v6159 = vunpack.c.0.s8 %v6158
    %v6160 = vlaneseq
    %v6161 = vshrl.u32 %v6160, 7
    %v6162 = vsub.s32 %v6159, %v6161
    %v6163 = vrot.slane %v6135, %v6162
    %v6164 = vcombine.high %v6142, %v6142
    %v6165 = vcombine.high %v6149, %v6149
    %v6166 = vcombine.high %v6156, %v6156
    %v6167 = vcombine.high %v6163, %v6163
    %v6169 = vunpack.c.l.s4 1966171168
    %v6170 = vunpack.c.0.s8 %v6169
    %v6171 = vlaneseq
    %v6172 = vshrl.u32 %v6171, 7
    %v6173 = vsub.s32 %v6170, %v6172
    %v6174 = vrot.slane %v6114, %v6173
    %v6175 = vcombine.high %v6174, %v6174
    %v6177 = vunpack.c.l.s4 1966171168
    %v6178 = vunpack.c.0.s8 %v6177
    %v6179 = vlaneseq
    %v6180 = vshrl.u32 %v6179, 7
    %v6181 = vsub.s32 %v6178, %v6180
    %v6182 = vrot.slane %v6174, %v6181
    %v6184 = vunpack.c.l.s4 1966171168
    %v6185 = vunpack.c.0.s8 %v6184
    %v6186 = vlaneseq
    %v6187 = vshrl.u32 %v6186, 7
    %v6188 = vsub.s32 %v6185, %v6187
    %v6189 = vrot.slane %v6175, %v6188
    %v6200 = vadd.f32 %v4122, %v6142
    %v6201 = vadd.f32 %v4123, %v6156
    %v6202 = vadd.f32 %v4124, %v6164
    %v6203 = vadd.f32 %v4125, %v6166
    %v6204 = vadd.f32 %v4126, %v6149
    %v6205 = vadd.f32 %v4127, %v6163
    %v6206 = vadd.f32 %v4128, %v6165
    %v6207 = vadd.f32 %v4129, %v6167
    %v6208 = vadd.f32 %v4130, %v6182
    %v6209 = vadd.f32 %v4131, %v6189
    %s6210 = scalar_lea.vmem %s21, 1
    %v6211 = vld [vmem:[%s6210] sm:$0x1]
    %v6213 = vlaneseq
    %v6214 = vshrl.u32 %v6213, 7
    %v6215 = vsub.s32 0, %v6214
    %v6216 = vrot.slane %v6211, %v6215
    %v6217 = vcombine.high %v6216, %v6216
    %v6219 = vunpack.c.l.s4 1966171168
    %v6220 = vunpack.c.0.s8 %v6219
    %v6221 = vlaneseq
    %v6222 = vshrl.u32 %v6221, 7
    %v6223 = vsub.s32 %v6220, %v6222
    %v6224 = vrot.slane %v6216, %v6223
    %v6226 = vunpack.c.l.s4 1966171168
    %v6227 = vunpack.c.0.s8 %v6226
    %v6228 = vlaneseq
    %v6229 = vshrl.u32 %v6228, 7
    %v6230 = vsub.s32 %v6227, %v6229
    %v6231 = vrot.slane %v6217, %v6230
    %v6232 = vcombine.high %v6224, %v6224
    %v6233 = vcombine.high %v6231, %v6231
    %v6235 = vunpack.c.l.s4 1966171168
    %v6236 = vunpack.c.0.s8 %v6235
    %v6237 = vlaneseq
    %v6238 = vshrl.u32 %v6237, 7
    %v6239 = vsub.s32 %v6236, %v6238
    %v6240 = vrot.slane %v6224, %v6239
    %v6242 = vunpack.c.l.s4 1966171168
    %v6243 = vunpack.c.0.s8 %v6242
    %v6244 = vlaneseq
    %v6245 = vshrl.u32 %v6244, 7
    %v6246 = vsub.s32 %v6243, %v6245
    %v6247 = vrot.slane %v6231, %v6246
    %v6249 = vunpack.c.l.s4 1966171168
    %v6250 = vunpack.c.0.s8 %v6249
    %v6251 = vlaneseq
    %v6252 = vshrl.u32 %v6251, 7
    %v6253 = vsub.s32 %v6250, %v6252
    %v6254 = vrot.slane %v6232, %v6253
    %v6256 = vunpack.c.l.s4 1966171168
    %v6257 = vunpack.c.0.s8 %v6256
    %v6258 = vlaneseq
    %v6259 = vshrl.u32 %v6258, 7
    %v6260 = vsub.s32 %v6257, %v6259
    %v6261 = vrot.slane %v6233, %v6260
    %v6262 = vcombine.high %v6240, %v6240
    %v6263 = vcombine.high %v6247, %v6247
    %v6264 = vcombine.high %v6254, %v6254
    %v6265 = vcombine.high %v6261, %v6261
    %v6274 = vadd.f32 %v6200, %v6240
    %v6275 = vadd.f32 %v6201, %v6254
    %v6276 = vadd.f32 %v6202, %v6262
    %v6277 = vadd.f32 %v6203, %v6264
    %v6278 = vadd.f32 %v6204, %v6247
    %v6279 = vadd.f32 %v6205, %v6261
    %v6280 = vadd.f32 %v6206, %v6263
    %v6281 = vadd.f32 %v6207, %v6265
    %v6282 = vadd.f32 %v6208, %v6240
    %v6283 = vadd.f32 %v6209, %v6254
    %s6284 = scalar_lea.vmem %s27, 1
    %v6285 = vld [vmem:[%s6284] sm:$0x1]
    %s6286 = scalar_lea.vmem %s29, 1
    %v6287 = vld [vmem:[%s6286] sm:$0x1]
    %v6298 = vcombine.low %v6274, %v6275
    %v6299 = vcombine.low %v6276, %v6277
    %v6300 = vcombine.low %v6278, %v6279
    %v6301 = vcombine.low %v6280, %v6281
    %v6303 = vunpack.c.l.s4 1966171168
    %v6304 = vunpack.c.0.s8 %v6303
    %v6305 = vlaneseq
    %v6306 = vshrl.u32 %v6305, 7
    %v6307 = vsub.s32 %v6304, %v6306
    %v6308 = vrot.slane %v6298, %v6307
    %v6310 = vunpack.c.l.s4 1966171168
    %v6311 = vunpack.c.0.s8 %v6310
    %v6312 = vlaneseq
    %v6313 = vshrl.u32 %v6312, 7
    %v6314 = vsub.s32 %v6311, %v6313
    %v6315 = vrot.slane %v6299, %v6314
    %v6317 = vunpack.c.l.s4 1966171168
    %v6318 = vunpack.c.0.s8 %v6317
    %v6319 = vlaneseq
    %v6320 = vshrl.u32 %v6319, 7
    %v6321 = vsub.s32 %v6318, %v6320
    %v6322 = vrot.slane %v6300, %v6321
    %v6324 = vunpack.c.l.s4 1966171168
    %v6325 = vunpack.c.0.s8 %v6324
    %v6326 = vlaneseq
    %v6327 = vshrl.u32 %v6326, 7
    %v6328 = vsub.s32 %v6325, %v6327
    %v6329 = vrot.slane %v6301, %v6328
    %v6330 = vcombine.low %v6308, %v6315
    %v6331 = vcombine.low %v6322, %v6329
    %v6333 = vunpack.c.l.s4 1966171168
    %v6334 = vunpack.c.0.s8 %v6333
    %v6335 = vlaneseq
    %v6336 = vshrl.u32 %v6335, 7
    %v6337 = vsub.s32 %v6334, %v6336
    %v6338 = vrot.slane %v6330, %v6337
    %v6340 = vunpack.c.l.s4 1966171168
    %v6341 = vunpack.c.0.s8 %v6340
    %v6342 = vlaneseq
    %v6343 = vshrl.u32 %v6342, 7
    %v6344 = vsub.s32 %v6341, %v6343
    %v6345 = vrot.slane %v6331, %v6344
    %v6346 = vcombine.low %v6338, %v6345
    %v6347 = vcombine.low %v6282, %v6283
    %v6349 = vunpack.c.l.s4 1966171168
    %v6350 = vunpack.c.0.s8 %v6349
    %v6351 = vlaneseq
    %v6352 = vshrl.u32 %v6351, 7
    %v6353 = vsub.s32 %v6350, %v6352
    %v6354 = vrot.slane %v6347, %v6353
    %v6356 = vunpack.c.l.s4 1966171168
    %v6357 = vunpack.c.0.s8 %v6356
    %v6358 = vlaneseq
    %v6359 = vshrl.u32 %v6358, 7
    %v6360 = vsub.s32 %v6357, %v6359
    %v6361 = vrot.slane %v6354, %v6360
    %v6364 = vsel %vm716, %v6346, 0.0
    %6365 = vadd.xlane.f32.xlu0 %v6364
    %v6366 = vpop.xlane.xlu0 %6365
    %v6367 = vsel %vm720, %v6361, 0.0
    %6368 = vadd.xlane.f32.xlu0 %v6367
    %v6369 = vpop.xlane.xlu0 %6368
    %v6370 = vmul.f32 %v6366, %v724
    %v6371 = vmul.f32 %v6369, %v724
    %v6374 = vlaneseq
    %v6375 = vshrl.u32 %v6374, 7
    %v6376 = vsub.s32 0, %v6375
    %v6377 = vrot.slane %v6370, %v6376
    %v6378 = vlaneseq
    %v6379 = vshrl.u32 %v6378, 7
    %v6380 = vsub.s32 1, %v6379
    %v6381 = vrot.slane %v6370, %v6380
    %v6382 = vlaneseq
    %v6383 = vshrl.u32 %v6382, 7
    %v6384 = vsub.s32 2, %v6383
    %v6385 = vrot.slane %v6370, %v6384
    %v6386 = vlaneseq
    %v6387 = vshrl.u32 %v6386, 7
    %v6388 = vsub.s32 3, %v6387
    %v6389 = vrot.slane %v6370, %v6388
    %v6390 = vlaneseq
    %v6391 = vshrl.u32 %v6390, 7
    %v6392 = vsub.s32 4, %v6391
    %v6393 = vrot.slane %v6370, %v6392
    %v6394 = vlaneseq
    %v6395 = vshrl.u32 %v6394, 7
    %v6396 = vsub.s32 5, %v6395
    %v6397 = vrot.slane %v6370, %v6396
    %v6398 = vlaneseq
    %v6399 = vshrl.u32 %v6398, 7
    %v6400 = vsub.s32 6, %v6399
    %v6401 = vrot.slane %v6370, %v6400
    %v6402 = vlaneseq
    %v6403 = vshrl.u32 %v6402, 7
    %v6404 = vsub.s32 7, %v6403
    %v6405 = vrot.slane %v6370, %v6404
    %v6406 = vlaneseq
    %v6407 = vshrl.u32 %v6406, 7
    %v6408 = vsub.s32 0, %v6407
    %v6409 = vrot.slane %v6371, %v6408
    %v6410 = vlaneseq
    %v6411 = vshrl.u32 %v6410, 7
    %v6412 = vsub.s32 1, %v6411
    %v6413 = vrot.slane %v6371, %v6412
    %v6424 = vsub.f32 %v6274, %v6377
    %v6425 = vsub.f32 %v6275, %v6381
    %v6426 = vsub.f32 %v6276, %v6385
    %v6427 = vsub.f32 %v6277, %v6389
    %v6428 = vsub.f32 %v6278, %v6393
    %v6429 = vsub.f32 %v6279, %v6397
    %v6430 = vsub.f32 %v6280, %v6401
    %v6431 = vsub.f32 %v6281, %v6405
    %v6432 = vsub.f32 %v6282, %v6409
    %v6433 = vsub.f32 %v6283, %v6413
    %v6434 = vmul.f32 %v6424, %v6424
    %v6435 = vmul.f32 %v6425, %v6425
    %v6436 = vmul.f32 %v6426, %v6426
    %v6437 = vmul.f32 %v6427, %v6427
    %v6438 = vmul.f32 %v6428, %v6428
    %v6439 = vmul.f32 %v6429, %v6429
    %v6440 = vmul.f32 %v6430, %v6430
    %v6441 = vmul.f32 %v6431, %v6431
    %v6442 = vmul.f32 %v6432, %v6432
    %v6443 = vmul.f32 %v6433, %v6433
    %v6454 = vcombine.low %v6434, %v6435
    %v6455 = vcombine.low %v6436, %v6437
    %v6456 = vcombine.low %v6438, %v6439
    %v6457 = vcombine.low %v6440, %v6441
    %v6459 = vunpack.c.l.s4 1966171168
    %v6460 = vunpack.c.0.s8 %v6459
    %v6461 = vlaneseq
    %v6462 = vshrl.u32 %v6461, 7
    %v6463 = vsub.s32 %v6460, %v6462
    %v6464 = vrot.slane %v6454, %v6463
    %v6466 = vunpack.c.l.s4 1966171168
    %v6467 = vunpack.c.0.s8 %v6466
    %v6468 = vlaneseq
    %v6469 = vshrl.u32 %v6468, 7
    %v6470 = vsub.s32 %v6467, %v6469
    %v6471 = vrot.slane %v6455, %v6470
    %v6473 = vunpack.c.l.s4 1966171168
    %v6474 = vunpack.c.0.s8 %v6473
    %v6475 = vlaneseq
    %v6476 = vshrl.u32 %v6475, 7
    %v6477 = vsub.s32 %v6474, %v6476
    %v6478 = vrot.slane %v6456, %v6477
    %v6480 = vunpack.c.l.s4 1966171168
    %v6481 = vunpack.c.0.s8 %v6480
    %v6482 = vlaneseq
    %v6483 = vshrl.u32 %v6482, 7
    %v6484 = vsub.s32 %v6481, %v6483
    %v6485 = vrot.slane %v6457, %v6484
    %v6486 = vcombine.low %v6464, %v6471
    %v6487 = vcombine.low %v6478, %v6485
    %v6489 = vunpack.c.l.s4 1966171168
    %v6490 = vunpack.c.0.s8 %v6489
    %v6491 = vlaneseq
    %v6492 = vshrl.u32 %v6491, 7
    %v6493 = vsub.s32 %v6490, %v6492
    %v6494 = vrot.slane %v6486, %v6493
    %v6496 = vunpack.c.l.s4 1966171168
    %v6497 = vunpack.c.0.s8 %v6496
    %v6498 = vlaneseq
    %v6499 = vshrl.u32 %v6498, 7
    %v6500 = vsub.s32 %v6497, %v6499
    %v6501 = vrot.slane %v6487, %v6500
    %v6502 = vcombine.low %v6494, %v6501
    %v6503 = vcombine.low %v6442, %v6443
    %v6505 = vunpack.c.l.s4 1966171168
    %v6506 = vunpack.c.0.s8 %v6505
    %v6507 = vlaneseq
    %v6508 = vshrl.u32 %v6507, 7
    %v6509 = vsub.s32 %v6506, %v6508
    %v6510 = vrot.slane %v6503, %v6509
    %v6512 = vunpack.c.l.s4 1966171168
    %v6513 = vunpack.c.0.s8 %v6512
    %v6514 = vlaneseq
    %v6515 = vshrl.u32 %v6514, 7
    %v6516 = vsub.s32 %v6513, %v6515
    %v6517 = vrot.slane %v6510, %v6516
    %v6520 = vsel %vm716, %v6502, 0.0
    %6521 = vadd.xlane.f32.xlu0 %v6520
    %v6522 = vpop.xlane.xlu0 %6521
    %v6523 = vsel %vm720, %v6517, 0.0
    %6524 = vadd.xlane.f32.xlu0 %v6523
    %v6525 = vpop.xlane.xlu0 %6524
    %v6526 = vmul.f32 %v6522, %v724
    %v6527 = vmul.f32 %v6525, %v724
    %v6528 = vadd.f32 %v6526, 1e-05
    %v6529 = vadd.f32 %v6527, 1e-05
    %v6530 = vrsqrt.pop %v6528
    %v6531 = vrsqrt.pop %v6529
    %v6534 = vlaneseq
    %v6535 = vshrl.u32 %v6534, 7
    %v6536 = vsub.s32 0, %v6535
    %v6537 = vrot.slane %v6530, %v6536
    %v6538 = vlaneseq
    %v6539 = vshrl.u32 %v6538, 7
    %v6540 = vsub.s32 1, %v6539
    %v6541 = vrot.slane %v6530, %v6540
    %v6542 = vlaneseq
    %v6543 = vshrl.u32 %v6542, 7
    %v6544 = vsub.s32 2, %v6543
    %v6545 = vrot.slane %v6530, %v6544
    %v6546 = vlaneseq
    %v6547 = vshrl.u32 %v6546, 7
    %v6548 = vsub.s32 3, %v6547
    %v6549 = vrot.slane %v6530, %v6548
    %v6550 = vlaneseq
    %v6551 = vshrl.u32 %v6550, 7
    %v6552 = vsub.s32 4, %v6551
    %v6553 = vrot.slane %v6530, %v6552
    %v6554 = vlaneseq
    %v6555 = vshrl.u32 %v6554, 7
    %v6556 = vsub.s32 5, %v6555
    %v6557 = vrot.slane %v6530, %v6556
    %v6558 = vlaneseq
    %v6559 = vshrl.u32 %v6558, 7
    %v6560 = vsub.s32 6, %v6559
    %v6561 = vrot.slane %v6530, %v6560
    %v6562 = vlaneseq
    %v6563 = vshrl.u32 %v6562, 7
    %v6564 = vsub.s32 7, %v6563
    %v6565 = vrot.slane %v6530, %v6564
    %v6566 = vlaneseq
    %v6567 = vshrl.u32 %v6566, 7
    %v6568 = vsub.s32 0, %v6567
    %v6569 = vrot.slane %v6531, %v6568
    %v6570 = vlaneseq
    %v6571 = vshrl.u32 %v6570, 7
    %v6572 = vsub.s32 1, %v6571
    %v6573 = vrot.slane %v6531, %v6572
    %v6584 = vmul.f32 %v6424, %v6537
    %v6585 = vmul.f32 %v6425, %v6541
    %v6586 = vmul.f32 %v6426, %v6545
    %v6587 = vmul.f32 %v6427, %v6549
    %v6588 = vmul.f32 %v6428, %v6553
    %v6589 = vmul.f32 %v6429, %v6557
    %v6590 = vmul.f32 %v6430, %v6561
    %v6591 = vmul.f32 %v6431, %v6565
    %v6592 = vmul.f32 %v6432, %v6569
    %v6593 = vmul.f32 %v6433, %v6573
    %v6595 = vlaneseq
    %v6596 = vshrl.u32 %v6595, 7
    %v6597 = vsub.s32 0, %v6596
    %v6598 = vrot.slane %v6285, %v6597
    %v6599 = vcombine.high %v6598, %v6598
    %v6601 = vunpack.c.l.s4 1966171168
    %v6602 = vunpack.c.0.s8 %v6601
    %v6603 = vlaneseq
    %v6604 = vshrl.u32 %v6603, 7
    %v6605 = vsub.s32 %v6602, %v6604
    %v6606 = vrot.slane %v6598, %v6605
    %v6608 = vunpack.c.l.s4 1966171168
    %v6609 = vunpack.c.0.s8 %v6608
    %v6610 = vlaneseq
    %v6611 = vshrl.u32 %v6610, 7
    %v6612 = vsub.s32 %v6609, %v6611
    %v6613 = vrot.slane %v6599, %v6612
    %v6614 = vcombine.high %v6606, %v6606
    %v6615 = vcombine.high %v6613, %v6613
    %v6617 = vunpack.c.l.s4 1966171168
    %v6618 = vunpack.c.0.s8 %v6617
    %v6619 = vlaneseq
    %v6620 = vshrl.u32 %v6619, 7
    %v6621 = vsub.s32 %v6618, %v6620
    %v6622 = vrot.slane %v6606, %v6621
    %v6624 = vunpack.c.l.s4 1966171168
    %v6625 = vunpack.c.0.s8 %v6624
    %v6626 = vlaneseq
    %v6627 = vshrl.u32 %v6626, 7
    %v6628 = vsub.s32 %v6625, %v6627
    %v6629 = vrot.slane %v6613, %v6628
    %v6631 = vunpack.c.l.s4 1966171168
    %v6632 = vunpack.c.0.s8 %v6631
    %v6633 = vlaneseq
    %v6634 = vshrl.u32 %v6633, 7
    %v6635 = vsub.s32 %v6632, %v6634
    %v6636 = vrot.slane %v6614, %v6635
    %v6638 = vunpack.c.l.s4 1966171168
    %v6639 = vunpack.c.0.s8 %v6638
    %v6640 = vlaneseq
    %v6641 = vshrl.u32 %v6640, 7
    %v6642 = vsub.s32 %v6639, %v6641
    %v6643 = vrot.slane %v6615, %v6642
    %v6644 = vcombine.high %v6622, %v6622
    %v6645 = vcombine.high %v6629, %v6629
    %v6646 = vcombine.high %v6636, %v6636
    %v6647 = vcombine.high %v6643, %v6643
    %v6656 = vmul.f32 %v6584, %v6622
    %v6657 = vmul.f32 %v6585, %v6636
    %v6658 = vmul.f32 %v6586, %v6644
    %v6659 = vmul.f32 %v6587, %v6646
    %v6660 = vmul.f32 %v6588, %v6629
    %v6661 = vmul.f32 %v6589, %v6643
    %v6662 = vmul.f32 %v6590, %v6645
    %v6663 = vmul.f32 %v6591, %v6647
    %v6664 = vmul.f32 %v6592, %v6622
    %v6665 = vmul.f32 %v6593, %v6636
    %v6667 = vlaneseq
    %v6668 = vshrl.u32 %v6667, 7
    %v6669 = vsub.s32 0, %v6668
    %v6670 = vrot.slane %v6287, %v6669
    %v6671 = vcombine.high %v6670, %v6670
    %v6673 = vunpack.c.l.s4 1966171168
    %v6674 = vunpack.c.0.s8 %v6673
    %v6675 = vlaneseq
    %v6676 = vshrl.u32 %v6675, 7
    %v6677 = vsub.s32 %v6674, %v6676
    %v6678 = vrot.slane %v6670, %v6677
    %v6680 = vunpack.c.l.s4 1966171168
    %v6681 = vunpack.c.0.s8 %v6680
    %v6682 = vlaneseq
    %v6683 = vshrl.u32 %v6682, 7
    %v6684 = vsub.s32 %v6681, %v6683
    %v6685 = vrot.slane %v6671, %v6684
    %v6686 = vcombine.high %v6678, %v6678
    %v6687 = vcombine.high %v6685, %v6685
    %v6689 = vunpack.c.l.s4 1966171168
    %v6690 = vunpack.c.0.s8 %v6689
    %v6691 = vlaneseq
    %v6692 = vshrl.u32 %v6691, 7
    %v6693 = vsub.s32 %v6690, %v6692
    %v6694 = vrot.slane %v6678, %v6693
    %v6696 = vunpack.c.l.s4 1966171168
    %v6697 = vunpack.c.0.s8 %v6696
    %v6698 = vlaneseq
    %v6699 = vshrl.u32 %v6698, 7
    %v6700 = vsub.s32 %v6697, %v6699
    %v6701 = vrot.slane %v6685, %v6700
    %v6703 = vunpack.c.l.s4 1966171168
    %v6704 = vunpack.c.0.s8 %v6703
    %v6705 = vlaneseq
    %v6706 = vshrl.u32 %v6705, 7
    %v6707 = vsub.s32 %v6704, %v6706
    %v6708 = vrot.slane %v6686, %v6707
    %v6710 = vunpack.c.l.s4 1966171168
    %v6711 = vunpack.c.0.s8 %v6710
    %v6712 = vlaneseq
    %v6713 = vshrl.u32 %v6712, 7
    %v6714 = vsub.s32 %v6711, %v6713
    %v6715 = vrot.slane %v6687, %v6714
    %v6716 = vcombine.high %v6694, %v6694
    %v6717 = vcombine.high %v6701, %v6701
    %v6718 = vcombine.high %v6708, %v6708
    %v6719 = vcombine.high %v6715, %v6715
    %v6728 = vadd.f32 %v6656, %v6694
    %v6729 = vadd.f32 %v6657, %v6708
    %v6730 = vadd.f32 %v6658, %v6716
    %v6731 = vadd.f32 %v6659, %v6718
    %v6732 = vadd.f32 %v6660, %v6701
    %v6733 = vadd.f32 %v6661, %v6715
    %v6734 = vadd.f32 %v6662, %v6717
    %v6735 = vadd.f32 %v6663, %v6719
    %v6736 = vadd.f32 %v6664, %v6694
    %v6737 = vadd.f32 %v6665, %v6708
    %v6748 = vcombine.low %v6728, %v6729
    %v6749 = vcombine.low %v6730, %v6731
    %v6750 = vcombine.low %v6732, %v6733
    %v6751 = vcombine.low %v6734, %v6735
    %v6753 = vunpack.c.l.s4 1966171168
    %v6754 = vunpack.c.0.s8 %v6753
    %v6755 = vlaneseq
    %v6756 = vshrl.u32 %v6755, 7
    %v6757 = vsub.s32 %v6754, %v6756
    %v6758 = vrot.slane %v6748, %v6757
    %v6760 = vunpack.c.l.s4 1966171168
    %v6761 = vunpack.c.0.s8 %v6760
    %v6762 = vlaneseq
    %v6763 = vshrl.u32 %v6762, 7
    %v6764 = vsub.s32 %v6761, %v6763
    %v6765 = vrot.slane %v6749, %v6764
    %v6767 = vunpack.c.l.s4 1966171168
    %v6768 = vunpack.c.0.s8 %v6767
    %v6769 = vlaneseq
    %v6770 = vshrl.u32 %v6769, 7
    %v6771 = vsub.s32 %v6768, %v6770
    %v6772 = vrot.slane %v6750, %v6771
    %v6774 = vunpack.c.l.s4 1966171168
    %v6775 = vunpack.c.0.s8 %v6774
    %v6776 = vlaneseq
    %v6777 = vshrl.u32 %v6776, 7
    %v6778 = vsub.s32 %v6775, %v6777
    %v6779 = vrot.slane %v6751, %v6778
    %v6780 = vcombine.low %v6758, %v6765
    %v6781 = vcombine.low %v6772, %v6779
    %v6783 = vunpack.c.l.s4 1966171168
    %v6784 = vunpack.c.0.s8 %v6783
    %v6785 = vlaneseq
    %v6786 = vshrl.u32 %v6785, 7
    %v6787 = vsub.s32 %v6784, %v6786
    %v6788 = vrot.slane %v6780, %v6787
    %v6790 = vunpack.c.l.s4 1966171168
    %v6791 = vunpack.c.0.s8 %v6790
    %v6792 = vlaneseq
    %v6793 = vshrl.u32 %v6792, 7
    %v6794 = vsub.s32 %v6791, %v6793
    %v6795 = vrot.slane %v6781, %v6794
    %v6796 = vcombine.low %v6788, %v6795
    %v6797 = vcombine.low %v6736, %v6737
    %v6799 = vunpack.c.l.s4 1966171168
    %v6800 = vunpack.c.0.s8 %v6799
    %v6801 = vlaneseq
    %v6802 = vshrl.u32 %v6801, 7
    %v6803 = vsub.s32 %v6800, %v6802
    %v6804 = vrot.slane %v6797, %v6803
    %v6806 = vunpack.c.l.s4 1966171168
    %v6807 = vunpack.c.0.s8 %v6806
    %v6808 = vlaneseq
    %v6809 = vshrl.u32 %v6808, 7
    %v6810 = vsub.s32 %v6807, %v6809
    %v6811 = vrot.slane %v6804, %v6810
    %v6814 = vpack.c.bf16 %v6811, %v6796
    %s6815 = scalar_lea.vmem %s31, 16
    %v6816 = vld [vmem:[%s6815] sm:$0xf]
    %v6817 = vld [vmem:[%s6815 + $0x4] sm:$0xf]
    %v6818 = vld [vmem:[%s6815 + $0x8] sm:$0xf]
    %v6819 = vld [vmem:[%s6815 + $0xc] sm:$0xf]
    %s6820 = scalar_lea.vmem %s33, 1
    %v6821 = vld [vmem:[%s6820] sm:$0x1]
    %v6823 = vlaneseq
    %v6824 = vshrl.u32 %v6823, 7
    %v6825 = vsub.s32 0, %v6824
    %v6826 = vrot.slane %v6821, %v6825
    %v6832 = vunpack.c.l.b16 %v6816
    %v6833 = vunpack.c.l.b16 %v6817
    %v6834 = vunpack.c.l.b16 %v6818
    %v6835 = vunpack.c.l.b16 %v6819
    %v6836 = vpack.c.b16 %v6833, %v6832
    %v6837 = vpack.c.b16 %v6835, %v6834
    %v6841 = vsel %vm716, %v6814, 0
    %6843 = vmatprep.subr.bf16.mxu0 0
    %6844 = vmatpush1.bf16.msra.mxu0 %v6836
    %6845 = vmatprep.subr.bf16.mxu0 0
    %6846 = vmatpush1.bf16.msra.mxu0 %v6837
    %6847 = vmatprep.subr.bf16.mxu0 0
    %6848 = vmatpush1.bf16.msra.mxu0 0
    %6849 = vmatprep.subr.bf16.mxu0 0
    %6850 = vmatpush1.bf16.msra.mxu0 0
    %6851 = vmatprep.subr.bf16.mxu0 0
    %6852 = vmatpush1.bf16.msra.mxu0 0
    %6853 = vmatprep.subr.bf16.mxu0 0
    %6854 = vmatpush1.bf16.msra.mxu0 0
    %6855 = vmatprep.subr.bf16.mxu0 0
    %6856 = vmatpush1.bf16.msra.mxu0 0
    %6857 = vmatprep.subr.bf16.mxu0 0
    %6858 = vmatpush1.bf16.msra.mxu0 0
    %6859 = vmatprep.subr.bf16.mxu0 0
    %6860 = vmatpush1.bf16.msra.mxu0 0
    %6861 = vmatprep.subr.bf16.mxu0 0
    %6862 = vmatpush1.bf16.msra.mxu0 0
    %6863 = vmatprep.subr.bf16.mxu0 0
    %6864 = vmatpush1.bf16.msra.mxu0 0
    %6865 = vmatprep.subr.bf16.mxu0 0
    %6866 = vmatpush1.bf16.msra.mxu0 0
    %6867 = vmatprep.subr.bf16.mxu0 0
    %6868 = vmatpush1.bf16.msra.mxu0 0
    %6869 = vmatprep.subr.bf16.mxu0 0
    %6870 = vmatpush1.bf16.msra.mxu0 0
    %6871 = vmatprep.subr.bf16.mxu0 0
    %6872 = vmatpush1.bf16.msra.mxu0 0
    %6873 = vmatprep.subr.bf16.mxu0 0
    %6874 = vmatpush1.bf16.msra.mxu0 0
    %6875 = vmatprep.mubr.bf16.mxu0 0
    %6876 = vmatmul.mubr.bf16.gmra.mrb[0].mxu0 %v6841
    %v6877 = vpop.f32.mrb[0].mxu0
    %v6878 = vadd.f32 %v6826, %v6877
    %v6879 = vpop.f32.mrb[0].mxu0
    %v6880 = vpop.f32.mrb[0].mxu0
    %v6881 = vadd.f32 %v6826, %v6880
    %v6882 = vpop.f32.mrb[0].mxu0
    %6883 = vdwg.mxu0
    %v6884 = vmul.f32 %v6878, 1.702
    %v6885 = vmul.f32 %v6881, 1.702
    %v6886 = vxor.u32 %v6884, 2147483648
    %v6887 = vxor.u32 %v6885, 2147483648
    %v6888 = vmul.f32 %v6886, 1.442695
    %v6889 = vpow.pop %v6888
    %v6890 = vmul.f32 %v6887, 1.442695
    %v6891 = vpow.pop %v6890
    %v6892 = vadd.f32 %v6889, 1.0
    %v6893 = vadd.f32 %v6891, 1.0
    %v6894 = vrcp.pop %v6892
    %v6895 = vmul.f32 1.0, %v6894
    %v6896 = vrcp.pop %v6893
    %v6897 = vmul.f32 1.0, %v6896
    %v6898 = vmul.f32 %v6878, %v6895
    %v6899 = vmul.f32 %v6881, %v6897
    %v6900 = vpack.c.bf16 %v6899, %v6898
    %s6901 = scalar_lea.vmem %s35, 64
    %v6902 = vld [vmem:[%s6901] sm:$0xf]
    %v6903 = vld [vmem:[%s6901 + $0x4] sm:$0xf]
    %v6904 = vld [vmem:[%s6901 + $0x8] sm:$0xf]
    %v6905 = vld [vmem:[%s6901 + $0xc] sm:$0xf]
    %v6906 = vld [vmem:[%s6901 + $0x10] sm:$0xf]
    %v6907 = vld [vmem:[%s6901 + $0x14] sm:$0xf]
    %v6908 = vld [vmem:[%s6901 + $0x18] sm:$0xf]
    %v6909 = vld [vmem:[%s6901 + $0x1c] sm:$0xf]
    %v6910 = vld [vmem:[%s6901 + $0x20] sm:$0xf]
    %v6911 = vld [vmem:[%s6901 + $0x24] sm:$0xf]
    %v6912 = vld [vmem:[%s6901 + $0x28] sm:$0xf]
    %v6913 = vld [vmem:[%s6901 + $0x2c] sm:$0xf]
    %v6914 = vld [vmem:[%s6901 + $0x30] sm:$0xf]
    %v6915 = vld [vmem:[%s6901 + $0x34] sm:$0xf]
    %v6916 = vld [vmem:[%s6901 + $0x38] sm:$0xf]
    %v6917 = vld [vmem:[%s6901 + $0x3c] sm:$0xf]
    %v6934 = vunpack.c.l.b16 %v6902
    %v6935 = vunpack.c.l.b16 %v6903
    %v6936 = vunpack.c.l.b16 %v6904
    %v6937 = vunpack.c.l.b16 %v6905
    %v6938 = vunpack.c.l.b16 %v6906
    %v6939 = vunpack.c.l.b16 %v6907
    %v6940 = vunpack.c.l.b16 %v6908
    %v6941 = vunpack.c.l.b16 %v6909
    %v6942 = vunpack.c.l.b16 %v6910
    %v6943 = vunpack.c.l.b16 %v6911
    %v6944 = vunpack.c.l.b16 %v6912
    %v6945 = vunpack.c.l.b16 %v6913
    %v6946 = vunpack.c.l.b16 %v6914
    %v6947 = vunpack.c.l.b16 %v6915
    %v6948 = vunpack.c.l.b16 %v6916
    %v6949 = vunpack.c.l.b16 %v6917
    %v6950 = vpack.c.b16 %v6935, %v6934
    %v6951 = vpack.c.b16 %v6937, %v6936
    %v6952 = vpack.c.b16 %v6939, %v6938
    %v6953 = vpack.c.b16 %v6941, %v6940
    %v6954 = vpack.c.b16 %v6943, %v6942
    %v6955 = vpack.c.b16 %v6945, %v6944
    %v6956 = vpack.c.b16 %v6947, %v6946
    %v6957 = vpack.c.b16 %v6949, %v6948
    %6966 = vmatprep.subr.bf16.mxu0 0
    %6967 = vmatpush1.bf16.msra.mxu0 %v6950
    %6968 = vmatprep.subr.bf16.mxu0 0
    %6969 = vmatpush1.bf16.msra.mxu0 %v6951
    %6970 = vmatprep.subr.bf16.mxu0 0
    %6971 = vmatpush1.bf16.msra.mxu0 %v6952
    %6972 = vmatprep.subr.bf16.mxu0 0
    %6973 = vmatpush1.bf16.msra.mxu0 %v6953
    %6974 = vmatprep.subr.bf16.mxu0 0
    %6975 = vmatpush1.bf16.msra.mxu0 %v6954
    %6976 = vmatprep.subr.bf16.mxu0 0
    %6977 = vmatpush1.bf16.msra.mxu0 %v6955
    %6978 = vmatprep.subr.bf16.mxu0 0
    %6979 = vmatpush1.bf16.msra.mxu0 %v6956
    %6980 = vmatprep.subr.bf16.mxu0 0
    %6981 = vmatpush1.bf16.msra.mxu0 %v6957
    %6982 = vmatprep.subr.bf16.mxu0 0
    %6983 = vmatpush1.bf16.msra.mxu0 0
    %6984 = vmatprep.subr.bf16.mxu0 0
    %6985 = vmatpush1.bf16.msra.mxu0 0
    %6986 = vmatprep.subr.bf16.mxu0 0
    %6987 = vmatpush1.bf16.msra.mxu0 0
    %6988 = vmatprep.subr.bf16.mxu0 0
    %6989 = vmatpush1.bf16.msra.mxu0 0
    %6990 = vmatprep.subr.bf16.mxu0 0
    %6991 = vmatpush1.bf16.msra.mxu0 0
    %6992 = vmatprep.subr.bf16.mxu0 0
    %6993 = vmatpush1.bf16.msra.mxu0 0
    %6994 = vmatprep.subr.bf16.mxu0 0
    %6995 = vmatpush1.bf16.msra.mxu0 0
    %6996 = vmatprep.subr.bf16.mxu0 0
    %6997 = vmatpush1.bf16.msra.mxu0 0
    %6998 = vmatprep.mubr.bf16.mxu0 0
    %6999 = vmatmul.mubr.bf16.gmra.mrb[0].mxu0 %v6900
    %v7000 = vpop.f32.mrb[0].mxu0
    %v7001 = vadd.f32 0.0, %v7000
    %v7002 = vpop.f32.mrb[0].mxu0
    %v7003 = vpop.f32.mrb[0].mxu0
    %v7004 = vpop.f32.mrb[0].mxu0
    %7005 = vdwg.mxu0
    %v7007 = vcombine.high %v7001, %v7001
    %v7009 = vunpack.c.l.s4 1966171168
    %v7010 = vunpack.c.0.s8 %v7009
    %v7011 = vlaneseq
    %v7012 = vshrl.u32 %v7011, 7
    %v7013 = vsub.s32 %v7010, %v7012
    %v7014 = vrot.slane %v7001, %v7013
    %v7016 = vunpack.c.l.s4 1966171168
    %v7017 = vunpack.c.0.s8 %v7016
    %v7018 = vlaneseq
    %v7019 = vshrl.u32 %v7018, 7
    %v7020 = vsub.s32 %v7017, %v7019
    %v7021 = vrot.slane %v7007, %v7020
    %v7022 = vcombine.high %v7021, %v7021
    %v7024 = vunpack.c.l.s4 1966171168
    %v7025 = vunpack.c.0.s8 %v7024
    %v7026 = vlaneseq
    %v7027 = vshrl.u32 %v7026, 7
    %v7028 = vsub.s32 %v7025, %v7027
    %v7029 = vrot.slane %v7014, %v7028
    %v7031 = vunpack.c.l.s4 1966171168
    %v7032 = vunpack.c.0.s8 %v7031
    %v7033 = vlaneseq
    %v7034 = vshrl.u32 %v7033, 7
    %v7035 = vsub.s32 %v7032, %v7034
    %v7036 = vrot.slane %v7022, %v7035
    %v7039 = vadd.f32 %v6274, %v7029
    %v7040 = vadd.f32 %v6279, %v7036
    %s7041 = scalar_lea.vmem %s37, 1
    %v7042 = vld [vmem:[%s7041] sm:$0x1]
    %v7044 = vlaneseq
    %v7045 = vshrl.u32 %v7044, 7
    %v7046 = vsub.s32 0, %v7045
    %v7047 = vrot.slane %v7042, %v7046
    %v7048 = vcombine.high %v7047, %v7047
    %v7050 = vunpack.c.l.s4 1966171168
    %v7051 = vunpack.c.0.s8 %v7050
    %v7052 = vlaneseq
    %v7053 = vshrl.u32 %v7052, 7
    %v7054 = vsub.s32 %v7051, %v7053
    %v7055 = vrot.slane %v7047, %v7054
    %v7057 = vunpack.c.l.s4 1966171168
    %v7058 = vunpack.c.0.s8 %v7057
    %v7059 = vlaneseq
    %v7060 = vshrl.u32 %v7059, 7
    %v7061 = vsub.s32 %v7058, %v7060
    %v7062 = vrot.slane %v7048, %v7061
    %v7063 = vcombine.high %v7062, %v7062
    %v7065 = vunpack.c.l.s4 1966171168
    %v7066 = vunpack.c.0.s8 %v7065
    %v7067 = vlaneseq
    %v7068 = vshrl.u32 %v7067, 7
    %v7069 = vsub.s32 %v7066, %v7068
    %v7070 = vrot.slane %v7055, %v7069
    %v7072 = vunpack.c.l.s4 1966171168
    %v7073 = vunpack.c.0.s8 %v7072
    %v7074 = vlaneseq
    %v7075 = vshrl.u32 %v7074, 7
    %v7076 = vsub.s32 %v7073, %v7075
    %v7077 = vrot.slane %v7063, %v7076
    %v7080 = vadd.f32 %v7039, %v7070
    %v7081 = vadd.f32 %v7040, %v7077
    %v7082 = vld [vmem:[%s39] sm:$0x1]
    %v7083 = vld [vmem:[%s41] sm:$0x1]
    %v7086 = vcombine.low %v7080, %v7081
    %v7088 = vunpack.c.l.s4 1966171168
    %v7089 = vunpack.c.0.s8 %v7088
    %v7090 = vlaneseq
    %v7091 = vshrl.u32 %v7090, 7
    %v7092 = vsub.s32 %v7089, %v7091
    %v7093 = vrot.slane %v7086, %v7092
    %v7095 = vunpack.c.l.s4 1966171168
    %v7096 = vunpack.c.0.s8 %v7095
    %v7097 = vlaneseq
    %v7098 = vshrl.u32 %v7097, 7
    %v7099 = vsub.s32 %v7096, %v7098
    %v7100 = vrot.slane %v7093, %v7099
    %v7102 = vsel %vm720, %v7100, 0.0
    %7103 = vadd.xlane.f32.xlu0 %v7102
    %v7104 = vpop.xlane.xlu0 %7103
    %v7105 = vmul.f32 %v7104, %v724
    %v7107 = vlaneseq
    %v7108 = vshrl.u32 %v7107, 7
    %v7109 = vsub.s32 0, %v7108
    %v7110 = vrot.slane %v7105, %v7109
    %v7111 = vlaneseq
    %v7112 = vshrl.u32 %v7111, 7
    %v7113 = vsub.s32 1, %v7112
    %v7114 = vrot.slane %v7105, %v7113
    %v7117 = vsub.f32 %v7080, %v7110
    %v7118 = vsub.f32 %v7081, %v7114
    %v7119 = vmul.f32 %v7117, %v7117
    %v7120 = vmul.f32 %v7118, %v7118
    %v7123 = vcombine.low %v7119, %v7120
    %v7125 = vunpack.c.l.s4 1966171168
    %v7126 = vunpack.c.0.s8 %v7125
    %v7127 = vlaneseq
    %v7128 = vshrl.u32 %v7127, 7
    %v7129 = vsub.s32 %v7126, %v7128
    %v7130 = vrot.slane %v7123, %v7129
    %v7132 = vunpack.c.l.s4 1966171168
    %v7133 = vunpack.c.0.s8 %v7132
    %v7134 = vlaneseq
    %v7135 = vshrl.u32 %v7134, 7
    %v7136 = vsub.s32 %v7133, %v7135
    %v7137 = vrot.slane %v7130, %v7136
    %v7139 = vsel %vm720, %v7137, 0.0
    %7140 = vadd.xlane.f32.xlu0 %v7139
    %v7141 = vpop.xlane.xlu0 %7140
    %v7142 = vmul.f32 %v7141, %v724
    %v7143 = vadd.f32 %v7142, 1e-05
    %v7144 = vrsqrt.pop %v7143
    %v7146 = vlaneseq
    %v7147 = vshrl.u32 %v7146, 7
    %v7148 = vsub.s32 0, %v7147
    %v7149 = vrot.slane %v7144, %v7148
    %v7150 = vlaneseq
    %v7151 = vshrl.u32 %v7150, 7
    %v7152 = vsub.s32 1, %v7151
    %v7153 = vrot.slane %v7144, %v7152
    %v7156 = vmul.f32 %v7117, %v7149
    %v7157 = vmul.f32 %v7118, %v7153
    %v7159 = vlaneseq
    %v7160 = vshrl.u32 %v7159, 7
    %v7161 = vsub.s32 0, %v7160
    %v7162 = vrot.slane %v7082, %v7161
    %v7164 = vunpack.c.l.s4 1966171168
    %v7165 = vunpack.c.0.s8 %v7164
    %v7166 = vlaneseq
    %v7167 = vshrl.u32 %v7166, 7
    %v7168 = vsub.s32 %v7165, %v7167
    %v7169 = vrot.slane %v7162, %v7168
    %v7170 = vcombine.high %v7169, %v7169
    %v7172 = vunpack.c.l.s4 1966171168
    %v7173 = vunpack.c.0.s8 %v7172
    %v7174 = vlaneseq
    %v7175 = vshrl.u32 %v7174, 7
    %v7176 = vsub.s32 %v7173, %v7175
    %v7177 = vrot.slane %v7169, %v7176
    %v7179 = vunpack.c.l.s4 1966171168
    %v7180 = vunpack.c.0.s8 %v7179
    %v7181 = vlaneseq
    %v7182 = vshrl.u32 %v7181, 7
    %v7183 = vsub.s32 %v7180, %v7182
    %v7184 = vrot.slane %v7170, %v7183
    %v7187 = vmul.f32 %v7156, %v7177
    %v7188 = vmul.f32 %v7157, %v7184
    %v7190 = vlaneseq
    %v7191 = vshrl.u32 %v7190, 7
    %v7192 = vsub.s32 0, %v7191
    %v7193 = vrot.slane %v7083, %v7192
    %v7195 = vunpack.c.l.s4 1966171168
    %v7196 = vunpack.c.0.s8 %v7195
    %v7197 = vlaneseq
    %v7198 = vshrl.u32 %v7197, 7
    %v7199 = vsub.s32 %v7196, %v7198
    %v7200 = vrot.slane %v7193, %v7199
    %v7201 = vcombine.high %v7200, %v7200
    %v7203 = vunpack.c.l.s4 1966171168
    %v7204 = vunpack.c.0.s8 %v7203
    %v7205 = vlaneseq
    %v7206 = vshrl.u32 %v7205, 7
    %v7207 = vsub.s32 %v7204, %v7206
    %v7208 = vrot.slane %v7200, %v7207
    %v7210 = vunpack.c.l.s4 1966171168
    %v7211 = vunpack.c.0.s8 %v7210
    %v7212 = vlaneseq
    %v7213 = vshrl.u32 %v7212, 7
    %v7214 = vsub.s32 %v7211, %v7213
    %v7215 = vrot.slane %v7201, %v7214
    %v7218 = vadd.f32 %v7187, %v7208
    %v7219 = vadd.f32 %v7188, %v7215
    %v7220 = vpack.c.bf16 %v7218, %v7218
    %v7221 = vpack.c.bf16 %v7219, %v7219
    %v7222 = vld [vmem:[%s43] sm:$0xf]
    %v7223 = vld [vmem:[%s43 + $0x4] sm:$0xf]
    %v7224 = vld [vmem:[%s43 + $0x8] sm:$0xf]
    %v7225 = vld [vmem:[%s43 + $0xc] sm:$0xf]
    %v7228 = vunpack.c.l.b16 %v7220
    %v7229 = vunpack.c.l.b16 %v7221
    %v7230 = vrot.slane %v7229, 7
    %vm7231 = vcmask 1041409
    %v7232 = vsel %vm7231, %v7230, %v7228
    %v7233 = vpack.c.b16 %v7232, %v7232
    %v7238 = vunpack.c.l.b16 %v7222
    %v7239 = vunpack.c.l.b16 %v7223
    %v7240 = vunpack.c.l.b16 %v7224
    %v7241 = vunpack.c.l.b16 %v7225
    %v7242 = vpack.c.b16 %v7239, %v7238
    %v7243 = vpack.c.b16 %v7241, %v7240
    %v7247 = vsel %vm716, %v7233, 0
    %7249 = vmatprep.subr.bf16.mxu0 0
    %7250 = vmatpush1.bf16.msra.mxu0 %v7242
    %7251 = vmatprep.subr.bf16.mxu0 0
    %7252 = vmatpush1.bf16.msra.mxu0 %v7243
    %7253 = vmatprep.subr.bf16.mxu0 0
    %7254 = vmatpush1.bf16.msra.mxu0 0
    %7255 = vmatprep.subr.bf16.mxu0 0
    %7256 = vmatpush1.bf16.msra.mxu0 0
    %7257 = vmatprep.subr.bf16.mxu0 0
    %7258 = vmatpush1.bf16.msra.mxu0 0
    %7259 = vmatprep.subr.bf16.mxu0 0
    %7260 = vmatpush1.bf16.msra.mxu0 0
    %7261 = vmatprep.subr.bf16.mxu0 0
    %7262 = vmatpush1.bf16.msra.mxu0 0
    %7263 = vmatprep.subr.bf16.mxu0 0
    %7264 = vmatpush1.bf16.msra.mxu0 0
    %7265 = vmatprep.subr.bf16.mxu0 0
    %7266 = vmatpush1.bf16.msra.mxu0 0
    %7267 = vmatprep.subr.bf16.mxu0 0
    %7268 = vmatpush1.bf16.msra.mxu0 0
    %7269 = vmatprep.subr.bf16.mxu0 0
    %7270 = vmatpush1.bf16.msra.mxu0 0
    %7271 = vmatprep.subr.bf16.mxu0 0
    %7272 = vmatpush1.bf16.msra.mxu0 0
    %7273 = vmatprep.subr.bf16.mxu0 0
    %7274 = vmatpush1.bf16.msra.mxu0 0
    %7275 = vmatprep.subr.bf16.mxu0 0
    %7276 = vmatpush1.bf16.msra.mxu0 0
    %7277 = vmatprep.subr.bf16.mxu0 0
    %7278 = vmatpush1.bf16.msra.mxu0 0
    %7279 = vmatprep.subr.bf16.mxu0 0
    %7280 = vmatpush1.bf16.msra.mxu0 0
    %7281 = vmatprep.mubr.bf16.mxu0 0
    %7282 = vmatmul.mubr.bf16.gmra.mrb[0].mxu0 %v7247
    %v7283 = vpop.f32.mrb[0].mxu0
    %v7284 = vadd.f32 0.0, %v7283
    %v7285 = vpop.f32.mrb[0].mxu0
    %v7286 = vpop.f32.mrb[0].mxu0
    %v7287 = vpop.f32.mrb[0].mxu0
    %7288 = vdwg.mxu0
    %v7289 = vld [vmem:[%s3] sm:$0xff]
    %v7290 = vld [vmem:[%s3 + $0x8] sm:$0xff]
    %v7291 = vld [vmem:[%s3 + $0x10] sm:$0xff]
    %v7292 = vld [vmem:[%s45] sm:$0xff]
    %v7293 = vadd.f32 %v7289, %v7292
    %v7294 = vadd.f32 %v7290, %v7292
    %v7295 = vadd.f32 %v7291, %v7292
    %v7296 = vlaneseq
    %v7297 = vshrl.u32 %v7296, 7
    %v7298 = vlaneseq
    %v7299 = vand.u32 %v7298, 127
    %vm7300 = vcmp.gt.s32.totalorder %v7299, %v7297
    %v7301 = vsel %vm7300, -1e+30, 0.0
    %v7302 = vld [vmem:[%s55] sm:$0x1]
    %v7303 = vld [vmem:[%s57] sm:$0x1]
    %v7304 = vsel %vm716, %v7293, 0.0
    %7305 = vadd.xlane.f32.xlu0 %v7304
    %v7306 = vpop.xlane.xlu0 %7305
    %v7307 = vsel %vm716, %v7294, 0.0
    %7308 = vadd.xlane.f32.xlu0 %v7307
    %v7309 = vpop.xlane.xlu0 %7308
    %v7310 = vsel %vm716, %v7295, 0.0
    %7311 = vadd.xlane.f32.xlu0 %v7310
    %v7312 = vpop.xlane.xlu0 %7311
    %v7313 = vmul.f32 %v7306, %v724
    %v7314 = vmul.f32 %v7309, %v724
    %v7315 = vmul.f32 %v7312, %v724
    %v7316 = vsub.f32 %v7293, %v7313
    %v7317 = vsub.f32 %v7294, %v7314
    %v7318 = vsub.f32 %v7295, %v7315
    %v7319 = vmul.f32 %v7316, %v7316
    %v7320 = vmul.f32 %v7317, %v7317
    %v7321 = vmul.f32 %v7318, %v7318
    %v7322 = vsel %vm716, %v7319, 0.0
    %7323 = vadd.xlane.f32.xlu0 %v7322
    %v7324 = vpop.xlane.xlu0 %7323
    %v7325 = vsel %vm716, %v7320, 0.0
    %7326 = vadd.xlane.f32.xlu0 %v7325
    %v7327 = vpop.xlane.xlu0 %7326
    %v7328 = vsel %vm716, %v7321, 0.0
    %7329 = vadd.xlane.f32.xlu0 %v7328
    %v7330 = vpop.xlane.xlu0 %7329
    %v7331 = vmul.f32 %v7324, %v724
    %v7332 = vmul.f32 %v7327, %v724
    %v7333 = vmul.f32 %v7330, %v724
    %v7334 = vadd.f32 %v7331, 1e-05
    %v7335 = vadd.f32 %v7332, 1e-05
    %v7336 = vadd.f32 %v7333, 1e-05
    %v7337 = vrsqrt.pop %v7334
    %v7338 = vrsqrt.pop %v7335
    %v7339 = vrsqrt.pop %v7336
    %v7340 = vmul.f32 %v7316, %v7337
    %v7341 = vmul.f32 %v7317, %v7338
    %v7342 = vmul.f32 %v7318, %v7339
    %v7344 = vlaneseq
    %v7345 = vshrl.u32 %v7344, 7
    %v7346 = vsub.s32 0, %v7345
    %v7347 = vrot.slane %v7302, %v7346
    %v7349 = vmul.f32 %v7340, %v7347
    %v7350 = vmul.f32 %v7341, %v7347
    %v7351 = vmul.f32 %v7342, %v7347
    %v7353 = vlaneseq
    %v7354 = vshrl.u32 %v7353, 7
    %v7355 = vsub.s32 0, %v7354
    %v7356 = vrot.slane %v7303, %v7355
    %v7358 = vadd.f32 %v7349, %v7356
    %v7359 = vadd.f32 %v7350, %v7356
    %v7360 = vadd.f32 %v7351, %v7356
    %v7361 = vpack.c.bf16 %v7359, %v7358
    %v7362 = vpack.c.bf16 %v7360, %v7360
    %v7363 = vld [vmem:[%s47] sm:$0xf]
    %v7364 = vld [vmem:[%s47 + $0x4] sm:$0xf]
    %v7365 = vld [vmem:[%s47 + $0x8] sm:$0xf]
    %v7366 = vld [vmem:[%s47 + $0xc] sm:$0xf]
    %v7367 = vld [vmem:[%s49] sm:$0x1]
    %v7369 = vlaneseq
    %v7370 = vshrl.u32 %v7369, 7
    %v7371 = vsub.s32 0, %v7370
    %v7372 = vrot.slane %v7367, %v7371
    %v7378 = vunpack.c.l.b16 %v7363
    %v7379 = vunpack.c.l.b16 %v7364
    %v7380 = vunpack.c.l.b16 %v7365
    %v7381 = vunpack.c.l.b16 %v7366
    %v7382 = vpack.c.b16 %v7379, %v7378
    %v7383 = vpack.c.b16 %v7381, %v7380
    %v7387 = vsel %vm716, %v7361, 0
    %v7390 = vsel %vm716, %v7362, 0
    %7392 = vmatprep.subr.bf16.mxu0 0
    %7393 = vmatpush1.bf16.msra.mxu0 %v7382
    %7394 = vmatprep.subr.bf16.mxu0 0
    %7395 = vmatpush1.bf16.msra.mxu0 %v7383
    %7396 = vmatprep.subr.bf16.mxu0 0
    %7397 = vmatpush1.bf16.msra.mxu0 0
    %7398 = vmatprep.subr.bf16.mxu0 0
    %7399 = vmatpush1.bf16.msra.mxu0 0
    %7400 = vmatprep.subr.bf16.mxu0 0
    %7401 = vmatpush1.bf16.msra.mxu0 0
    %7402 = vmatprep.subr.bf16.mxu0 0
    %7403 = vmatpush1.bf16.msra.mxu0 0
    %7404 = vmatprep.subr.bf16.mxu0 0
    %7405 = vmatpush1.bf16.msra.mxu0 0
    %7406 = vmatprep.subr.bf16.mxu0 0
    %7407 = vmatpush1.bf16.msra.mxu0 0
    %7408 = vmatprep.subr.bf16.mxu0 0
    %7409 = vmatpush1.bf16.msra.mxu0 0
    %7410 = vmatprep.subr.bf16.mxu0 0
    %7411 = vmatpush1.bf16.msra.mxu0 0
    %7412 = vmatprep.subr.bf16.mxu0 0
    %7413 = vmatpush1.bf16.msra.mxu0 0
    %7414 = vmatprep.subr.bf16.mxu0 0
    %7415 = vmatpush1.bf16.msra.mxu0 0
    %7416 = vmatprep.subr.bf16.mxu0 0
    %7417 = vmatpush1.bf16.msra.mxu0 0
    %7418 = vmatprep.subr.bf16.mxu0 0
    %7419 = vmatpush1.bf16.msra.mxu0 0
    %7420 = vmatprep.subr.bf16.mxu0 0
    %7421 = vmatpush1.bf16.msra.mxu0 0
    %7422 = vmatprep.subr.bf16.mxu0 0
    %7423 = vmatpush1.bf16.msra.mxu0 0
    %7424 = vmatprep.mubr.bf16.mxu0 0
    %7425 = vmatmul.mubr.bf16.gmra.mrb[0].mxu0 %v7387
    %v7426 = vpop.f32.mrb[0].mxu0
    %v7427 = vadd.f32 %v7372, %v7426
    %v7428 = vpop.f32.mrb[0].mxu0
    %v7429 = vpop.f32.mrb[0].mxu0
    %v7430 = vadd.f32 %v7372, %v7429
    %v7431 = vpop.f32.mrb[0].mxu0
    %7432 = vmatprep.mubr.bf16.mxu0 0
    %7433 = vmatmul.mubr.bf16.gmra.mrb[0].mxu0 %v7390
    %v7434 = vpop.f32.mrb[0].mxu0
    %v7435 = vadd.f32 %v7372, %v7434
    %v7436 = vpop.f32.mrb[0].mxu0
    %v7437 = vpop.f32.mrb[0].mxu0
    %v7438 = vpop.f32.mrb[0].mxu0
    %7439 = vdwg.mxu0
    %v7440 = vmul.f32 %v7427, 0.35355338
    %v7441 = vmul.f32 %v7430, 0.35355338
    %v7442 = vmul.f32 %v7435, 0.35355338
    %v7443 = vpack.c.bf16 %v7440, %v7440
    %v7444 = vpack.c.bf16 %v7441, %v7441
    %v7445 = vpack.c.bf16 %v7442, %v7442
    %v7446 = vpack.c.bf16 %v7427, %v7427
    %v7447 = vpack.c.bf16 %v7430, %v7430
    %v7448 = vpack.c.bf16 %v7435, %v7435
    %7450 = vrot.lane.b32.xlu0 %v7446, 96
    %v7451 = vpop.permute.xlu0 %7450
    %v7453 = vsel %vm1959, %v7443, 0
    %v7456 = vsel %vm1959, %v7451, 0
    %7458 = vmatprep.subr.bf16.mxu0 0
    %7459 = vmatpush1.bf16.xpose.msra.mxu0 %v7456
    %7460 = vmatprep.subr.bf16.mxu0 0
    %7461 = vmatpush1.bf16.xpose.msra.mxu0 0
    %7462 = vmatprep.subr.bf16.mxu0 0
    %7463 = vmatpush1.bf16.xpose.msra.mxu0 0
    %7464 = vmatprep.subr.bf16.mxu0 0
    %7465 = vmatpush1.bf16.xpose.msra.mxu0 0
    %7466 = vmatprep.subr.bf16.mxu0 0
    %7467 = vmatpush1.bf16.xpose.msra.mxu0 0
    %7468 = vmatprep.subr.bf16.mxu0 0
    %7469 = vmatpush1.bf16.xpose.msra.mxu0 0
    %7470 = vmatprep.subr.bf16.mxu0 0
    %7471 = vmatpush1.bf16.xpose.msra.mxu0 0
    %7472 = vmatprep.subr.bf16.mxu0 0
    %7473 = vmatpush1.bf16.xpose.msra.mxu0 0
    %7474 = vmatprep.subr.bf16.mxu0 0
    %7475 = vmatpush1.bf16.xpose.msra.mxu0 0
    %7476 = vmatprep.subr.bf16.mxu0 0
    %7477 = vmatpush1.bf16.xpose.msra.mxu0 0
    %7478 = vmatprep.subr.bf16.mxu0 0
    %7479 = vmatpush1.bf16.xpose.msra.mxu0 0
    %7480 = vmatprep.subr.bf16.mxu0 0
    %7481 = vmatpush1.bf16.xpose.msra.mxu0 0
    %7482 = vmatprep.subr.bf16.mxu0 0
    %7483 = vmatpush1.bf16.xpose.msra.mxu0 0
    %7484 = vmatprep.subr.bf16.mxu0 0
    %7485 = vmatpush1.bf16.xpose.msra.mxu0 0
    %7486 = vmatprep.subr.bf16.mxu0 0
    %7487 = vmatpush1.bf16.xpose.msra.mxu0 0
    %7488 = vmatprep.subr.bf16.mxu0 0
    %7489 = vmatpush1.bf16.xpose.msra.mxu0 0
    %7490 = vmatprep.mubr.bf16.mxu0 0
    %7491 = vmatmul.mubr.bf16.gmra.mrb[0].mxu0 %v7453
    %v7492 = vpop.f32.mrb[0].mxu0
    %v7493 = vadd.f32 %v7301, %v7492
    %v7494 = vpop.f32.mrb[0].mxu0
    %v7495 = vpop.f32.mrb[0].mxu0
    %v7496 = vpop.f32.mrb[0].mxu0
    %7497 = vdwg.mxu0
    %7499 = vrot.lane.b32.xlu0 %v7447, 96
    %v7500 = vpop.permute.xlu0 %7499
    %v7502 = vsel %vm1959, %v7444, 0
    %v7505 = vsel %vm1959, %v7500, 0
    %7507 = vmatprep.subr.bf16.mxu0 0
    %7508 = vmatpush1.bf16.xpose.msra.mxu0 %v7505
    %7509 = vmatprep.subr.bf16.mxu0 0
    %7510 = vmatpush1.bf16.xpose.msra.mxu0 0
    %7511 = vmatprep.subr.bf16.mxu0 0
    %7512 = vmatpush1.bf16.xpose.msra.mxu0 0
    %7513 = vmatprep.subr.bf16.mxu0 0
    %7514 = vmatpush1.bf16.xpose.msra.mxu0 0
    %7515 = vmatprep.subr.bf16.mxu0 0
    %7516 = vmatpush1.bf16.xpose.msra.mxu0 0
    %7517 = vmatprep.subr.bf16.mxu0 0
    %7518 = vmatpush1.bf16.xpose.msra.mxu0 0
    %7519 = vmatprep.subr.bf16.mxu0 0
    %7520 = vmatpush1.bf16.xpose.msra.mxu0 0
    %7521 = vmatprep.subr.bf16.mxu0 0
    %7522 = vmatpush1.bf16.xpose.msra.mxu0 0
    %7523 = vmatprep.subr.bf16.mxu0 0
    %7524 = vmatpush1.bf16.xpose.msra.mxu0 0
    %7525 = vmatprep.subr.bf16.mxu0 0
    %7526 = vmatpush1.bf16.xpose.msra.mxu0 0
    %7527 = vmatprep.subr.bf16.mxu0 0
    %7528 = vmatpush1.bf16.xpose.msra.mxu0 0
    %7529 = vmatprep.subr.bf16.mxu0 0
    %7530 = vmatpush1.bf16.xpose.msra.mxu0 0
    %7531 = vmatprep.subr.bf16.mxu0 0
    %7532 = vmatpush1.bf16.xpose.msra.mxu0 0
    %7533 = vmatprep.subr.bf16.mxu0 0
    %7534 = vmatpush1.bf16.xpose.msra.mxu0 0
    %7535 = vmatprep.subr.bf16.mxu0 0
    %7536 = vmatpush1.bf16.xpose.msra.mxu0 0
    %7537 = vmatprep.subr.bf16.mxu0 0
    %7538 = vmatpush1.bf16.xpose.msra.mxu0 0
    %7539 = vmatprep.mubr.bf16.mxu0 0
    %7540 = vmatmul.mubr.bf16.gmra.mrb[0].mxu0 %v7502
    %v7541 = vpop.f32.mrb[0].mxu0
    %v7542 = vadd.f32 %v7301, %v7541
    %v7543 = vpop.f32.mrb[0].mxu0
    %v7544 = vpop.f32.mrb[0].mxu0
    %v7545 = vpop.f32.mrb[0].mxu0
    %7546 = vdwg.mxu0
    %7548 = vrot.lane.b32.xlu0 %v7448, 96
    %v7549 = vpop.permute.xlu0 %7548
    %v7551 = vsel %vm1959, %v7445, 0
    %v7554 = vsel %vm1959, %v7549, 0
    %7556 = vmatprep.subr.bf16.mxu0 0
    %7557 = vmatpush1.bf16.xpose.msra.mxu0 %v7554
    %7558 = vmatprep.subr.bf16.mxu0 0
    %7559 = vmatpush1.bf16.xpose.msra.mxu0 0
    %7560 = vmatprep.subr.bf16.mxu0 0
    %7561 = vmatpush1.bf16.xpose.msra.mxu0 0
    %7562 = vmatprep.subr.bf16.mxu0 0
    %7563 = vmatpush1.bf16.xpose.msra.mxu0 0
    %7564 = vmatprep.subr.bf16.mxu0 0
    %7565 = vmatpush1.bf16.xpose.msra.mxu0 0
    %7566 = vmatprep.subr.bf16.mxu0 0
    %7567 = vmatpush1.bf16.xpose.msra.mxu0 0
    %7568 = vmatprep.subr.bf16.mxu0 0
    %7569 = vmatpush1.bf16.xpose.msra.mxu0 0
    %7570 = vmatprep.subr.bf16.mxu0 0
    %7571 = vmatpush1.bf16.xpose.msra.mxu0 0
    %7572 = vmatprep.subr.bf16.mxu0 0
    %7573 = vmatpush1.bf16.xpose.msra.mxu0 0
    %7574 = vmatprep.subr.bf16.mxu0 0
    %7575 = vmatpush1.bf16.xpose.msra.mxu0 0
    %7576 = vmatprep.subr.bf16.mxu0 0
    %7577 = vmatpush1.bf16.xpose.msra.mxu0 0
    %7578 = vmatprep.subr.bf16.mxu0 0
    %7579 = vmatpush1.bf16.xpose.msra.mxu0 0
    %7580 = vmatprep.subr.bf16.mxu0 0
    %7581 = vmatpush1.bf16.xpose.msra.mxu0 0
    %7582 = vmatprep.subr.bf16.mxu0 0
    %7583 = vmatpush1.bf16.xpose.msra.mxu0 0
    %7584 = vmatprep.subr.bf16.mxu0 0
    %7585 = vmatpush1.bf16.xpose.msra.mxu0 0
    %7586 = vmatprep.subr.bf16.mxu0 0
    %7587 = vmatpush1.bf16.xpose.msra.mxu0 0
    %7588 = vmatprep.mubr.bf16.mxu0 0
    %7589 = vmatmul.mubr.bf16.gmra.mrb[0].mxu0 %v7551
    %v7590 = vpop.f32.mrb[0].mxu0
    %v7591 = vadd.f32 %v7301, %v7590
    %v7592 = vpop.f32.mrb[0].mxu0
    %v7593 = vpop.f32.mrb[0].mxu0
    %v7594 = vpop.f32.mrb[0].mxu0
    %7595 = vdwg.mxu0
    %v7596 = vsel %vm1959, %v7493, -inf
    %7597 = vmax.xlane.f32.xlu0 %v7596
    %v7598 = vpop.xlane.xlu0 %7597
    %v7599 = vsel %vm1959, %v7542, -inf
    %7600 = vmax.xlane.f32.xlu0 %v7599
    %v7601 = vpop.xlane.xlu0 %7600
    %v7602 = vsel %vm1959, %v7591, -inf
    %7603 = vmax.xlane.f32.xlu0 %v7602
    %v7604 = vpop.xlane.xlu0 %7603
    %v7605 = vsub.f32 %v7493, %v7598
    %v7606 = vsub.f32 %v7542, %v7601
    %v7607 = vsub.f32 %v7591, %v7604
    %v7608 = vmul.f32 %v7605, 1.442695
    %v7609 = vpow.pop %v7608
    %v7610 = vmul.f32 %v7606, 1.442695
    %v7611 = vpow.pop %v7610
    %v7612 = vmul.f32 %v7607, 1.442695
    %v7613 = vpow.pop %v7612
    %v7614 = vsel %vm1959, %v7609, 0.0
    %7615 = vadd.xlane.f32.xlu0 %v7614
    %v7616 = vpop.xlane.xlu0 %7615
    %v7617 = vsel %vm1959, %v7611, 0.0
    %7618 = vadd.xlane.f32.xlu0 %v7617
    %v7619 = vpop.xlane.xlu0 %7618
    %v7620 = vsel %vm1959, %v7613, 0.0
    %7621 = vadd.xlane.f32.xlu0 %v7620
    %v7622 = vpop.xlane.xlu0 %7621
    %v7623 = vrcp.pop %v7616
    %v7624 = vrcp.pop %v7619
    %v7625 = vrcp.pop %v7622
    %v7626 = vmul.f32 %v7609, %v7623
    %v7627 = vmul.f32 %v7611, %v7624
    %v7628 = vmul.f32 %v7613, %v7625
    %v7629 = vpack.c.bf16 %v7626, %v7626
    %v7630 = vpack.c.bf16 %v7627, %v7627
    %v7631 = vpack.c.bf16 %v7628, %v7628
    %7632 = vrot.lane.b32.xlu0 %v7446, 64
    %v7633 = vpop.permute.xlu0 %7632
    %v7635 = vsel %vm1959, %v7629, 0
    %vm7637 = vcmask 1043456
    %v7639 = vsel %vm7637, %v7633, 0
    %7641 = vmatprep.subr.bf16.mxu0 0
    %7642 = vmatpush1.bf16.msra.mxu0 %v7639
    %7643 = vmatprep.subr.bf16.mxu0 0
    %7644 = vmatpush1.bf16.msra.mxu0 0
    %7645 = vmatprep.subr.bf16.mxu0 0
    %7646 = vmatpush1.bf16.msra.mxu0 0
    %7647 = vmatprep.subr.bf16.mxu0 0
    %7648 = vmatpush1.bf16.msra.mxu0 0
    %7649 = vmatprep.subr.bf16.mxu0 0
    %7650 = vmatpush1.bf16.msra.mxu0 0
    %7651 = vmatprep.subr.bf16.mxu0 0
    %7652 = vmatpush1.bf16.msra.mxu0 0
    %7653 = vmatprep.subr.bf16.mxu0 0
    %7654 = vmatpush1.bf16.msra.mxu0 0
    %7655 = vmatprep.subr.bf16.mxu0 0
    %7656 = vmatpush1.bf16.msra.mxu0 0
    %7657 = vmatprep.subr.bf16.mxu0 0
    %7658 = vmatpush1.bf16.msra.mxu0 0
    %7659 = vmatprep.subr.bf16.mxu0 0
    %7660 = vmatpush1.bf16.msra.mxu0 0
    %7661 = vmatprep.subr.bf16.mxu0 0
    %7662 = vmatpush1.bf16.msra.mxu0 0
    %7663 = vmatprep.subr.bf16.mxu0 0
    %7664 = vmatpush1.bf16.msra.mxu0 0
    %7665 = vmatprep.subr.bf16.mxu0 0
    %7666 = vmatpush1.bf16.msra.mxu0 0
    %7667 = vmatprep.subr.bf16.mxu0 0
    %7668 = vmatpush1.bf16.msra.mxu0 0
    %7669 = vmatprep.subr.bf16.mxu0 0
    %7670 = vmatpush1.bf16.msra.mxu0 0
    %7671 = vmatprep.subr.bf16.mxu0 0
    %7672 = vmatpush1.bf16.msra.mxu0 0
    %7673 = vmatprep.mubr.bf16.mxu0 0
    %7674 = vmatmul.mubr.bf16.gmra.mrb[0].mxu0 %v7635
    %v7675 = vpop.f32.mrb[0].mxu0
    %v7676 = vadd.f32 0.0, %v7675
    %v7677 = vpop.f32.mrb[0].mxu0
    %v7678 = vpop.f32.mrb[0].mxu0
    %v7679 = vpop.f32.mrb[0].mxu0
    %7680 = vdwg.mxu0
    %7681 = vrot.lane.b32.xlu0 %v7447, 64
    %v7682 = vpop.permute.xlu0 %7681
    %v7684 = vsel %vm1959, %v7630, 0
    %v7687 = vsel %vm7637, %v7682, 0
    %7689 = vmatprep.subr.bf16.mxu0 0
    %7690 = vmatpush1.bf16.msra.mxu0 %v7687
    %7691 = vmatprep.subr.bf16.mxu0 0
    %7692 = vmatpush1.bf16.msra.mxu0 0
    %7693 = vmatprep.subr.bf16.mxu0 0
    %7694 = vmatpush1.bf16.msra.mxu0 0
    %7695 = vmatprep.subr.bf16.mxu0 0
    %7696 = vmatpush1.bf16.msra.mxu0 0
    %7697 = vmatprep.subr.bf16.mxu0 0
    %7698 = vmatpush1.bf16.msra.mxu0 0
    %7699 = vmatprep.subr.bf16.mxu0 0
    %7700 = vmatpush1.bf16.msra.mxu0 0
    %7701 = vmatprep.subr.bf16.mxu0 0
    %7702 = vmatpush1.bf16.msra.mxu0 0
    %7703 = vmatprep.subr.bf16.mxu0 0
    %7704 = vmatpush1.bf16.msra.mxu0 0
    %7705 = vmatprep.subr.bf16.mxu0 0
    %7706 = vmatpush1.bf16.msra.mxu0 0
    %7707 = vmatprep.subr.bf16.mxu0 0
    %7708 = vmatpush1.bf16.msra.mxu0 0
    %7709 = vmatprep.subr.bf16.mxu0 0
    %7710 = vmatpush1.bf16.msra.mxu0 0
    %7711 = vmatprep.subr.bf16.mxu0 0
    %7712 = vmatpush1.bf16.msra.mxu0 0
    %7713 = vmatprep.subr.bf16.mxu0 0
    %7714 = vmatpush1.bf16.msra.mxu0 0
    %7715 = vmatprep.subr.bf16.mxu0 0
    %7716 = vmatpush1.bf16.msra.mxu0 0
    %7717 = vmatprep.subr.bf16.mxu0 0
    %7718 = vmatpush1.bf16.msra.mxu0 0
    %7719 = vmatprep.subr.bf16.mxu0 0
    %7720 = vmatpush1.bf16.msra.mxu0 0
    %7721 = vmatprep.mubr.bf16.mxu0 0
    %7722 = vmatmul.mubr.bf16.gmra.mrb[0].mxu0 %v7684
    %v7723 = vpop.f32.mrb[0].mxu0
    %v7724 = vadd.f32 0.0, %v7723
    %v7725 = vpop.f32.mrb[0].mxu0
    %v7726 = vpop.f32.mrb[0].mxu0
    %v7727 = vpop.f32.mrb[0].mxu0
    %7728 = vdwg.mxu0
    %7729 = vrot.lane.b32.xlu0 %v7448, 64
    %v7730 = vpop.permute.xlu0 %7729
    %v7732 = vsel %vm1959, %v7631, 0
    %v7735 = vsel %vm7637, %v7730, 0
    %7737 = vmatprep.subr.bf16.mxu0 0
    %7738 = vmatpush1.bf16.msra.mxu0 %v7735
    %7739 = vmatprep.subr.bf16.mxu0 0
    %7740 = vmatpush1.bf16.msra.mxu0 0
    %7741 = vmatprep.subr.bf16.mxu0 0
    %7742 = vmatpush1.bf16.msra.mxu0 0
    %7743 = vmatprep.subr.bf16.mxu0 0
    %7744 = vmatpush1.bf16.msra.mxu0 0
    %7745 = vmatprep.subr.bf16.mxu0 0
    %7746 = vmatpush1.bf16.msra.mxu0 0
    %7747 = vmatprep.subr.bf16.mxu0 0
    %7748 = vmatpush1.bf16.msra.mxu0 0
    %7749 = vmatprep.subr.bf16.mxu0 0
    %7750 = vmatpush1.bf16.msra.mxu0 0
    %7751 = vmatprep.subr.bf16.mxu0 0
    %7752 = vmatpush1.bf16.msra.mxu0 0
    %7753 = vmatprep.subr.bf16.mxu0 0
    %7754 = vmatpush1.bf16.msra.mxu0 0
    %7755 = vmatprep.subr.bf16.mxu0 0
    %7756 = vmatpush1.bf16.msra.mxu0 0
    %7757 = vmatprep.subr.bf16.mxu0 0
    %7758 = vmatpush1.bf16.msra.mxu0 0
    %7759 = vmatprep.subr.bf16.mxu0 0
    %7760 = vmatpush1.bf16.msra.mxu0 0
    %7761 = vmatprep.subr.bf16.mxu0 0
    %7762 = vmatpush1.bf16.msra.mxu0 0
    %7763 = vmatprep.subr.bf16.mxu0 0
    %7764 = vmatpush1.bf16.msra.mxu0 0
    %7765 = vmatprep.subr.bf16.mxu0 0
    %7766 = vmatpush1.bf16.msra.mxu0 0
    %7767 = vmatprep.subr.bf16.mxu0 0
    %7768 = vmatpush1.bf16.msra.mxu0 0
    %7769 = vmatprep.mubr.bf16.mxu0 0
    %7770 = vmatmul.mubr.bf16.gmra.mrb[0].mxu0 %v7732
    %v7771 = vpop.f32.mrb[0].mxu0
    %v7772 = vadd.f32 0.0, %v7771
    %v7773 = vpop.f32.mrb[0].mxu0
    %v7774 = vpop.f32.mrb[0].mxu0
    %v7775 = vpop.f32.mrb[0].mxu0
    %7776 = vdwg.mxu0
    %7778 = vrot.lane.b32.xlu0 %v7443, 120
    %v7779 = vpop.permute.xlu0 %7778
    %7780 = vrot.lane.b32.xlu0 %v7446, 88
    %v7781 = vpop.permute.xlu0 %7780
    %v7783 = vsel %vm1959, %v7779, 0
    %v7786 = vsel %vm1959, %v7781, 0
    %7788 = vmatprep.subr.bf16.mxu0 0
    %7789 = vmatpush1.bf16.xpose.msra.mxu0 %v7786
    %7790 = vmatprep.subr.bf16.mxu0 0
    %7791 = vmatpush1.bf16.xpose.msra.mxu0 0
    %7792 = vmatprep.subr.bf16.mxu0 0
    %7793 = vmatpush1.bf16.xpose.msra.mxu0 0
    %7794 = vmatprep.subr.bf16.mxu0 0
    %7795 = vmatpush1.bf16.xpose.msra.mxu0 0
    %7796 = vmatprep.subr.bf16.mxu0 0
    %7797 = vmatpush1.bf16.xpose.msra.mxu0 0
    %7798 = vmatprep.subr.bf16.mxu0 0
    %7799 = vmatpush1.bf16.xpose.msra.mxu0 0
    %7800 = vmatprep.subr.bf16.mxu0 0
    %7801 = vmatpush1.bf16.xpose.msra.mxu0 0
    %7802 = vmatprep.subr.bf16.mxu0 0
    %7803 = vmatpush1.bf16.xpose.msra.mxu0 0
    %7804 = vmatprep.subr.bf16.mxu0 0
    %7805 = vmatpush1.bf16.xpose.msra.mxu0 0
    %7806 = vmatprep.subr.bf16.mxu0 0
    %7807 = vmatpush1.bf16.xpose.msra.mxu0 0
    %7808 = vmatprep.subr.bf16.mxu0 0
    %7809 = vmatpush1.bf16.xpose.msra.mxu0 0
    %7810 = vmatprep.subr.bf16.mxu0 0
    %7811 = vmatpush1.bf16.xpose.msra.mxu0 0
    %7812 = vmatprep.subr.bf16.mxu0 0
    %7813 = vmatpush1.bf16.xpose.msra.mxu0 0
    %7814 = vmatprep.subr.bf16.mxu0 0
    %7815 = vmatpush1.bf16.xpose.msra.mxu0 0
    %7816 = vmatprep.subr.bf16.mxu0 0
    %7817 = vmatpush1.bf16.xpose.msra.mxu0 0
    %7818 = vmatprep.subr.bf16.mxu0 0
    %7819 = vmatpush1.bf16.xpose.msra.mxu0 0
    %7820 = vmatprep.mubr.bf16.mxu0 0
    %7821 = vmatmul.mubr.bf16.gmra.mrb[0].mxu0 %v7783
    %v7822 = vpop.f32.mrb[0].mxu0
    %v7823 = vadd.f32 %v7301, %v7822
    %v7824 = vpop.f32.mrb[0].mxu0
    %v7825 = vpop.f32.mrb[0].mxu0
    %v7826 = vpop.f32.mrb[0].mxu0
    %7827 = vdwg.mxu0
    %7829 = vrot.lane.b32.xlu0 %v7444, 120
    %v7830 = vpop.permute.xlu0 %7829
    %7831 = vrot.lane.b32.xlu0 %v7447, 88
    %v7832 = vpop.permute.xlu0 %7831
    %v7834 = vsel %vm1959, %v7830, 0
    %v7837 = vsel %vm1959, %v7832, 0
    %7839 = vmatprep.subr.bf16.mxu0 0
    %7840 = vmatpush1.bf16.xpose.msra.mxu0 %v7837
    %7841 = vmatprep.subr.bf16.mxu0 0
    %7842 = vmatpush1.bf16.xpose.msra.mxu0 0
    %7843 = vmatprep.subr.bf16.mxu0 0
    %7844 = vmatpush1.bf16.xpose.msra.mxu0 0
    %7845 = vmatprep.subr.bf16.mxu0 0
    %7846 = vmatpush1.bf16.xpose.msra.mxu0 0
    %7847 = vmatprep.subr.bf16.mxu0 0
    %7848 = vmatpush1.bf16.xpose.msra.mxu0 0
    %7849 = vmatprep.subr.bf16.mxu0 0
    %7850 = vmatpush1.bf16.xpose.msra.mxu0 0
    %7851 = vmatprep.subr.bf16.mxu0 0
    %7852 = vmatpush1.bf16.xpose.msra.mxu0 0
    %7853 = vmatprep.subr.bf16.mxu0 0
    %7854 = vmatpush1.bf16.xpose.msra.mxu0 0
    %7855 = vmatprep.subr.bf16.mxu0 0
    %7856 = vmatpush1.bf16.xpose.msra.mxu0 0
    %7857 = vmatprep.subr.bf16.mxu0 0
    %7858 = vmatpush1.bf16.xpose.msra.mxu0 0
    %7859 = vmatprep.subr.bf16.mxu0 0
    %7860 = vmatpush1.bf16.xpose.msra.mxu0 0
    %7861 = vmatprep.subr.bf16.mxu0 0
    %7862 = vmatpush1.bf16.xpose.msra.mxu0 0
    %7863 = vmatprep.subr.bf16.mxu0 0
    %7864 = vmatpush1.bf16.xpose.msra.mxu0 0
    %7865 = vmatprep.subr.bf16.mxu0 0
    %7866 = vmatpush1.bf16.xpose.msra.mxu0 0
    %7867 = vmatprep.subr.bf16.mxu0 0
    %7868 = vmatpush1.bf16.xpose.msra.mxu0 0
    %7869 = vmatprep.subr.bf16.mxu0 0
    %7870 = vmatpush1.bf16.xpose.msra.mxu0 0
    %7871 = vmatprep.mubr.bf16.mxu0 0
    %7872 = vmatmul.mubr.bf16.gmra.mrb[0].mxu0 %v7834
    %v7873 = vpop.f32.mrb[0].mxu0
    %v7874 = vadd.f32 %v7301, %v7873
    %v7875 = vpop.f32.mrb[0].mxu0
    %v7876 = vpop.f32.mrb[0].mxu0
    %v7877 = vpop.f32.mrb[0].mxu0
    %7878 = vdwg.mxu0
    %7880 = vrot.lane.b32.xlu0 %v7445, 120
    %v7881 = vpop.permute.xlu0 %7880
    %7882 = vrot.lane.b32.xlu0 %v7448, 88
    %v7883 = vpop.permute.xlu0 %7882
    %v7885 = vsel %vm1959, %v7881, 0
    %v7888 = vsel %vm1959, %v7883, 0
    %7890 = vmatprep.subr.bf16.mxu0 0
    %7891 = vmatpush1.bf16.xpose.msra.mxu0 %v7888
    %7892 = vmatprep.subr.bf16.mxu0 0
    %7893 = vmatpush1.bf16.xpose.msra.mxu0 0
    %7894 = vmatprep.subr.bf16.mxu0 0
    %7895 = vmatpush1.bf16.xpose.msra.mxu0 0
    %7896 = vmatprep.subr.bf16.mxu0 0
    %7897 = vmatpush1.bf16.xpose.msra.mxu0 0
    %7898 = vmatprep.subr.bf16.mxu0 0
    %7899 = vmatpush1.bf16.xpose.msra.mxu0 0
    %7900 = vmatprep.subr.bf16.mxu0 0
    %7901 = vmatpush1.bf16.xpose.msra.mxu0 0
    %7902 = vmatprep.subr.bf16.mxu0 0
    %7903 = vmatpush1.bf16.xpose.msra.mxu0 0
    %7904 = vmatprep.subr.bf16.mxu0 0
    %7905 = vmatpush1.bf16.xpose.msra.mxu0 0
    %7906 = vmatprep.subr.bf16.mxu0 0
    %7907 = vmatpush1.bf16.xpose.msra.mxu0 0
    %7908 = vmatprep.subr.bf16.mxu0 0
    %7909 = vmatpush1.bf16.xpose.msra.mxu0 0
    %7910 = vmatprep.subr.bf16.mxu0 0
    %7911 = vmatpush1.bf16.xpose.msra.mxu0 0
    %7912 = vmatprep.subr.bf16.mxu0 0
    %7913 = vmatpush1.bf16.xpose.msra.mxu0 0
    %7914 = vmatprep.subr.bf16.mxu0 0
    %7915 = vmatpush1.bf16.xpose.msra.mxu0 0
    %7916 = vmatprep.subr.bf16.mxu0 0
    %7917 = vmatpush1.bf16.xpose.msra.mxu0 0
    %7918 = vmatprep.subr.bf16.mxu0 0
    %7919 = vmatpush1.bf16.xpose.msra.mxu0 0
    %7920 = vmatprep.subr.bf16.mxu0 0
    %7921 = vmatpush1.bf16.xpose.msra.mxu0 0
    %7922 = vmatprep.mubr.bf16.mxu0 0
    %7923 = vmatmul.mubr.bf16.gmra.mrb[0].mxu0 %v7885
    %v7924 = vpop.f32.mrb[0].mxu0
    %v7925 = vadd.f32 %v7301, %v7924
    %v7926 = vpop.f32.mrb[0].mxu0
    %v7927 = vpop.f32.mrb[0].mxu0
    %v7928 = vpop.f32.mrb[0].mxu0
    %7929 = vdwg.mxu0
    %v7930 = vsel %vm1959, %v7823, -inf
    %7931 = vmax.xlane.f32.xlu0 %v7930
    %v7932 = vpop.xlane.xlu0 %7931
    %v7933 = vsel %vm1959, %v7874, -inf
    %7934 = vmax.xlane.f32.xlu0 %v7933
    %v7935 = vpop.xlane.xlu0 %7934
    %v7936 = vsel %vm1959, %v7925, -inf
    %7937 = vmax.xlane.f32.xlu0 %v7936
    %v7938 = vpop.xlane.xlu0 %7937
    %v7939 = vsub.f32 %v7823, %v7932
    %v7940 = vsub.f32 %v7874, %v7935
    %v7941 = vsub.f32 %v7925, %v7938
    %v7942 = vmul.f32 %v7939, 1.442695
    %v7943 = vpow.pop %v7942
    %v7944 = vmul.f32 %v7940, 1.442695
    %v7945 = vpow.pop %v7944
    %v7946 = vmul.f32 %v7941, 1.442695
    %v7947 = vpow.pop %v7946
    %v7948 = vsel %vm1959, %v7943, 0.0
    %7949 = vadd.xlane.f32.xlu0 %v7948
    %v7950 = vpop.xlane.xlu0 %7949
    %v7951 = vsel %vm1959, %v7945, 0.0
    %7952 = vadd.xlane.f32.xlu0 %v7951
    %v7953 = vpop.xlane.xlu0 %7952
    %v7954 = vsel %vm1959, %v7947, 0.0
    %7955 = vadd.xlane.f32.xlu0 %v7954
    %v7956 = vpop.xlane.xlu0 %7955
    %v7957 = vrcp.pop %v7950
    %v7958 = vrcp.pop %v7953
    %v7959 = vrcp.pop %v7956
    %v7960 = vmul.f32 %v7943, %v7957
    %v7961 = vmul.f32 %v7945, %v7958
    %v7962 = vmul.f32 %v7947, %v7959
    %v7963 = vpack.c.bf16 %v7960, %v7960
    %v7964 = vpack.c.bf16 %v7961, %v7961
    %v7965 = vpack.c.bf16 %v7962, %v7962
    %7966 = vrot.lane.b32.xlu0 %v7446, 56
    %v7967 = vpop.permute.xlu0 %7966
    %v7969 = vsel %vm1959, %v7963, 0
    %v7972 = vsel %vm7637, %v7967, 0
    %7974 = vmatprep.subr.bf16.mxu0 0
    %7975 = vmatpush1.bf16.msra.mxu0 %v7972
    %7976 = vmatprep.subr.bf16.mxu0 0
    %7977 = vmatpush1.bf16.msra.mxu0 0
    %7978 = vmatprep.subr.bf16.mxu0 0
    %7979 = vmatpush1.bf16.msra.mxu0 0
    %7980 = vmatprep.subr.bf16.mxu0 0
    %7981 = vmatpush1.bf16.msra.mxu0 0
    %7982 = vmatprep.subr.bf16.mxu0 0
    %7983 = vmatpush1.bf16.msra.mxu0 0
    %7984 = vmatprep.subr.bf16.mxu0 0
    %7985 = vmatpush1.bf16.msra.mxu0 0
    %7986 = vmatprep.subr.bf16.mxu0 0
    %7987 = vmatpush1.bf16.msra.mxu0 0
    %7988 = vmatprep.subr.bf16.mxu0 0
    %7989 = vmatpush1.bf16.msra.mxu0 0
    %7990 = vmatprep.subr.bf16.mxu0 0
    %7991 = vmatpush1.bf16.msra.mxu0 0
    %7992 = vmatprep.subr.bf16.mxu0 0
    %7993 = vmatpush1.bf16.msra.mxu0 0
    %7994 = vmatprep.subr.bf16.mxu0 0
    %7995 = vmatpush1.bf16.msra.mxu0 0
    %7996 = vmatprep.subr.bf16.mxu0 0
    %7997 = vmatpush1.bf16.msra.mxu0 0
    %7998 = vmatprep.subr.bf16.mxu0 0
    %7999 = vmatpush1.bf16.msra.mxu0 0
    %8000 = vmatprep.subr.bf16.mxu0 0
    %8001 = vmatpush1.bf16.msra.mxu0 0
    %8002 = vmatprep.subr.bf16.mxu0 0
    %8003 = vmatpush1.bf16.msra.mxu0 0
    %8004 = vmatprep.subr.bf16.mxu0 0
    %8005 = vmatpush1.bf16.msra.mxu0 0
    %8006 = vmatprep.mubr.bf16.mxu0 0
    %8007 = vmatmul.mubr.bf16.gmra.mrb[0].mxu0 %v7969
    %v8008 = vpop.f32.mrb[0].mxu0
    %v8009 = vadd.f32 0.0, %v8008
    %v8010 = vpop.f32.mrb[0].mxu0
    %v8011 = vpop.f32.mrb[0].mxu0
    %v8012 = vpop.f32.mrb[0].mxu0
    %8013 = vdwg.mxu0
    %8014 = vrot.lane.b32.xlu0 %v7447, 56
    %v8015 = vpop.permute.xlu0 %8014
    %v8017 = vsel %vm1959, %v7964, 0
    %v8020 = vsel %vm7637, %v8015, 0
    %8022 = vmatprep.subr.bf16.mxu0 0
    %8023 = vmatpush1.bf16.msra.mxu0 %v8020
    %8024 = vmatprep.subr.bf16.mxu0 0
    %8025 = vmatpush1.bf16.msra.mxu0 0
    %8026 = vmatprep.subr.bf16.mxu0 0
    %8027 = vmatpush1.bf16.msra.mxu0 0
    %8028 = vmatprep.subr.bf16.mxu0 0
    %8029 = vmatpush1.bf16.msra.mxu0 0
    %8030 = vmatprep.subr.bf16.mxu0 0
    %8031 = vmatpush1.bf16.msra.mxu0 0
    %8032 = vmatprep.subr.bf16.mxu0 0
    %8033 = vmatpush1.bf16.msra.mxu0 0
    %8034 = vmatprep.subr.bf16.mxu0 0
    %8035 = vmatpush1.bf16.msra.mxu0 0
    %8036 = vmatprep.subr.bf16.mxu0 0
    %8037 = vmatpush1.bf16.msra.mxu0 0
    %8038 = vmatprep.subr.bf16.mxu0 0
    %8039 = vmatpush1.bf16.msra.mxu0 0
    %8040 = vmatprep.subr.bf16.mxu0 0
    %8041 = vmatpush1.bf16.msra.mxu0 0
    %8042 = vmatprep.subr.bf16.mxu0 0
    %8043 = vmatpush1.bf16.msra.mxu0 0
    %8044 = vmatprep.subr.bf16.mxu0 0
    %8045 = vmatpush1.bf16.msra.mxu0 0
    %8046 = vmatprep.subr.bf16.mxu0 0
    %8047 = vmatpush1.bf16.msra.mxu0 0
    %8048 = vmatprep.subr.bf16.mxu0 0
    %8049 = vmatpush1.bf16.msra.mxu0 0
    %8050 = vmatprep.subr.bf16.mxu0 0
    %8051 = vmatpush1.bf16.msra.mxu0 0
    %8052 = vmatprep.subr.bf16.mxu0 0
    %8053 = vmatpush1.bf16.msra.mxu0 0
    %8054 = vmatprep.mubr.bf16.mxu0 0
    %8055 = vmatmul.mubr.bf16.gmra.mrb[0].mxu0 %v8017
    %v8056 = vpop.f32.mrb[0].mxu0
    %v8057 = vadd.f32 0.0, %v8056
    %v8058 = vpop.f32.mrb[0].mxu0
    %v8059 = vpop.f32.mrb[0].mxu0
    %v8060 = vpop.f32.mrb[0].mxu0
    %8061 = vdwg.mxu0
    %8062 = vrot.lane.b32.xlu0 %v7448, 56
    %v8063 = vpop.permute.xlu0 %8062
    %v8065 = vsel %vm1959, %v7965, 0
    %v8068 = vsel %vm7637, %v8063, 0
    %8070 = vmatprep.subr.bf16.mxu0 0
    %8071 = vmatpush1.bf16.msra.mxu0 %v8068
    %8072 = vmatprep.subr.bf16.mxu0 0
    %8073 = vmatpush1.bf16.msra.mxu0 0
    %8074 = vmatprep.subr.bf16.mxu0 0
    %8075 = vmatpush1.bf16.msra.mxu0 0
    %8076 = vmatprep.subr.bf16.mxu0 0
    %8077 = vmatpush1.bf16.msra.mxu0 0
    %8078 = vmatprep.subr.bf16.mxu0 0
    %8079 = vmatpush1.bf16.msra.mxu0 0
    %8080 = vmatprep.subr.bf16.mxu0 0
    %8081 = vmatpush1.bf16.msra.mxu0 0
    %8082 = vmatprep.subr.bf16.mxu0 0
    %8083 = vmatpush1.bf16.msra.mxu0 0
    %8084 = vmatprep.subr.bf16.mxu0 0
    %8085 = vmatpush1.bf16.msra.mxu0 0
    %8086 = vmatprep.subr.bf16.mxu0 0
    %8087 = vmatpush1.bf16.msra.mxu0 0
    %8088 = vmatprep.subr.bf16.mxu0 0
    %8089 = vmatpush1.bf16.msra.mxu0 0
    %8090 = vmatprep.subr.bf16.mxu0 0
    %8091 = vmatpush1.bf16.msra.mxu0 0
    %8092 = vmatprep.subr.bf16.mxu0 0
    %8093 = vmatpush1.bf16.msra.mxu0 0
    %8094 = vmatprep.subr.bf16.mxu0 0
    %8095 = vmatpush1.bf16.msra.mxu0 0
    %8096 = vmatprep.subr.bf16.mxu0 0
    %8097 = vmatpush1.bf16.msra.mxu0 0
    %8098 = vmatprep.subr.bf16.mxu0 0
    %8099 = vmatpush1.bf16.msra.mxu0 0
    %8100 = vmatprep.subr.bf16.mxu0 0
    %8101 = vmatpush1.bf16.msra.mxu0 0
    %8102 = vmatprep.mubr.bf16.mxu0 0
    %8103 = vmatmul.mubr.bf16.gmra.mrb[0].mxu0 %v8065
    %v8104 = vpop.f32.mrb[0].mxu0
    %v8105 = vadd.f32 0.0, %v8104
    %v8106 = vpop.f32.mrb[0].mxu0
    %v8107 = vpop.f32.mrb[0].mxu0
    %v8108 = vpop.f32.mrb[0].mxu0
    %8109 = vdwg.mxu0
    %8110 = vrot.lane.b32.xlu0 %v7443, 112
    %v8111 = vpop.permute.xlu0 %8110
    %8112 = vrot.lane.b32.xlu0 %v7446, 80
    %v8113 = vpop.permute.xlu0 %8112
    %v8115 = vsel %vm1959, %v8111, 0
    %v8118 = vsel %vm1959, %v8113, 0
    %8120 = vmatprep.subr.bf16.mxu0 0
    %8121 = vmatpush1.bf16.xpose.msra.mxu0 %v8118
    %8122 = vmatprep.subr.bf16.mxu0 0
    %8123 = vmatpush1.bf16.xpose.msra.mxu0 0
    %8124 = vmatprep.subr.bf16.mxu0 0
    %8125 = vmatpush1.bf16.xpose.msra.mxu0 0
    %8126 = vmatprep.subr.bf16.mxu0 0
    %8127 = vmatpush1.bf16.xpose.msra.mxu0 0
    %8128 = vmatprep.subr.bf16.mxu0 0
    %8129 = vmatpush1.bf16.xpose.msra.mxu0 0
    %8130 = vmatprep.subr.bf16.mxu0 0
    %8131 = vmatpush1.bf16.xpose.msra.mxu0 0
    %8132 = vmatprep.subr.bf16.mxu0 0
    %8133 = vmatpush1.bf16.xpose.msra.mxu0 0
    %8134 = vmatprep.subr.bf16.mxu0 0
    %8135 = vmatpush1.bf16.xpose.msra.mxu0 0
    %8136 = vmatprep.subr.bf16.mxu0 0
    %8137 = vmatpush1.bf16.xpose.msra.mxu0 0
    %8138 = vmatprep.subr.bf16.mxu0 0
    %8139 = vmatpush1.bf16.xpose.msra.mxu0 0
    %8140 = vmatprep.subr.bf16.mxu0 0
    %8141 = vmatpush1.bf16.xpose.msra.mxu0 0
    %8142 = vmatprep.subr.bf16.mxu0 0
    %8143 = vmatpush1.bf16.xpose.msra.mxu0 0
    %8144 = vmatprep.subr.bf16.mxu0 0
    %8145 = vmatpush1.bf16.xpose.msra.mxu0 0
    %8146 = vmatprep.subr.bf16.mxu0 0
    %8147 = vmatpush1.bf16.xpose.msra.mxu0 0
    %8148 = vmatprep.subr.bf16.mxu0 0
    %8149 = vmatpush1.bf16.xpose.msra.mxu0 0
    %8150 = vmatprep.subr.bf16.mxu0 0
    %8151 = vmatpush1.bf16.xpose.msra.mxu0 0
    %8152 = vmatprep.mubr.bf16.mxu0 0
    %8153 = vmatmul.mubr.bf16.gmra.mrb[0].mxu0 %v8115
    %v8154 = vpop.f32.mrb[0].mxu0
    %v8155 = vadd.f32 %v7301, %v8154
    %v8156 = vpop.f32.mrb[0].mxu0
    %v8157 = vpop.f32.mrb[0].mxu0
    %v8158 = vpop.f32.mrb[0].mxu0
    %8159 = vdwg.mxu0
    %8160 = vrot.lane.b32.xlu0 %v7444, 112
    %v8161 = vpop.permute.xlu0 %8160
    %8162 = vrot.lane.b32.xlu0 %v7447, 80
    %v8163 = vpop.permute.xlu0 %8162
    %v8165 = vsel %vm1959, %v8161, 0
    %v8168 = vsel %vm1959, %v8163, 0
    %8170 = vmatprep.subr.bf16.mxu0 0
    %8171 = vmatpush1.bf16.xpose.msra.mxu0 %v8168
    %8172 = vmatprep.subr.bf16.mxu0 0
    %8173 = vmatpush1.bf16.xpose.msra.mxu0 0
    %8174 = vmatprep.subr.bf16.mxu0 0
    %8175 = vmatpush1.bf16.xpose.msra.mxu0 0
    %8176 = vmatprep.subr.bf16.mxu0 0
    %8177 = vmatpush1.bf16.xpose.msra.mxu0 0
    %8178 = vmatprep.subr.bf16.mxu0 0
    %8179 = vmatpush1.bf16.xpose.msra.mxu0 0
    %8180 = vmatprep.subr.bf16.mxu0 0
    %8181 = vmatpush1.bf16.xpose.msra.mxu0 0
    %8182 = vmatprep.subr.bf16.mxu0 0
    %8183 = vmatpush1.bf16.xpose.msra.mxu0 0
    %8184 = vmatprep.subr.bf16.mxu0 0
    %8185 = vmatpush1.bf16.xpose.msra.mxu0 0
    %8186 = vmatprep.subr.bf16.mxu0 0
    %8187 = vmatpush1.bf16.xpose.msra.mxu0 0
    %8188 = vmatprep.subr.bf16.mxu0 0
    %8189 = vmatpush1.bf16.xpose.msra.mxu0 0
    %8190 = vmatprep.subr.bf16.mxu0 0
    %8191 = vmatpush1.bf16.xpose.msra.mxu0 0
    %8192 = vmatprep.subr.bf16.mxu0 0
    %8193 = vmatpush1.bf16.xpose.msra.mxu0 0
    %8194 = vmatprep.subr.bf16.mxu0 0
    %8195 = vmatpush1.bf16.xpose.msra.mxu0 0
    %8196 = vmatprep.subr.bf16.mxu0 0
    %8197 = vmatpush1.bf16.xpose.msra.mxu0 0
    %8198 = vmatprep.subr.bf16.mxu0 0
    %8199 = vmatpush1.bf16.xpose.msra.mxu0 0
    %8200 = vmatprep.subr.bf16.mxu0 0
    %8201 = vmatpush1.bf16.xpose.msra.mxu0 0
    %8202 = vmatprep.mubr.bf16.mxu0 0
    %8203 = vmatmul.mubr.bf16.gmra.mrb[0].mxu0 %v8165
    %v8204 = vpop.f32.mrb[0].mxu0
    %v8205 = vadd.f32 %v7301, %v8204
    %v8206 = vpop.f32.mrb[0].mxu0
    %v8207 = vpop.f32.mrb[0].mxu0
    %v8208 = vpop.f32.mrb[0].mxu0
    %8209 = vdwg.mxu0
    %8210 = vrot.lane.b32.xlu0 %v7445, 112
    %v8211 = vpop.permute.xlu0 %8210
    %8212 = vrot.lane.b32.xlu0 %v7448, 80
    %v8213 = vpop.permute.xlu0 %8212
    %v8215 = vsel %vm1959, %v8211, 0
    %v8218 = vsel %vm1959, %v8213, 0
    %8220 = vmatprep.subr.bf16.mxu0 0
    %8221 = vmatpush1.bf16.xpose.msra.mxu0 %v8218
    %8222 = vmatprep.subr.bf16.mxu0 0
    %8223 = vmatpush1.bf16.xpose.msra.mxu0 0
    %8224 = vmatprep.subr.bf16.mxu0 0
    %8225 = vmatpush1.bf16.xpose.msra.mxu0 0
    %8226 = vmatprep.subr.bf16.mxu0 0
    %8227 = vmatpush1.bf16.xpose.msra.mxu0 0
    %8228 = vmatprep.subr.bf16.mxu0 0
    %8229 = vmatpush1.bf16.xpose.msra.mxu0 0
    %8230 = vmatprep.subr.bf16.mxu0 0
    %8231 = vmatpush1.bf16.xpose.msra.mxu0 0
    %8232 = vmatprep.subr.bf16.mxu0 0
    %8233 = vmatpush1.bf16.xpose.msra.mxu0 0
    %8234 = vmatprep.subr.bf16.mxu0 0
    %8235 = vmatpush1.bf16.xpose.msra.mxu0 0
    %8236 = vmatprep.subr.bf16.mxu0 0
    %8237 = vmatpush1.bf16.xpose.msra.mxu0 0
    %8238 = vmatprep.subr.bf16.mxu0 0
    %8239 = vmatpush1.bf16.xpose.msra.mxu0 0
    %8240 = vmatprep.subr.bf16.mxu0 0
    %8241 = vmatpush1.bf16.xpose.msra.mxu0 0
    %8242 = vmatprep.subr.bf16.mxu0 0
    %8243 = vmatpush1.bf16.xpose.msra.mxu0 0
    %8244 = vmatprep.subr.bf16.mxu0 0
    %8245 = vmatpush1.bf16.xpose.msra.mxu0 0
    %8246 = vmatprep.subr.bf16.mxu0 0
    %8247 = vmatpush1.bf16.xpose.msra.mxu0 0
    %8248 = vmatprep.subr.bf16.mxu0 0
    %8249 = vmatpush1.bf16.xpose.msra.mxu0 0
    %8250 = vmatprep.subr.bf16.mxu0 0
    %8251 = vmatpush1.bf16.xpose.msra.mxu0 0
    %8252 = vmatprep.mubr.bf16.mxu0 0
    %8253 = vmatmul.mubr.bf16.gmra.mrb[0].mxu0 %v8215
    %v8254 = vpop.f32.mrb[0].mxu0
    %v8255 = vadd.f32 %v7301, %v8254
    %v8256 = vpop.f32.mrb[0].mxu0
    %v8257 = vpop.f32.mrb[0].mxu0
    %v8258 = vpop.f32.mrb[0].mxu0
    %8259 = vdwg.mxu0
    %v8260 = vsel %vm1959, %v8155, -inf
    %8261 = vmax.xlane.f32.xlu0 %v8260
    %v8262 = vpop.xlane.xlu0 %8261
    %v8263 = vsel %vm1959, %v8205, -inf
    %8264 = vmax.xlane.f32.xlu0 %v8263
    %v8265 = vpop.xlane.xlu0 %8264
    %v8266 = vsel %vm1959, %v8255, -inf
    %8267 = vmax.xlane.f32.xlu0 %v8266
    %v8268 = vpop.xlane.xlu0 %8267
    %v8269 = vsub.f32 %v8155, %v8262
    %v8270 = vsub.f32 %v8205, %v8265
    %v8271 = vsub.f32 %v8255, %v8268
    %v8272 = vmul.f32 %v8269, 1.442695
    %v8273 = vpow.pop %v8272
    %v8274 = vmul.f32 %v8270, 1.442695
    %v8275 = vpow.pop %v8274
    %v8276 = vmul.f32 %v8271, 1.442695
    %v8277 = vpow.pop %v8276
    %v8278 = vsel %vm1959, %v8273, 0.0
    %8279 = vadd.xlane.f32.xlu0 %v8278
    %v8280 = vpop.xlane.xlu0 %8279
    %v8281 = vsel %vm1959, %v8275, 0.0
    %8282 = vadd.xlane.f32.xlu0 %v8281
    %v8283 = vpop.xlane.xlu0 %8282
    %v8284 = vsel %vm1959, %v8277, 0.0
    %8285 = vadd.xlane.f32.xlu0 %v8284
    %v8286 = vpop.xlane.xlu0 %8285
    %v8287 = vrcp.pop %v8280
    %v8288 = vrcp.pop %v8283
    %v8289 = vrcp.pop %v8286
    %v8290 = vmul.f32 %v8273, %v8287
    %v8291 = vmul.f32 %v8275, %v8288
    %v8292 = vmul.f32 %v8277, %v8289
    %v8293 = vpack.c.bf16 %v8290, %v8290
    %v8294 = vpack.c.bf16 %v8291, %v8291
    %v8295 = vpack.c.bf16 %v8292, %v8292
    %8296 = vrot.lane.b32.xlu0 %v7446, 48
    %v8297 = vpop.permute.xlu0 %8296
    %v8299 = vsel %vm1959, %v8293, 0
    %v8302 = vsel %vm7637, %v8297, 0
    %8304 = vmatprep.subr.bf16.mxu0 0
    %8305 = vmatpush1.bf16.msra.mxu0 %v8302
    %8306 = vmatprep.subr.bf16.mxu0 0
    %8307 = vmatpush1.bf16.msra.mxu0 0
    %8308 = vmatprep.subr.bf16.mxu0 0
    %8309 = vmatpush1.bf16.msra.mxu0 0
    %8310 = vmatprep.subr.bf16.mxu0 0
    %8311 = vmatpush1.bf16.msra.mxu0 0
    %8312 = vmatprep.subr.bf16.mxu0 0
    %8313 = vmatpush1.bf16.msra.mxu0 0
    %8314 = vmatprep.subr.bf16.mxu0 0
    %8315 = vmatpush1.bf16.msra.mxu0 0
    %8316 = vmatprep.subr.bf16.mxu0 0
    %8317 = vmatpush1.bf16.msra.mxu0 0
    %8318 = vmatprep.subr.bf16.mxu0 0
    %8319 = vmatpush1.bf16.msra.mxu0 0
    %8320 = vmatprep.subr.bf16.mxu0 0
    %8321 = vmatpush1.bf16.msra.mxu0 0
    %8322 = vmatprep.subr.bf16.mxu0 0
    %8323 = vmatpush1.bf16.msra.mxu0 0
    %8324 = vmatprep.subr.bf16.mxu0 0
    %8325 = vmatpush1.bf16.msra.mxu0 0
    %8326 = vmatprep.subr.bf16.mxu0 0
    %8327 = vmatpush1.bf16.msra.mxu0 0
    %8328 = vmatprep.subr.bf16.mxu0 0
    %8329 = vmatpush1.bf16.msra.mxu0 0
    %8330 = vmatprep.subr.bf16.mxu0 0
    %8331 = vmatpush1.bf16.msra.mxu0 0
    %8332 = vmatprep.subr.bf16.mxu0 0
    %8333 = vmatpush1.bf16.msra.mxu0 0
    %8334 = vmatprep.subr.bf16.mxu0 0
    %8335 = vmatpush1.bf16.msra.mxu0 0
    %8336 = vmatprep.mubr.bf16.mxu0 0
    %8337 = vmatmul.mubr.bf16.gmra.mrb[0].mxu0 %v8299
    %v8338 = vpop.f32.mrb[0].mxu0
    %v8339 = vadd.f32 0.0, %v8338
    %v8340 = vpop.f32.mrb[0].mxu0
    %v8341 = vpop.f32.mrb[0].mxu0
    %v8342 = vpop.f32.mrb[0].mxu0
    %8343 = vdwg.mxu0
    %8344 = vrot.lane.b32.xlu0 %v7447, 48
    %v8345 = vpop.permute.xlu0 %8344
    %v8347 = vsel %vm1959, %v8294, 0
    %v8350 = vsel %vm7637, %v8345, 0
    %8352 = vmatprep.subr.bf16.mxu0 0
    %8353 = vmatpush1.bf16.msra.mxu0 %v8350
    %8354 = vmatprep.subr.bf16.mxu0 0
    %8355 = vmatpush1.bf16.msra.mxu0 0
    %8356 = vmatprep.subr.bf16.mxu0 0
    %8357 = vmatpush1.bf16.msra.mxu0 0
    %8358 = vmatprep.subr.bf16.mxu0 0
    %8359 = vmatpush1.bf16.msra.mxu0 0
    %8360 = vmatprep.subr.bf16.mxu0 0
    %8361 = vmatpush1.bf16.msra.mxu0 0
    %8362 = vmatprep.subr.bf16.mxu0 0
    %8363 = vmatpush1.bf16.msra.mxu0 0
    %8364 = vmatprep.subr.bf16.mxu0 0
    %8365 = vmatpush1.bf16.msra.mxu0 0
    %8366 = vmatprep.subr.bf16.mxu0 0
    %8367 = vmatpush1.bf16.msra.mxu0 0
    %8368 = vmatprep.subr.bf16.mxu0 0
    %8369 = vmatpush1.bf16.msra.mxu0 0
    %8370 = vmatprep.subr.bf16.mxu0 0
    %8371 = vmatpush1.bf16.msra.mxu0 0
    %8372 = vmatprep.subr.bf16.mxu0 0
    %8373 = vmatpush1.bf16.msra.mxu0 0
    %8374 = vmatprep.subr.bf16.mxu0 0
    %8375 = vmatpush1.bf16.msra.mxu0 0
    %8376 = vmatprep.subr.bf16.mxu0 0
    %8377 = vmatpush1.bf16.msra.mxu0 0
    %8378 = vmatprep.subr.bf16.mxu0 0
    %8379 = vmatpush1.bf16.msra.mxu0 0
    %8380 = vmatprep.subr.bf16.mxu0 0
    %8381 = vmatpush1.bf16.msra.mxu0 0
    %8382 = vmatprep.subr.bf16.mxu0 0
    %8383 = vmatpush1.bf16.msra.mxu0 0
    %8384 = vmatprep.mubr.bf16.mxu0 0
    %8385 = vmatmul.mubr.bf16.gmra.mrb[0].mxu0 %v8347
    %v8386 = vpop.f32.mrb[0].mxu0
    %v8387 = vadd.f32 0.0, %v8386
    %v8388 = vpop.f32.mrb[0].mxu0
    %v8389 = vpop.f32.mrb[0].mxu0
    %v8390 = vpop.f32.mrb[0].mxu0
    %8391 = vdwg.mxu0
    %8392 = vrot.lane.b32.xlu0 %v7448, 48
    %v8393 = vpop.permute.xlu0 %8392
    %v8395 = vsel %vm1959, %v8295, 0
    %v8398 = vsel %vm7637, %v8393, 0
    %8400 = vmatprep.subr.bf16.mxu0 0
    %8401 = vmatpush1.bf16.msra.mxu0 %v8398
    %8402 = vmatprep.subr.bf16.mxu0 0
    %8403 = vmatpush1.bf16.msra.mxu0 0
    %8404 = vmatprep.subr.bf16.mxu0 0
    %8405 = vmatpush1.bf16.msra.mxu0 0
    %8406 = vmatprep.subr.bf16.mxu0 0
    %8407 = vmatpush1.bf16.msra.mxu0 0
    %8408 = vmatprep.subr.bf16.mxu0 0
    %8409 = vmatpush1.bf16.msra.mxu0 0
    %8410 = vmatprep.subr.bf16.mxu0 0
    %8411 = vmatpush1.bf16.msra.mxu0 0
    %8412 = vmatprep.subr.bf16.mxu0 0
    %8413 = vmatpush1.bf16.msra.mxu0 0
    %8414 = vmatprep.subr.bf16.mxu0 0
    %8415 = vmatpush1.bf16.msra.mxu0 0
    %8416 = vmatprep.subr.bf16.mxu0 0
    %8417 = vmatpush1.bf16.msra.mxu0 0
    %8418 = vmatprep.subr.bf16.mxu0 0
    %8419 = vmatpush1.bf16.msra.mxu0 0
    %8420 = vmatprep.subr.bf16.mxu0 0
    %8421 = vmatpush1.bf16.msra.mxu0 0
    %8422 = vmatprep.subr.bf16.mxu0 0
    %8423 = vmatpush1.bf16.msra.mxu0 0
    %8424 = vmatprep.subr.bf16.mxu0 0
    %8425 = vmatpush1.bf16.msra.mxu0 0
    %8426 = vmatprep.subr.bf16.mxu0 0
    %8427 = vmatpush1.bf16.msra.mxu0 0
    %8428 = vmatprep.subr.bf16.mxu0 0
    %8429 = vmatpush1.bf16.msra.mxu0 0
    %8430 = vmatprep.subr.bf16.mxu0 0
    %8431 = vmatpush1.bf16.msra.mxu0 0
    %8432 = vmatprep.mubr.bf16.mxu0 0
    %8433 = vmatmul.mubr.bf16.gmra.mrb[0].mxu0 %v8395
    %v8434 = vpop.f32.mrb[0].mxu0
    %v8435 = vadd.f32 0.0, %v8434
    %v8436 = vpop.f32.mrb[0].mxu0
    %v8437 = vpop.f32.mrb[0].mxu0
    %v8438 = vpop.f32.mrb[0].mxu0
    %8439 = vdwg.mxu0
    %8440 = vrot.lane.b32.xlu0 %v7443, 104
    %v8441 = vpop.permute.xlu0 %8440
    %8442 = vrot.lane.b32.xlu0 %v7446, 72
    %v8443 = vpop.permute.xlu0 %8442
    %v8445 = vsel %vm1959, %v8441, 0
    %v8448 = vsel %vm1959, %v8443, 0
    %8450 = vmatprep.subr.bf16.mxu0 0
    %8451 = vmatpush1.bf16.xpose.msra.mxu0 %v8448
    %8452 = vmatprep.subr.bf16.mxu0 0
    %8453 = vmatpush1.bf16.xpose.msra.mxu0 0
    %8454 = vmatprep.subr.bf16.mxu0 0
    %8455 = vmatpush1.bf16.xpose.msra.mxu0 0
    %8456 = vmatprep.subr.bf16.mxu0 0
    %8457 = vmatpush1.bf16.xpose.msra.mxu0 0
    %8458 = vmatprep.subr.bf16.mxu0 0
    %8459 = vmatpush1.bf16.xpose.msra.mxu0 0
    %8460 = vmatprep.subr.bf16.mxu0 0
    %8461 = vmatpush1.bf16.xpose.msra.mxu0 0
    %8462 = vmatprep.subr.bf16.mxu0 0
    %8463 = vmatpush1.bf16.xpose.msra.mxu0 0
    %8464 = vmatprep.subr.bf16.mxu0 0
    %8465 = vmatpush1.bf16.xpose.msra.mxu0 0
    %8466 = vmatprep.subr.bf16.mxu0 0
    %8467 = vmatpush1.bf16.xpose.msra.mxu0 0
    %8468 = vmatprep.subr.bf16.mxu0 0
    %8469 = vmatpush1.bf16.xpose.msra.mxu0 0
    %8470 = vmatprep.subr.bf16.mxu0 0
    %8471 = vmatpush1.bf16.xpose.msra.mxu0 0
    %8472 = vmatprep.subr.bf16.mxu0 0
    %8473 = vmatpush1.bf16.xpose.msra.mxu0 0
    %8474 = vmatprep.subr.bf16.mxu0 0
    %8475 = vmatpush1.bf16.xpose.msra.mxu0 0
    %8476 = vmatprep.subr.bf16.mxu0 0
    %8477 = vmatpush1.bf16.xpose.msra.mxu0 0
    %8478 = vmatprep.subr.bf16.mxu0 0
    %8479 = vmatpush1.bf16.xpose.msra.mxu0 0
    %8480 = vmatprep.subr.bf16.mxu0 0
    %8481 = vmatpush1.bf16.xpose.msra.mxu0 0
    %8482 = vmatprep.mubr.bf16.mxu0 0
    %8483 = vmatmul.mubr.bf16.gmra.mrb[0].mxu0 %v8445
    %v8484 = vpop.f32.mrb[0].mxu0
    %v8485 = vadd.f32 %v7301, %v8484
    %v8486 = vpop.f32.mrb[0].mxu0
    %v8487 = vpop.f32.mrb[0].mxu0
    %v8488 = vpop.f32.mrb[0].mxu0
    %8489 = vdwg.mxu0
    %8490 = vrot.lane.b32.xlu0 %v7444, 104
    %v8491 = vpop.permute.xlu0 %8490
    %8492 = vrot.lane.b32.xlu0 %v7447, 72
    %v8493 = vpop.permute.xlu0 %8492
    %v8495 = vsel %vm1959, %v8491, 0
    %v8498 = vsel %vm1959, %v8493, 0
    %8500 = vmatprep.subr.bf16.mxu0 0
    %8501 = vmatpush1.bf16.xpose.msra.mxu0 %v8498
    %8502 = vmatprep.subr.bf16.mxu0 0
    %8503 = vmatpush1.bf16.xpose.msra.mxu0 0
    %8504 = vmatprep.subr.bf16.mxu0 0
    %8505 = vmatpush1.bf16.xpose.msra.mxu0 0
    %8506 = vmatprep.subr.bf16.mxu0 0
    %8507 = vmatpush1.bf16.xpose.msra.mxu0 0
    %8508 = vmatprep.subr.bf16.mxu0 0
    %8509 = vmatpush1.bf16.xpose.msra.mxu0 0
    %8510 = vmatprep.subr.bf16.mxu0 0
    %8511 = vmatpush1.bf16.xpose.msra.mxu0 0
    %8512 = vmatprep.subr.bf16.mxu0 0
    %8513 = vmatpush1.bf16.xpose.msra.mxu0 0
    %8514 = vmatprep.subr.bf16.mxu0 0
    %8515 = vmatpush1.bf16.xpose.msra.mxu0 0
    %8516 = vmatprep.subr.bf16.mxu0 0
    %8517 = vmatpush1.bf16.xpose.msra.mxu0 0
    %8518 = vmatprep.subr.bf16.mxu0 0
    %8519 = vmatpush1.bf16.xpose.msra.mxu0 0
    %8520 = vmatprep.subr.bf16.mxu0 0
    %8521 = vmatpush1.bf16.xpose.msra.mxu0 0
    %8522 = vmatprep.subr.bf16.mxu0 0
    %8523 = vmatpush1.bf16.xpose.msra.mxu0 0
    %8524 = vmatprep.subr.bf16.mxu0 0
    %8525 = vmatpush1.bf16.xpose.msra.mxu0 0
    %8526 = vmatprep.subr.bf16.mxu0 0
    %8527 = vmatpush1.bf16.xpose.msra.mxu0 0
    %8528 = vmatprep.subr.bf16.mxu0 0
    %8529 = vmatpush1.bf16.xpose.msra.mxu0 0
    %8530 = vmatprep.subr.bf16.mxu0 0
    %8531 = vmatpush1.bf16.xpose.msra.mxu0 0
    %8532 = vmatprep.mubr.bf16.mxu0 0
    %8533 = vmatmul.mubr.bf16.gmra.mrb[0].mxu0 %v8495
    %v8534 = vpop.f32.mrb[0].mxu0
    %v8535 = vadd.f32 %v7301, %v8534
    %v8536 = vpop.f32.mrb[0].mxu0
    %v8537 = vpop.f32.mrb[0].mxu0
    %v8538 = vpop.f32.mrb[0].mxu0
    %8539 = vdwg.mxu0
    %8540 = vrot.lane.b32.xlu0 %v7445, 104
    %v8541 = vpop.permute.xlu0 %8540
    %8542 = vrot.lane.b32.xlu0 %v7448, 72
    %v8543 = vpop.permute.xlu0 %8542
    %v8545 = vsel %vm1959, %v8541, 0
    %v8548 = vsel %vm1959, %v8543, 0
    %8550 = vmatprep.subr.bf16.mxu0 0
    %8551 = vmatpush1.bf16.xpose.msra.mxu0 %v8548
    %8552 = vmatprep.subr.bf16.mxu0 0
    %8553 = vmatpush1.bf16.xpose.msra.mxu0 0
    %8554 = vmatprep.subr.bf16.mxu0 0
    %8555 = vmatpush1.bf16.xpose.msra.mxu0 0
    %8556 = vmatprep.subr.bf16.mxu0 0
    %8557 = vmatpush1.bf16.xpose.msra.mxu0 0
    %8558 = vmatprep.subr.bf16.mxu0 0
    %8559 = vmatpush1.bf16.xpose.msra.mxu0 0
    %8560 = vmatprep.subr.bf16.mxu0 0
    %8561 = vmatpush1.bf16.xpose.msra.mxu0 0
    %8562 = vmatprep.subr.bf16.mxu0 0
    %8563 = vmatpush1.bf16.xpose.msra.mxu0 0
    %8564 = vmatprep.subr.bf16.mxu0 0
    %8565 = vmatpush1.bf16.xpose.msra.mxu0 0
    %8566 = vmatprep.subr.bf16.mxu0 0
    %8567 = vmatpush1.bf16.xpose.msra.mxu0 0
    %8568 = vmatprep.subr.bf16.mxu0 0
    %8569 = vmatpush1.bf16.xpose.msra.mxu0 0
    %8570 = vmatprep.subr.bf16.mxu0 0
    %8571 = vmatpush1.bf16.xpose.msra.mxu0 0
    %8572 = vmatprep.subr.bf16.mxu0 0
    %8573 = vmatpush1.bf16.xpose.msra.mxu0 0
    %8574 = vmatprep.subr.bf16.mxu0 0
    %8575 = vmatpush1.bf16.xpose.msra.mxu0 0
    %8576 = vmatprep.subr.bf16.mxu0 0
    %8577 = vmatpush1.bf16.xpose.msra.mxu0 0
    %8578 = vmatprep.subr.bf16.mxu0 0
    %8579 = vmatpush1.bf16.xpose.msra.mxu0 0
    %8580 = vmatprep.subr.bf16.mxu0 0
    %8581 = vmatpush1.bf16.xpose.msra.mxu0 0
    %8582 = vmatprep.mubr.bf16.mxu0 0
    %8583 = vmatmul.mubr.bf16.gmra.mrb[0].mxu0 %v8545
    %v8584 = vpop.f32.mrb[0].mxu0
    %v8585 = vadd.f32 %v7301, %v8584
    %v8586 = vpop.f32.mrb[0].mxu0
    %v8587 = vpop.f32.mrb[0].mxu0
    %v8588 = vpop.f32.mrb[0].mxu0
    %8589 = vdwg.mxu0
    %v8590 = vsel %vm1959, %v8485, -inf
    %8591 = vmax.xlane.f32.xlu0 %v8590
    %v8592 = vpop.xlane.xlu0 %8591
    %v8593 = vsel %vm1959, %v8535, -inf
    %8594 = vmax.xlane.f32.xlu0 %v8593
    %v8595 = vpop.xlane.xlu0 %8594
    %v8596 = vsel %vm1959, %v8585, -inf
    %8597 = vmax.xlane.f32.xlu0 %v8596
    %v8598 = vpop.xlane.xlu0 %8597
    %v8599 = vsub.f32 %v8485, %v8592
    %v8600 = vsub.f32 %v8535, %v8595
    %v8601 = vsub.f32 %v8585, %v8598
    %v8602 = vmul.f32 %v8599, 1.442695
    %v8603 = vpow.pop %v8602
    %v8604 = vmul.f32 %v8600, 1.442695
    %v8605 = vpow.pop %v8604
    %v8606 = vmul.f32 %v8601, 1.442695
    %v8607 = vpow.pop %v8606
    %v8608 = vsel %vm1959, %v8603, 0.0
    %8609 = vadd.xlane.f32.xlu0 %v8608
    %v8610 = vpop.xlane.xlu0 %8609
    %v8611 = vsel %vm1959, %v8605, 0.0
    %8612 = vadd.xlane.f32.xlu0 %v8611
    %v8613 = vpop.xlane.xlu0 %8612
    %v8614 = vsel %vm1959, %v8607, 0.0
    %8615 = vadd.xlane.f32.xlu0 %v8614
    %v8616 = vpop.xlane.xlu0 %8615
    %v8617 = vrcp.pop %v8610
    %v8618 = vrcp.pop %v8613
    %v8619 = vrcp.pop %v8616
    %v8620 = vmul.f32 %v8603, %v8617
    %v8621 = vmul.f32 %v8605, %v8618
    %v8622 = vmul.f32 %v8607, %v8619
    %v8623 = vpack.c.bf16 %v8620, %v8620
    %v8624 = vpack.c.bf16 %v8621, %v8621
    %v8625 = vpack.c.bf16 %v8622, %v8622
    %8626 = vrot.lane.b32.xlu0 %v7446, 40
    %v8627 = vpop.permute.xlu0 %8626
    %v8629 = vsel %vm1959, %v8623, 0
    %v8632 = vsel %vm7637, %v8627, 0
    %8634 = vmatprep.subr.bf16.mxu0 0
    %8635 = vmatpush1.bf16.msra.mxu0 %v8632
    %8636 = vmatprep.subr.bf16.mxu0 0
    %8637 = vmatpush1.bf16.msra.mxu0 0
    %8638 = vmatprep.subr.bf16.mxu0 0
    %8639 = vmatpush1.bf16.msra.mxu0 0
    %8640 = vmatprep.subr.bf16.mxu0 0
    %8641 = vmatpush1.bf16.msra.mxu0 0
    %8642 = vmatprep.subr.bf16.mxu0 0
    %8643 = vmatpush1.bf16.msra.mxu0 0
    %8644 = vmatprep.subr.bf16.mxu0 0
    %8645 = vmatpush1.bf16.msra.mxu0 0
    %8646 = vmatprep.subr.bf16.mxu0 0
    %8647 = vmatpush1.bf16.msra.mxu0 0
    %8648 = vmatprep.subr.bf16.mxu0 0
    %8649 = vmatpush1.bf16.msra.mxu0 0
    %8650 = vmatprep.subr.bf16.mxu0 0
    %8651 = vmatpush1.bf16.msra.mxu0 0
    %8652 = vmatprep.subr.bf16.mxu0 0
    %8653 = vmatpush1.bf16.msra.mxu0 0
    %8654 = vmatprep.subr.bf16.mxu0 0
    %8655 = vmatpush1.bf16.msra.mxu0 0
    %8656 = vmatprep.subr.bf16.mxu0 0
    %8657 = vmatpush1.bf16.msra.mxu0 0
    %8658 = vmatprep.subr.bf16.mxu0 0
    %8659 = vmatpush1.bf16.msra.mxu0 0
    %8660 = vmatprep.subr.bf16.mxu0 0
    %8661 = vmatpush1.bf16.msra.mxu0 0
    %8662 = vmatprep.subr.bf16.mxu0 0
    %8663 = vmatpush1.bf16.msra.mxu0 0
    %8664 = vmatprep.subr.bf16.mxu0 0
    %8665 = vmatpush1.bf16.msra.mxu0 0
    %8666 = vmatprep.mubr.bf16.mxu0 0
    %8667 = vmatmul.mubr.bf16.gmra.mrb[0].mxu0 %v8629
    %v8668 = vpop.f32.mrb[0].mxu0
    %v8669 = vadd.f32 0.0, %v8668
    %v8670 = vpop.f32.mrb[0].mxu0
    %v8671 = vpop.f32.mrb[0].mxu0
    %v8672 = vpop.f32.mrb[0].mxu0
    %8673 = vdwg.mxu0
    %8674 = vrot.lane.b32.xlu0 %v7447, 40
    %v8675 = vpop.permute.xlu0 %8674
    %v8677 = vsel %vm1959, %v8624, 0
    %v8680 = vsel %vm7637, %v8675, 0
    %8682 = vmatprep.subr.bf16.mxu0 0
    %8683 = vmatpush1.bf16.msra.mxu0 %v8680
    %8684 = vmatprep.subr.bf16.mxu0 0
    %8685 = vmatpush1.bf16.msra.mxu0 0
    %8686 = vmatprep.subr.bf16.mxu0 0
    %8687 = vmatpush1.bf16.msra.mxu0 0
    %8688 = vmatprep.subr.bf16.mxu0 0
    %8689 = vmatpush1.bf16.msra.mxu0 0
    %8690 = vmatprep.subr.bf16.mxu0 0
    %8691 = vmatpush1.bf16.msra.mxu0 0
    %8692 = vmatprep.subr.bf16.mxu0 0
    %8693 = vmatpush1.bf16.msra.mxu0 0
    %8694 = vmatprep.subr.bf16.mxu0 0
    %8695 = vmatpush1.bf16.msra.mxu0 0
    %8696 = vmatprep.subr.bf16.mxu0 0
    %8697 = vmatpush1.bf16.msra.mxu0 0
    %8698 = vmatprep.subr.bf16.mxu0 0
    %8699 = vmatpush1.bf16.msra.mxu0 0
    %8700 = vmatprep.subr.bf16.mxu0 0
    %8701 = vmatpush1.bf16.msra.mxu0 0
    %8702 = vmatprep.subr.bf16.mxu0 0
    %8703 = vmatpush1.bf16.msra.mxu0 0
    %8704 = vmatprep.subr.bf16.mxu0 0
    %8705 = vmatpush1.bf16.msra.mxu0 0
    %8706 = vmatprep.subr.bf16.mxu0 0
    %8707 = vmatpush1.bf16.msra.mxu0 0
    %8708 = vmatprep.subr.bf16.mxu0 0
    %8709 = vmatpush1.bf16.msra.mxu0 0
    %8710 = vmatprep.subr.bf16.mxu0 0
    %8711 = vmatpush1.bf16.msra.mxu0 0
    %8712 = vmatprep.subr.bf16.mxu0 0
    %8713 = vmatpush1.bf16.msra.mxu0 0
    %8714 = vmatprep.mubr.bf16.mxu0 0
    %8715 = vmatmul.mubr.bf16.gmra.mrb[0].mxu0 %v8677
    %v8716 = vpop.f32.mrb[0].mxu0
    %v8717 = vadd.f32 0.0, %v8716
    %v8718 = vpop.f32.mrb[0].mxu0
    %v8719 = vpop.f32.mrb[0].mxu0
    %v8720 = vpop.f32.mrb[0].mxu0
    %8721 = vdwg.mxu0
    %8722 = vrot.lane.b32.xlu0 %v7448, 40
    %v8723 = vpop.permute.xlu0 %8722
    %v8725 = vsel %vm1959, %v8625, 0
    %v8728 = vsel %vm7637, %v8723, 0
    %8730 = vmatprep.subr.bf16.mxu0 0
    %8731 = vmatpush1.bf16.msra.mxu0 %v8728
    %8732 = vmatprep.subr.bf16.mxu0 0
    %8733 = vmatpush1.bf16.msra.mxu0 0
    %8734 = vmatprep.subr.bf16.mxu0 0
    %8735 = vmatpush1.bf16.msra.mxu0 0
    %8736 = vmatprep.subr.bf16.mxu0 0
    %8737 = vmatpush1.bf16.msra.mxu0 0
    %8738 = vmatprep.subr.bf16.mxu0 0
    %8739 = vmatpush1.bf16.msra.mxu0 0
    %8740 = vmatprep.subr.bf16.mxu0 0
    %8741 = vmatpush1.bf16.msra.mxu0 0
    %8742 = vmatprep.subr.bf16.mxu0 0
    %8743 = vmatpush1.bf16.msra.mxu0 0
    %8744 = vmatprep.subr.bf16.mxu0 0
    %8745 = vmatpush1.bf16.msra.mxu0 0
    %8746 = vmatprep.subr.bf16.mxu0 0
    %8747 = vmatpush1.bf16.msra.mxu0 0
    %8748 = vmatprep.subr.bf16.mxu0 0
    %8749 = vmatpush1.bf16.msra.mxu0 0
    %8750 = vmatprep.subr.bf16.mxu0 0
    %8751 = vmatpush1.bf16.msra.mxu0 0
    %8752 = vmatprep.subr.bf16.mxu0 0
    %8753 = vmatpush1.bf16.msra.mxu0 0
    %8754 = vmatprep.subr.bf16.mxu0 0
    %8755 = vmatpush1.bf16.msra.mxu0 0
    %8756 = vmatprep.subr.bf16.mxu0 0
    %8757 = vmatpush1.bf16.msra.mxu0 0
    %8758 = vmatprep.subr.bf16.mxu0 0
    %8759 = vmatpush1.bf16.msra.mxu0 0
    %8760 = vmatprep.subr.bf16.mxu0 0
    %8761 = vmatpush1.bf16.msra.mxu0 0
    %8762 = vmatprep.mubr.bf16.mxu0 0
    %8763 = vmatmul.mubr.bf16.gmra.mrb[0].mxu0 %v8725
    %v8764 = vpop.f32.mrb[0].mxu0
    %v8765 = vadd.f32 0.0, %v8764
    %v8766 = vpop.f32.mrb[0].mxu0
    %v8767 = vpop.f32.mrb[0].mxu0
    %v8768 = vpop.f32.mrb[0].mxu0
    %8769 = vdwg.mxu0
    %8773 = vrot.lane.b32.xlu0 %v8009, 8
    %v8774 = vpop.permute.xlu0 %8773
    %8775 = vrot.lane.b32.xlu0 %v8057, 8
    %v8776 = vpop.permute.xlu0 %8775
    %8777 = vrot.lane.b32.xlu0 %v8105, 8
    %v8778 = vpop.permute.xlu0 %8777
    %8785 = vrot.lane.b32.xlu0 %v8339, 16
    %v8786 = vpop.permute.xlu0 %8785
    %8787 = vrot.lane.b32.xlu0 %v8387, 16
    %v8788 = vpop.permute.xlu0 %8787
    %8789 = vrot.lane.b32.xlu0 %v8435, 16
    %v8790 = vpop.permute.xlu0 %8789
    %8797 = vrot.lane.b32.xlu0 %v8669, 24
    %v8798 = vpop.permute.xlu0 %8797
    %8799 = vrot.lane.b32.xlu0 %v8717, 24
    %v8800 = vpop.permute.xlu0 %8799
    %8801 = vrot.lane.b32.xlu0 %v8765, 24
    %v8802 = vpop.permute.xlu0 %8801
    %v8806 = vsel %vm1959, %v7676, %v8774
    %v8807 = vsel %vm1959, %v7724, %v8776
    %v8808 = vsel %vm1959, %v7772, %v8778
    %v8809 = vsel %vm2869, %v8806, %v8786
    %v8810 = vsel %vm2869, %v8807, %v8788
    %v8811 = vsel %vm2869, %v8808, %v8790
    %v8812 = vsel %vm2872, %v8809, %v8798
    %v8813 = vsel %vm2872, %v8810, %v8800
    %v8814 = vsel %vm2872, %v8811, %v8802
    %v8815 = vpack.c.bf16 %v8813, %v8812
    %v8816 = vpack.c.bf16 %v8814, %v8814
    %v8817 = vld [vmem:[%s51] sm:$0xf]
    %v8818 = vld [vmem:[%s51 + $0x4] sm:$0xf]
    %v8819 = vld [vmem:[%s51 + $0x8] sm:$0xf]
    %v8820 = vld [vmem:[%s51 + $0xc] sm:$0xf]
    %v8825 = vunpack.c.l.b16 %v8817
    %v8826 = vunpack.c.l.b16 %v8818
    %v8827 = vunpack.c.l.b16 %v8819
    %v8828 = vunpack.c.l.b16 %v8820
    %v8829 = vpack.c.b16 %v8826, %v8825
    %v8830 = vpack.c.b16 %v8828, %v8827
    %v8834 = vsel %vm716, %v8815, 0
    %v8837 = vsel %vm716, %v8816, 0
    %8839 = vmatprep.subr.bf16.mxu0 0
    %8840 = vmatpush1.bf16.msra.mxu0 %v8829
    %8841 = vmatprep.subr.bf16.mxu0 0
    %8842 = vmatpush1.bf16.msra.mxu0 %v8830
    %8843 = vmatprep.subr.bf16.mxu0 0
    %8844 = vmatpush1.bf16.msra.mxu0 0
    %8845 = vmatprep.subr.bf16.mxu0 0
    %8846 = vmatpush1.bf16.msra.mxu0 0
    %8847 = vmatprep.subr.bf16.mxu0 0
    %8848 = vmatpush1.bf16.msra.mxu0 0
    %8849 = vmatprep.subr.bf16.mxu0 0
    %8850 = vmatpush1.bf16.msra.mxu0 0
    %8851 = vmatprep.subr.bf16.mxu0 0
    %8852 = vmatpush1.bf16.msra.mxu0 0
    %8853 = vmatprep.subr.bf16.mxu0 0
    %8854 = vmatpush1.bf16.msra.mxu0 0
    %8855 = vmatprep.subr.bf16.mxu0 0
    %8856 = vmatpush1.bf16.msra.mxu0 0
    %8857 = vmatprep.subr.bf16.mxu0 0
    %8858 = vmatpush1.bf16.msra.mxu0 0
    %8859 = vmatprep.subr.bf16.mxu0 0
    %8860 = vmatpush1.bf16.msra.mxu0 0
    %8861 = vmatprep.subr.bf16.mxu0 0
    %8862 = vmatpush1.bf16.msra.mxu0 0
    %8863 = vmatprep.subr.bf16.mxu0 0
    %8864 = vmatpush1.bf16.msra.mxu0 0
    %8865 = vmatprep.subr.bf16.mxu0 0
    %8866 = vmatpush1.bf16.msra.mxu0 0
    %8867 = vmatprep.subr.bf16.mxu0 0
    %8868 = vmatpush1.bf16.msra.mxu0 0
    %8869 = vmatprep.subr.bf16.mxu0 0
    %8870 = vmatpush1.bf16.msra.mxu0 0
    %8871 = vmatprep.mubr.bf16.mxu0 0
    %8872 = vmatmul.mubr.bf16.gmra.mrb[0].mxu0 %v8834
    %v8873 = vpop.f32.mrb[0].mxu0
    %v8874 = vadd.f32 0.0, %v8873
    %v8875 = vpop.f32.mrb[0].mxu0
    %v8876 = vpop.f32.mrb[0].mxu0
    %v8877 = vadd.f32 0.0, %v8876
    %v8878 = vpop.f32.mrb[0].mxu0
    %8879 = vmatprep.mubr.bf16.mxu0 0
    %8880 = vmatmul.mubr.bf16.gmra.mrb[0].mxu0 %v8837
    %v8881 = vpop.f32.mrb[0].mxu0
    %v8882 = vadd.f32 0.0, %v8881
    %v8883 = vpop.f32.mrb[0].mxu0
    %v8884 = vpop.f32.mrb[0].mxu0
    %v8885 = vpop.f32.mrb[0].mxu0
    %8886 = vdwg.mxu0
    %v8887 = vadd.f32 %v7293, %v8874
    %v8888 = vadd.f32 %v7294, %v8877
    %v8889 = vadd.f32 %v7295, %v8882
    %v8890 = vld [vmem:[%s53] sm:$0x1]
    %v8892 = vlaneseq
    %v8893 = vshrl.u32 %v8892, 7
    %v8894 = vsub.s32 0, %v8893
    %v8895 = vrot.slane %v8890, %v8894
    %v8897 = vadd.f32 %v8887, %v8895
    %v8898 = vadd.f32 %v8888, %v8895
    %v8899 = vadd.f32 %v8889, %v8895
    %v8900 = vld [vmem:[%s59] sm:$0x1]
    %v8901 = vld [vmem:[%s61] sm:$0x1]
    %v8902 = vsel %vm716, %v8897, 0.0
    %8903 = vadd.xlane.f32.xlu0 %v8902
    %v8904 = vpop.xlane.xlu0 %8903
    %v8905 = vsel %vm716, %v8898, 0.0
    %8906 = vadd.xlane.f32.xlu0 %v8905
    %v8907 = vpop.xlane.xlu0 %8906
    %v8908 = vsel %vm716, %v8899, 0.0
    %8909 = vadd.xlane.f32.xlu0 %v8908
    %v8910 = vpop.xlane.xlu0 %8909
    %v8911 = vmul.f32 %v8904, %v724
    %v8912 = vmul.f32 %v8907, %v724
    %v8913 = vmul.f32 %v8910, %v724
    %v8914 = vsub.f32 %v8897, %v8911
    %v8915 = vsub.f32 %v8898, %v8912
    %v8916 = vsub.f32 %v8899, %v8913
    %v8917 = vmul.f32 %v8914, %v8914
    %v8918 = vmul.f32 %v8915, %v8915
    %v8919 = vmul.f32 %v8916, %v8916
    %v8920 = vsel %vm716, %v8917, 0.0
    %8921 = vadd.xlane.f32.xlu0 %v8920
    %v8922 = vpop.xlane.xlu0 %8921
    %v8923 = vsel %vm716, %v8918, 0.0
    %8924 = vadd.xlane.f32.xlu0 %v8923
    %v8925 = vpop.xlane.xlu0 %8924
    %v8926 = vsel %vm716, %v8919, 0.0
    %8927 = vadd.xlane.f32.xlu0 %v8926
    %v8928 = vpop.xlane.xlu0 %8927
    %v8929 = vmul.f32 %v8922, %v724
    %v8930 = vmul.f32 %v8925, %v724
    %v8931 = vmul.f32 %v8928, %v724
    %v8932 = vadd.f32 %v8929, 1e-05
    %v8933 = vadd.f32 %v8930, 1e-05
    %v8934 = vadd.f32 %v8931, 1e-05
    %v8935 = vrsqrt.pop %v8932
    %v8936 = vrsqrt.pop %v8933
    %v8937 = vrsqrt.pop %v8934
    %v8938 = vmul.f32 %v8914, %v8935
    %v8939 = vmul.f32 %v8915, %v8936
    %v8940 = vmul.f32 %v8916, %v8937
    %v8942 = vlaneseq
    %v8943 = vshrl.u32 %v8942, 7
    %v8944 = vsub.s32 0, %v8943
    %v8945 = vrot.slane %v8900, %v8944
    %v8947 = vmul.f32 %v8938, %v8945
    %v8948 = vmul.f32 %v8939, %v8945
    %v8949 = vmul.f32 %v8940, %v8945
    %v8951 = vlaneseq
    %v8952 = vshrl.u32 %v8951, 7
    %v8953 = vsub.s32 0, %v8952
    %v8954 = vrot.slane %v8901, %v8953
    %v8956 = vadd.f32 %v8947, %v8954
    %v8957 = vadd.f32 %v8948, %v8954
    %v8958 = vadd.f32 %v8949, %v8954
    %v8959 = vpack.c.bf16 %v8957, %v8956
    %v8960 = vpack.c.bf16 %v8958, %v8958
    %v8961 = vld [vmem:[%s63] sm:$0xf]
    %v8962 = vld [vmem:[%s63 + $0x4] sm:$0xf]
    %v8963 = vld [vmem:[%s63 + $0x8] sm:$0xf]
    %v8964 = vld [vmem:[%s63 + $0xc] sm:$0xf]
    %v8965 = vld [vmem:[%s65] sm:$0x1]
    %v8967 = vlaneseq
    %v8968 = vshrl.u32 %v8967, 7
    %v8969 = vsub.s32 0, %v8968
    %v8970 = vrot.slane %v8965, %v8969
    %v8976 = vunpack.c.l.b16 %v8961
    %v8977 = vunpack.c.l.b16 %v8962
    %v8978 = vunpack.c.l.b16 %v8963
    %v8979 = vunpack.c.l.b16 %v8964
    %v8980 = vpack.c.b16 %v8977, %v8976
    %v8981 = vpack.c.b16 %v8979, %v8978
    %v8985 = vsel %vm716, %v8959, 0
    %v8988 = vsel %vm716, %v8960, 0
    %8990 = vmatprep.subr.bf16.mxu0 0
    %8991 = vmatpush1.bf16.msra.mxu0 %v8980
    %8992 = vmatprep.subr.bf16.mxu0 0
    %8993 = vmatpush1.bf16.msra.mxu0 %v8981
    %8994 = vmatprep.subr.bf16.mxu0 0
    %8995 = vmatpush1.bf16.msra.mxu0 0
    %8996 = vmatprep.subr.bf16.mxu0 0
    %8997 = vmatpush1.bf16.msra.mxu0 0
    %8998 = vmatprep.subr.bf16.mxu0 0
    %8999 = vmatpush1.bf16.msra.mxu0 0
    %9000 = vmatprep.subr.bf16.mxu0 0
    %9001 = vmatpush1.bf16.msra.mxu0 0
    %9002 = vmatprep.subr.bf16.mxu0 0
    %9003 = vmatpush1.bf16.msra.mxu0 0
    %9004 = vmatprep.subr.bf16.mxu0 0
    %9005 = vmatpush1.bf16.msra.mxu0 0
    %9006 = vmatprep.subr.bf16.mxu0 0
    %9007 = vmatpush1.bf16.msra.mxu0 0
    %9008 = vmatprep.subr.bf16.mxu0 0
    %9009 = vmatpush1.bf16.msra.mxu0 0
    %9010 = vmatprep.subr.bf16.mxu0 0
    %9011 = vmatpush1.bf16.msra.mxu0 0
    %9012 = vmatprep.subr.bf16.mxu0 0
    %9013 = vmatpush1.bf16.msra.mxu0 0
    %9014 = vmatprep.subr.bf16.mxu0 0
    %9015 = vmatpush1.bf16.msra.mxu0 0
    %9016 = vmatprep.subr.bf16.mxu0 0
    %9017 = vmatpush1.bf16.msra.mxu0 0
    %9018 = vmatprep.subr.bf16.mxu0 0
    %9019 = vmatpush1.bf16.msra.mxu0 0
    %9020 = vmatprep.subr.bf16.mxu0 0
    %9021 = vmatpush1.bf16.msra.mxu0 0
    %9022 = vmatprep.mubr.bf16.mxu0 0
    %9023 = vmatmul.mubr.bf16.gmra.mrb[0].mxu0 %v8985
    %v9024 = vpop.f32.mrb[0].mxu0
    %v9025 = vadd.f32 %v8970, %v9024
    %v9026 = vpop.f32.mrb[0].mxu0
    %v9027 = vpop.f32.mrb[0].mxu0
    %v9028 = vadd.f32 %v8970, %v9027
    %v9029 = vpop.f32.mrb[0].mxu0
    %9030 = vmatprep.mubr.bf16.mxu0 0
    %9031 = vmatmul.mubr.bf16.gmra.mrb[0].mxu0 %v8988
    %v9032 = vpop.f32.mrb[0].mxu0
    %v9033 = vadd.f32 %v8970, %v9032
    %v9034 = vpop.f32.mrb[0].mxu0
    %v9035 = vpop.f32.mrb[0].mxu0
    %v9036 = vpop.f32.mrb[0].mxu0
    %9037 = vdwg.mxu0
    %v9038 = vmul.f32 %v9025, 1.702
    %v9039 = vmul.f32 %v9028, 1.702
    %v9040 = vmul.f32 %v9033, 1.702
    %v9041 = vxor.u32 %v9038, 2147483648
    %v9042 = vxor.u32 %v9039, 2147483648
    %v9043 = vxor.u32 %v9040, 2147483648
    %v9044 = vmul.f32 %v9041, 1.442695
    %v9045 = vpow.pop %v9044
    %v9046 = vmul.f32 %v9042, 1.442695
    %v9047 = vpow.pop %v9046
    %v9048 = vmul.f32 %v9043, 1.442695
    %v9049 = vpow.pop %v9048
    %v9050 = vadd.f32 %v9045, 1.0
    %v9051 = vadd.f32 %v9047, 1.0
    %v9052 = vadd.f32 %v9049, 1.0
    %v9053 = vrcp.pop %v9050
    %v9054 = vmul.f32 1.0, %v9053
    %v9055 = vrcp.pop %v9051
    %v9056 = vmul.f32 1.0, %v9055
    %v9057 = vrcp.pop %v9052
    %v9058 = vmul.f32 1.0, %v9057
    %v9059 = vmul.f32 %v9025, %v9054
    %v9060 = vmul.f32 %v9028, %v9056
    %v9061 = vmul.f32 %v9033, %v9058
    %v9062 = vpack.c.bf16 %v9060, %v9059
    %v9063 = vpack.c.bf16 %v9061, %v9061
    %v9064 = vld [vmem:[%s67] sm:$0xf]
    %v9065 = vld [vmem:[%s67 + $0x4] sm:$0xf]
    %v9066 = vld [vmem:[%s67 + $0x8] sm:$0xf]
    %v9067 = vld [vmem:[%s67 + $0xc] sm:$0xf]
    %v9068 = vld [vmem:[%s67 + $0x10] sm:$0xf]
    %v9069 = vld [vmem:[%s67 + $0x14] sm:$0xf]
    %v9070 = vld [vmem:[%s67 + $0x18] sm:$0xf]
    %v9071 = vld [vmem:[%s67 + $0x1c] sm:$0xf]
    %v9072 = vld [vmem:[%s67 + $0x20] sm:$0xf]
    %v9073 = vld [vmem:[%s67 + $0x24] sm:$0xf]
    %v9074 = vld [vmem:[%s67 + $0x28] sm:$0xf]
    %v9075 = vld [vmem:[%s67 + $0x2c] sm:$0xf]
    %v9076 = vld [vmem:[%s67 + $0x30] sm:$0xf]
    %v9077 = vld [vmem:[%s67 + $0x34] sm:$0xf]
    %v9078 = vld [vmem:[%s67 + $0x38] sm:$0xf]
    %v9079 = vld [vmem:[%s67 + $0x3c] sm:$0xf]
    %v9096 = vunpack.c.l.b16 %v9064
    %v9097 = vunpack.c.l.b16 %v9065
    %v9098 = vunpack.c.l.b16 %v9066
    %v9099 = vunpack.c.l.b16 %v9067
    %v9100 = vunpack.c.l.b16 %v9068
    %v9101 = vunpack.c.l.b16 %v9069
    %v9102 = vunpack.c.l.b16 %v9070
    %v9103 = vunpack.c.l.b16 %v9071
    %v9104 = vunpack.c.l.b16 %v9072
    %v9105 = vunpack.c.l.b16 %v9073
    %v9106 = vunpack.c.l.b16 %v9074
    %v9107 = vunpack.c.l.b16 %v9075
    %v9108 = vunpack.c.l.b16 %v9076
    %v9109 = vunpack.c.l.b16 %v9077
    %v9110 = vunpack.c.l.b16 %v9078
    %v9111 = vunpack.c.l.b16 %v9079
    %v9112 = vpack.c.b16 %v9097, %v9096
    %v9113 = vpack.c.b16 %v9099, %v9098
    %v9114 = vpack.c.b16 %v9101, %v9100
    %v9115 = vpack.c.b16 %v9103, %v9102
    %v9116 = vpack.c.b16 %v9105, %v9104
    %v9117 = vpack.c.b16 %v9107, %v9106
    %v9118 = vpack.c.b16 %v9109, %v9108
    %v9119 = vpack.c.b16 %v9111, %v9110
    %9128 = vmatprep.subr.bf16.mxu0 0
    %9129 = vmatpush1.bf16.msra.mxu0 %v9112
    %9130 = vmatprep.subr.bf16.mxu0 0
    %9131 = vmatpush1.bf16.msra.mxu0 %v9113
    %9132 = vmatprep.subr.bf16.mxu0 0
    %9133 = vmatpush1.bf16.msra.mxu0 %v9114
    %9134 = vmatprep.subr.bf16.mxu0 0
    %9135 = vmatpush1.bf16.msra.mxu0 %v9115
    %9136 = vmatprep.subr.bf16.mxu0 0
    %9137 = vmatpush1.bf16.msra.mxu0 %v9116
    %9138 = vmatprep.subr.bf16.mxu0 0
    %9139 = vmatpush1.bf16.msra.mxu0 %v9117
    %9140 = vmatprep.subr.bf16.mxu0 0
    %9141 = vmatpush1.bf16.msra.mxu0 %v9118
    %9142 = vmatprep.subr.bf16.mxu0 0
    %9143 = vmatpush1.bf16.msra.mxu0 %v9119
    %9144 = vmatprep.subr.bf16.mxu0 0
    %9145 = vmatpush1.bf16.msra.mxu0 0
    %9146 = vmatprep.subr.bf16.mxu0 0
    %9147 = vmatpush1.bf16.msra.mxu0 0
    %9148 = vmatprep.subr.bf16.mxu0 0
    %9149 = vmatpush1.bf16.msra.mxu0 0
    %9150 = vmatprep.subr.bf16.mxu0 0
    %9151 = vmatpush1.bf16.msra.mxu0 0
    %9152 = vmatprep.subr.bf16.mxu0 0
    %9153 = vmatpush1.bf16.msra.mxu0 0
    %9154 = vmatprep.subr.bf16.mxu0 0
    %9155 = vmatpush1.bf16.msra.mxu0 0
    %9156 = vmatprep.subr.bf16.mxu0 0
    %9157 = vmatpush1.bf16.msra.mxu0 0
    %9158 = vmatprep.subr.bf16.mxu0 0
    %9159 = vmatpush1.bf16.msra.mxu0 0
    %9160 = vmatprep.mubr.bf16.mxu0 0
    %9161 = vmatmul.mubr.bf16.gmra.mrb[0].mxu0 %v9062
    %v9162 = vpop.f32.mrb[0].mxu0
    %v9163 = vadd.f32 0.0, %v9162
    %v9164 = vpop.f32.mrb[0].mxu0
    %v9165 = vpop.f32.mrb[0].mxu0
    %v9166 = vadd.f32 0.0, %v9165
    %v9167 = vpop.f32.mrb[0].mxu0
    %9168 = vmatprep.mubr.bf16.mxu0 0
    %9169 = vmatmul.mubr.bf16.gmra.mrb[0].mxu0 %v9063
    %v9170 = vpop.f32.mrb[0].mxu0
    %v9171 = vadd.f32 0.0, %v9170
    %v9172 = vpop.f32.mrb[0].mxu0
    %v9173 = vpop.f32.mrb[0].mxu0
    %v9174 = vpop.f32.mrb[0].mxu0
    %9175 = vdwg.mxu0
    %v9176 = vadd.f32 %v8897, %v9163
    %v9177 = vadd.f32 %v8898, %v9166
    %v9178 = vadd.f32 %v8899, %v9171
    %v9179 = vld [vmem:[%s69] sm:$0x1]
    %v9181 = vlaneseq
    %v9182 = vshrl.u32 %v9181, 7
    %v9183 = vsub.s32 0, %v9182
    %v9184 = vrot.slane %v9179, %v9183
    %v9186 = vadd.f32 %v9176, %v9184
    %v9187 = vadd.f32 %v9177, %v9184
    %v9188 = vadd.f32 %v9178, %v9184
    %s9189 = scalar_lea.vmem %s55, 1
    %v9190 = vld [vmem:[%s9189] sm:$0x1]
    %s9191 = scalar_lea.vmem %s57, 1
    %v9192 = vld [vmem:[%s9191] sm:$0x1]
    %v9193 = vsel %vm716, %v9186, 0.0
    %9194 = vadd.xlane.f32.xlu0 %v9193
    %v9195 = vpop.xlane.xlu0 %9194
    %v9196 = vsel %vm716, %v9187, 0.0
    %9197 = vadd.xlane.f32.xlu0 %v9196
    %v9198 = vpop.xlane.xlu0 %9197
    %v9199 = vsel %vm716, %v9188, 0.0
    %9200 = vadd.xlane.f32.xlu0 %v9199
    %v9201 = vpop.xlane.xlu0 %9200
    %v9202 = vmul.f32 %v9195, %v724
    %v9203 = vmul.f32 %v9198, %v724
    %v9204 = vmul.f32 %v9201, %v724
    %v9205 = vsub.f32 %v9186, %v9202
    %v9206 = vsub.f32 %v9187, %v9203
    %v9207 = vsub.f32 %v9188, %v9204
    %v9208 = vmul.f32 %v9205, %v9205
    %v9209 = vmul.f32 %v9206, %v9206
    %v9210 = vmul.f32 %v9207, %v9207
    %v9211 = vsel %vm716, %v9208, 0.0
    %9212 = vadd.xlane.f32.xlu0 %v9211
    %v9213 = vpop.xlane.xlu0 %9212
    %v9214 = vsel %vm716, %v9209, 0.0
    %9215 = vadd.xlane.f32.xlu0 %v9214
    %v9216 = vpop.xlane.xlu0 %9215
    %v9217 = vsel %vm716, %v9210, 0.0
    %9218 = vadd.xlane.f32.xlu0 %v9217
    %v9219 = vpop.xlane.xlu0 %9218
    %v9220 = vmul.f32 %v9213, %v724
    %v9221 = vmul.f32 %v9216, %v724
    %v9222 = vmul.f32 %v9219, %v724
    %v9223 = vadd.f32 %v9220, 1e-05
    %v9224 = vadd.f32 %v9221, 1e-05
    %v9225 = vadd.f32 %v9222, 1e-05
    %v9226 = vrsqrt.pop %v9223
    %v9227 = vrsqrt.pop %v9224
    %v9228 = vrsqrt.pop %v9225
    %v9229 = vmul.f32 %v9205, %v9226
    %v9230 = vmul.f32 %v9206, %v9227
    %v9231 = vmul.f32 %v9207, %v9228
    %v9233 = vlaneseq
    %v9234 = vshrl.u32 %v9233, 7
    %v9235 = vsub.s32 0, %v9234
    %v9236 = vrot.slane %v9190, %v9235
    %v9238 = vmul.f32 %v9229, %v9236
    %v9239 = vmul.f32 %v9230, %v9236
    %v9240 = vmul.f32 %v9231, %v9236
    %v9242 = vlaneseq
    %v9243 = vshrl.u32 %v9242, 7
    %v9244 = vsub.s32 0, %v9243
    %v9245 = vrot.slane %v9192, %v9244
    %v9247 = vadd.f32 %v9238, %v9245
    %v9248 = vadd.f32 %v9239, %v9245
    %v9249 = vadd.f32 %v9240, %v9245
    %v9250 = vpack.c.bf16 %v9248, %v9247
    %v9251 = vpack.c.bf16 %v9249, %v9249
    %s9252 = scalar_lea.vmem %s47, 16
    %v9253 = vld [vmem:[%s9252] sm:$0xf]
    %v9254 = vld [vmem:[%s9252 + $0x4] sm:$0xf]
    %v9255 = vld [vmem:[%s9252 + $0x8] sm:$0xf]
    %v9256 = vld [vmem:[%s9252 + $0xc] sm:$0xf]
    %s9257 = scalar_lea.vmem %s49, 1
    %v9258 = vld [vmem:[%s9257] sm:$0x1]
    %v9260 = vlaneseq
    %v9261 = vshrl.u32 %v9260, 7
    %v9262 = vsub.s32 0, %v9261
    %v9263 = vrot.slane %v9258, %v9262
    %v9269 = vunpack.c.l.b16 %v9253
    %v9270 = vunpack.c.l.b16 %v9254
    %v9271 = vunpack.c.l.b16 %v9255
    %v9272 = vunpack.c.l.b16 %v9256
    %v9273 = vpack.c.b16 %v9270, %v9269
    %v9274 = vpack.c.b16 %v9272, %v9271
    %v9278 = vsel %vm716, %v9250, 0
    %v9281 = vsel %vm716, %v9251, 0
    %9283 = vmatprep.subr.bf16.mxu0 0
    %9284 = vmatpush1.bf16.msra.mxu0 %v9273
    %9285 = vmatprep.subr.bf16.mxu0 0
    %9286 = vmatpush1.bf16.msra.mxu0 %v9274
    %9287 = vmatprep.subr.bf16.mxu0 0
    %9288 = vmatpush1.bf16.msra.mxu0 0
    %9289 = vmatprep.subr.bf16.mxu0 0
    %9290 = vmatpush1.bf16.msra.mxu0 0
    %9291 = vmatprep.subr.bf16.mxu0 0
    %9292 = vmatpush1.bf16.msra.mxu0 0
    %9293 = vmatprep.subr.bf16.mxu0 0
    %9294 = vmatpush1.bf16.msra.mxu0 0
    %9295 = vmatprep.subr.bf16.mxu0 0
    %9296 = vmatpush1.bf16.msra.mxu0 0
    %9297 = vmatprep.subr.bf16.mxu0 0
    %9298 = vmatpush1.bf16.msra.mxu0 0
    %9299 = vmatprep.subr.bf16.mxu0 0
    %9300 = vmatpush1.bf16.msra.mxu0 0
    %9301 = vmatprep.subr.bf16.mxu0 0
    %9302 = vmatpush1.bf16.msra.mxu0 0
    %9303 = vmatprep.subr.bf16.mxu0 0
    %9304 = vmatpush1.bf16.msra.mxu0 0
    %9305 = vmatprep.subr.bf16.mxu0 0
    %9306 = vmatpush1.bf16.msra.mxu0 0
    %9307 = vmatprep.subr.bf16.mxu0 0
    %9308 = vmatpush1.bf16.msra.mxu0 0
    %9309 = vmatprep.subr.bf16.mxu0 0
    %9310 = vmatpush1.bf16.msra.mxu0 0
    %9311 = vmatprep.subr.bf16.mxu0 0
    %9312 = vmatpush1.bf16.msra.mxu0 0
    %9313 = vmatprep.subr.bf16.mxu0 0
    %9314 = vmatpush1.bf16.msra.mxu0 0
    %9315 = vmatprep.mubr.bf16.mxu0 0
    %9316 = vmatmul.mubr.bf16.gmra.mrb[0].mxu0 %v9278
    %v9317 = vpop.f32.mrb[0].mxu0
    %v9318 = vadd.f32 %v9263, %v9317
    %v9319 = vpop.f32.mrb[0].mxu0
    %v9320 = vpop.f32.mrb[0].mxu0
    %v9321 = vadd.f32 %v9263, %v9320
    %v9322 = vpop.f32.mrb[0].mxu0
    %9323 = vmatprep.mubr.bf16.mxu0 0
    %9324 = vmatmul.mubr.bf16.gmra.mrb[0].mxu0 %v9281
    %v9325 = vpop.f32.mrb[0].mxu0
    %v9326 = vadd.f32 %v9263, %v9325
    %v9327 = vpop.f32.mrb[0].mxu0
    %v9328 = vpop.f32.mrb[0].mxu0
    %v9329 = vpop.f32.mrb[0].mxu0
    %9330 = vdwg.mxu0
    %v9331 = vmul.f32 %v9318, 0.35355338
    %v9332 = vmul.f32 %v9321, 0.35355338
    %v9333 = vmul.f32 %v9326, 0.35355338
    %v9334 = vpack.c.bf16 %v9331, %v9331
    %v9335 = vpack.c.bf16 %v9332, %v9332
    %v9336 = vpack.c.bf16 %v9333, %v9333
    %v9337 = vpack.c.bf16 %v9318, %v9318
    %v9338 = vpack.c.bf16 %v9321, %v9321
    %v9339 = vpack.c.bf16 %v9326, %v9326
    %9341 = vrot.lane.b32.xlu0 %v9337, 96
    %v9342 = vpop.permute.xlu0 %9341
    %v9344 = vsel %vm1959, %v9334, 0
    %v9347 = vsel %vm1959, %v9342, 0
    %9349 = vmatprep.subr.bf16.mxu0 0
    %9350 = vmatpush1.bf16.xpose.msra.mxu0 %v9347
    %9351 = vmatprep.subr.bf16.mxu0 0
    %9352 = vmatpush1.bf16.xpose.msra.mxu0 0
    %9353 = vmatprep.subr.bf16.mxu0 0
    %9354 = vmatpush1.bf16.xpose.msra.mxu0 0
    %9355 = vmatprep.subr.bf16.mxu0 0
    %9356 = vmatpush1.bf16.xpose.msra.mxu0 0
    %9357 = vmatprep.subr.bf16.mxu0 0
    %9358 = vmatpush1.bf16.xpose.msra.mxu0 0
    %9359 = vmatprep.subr.bf16.mxu0 0
    %9360 = vmatpush1.bf16.xpose.msra.mxu0 0
    %9361 = vmatprep.subr.bf16.mxu0 0
    %9362 = vmatpush1.bf16.xpose.msra.mxu0 0
    %9363 = vmatprep.subr.bf16.mxu0 0
    %9364 = vmatpush1.bf16.xpose.msra.mxu0 0
    %9365 = vmatprep.subr.bf16.mxu0 0
    %9366 = vmatpush1.bf16.xpose.msra.mxu0 0
    %9367 = vmatprep.subr.bf16.mxu0 0
    %9368 = vmatpush1.bf16.xpose.msra.mxu0 0
    %9369 = vmatprep.subr.bf16.mxu0 0
    %9370 = vmatpush1.bf16.xpose.msra.mxu0 0
    %9371 = vmatprep.subr.bf16.mxu0 0
    %9372 = vmatpush1.bf16.xpose.msra.mxu0 0
    %9373 = vmatprep.subr.bf16.mxu0 0
    %9374 = vmatpush1.bf16.xpose.msra.mxu0 0
    %9375 = vmatprep.subr.bf16.mxu0 0
    %9376 = vmatpush1.bf16.xpose.msra.mxu0 0
    %9377 = vmatprep.subr.bf16.mxu0 0
    %9378 = vmatpush1.bf16.xpose.msra.mxu0 0
    %9379 = vmatprep.subr.bf16.mxu0 0
    %9380 = vmatpush1.bf16.xpose.msra.mxu0 0
    %9381 = vmatprep.mubr.bf16.mxu0 0
    %9382 = vmatmul.mubr.bf16.gmra.mrb[0].mxu0 %v9344
    %v9383 = vpop.f32.mrb[0].mxu0
    %v9384 = vadd.f32 %v7301, %v9383
    %v9385 = vpop.f32.mrb[0].mxu0
    %v9386 = vpop.f32.mrb[0].mxu0
    %v9387 = vpop.f32.mrb[0].mxu0
    %9388 = vdwg.mxu0
    %9390 = vrot.lane.b32.xlu0 %v9338, 96
    %v9391 = vpop.permute.xlu0 %9390
    %v9393 = vsel %vm1959, %v9335, 0
    %v9396 = vsel %vm1959, %v9391, 0
    %9398 = vmatprep.subr.bf16.mxu0 0
    %9399 = vmatpush1.bf16.xpose.msra.mxu0 %v9396
    %9400 = vmatprep.subr.bf16.mxu0 0
    %9401 = vmatpush1.bf16.xpose.msra.mxu0 0
    %9402 = vmatprep.subr.bf16.mxu0 0
    %9403 = vmatpush1.bf16.xpose.msra.mxu0 0
    %9404 = vmatprep.subr.bf16.mxu0 0
    %9405 = vmatpush1.bf16.xpose.msra.mxu0 0
    %9406 = vmatprep.subr.bf16.mxu0 0
    %9407 = vmatpush1.bf16.xpose.msra.mxu0 0
    %9408 = vmatprep.subr.bf16.mxu0 0
    %9409 = vmatpush1.bf16.xpose.msra.mxu0 0
    %9410 = vmatprep.subr.bf16.mxu0 0
    %9411 = vmatpush1.bf16.xpose.msra.mxu0 0
    %9412 = vmatprep.subr.bf16.mxu0 0
    %9413 = vmatpush1.bf16.xpose.msra.mxu0 0
    %9414 = vmatprep.subr.bf16.mxu0 0
    %9415 = vmatpush1.bf16.xpose.msra.mxu0 0
    %9416 = vmatprep.subr.bf16.mxu0 0
    %9417 = vmatpush1.bf16.xpose.msra.mxu0 0
    %9418 = vmatprep.subr.bf16.mxu0 0
    %9419 = vmatpush1.bf16.xpose.msra.mxu0 0
    %9420 = vmatprep.subr.bf16.mxu0 0
    %9421 = vmatpush1.bf16.xpose.msra.mxu0 0
    %9422 = vmatprep.subr.bf16.mxu0 0
    %9423 = vmatpush1.bf16.xpose.msra.mxu0 0
    %9424 = vmatprep.subr.bf16.mxu0 0
    %9425 = vmatpush1.bf16.xpose.msra.mxu0 0
    %9426 = vmatprep.subr.bf16.mxu0 0
    %9427 = vmatpush1.bf16.xpose.msra.mxu0 0
    %9428 = vmatprep.subr.bf16.mxu0 0
    %9429 = vmatpush1.bf16.xpose.msra.mxu0 0
    %9430 = vmatprep.mubr.bf16.mxu0 0
    %9431 = vmatmul.mubr.bf16.gmra.mrb[0].mxu0 %v9393
    %v9432 = vpop.f32.mrb[0].mxu0
    %v9433 = vadd.f32 %v7301, %v9432
    %v9434 = vpop.f32.mrb[0].mxu0
    %v9435 = vpop.f32.mrb[0].mxu0
    %v9436 = vpop.f32.mrb[0].mxu0
    %9437 = vdwg.mxu0
    %9439 = vrot.lane.b32.xlu0 %v9339, 96
    %v9440 = vpop.permute.xlu0 %9439
    %v9442 = vsel %vm1959, %v9336, 0
    %v9445 = vsel %vm1959, %v9440, 0
    %9447 = vmatprep.subr.bf16.mxu0 0
    %9448 = vmatpush1.bf16.xpose.msra.mxu0 %v9445
    %9449 = vmatprep.subr.bf16.mxu0 0
    %9450 = vmatpush1.bf16.xpose.msra.mxu0 0
    %9451 = vmatprep.subr.bf16.mxu0 0
    %9452 = vmatpush1.bf16.xpose.msra.mxu0 0
    %9453 = vmatprep.subr.bf16.mxu0 0
    %9454 = vmatpush1.bf16.xpose.msra.mxu0 0
    %9455 = vmatprep.subr.bf16.mxu0 0
    %9456 = vmatpush1.bf16.xpose.msra.mxu0 0
    %9457 = vmatprep.subr.bf16.mxu0 0
    %9458 = vmatpush1.bf16.xpose.msra.mxu0 0
    %9459 = vmatprep.subr.bf16.mxu0 0
    %9460 = vmatpush1.bf16.xpose.msra.mxu0 0
    %9461 = vmatprep.subr.bf16.mxu0 0
    %9462 = vmatpush1.bf16.xpose.msra.mxu0 0
    %9463 = vmatprep.subr.bf16.mxu0 0
    %9464 = vmatpush1.bf16.xpose.msra.mxu0 0
    %9465 = vmatprep.subr.bf16.mxu0 0
    %9466 = vmatpush1.bf16.xpose.msra.mxu0 0
    %9467 = vmatprep.subr.bf16.mxu0 0
    %9468 = vmatpush1.bf16.xpose.msra.mxu0 0
    %9469 = vmatprep.subr.bf16.mxu0 0
    %9470 = vmatpush1.bf16.xpose.msra.mxu0 0
    %9471 = vmatprep.subr.bf16.mxu0 0
    %9472 = vmatpush1.bf16.xpose.msra.mxu0 0
    %9473 = vmatprep.subr.bf16.mxu0 0
    %9474 = vmatpush1.bf16.xpose.msra.mxu0 0
    %9475 = vmatprep.subr.bf16.mxu0 0
    %9476 = vmatpush1.bf16.xpose.msra.mxu0 0
    %9477 = vmatprep.subr.bf16.mxu0 0
    %9478 = vmatpush1.bf16.xpose.msra.mxu0 0
    %9479 = vmatprep.mubr.bf16.mxu0 0
    %9480 = vmatmul.mubr.bf16.gmra.mrb[0].mxu0 %v9442
    %v9481 = vpop.f32.mrb[0].mxu0
    %v9482 = vadd.f32 %v7301, %v9481
    %v9483 = vpop.f32.mrb[0].mxu0
    %v9484 = vpop.f32.mrb[0].mxu0
    %v9485 = vpop.f32.mrb[0].mxu0
    %9486 = vdwg.mxu0
    %v9487 = vsel %vm1959, %v9384, -inf
    %9488 = vmax.xlane.f32.xlu0 %v9487
    %v9489 = vpop.xlane.xlu0 %9488
    %v9490 = vsel %vm1959, %v9433, -inf
    %9491 = vmax.xlane.f32.xlu0 %v9490
    %v9492 = vpop.xlane.xlu0 %9491
    %v9493 = vsel %vm1959, %v9482, -inf
    %9494 = vmax.xlane.f32.xlu0 %v9493
    %v9495 = vpop.xlane.xlu0 %9494
    %v9496 = vsub.f32 %v9384, %v9489
    %v9497 = vsub.f32 %v9433, %v9492
    %v9498 = vsub.f32 %v9482, %v9495
    %v9499 = vmul.f32 %v9496, 1.442695
    %v9500 = vpow.pop %v9499
    %v9501 = vmul.f32 %v9497, 1.442695
    %v9502 = vpow.pop %v9501
    %v9503 = vmul.f32 %v9498, 1.442695
    %v9504 = vpow.pop %v9503
    %v9505 = vsel %vm1959, %v9500, 0.0
    %9506 = vadd.xlane.f32.xlu0 %v9505
    %v9507 = vpop.xlane.xlu0 %9506
    %v9508 = vsel %vm1959, %v9502, 0.0
    %9509 = vadd.xlane.f32.xlu0 %v9508
    %v9510 = vpop.xlane.xlu0 %9509
    %v9511 = vsel %vm1959, %v9504, 0.0
    %9512 = vadd.xlane.f32.xlu0 %v9511
    %v9513 = vpop.xlane.xlu0 %9512
    %v9514 = vrcp.pop %v9507
    %v9515 = vrcp.pop %v9510
    %v9516 = vrcp.pop %v9513
    %v9517 = vmul.f32 %v9500, %v9514
    %v9518 = vmul.f32 %v9502, %v9515
    %v9519 = vmul.f32 %v9504, %v9516
    %v9520 = vpack.c.bf16 %v9517, %v9517
    %v9521 = vpack.c.bf16 %v9518, %v9518
    %v9522 = vpack.c.bf16 %v9519, %v9519
    %9523 = vrot.lane.b32.xlu0 %v9337, 64
    %v9524 = vpop.permute.xlu0 %9523
    %v9526 = vsel %vm1959, %v9520, 0
    %v9529 = vsel %vm7637, %v9524, 0
    %9531 = vmatprep.subr.bf16.mxu0 0
    %9532 = vmatpush1.bf16.msra.mxu0 %v9529
    %9533 = vmatprep.subr.bf16.mxu0 0
    %9534 = vmatpush1.bf16.msra.mxu0 0
    %9535 = vmatprep.subr.bf16.mxu0 0
    %9536 = vmatpush1.bf16.msra.mxu0 0
    %9537 = vmatprep.subr.bf16.mxu0 0
    %9538 = vmatpush1.bf16.msra.mxu0 0
    %9539 = vmatprep.subr.bf16.mxu0 0
    %9540 = vmatpush1.bf16.msra.mxu0 0
    %9541 = vmatprep.subr.bf16.mxu0 0
    %9542 = vmatpush1.bf16.msra.mxu0 0
    %9543 = vmatprep.subr.bf16.mxu0 0
    %9544 = vmatpush1.bf16.msra.mxu0 0
    %9545 = vmatprep.subr.bf16.mxu0 0
    %9546 = vmatpush1.bf16.msra.mxu0 0
    %9547 = vmatprep.subr.bf16.mxu0 0
    %9548 = vmatpush1.bf16.msra.mxu0 0
    %9549 = vmatprep.subr.bf16.mxu0 0
    %9550 = vmatpush1.bf16.msra.mxu0 0
    %9551 = vmatprep.subr.bf16.mxu0 0
    %9552 = vmatpush1.bf16.msra.mxu0 0
    %9553 = vmatprep.subr.bf16.mxu0 0
    %9554 = vmatpush1.bf16.msra.mxu0 0
    %9555 = vmatprep.subr.bf16.mxu0 0
    %9556 = vmatpush1.bf16.msra.mxu0 0
    %9557 = vmatprep.subr.bf16.mxu0 0
    %9558 = vmatpush1.bf16.msra.mxu0 0
    %9559 = vmatprep.subr.bf16.mxu0 0
    %9560 = vmatpush1.bf16.msra.mxu0 0
    %9561 = vmatprep.subr.bf16.mxu0 0
    %9562 = vmatpush1.bf16.msra.mxu0 0
    %9563 = vmatprep.mubr.bf16.mxu0 0
    %9564 = vmatmul.mubr.bf16.gmra.mrb[0].mxu0 %v9526
    %v9565 = vpop.f32.mrb[0].mxu0
    %v9566 = vadd.f32 0.0, %v9565
    %v9567 = vpop.f32.mrb[0].mxu0
    %v9568 = vpop.f32.mrb[0].mxu0
    %v9569 = vpop.f32.mrb[0].mxu0
    %9570 = vdwg.mxu0
    %9571 = vrot.lane.b32.xlu0 %v9338, 64
    %v9572 = vpop.permute.xlu0 %9571
    %v9574 = vsel %vm1959, %v9521, 0
    %v9577 = vsel %vm7637, %v9572, 0
    %9579 = vmatprep.subr.bf16.mxu0 0
    %9580 = vmatpush1.bf16.msra.mxu0 %v9577
    %9581 = vmatprep.subr.bf16.mxu0 0
    %9582 = vmatpush1.bf16.msra.mxu0 0
    %9583 = vmatprep.subr.bf16.mxu0 0
    %9584 = vmatpush1.bf16.msra.mxu0 0
    %9585 = vmatprep.subr.bf16.mxu0 0
    %9586 = vmatpush1.bf16.msra.mxu0 0
    %9587 = vmatprep.subr.bf16.mxu0 0
    %9588 = vmatpush1.bf16.msra.mxu0 0
    %9589 = vmatprep.subr.bf16.mxu0 0
    %9590 = vmatpush1.bf16.msra.mxu0 0
    %9591 = vmatprep.subr.bf16.mxu0 0
    %9592 = vmatpush1.bf16.msra.mxu0 0
    %9593 = vmatprep.subr.bf16.mxu0 0
    %9594 = vmatpush1.bf16.msra.mxu0 0
    %9595 = vmatprep.subr.bf16.mxu0 0
    %9596 = vmatpush1.bf16.msra.mxu0 0
    %9597 = vmatprep.subr.bf16.mxu0 0
    %9598 = vmatpush1.bf16.msra.mxu0 0
    %9599 = vmatprep.subr.bf16.mxu0 0
    %9600 = vmatpush1.bf16.msra.mxu0 0
    %9601 = vmatprep.subr.bf16.mxu0 0
    %9602 = vmatpush1.bf16.msra.mxu0 0
    %9603 = vmatprep.subr.bf16.mxu0 0
    %9604 = vmatpush1.bf16.msra.mxu0 0
    %9605 = vmatprep.subr.bf16.mxu0 0
    %9606 = vmatpush1.bf16.msra.mxu0 0
    %9607 = vmatprep.subr.bf16.mxu0 0
    %9608 = vmatpush1.bf16.msra.mxu0 0
    %9609 = vmatprep.subr.bf16.mxu0 0
    %9610 = vmatpush1.bf16.msra.mxu0 0
    %9611 = vmatprep.mubr.bf16.mxu0 0
    %9612 = vmatmul.mubr.bf16.gmra.mrb[0].mxu0 %v9574
    %v9613 = vpop.f32.mrb[0].mxu0
    %v9614 = vadd.f32 0.0, %v9613
    %v9615 = vpop.f32.mrb[0].mxu0
    %v9616 = vpop.f32.mrb[0].mxu0
    %v9617 = vpop.f32.mrb[0].mxu0
    %9618 = vdwg.mxu0
    %9619 = vrot.lane.b32.xlu0 %v9339, 64
    %v9620 = vpop.permute.xlu0 %9619
    %v9622 = vsel %vm1959, %v9522, 0
    %v9625 = vsel %vm7637, %v9620, 0
    %9627 = vmatprep.subr.bf16.mxu0 0
    %9628 = vmatpush1.bf16.msra.mxu0 %v9625
    %9629 = vmatprep.subr.bf16.mxu0 0
    %9630 = vmatpush1.bf16.msra.mxu0 0
    %9631 = vmatprep.subr.bf16.mxu0 0
    %9632 = vmatpush1.bf16.msra.mxu0 0
    %9633 = vmatprep.subr.bf16.mxu0 0
    %9634 = vmatpush1.bf16.msra.mxu0 0
    %9635 = vmatprep.subr.bf16.mxu0 0
    %9636 = vmatpush1.bf16.msra.mxu0 0
    %9637 = vmatprep.subr.bf16.mxu0 0
    %9638 = vmatpush1.bf16.msra.mxu0 0
    %9639 = vmatprep.subr.bf16.mxu0 0
    %9640 = vmatpush1.bf16.msra.mxu0 0
    %9641 = vmatprep.subr.bf16.mxu0 0
    %9642 = vmatpush1.bf16.msra.mxu0 0
    %9643 = vmatprep.subr.bf16.mxu0 0
    %9644 = vmatpush1.bf16.msra.mxu0 0
    %9645 = vmatprep.subr.bf16.mxu0 0
    %9646 = vmatpush1.bf16.msra.mxu0 0
    %9647 = vmatprep.subr.bf16.mxu0 0
    %9648 = vmatpush1.bf16.msra.mxu0 0
    %9649 = vmatprep.subr.bf16.mxu0 0
    %9650 = vmatpush1.bf16.msra.mxu0 0
    %9651 = vmatprep.subr.bf16.mxu0 0
    %9652 = vmatpush1.bf16.msra.mxu0 0
    %9653 = vmatprep.subr.bf16.mxu0 0
    %9654 = vmatpush1.bf16.msra.mxu0 0
    %9655 = vmatprep.subr.bf16.mxu0 0
    %9656 = vmatpush1.bf16.msra.mxu0 0
    %9657 = vmatprep.subr.bf16.mxu0 0
    %9658 = vmatpush1.bf16.msra.mxu0 0
    %9659 = vmatprep.mubr.bf16.mxu0 0
    %9660 = vmatmul.mubr.bf16.gmra.mrb[0].mxu0 %v9622
    %v9661 = vpop.f32.mrb[0].mxu0
    %v9662 = vadd.f32 0.0, %v9661
    %v9663 = vpop.f32.mrb[0].mxu0
    %v9664 = vpop.f32.mrb[0].mxu0
    %v9665 = vpop.f32.mrb[0].mxu0
    %9666 = vdwg.mxu0
    %9668 = vrot.lane.b32.xlu0 %v9334, 120
    %v9669 = vpop.permute.xlu0 %9668
    %9670 = vrot.lane.b32.xlu0 %v9337, 88
    %v9671 = vpop.permute.xlu0 %9670
    %v9673 = vsel %vm1959, %v9669, 0
    %v9676 = vsel %vm1959, %v9671, 0
    %9678 = vmatprep.subr.bf16.mxu0 0
    %9679 = vmatpush1.bf16.xpose.msra.mxu0 %v9676
    %9680 = vmatprep.subr.bf16.mxu0 0
    %9681 = vmatpush1.bf16.xpose.msra.mxu0 0
    %9682 = vmatprep.subr.bf16.mxu0 0
    %9683 = vmatpush1.bf16.xpose.msra.mxu0 0
    %9684 = vmatprep.subr.bf16.mxu0 0
    %9685 = vmatpush1.bf16.xpose.msra.mxu0 0
    %9686 = vmatprep.subr.bf16.mxu0 0
    %9687 = vmatpush1.bf16.xpose.msra.mxu0 0
    %9688 = vmatprep.subr.bf16.mxu0 0
    %9689 = vmatpush1.bf16.xpose.msra.mxu0 0
    %9690 = vmatprep.subr.bf16.mxu0 0
    %9691 = vmatpush1.bf16.xpose.msra.mxu0 0
    %9692 = vmatprep.subr.bf16.mxu0 0
    %9693 = vmatpush1.bf16.xpose.msra.mxu0 0
    %9694 = vmatprep.subr.bf16.mxu0 0
    %9695 = vmatpush1.bf16.xpose.msra.mxu0 0
    %9696 = vmatprep.subr.bf16.mxu0 0
    %9697 = vmatpush1.bf16.xpose.msra.mxu0 0
    %9698 = vmatprep.subr.bf16.mxu0 0
    %9699 = vmatpush1.bf16.xpose.msra.mxu0 0
    %9700 = vmatprep.subr.bf16.mxu0 0
    %9701 = vmatpush1.bf16.xpose.msra.mxu0 0
    %9702 = vmatprep.subr.bf16.mxu0 0
    %9703 = vmatpush1.bf16.xpose.msra.mxu0 0
    %9704 = vmatprep.subr.bf16.mxu0 0
    %9705 = vmatpush1.bf16.xpose.msra.mxu0 0
    %9706 = vmatprep.subr.bf16.mxu0 0
    %9707 = vmatpush1.bf16.xpose.msra.mxu0 0
    %9708 = vmatprep.subr.bf16.mxu0 0
    %9709 = vmatpush1.bf16.xpose.msra.mxu0 0
    %9710 = vmatprep.mubr.bf16.mxu0 0
    %9711 = vmatmul.mubr.bf16.gmra.mrb[0].mxu0 %v9673
    %v9712 = vpop.f32.mrb[0].mxu0
    %v9713 = vadd.f32 %v7301, %v9712
    %v9714 = vpop.f32.mrb[0].mxu0
    %v9715 = vpop.f32.mrb[0].mxu0
    %v9716 = vpop.f32.mrb[0].mxu0
    %9717 = vdwg.mxu0
    %9719 = vrot.lane.b32.xlu0 %v9335, 120
    %v9720 = vpop.permute.xlu0 %9719
    %9721 = vrot.lane.b32.xlu0 %v9338, 88
    %v9722 = vpop.permute.xlu0 %9721
    %v9724 = vsel %vm1959, %v9720, 0
    %v9727 = vsel %vm1959, %v9722, 0
    %9729 = vmatprep.subr.bf16.mxu0 0
    %9730 = vmatpush1.bf16.xpose.msra.mxu0 %v9727
    %9731 = vmatprep.subr.bf16.mxu0 0
    %9732 = vmatpush1.bf16.xpose.msra.mxu0 0
    %9733 = vmatprep.subr.bf16.mxu0 0
    %9734 = vmatpush1.bf16.xpose.msra.mxu0 0
    %9735 = vmatprep.subr.bf16.mxu0 0
    %9736 = vmatpush1.bf16.xpose.msra.mxu0 0
    %9737 = vmatprep.subr.bf16.mxu0 0
    %9738 = vmatpush1.bf16.xpose.msra.mxu0 0
    %9739 = vmatprep.subr.bf16.mxu0 0
    %9740 = vmatpush1.bf16.xpose.msra.mxu0 0
    %9741 = vmatprep.subr.bf16.mxu0 0
    %9742 = vmatpush1.bf16.xpose.msra.mxu0 0
    %9743 = vmatprep.subr.bf16.mxu0 0
    %9744 = vmatpush1.bf16.xpose.msra.mxu0 0
    %9745 = vmatprep.subr.bf16.mxu0 0
    %9746 = vmatpush1.bf16.xpose.msra.mxu0 0
    %9747 = vmatprep.subr.bf16.mxu0 0
    %9748 = vmatpush1.bf16.xpose.msra.mxu0 0
    %9749 = vmatprep.subr.bf16.mxu0 0
    %9750 = vmatpush1.bf16.xpose.msra.mxu0 0
    %9751 = vmatprep.subr.bf16.mxu0 0
    %9752 = vmatpush1.bf16.xpose.msra.mxu0 0
    %9753 = vmatprep.subr.bf16.mxu0 0
    %9754 = vmatpush1.bf16.xpose.msra.mxu0 0
    %9755 = vmatprep.subr.bf16.mxu0 0
    %9756 = vmatpush1.bf16.xpose.msra.mxu0 0
    %9757 = vmatprep.subr.bf16.mxu0 0
    %9758 = vmatpush1.bf16.xpose.msra.mxu0 0
    %9759 = vmatprep.subr.bf16.mxu0 0
    %9760 = vmatpush1.bf16.xpose.msra.mxu0 0
    %9761 = vmatprep.mubr.bf16.mxu0 0
    %9762 = vmatmul.mubr.bf16.gmra.mrb[0].mxu0 %v9724
    %v9763 = vpop.f32.mrb[0].mxu0
    %v9764 = vadd.f32 %v7301, %v9763
    %v9765 = vpop.f32.mrb[0].mxu0
    %v9766 = vpop.f32.mrb[0].mxu0
    %v9767 = vpop.f32.mrb[0].mxu0
    %9768 = vdwg.mxu0
    %9770 = vrot.lane.b32.xlu0 %v9336, 120
    %v9771 = vpop.permute.xlu0 %9770
    %9772 = vrot.lane.b32.xlu0 %v9339, 88
    %v9773 = vpop.permute.xlu0 %9772
    %v9775 = vsel %vm1959, %v9771, 0
    %v9778 = vsel %vm1959, %v9773, 0
    %9780 = vmatprep.subr.bf16.mxu0 0
    %9781 = vmatpush1.bf16.xpose.msra.mxu0 %v9778
    %9782 = vmatprep.subr.bf16.mxu0 0
    %9783 = vmatpush1.bf16.xpose.msra.mxu0 0
    %9784 = vmatprep.subr.bf16.mxu0 0
    %9785 = vmatpush1.bf16.xpose.msra.mxu0 0
    %9786 = vmatprep.subr.bf16.mxu0 0
    %9787 = vmatpush1.bf16.xpose.msra.mxu0 0
    %9788 = vmatprep.subr.bf16.mxu0 0
    %9789 = vmatpush1.bf16.xpose.msra.mxu0 0
    %9790 = vmatprep.subr.bf16.mxu0 0
    %9791 = vmatpush1.bf16.xpose.msra.mxu0 0
    %9792 = vmatprep.subr.bf16.mxu0 0
    %9793 = vmatpush1.bf16.xpose.msra.mxu0 0
    %9794 = vmatprep.subr.bf16.mxu0 0
    %9795 = vmatpush1.bf16.xpose.msra.mxu0 0
    %9796 = vmatprep.subr.bf16.mxu0 0
    %9797 = vmatpush1.bf16.xpose.msra.mxu0 0
    %9798 = vmatprep.subr.bf16.mxu0 0
    %9799 = vmatpush1.bf16.xpose.msra.mxu0 0
    %9800 = vmatprep.subr.bf16.mxu0 0
    %9801 = vmatpush1.bf16.xpose.msra.mxu0 0
    %9802 = vmatprep.subr.bf16.mxu0 0
    %9803 = vmatpush1.bf16.xpose.msra.mxu0 0
    %9804 = vmatprep.subr.bf16.mxu0 0
    %9805 = vmatpush1.bf16.xpose.msra.mxu0 0
    %9806 = vmatprep.subr.bf16.mxu0 0
    %9807 = vmatpush1.bf16.xpose.msra.mxu0 0
    %9808 = vmatprep.subr.bf16.mxu0 0
    %9809 = vmatpush1.bf16.xpose.msra.mxu0 0
    %9810 = vmatprep.subr.bf16.mxu0 0
    %9811 = vmatpush1.bf16.xpose.msra.mxu0 0
    %9812 = vmatprep.mubr.bf16.mxu0 0
    %9813 = vmatmul.mubr.bf16.gmra.mrb[0].mxu0 %v9775
    %v9814 = vpop.f32.mrb[0].mxu0
    %v9815 = vadd.f32 %v7301, %v9814
    %v9816 = vpop.f32.mrb[0].mxu0
    %v9817 = vpop.f32.mrb[0].mxu0
    %v9818 = vpop.f32.mrb[0].mxu0
    %9819 = vdwg.mxu0
    %v9820 = vsel %vm1959, %v9713, -inf
    %9821 = vmax.xlane.f32.xlu0 %v9820
    %v9822 = vpop.xlane.xlu0 %9821
    %v9823 = vsel %vm1959, %v9764, -inf
    %9824 = vmax.xlane.f32.xlu0 %v9823
    %v9825 = vpop.xlane.xlu0 %9824
    %v9826 = vsel %vm1959, %v9815, -inf
    %9827 = vmax.xlane.f32.xlu0 %v9826
    %v9828 = vpop.xlane.xlu0 %9827
    %v9829 = vsub.f32 %v9713, %v9822
    %v9830 = vsub.f32 %v9764, %v9825
    %v9831 = vsub.f32 %v9815, %v9828
    %v9832 = vmul.f32 %v9829, 1.442695
    %v9833 = vpow.pop %v9832
    %v9834 = vmul.f32 %v9830, 1.442695
    %v9835 = vpow.pop %v9834
    %v9836 = vmul.f32 %v9831, 1.442695
    %v9837 = vpow.pop %v9836
    %v9838 = vsel %vm1959, %v9833, 0.0
    %9839 = vadd.xlane.f32.xlu0 %v9838
    %v9840 = vpop.xlane.xlu0 %9839
    %v9841 = vsel %vm1959, %v9835, 0.0
    %9842 = vadd.xlane.f32.xlu0 %v9841
    %v9843 = vpop.xlane.xlu0 %9842
    %v9844 = vsel %vm1959, %v9837, 0.0
    %9845 = vadd.xlane.f32.xlu0 %v9844
    %v9846 = vpop.xlane.xlu0 %9845
    %v9847 = vrcp.pop %v9840
    %v9848 = vrcp.pop %v9843
    %v9849 = vrcp.pop %v9846
    %v9850 = vmul.f32 %v9833, %v9847
    %v9851 = vmul.f32 %v9835, %v9848
    %v9852 = vmul.f32 %v9837, %v9849
    %v9853 = vpack.c.bf16 %v9850, %v9850
    %v9854 = vpack.c.bf16 %v9851, %v9851
    %v9855 = vpack.c.bf16 %v9852, %v9852
    %9856 = vrot.lane.b32.xlu0 %v9337, 56
    %v9857 = vpop.permute.xlu0 %9856
    %v9859 = vsel %vm1959, %v9853, 0
    %v9862 = vsel %vm7637, %v9857, 0
    %9864 = vmatprep.subr.bf16.mxu0 0
    %9865 = vmatpush1.bf16.msra.mxu0 %v9862
    %9866 = vmatprep.subr.bf16.mxu0 0
    %9867 = vmatpush1.bf16.msra.mxu0 0
    %9868 = vmatprep.subr.bf16.mxu0 0
    %9869 = vmatpush1.bf16.msra.mxu0 0
    %9870 = vmatprep.subr.bf16.mxu0 0
    %9871 = vmatpush1.bf16.msra.mxu0 0
    %9872 = vmatprep.subr.bf16.mxu0 0
    %9873 = vmatpush1.bf16.msra.mxu0 0
    %9874 = vmatprep.subr.bf16.mxu0 0
    %9875 = vmatpush1.bf16.msra.mxu0 0
    %9876 = vmatprep.subr.bf16.mxu0 0
    %9877 = vmatpush1.bf16.msra.mxu0 0
    %9878 = vmatprep.subr.bf16.mxu0 0
    %9879 = vmatpush1.bf16.msra.mxu0 0
    %9880 = vmatprep.subr.bf16.mxu0 0
    %9881 = vmatpush1.bf16.msra.mxu0 0
    %9882 = vmatprep.subr.bf16.mxu0 0
    %9883 = vmatpush1.bf16.msra.mxu0 0
    %9884 = vmatprep.subr.bf16.mxu0 0
    %9885 = vmatpush1.bf16.msra.mxu0 0
    %9886 = vmatprep.subr.bf16.mxu0 0
    %9887 = vmatpush1.bf16.msra.mxu0 0
    %9888 = vmatprep.subr.bf16.mxu0 0
    %9889 = vmatpush1.bf16.msra.mxu0 0
    %9890 = vmatprep.subr.bf16.mxu0 0
    %9891 = vmatpush1.bf16.msra.mxu0 0
    %9892 = vmatprep.subr.bf16.mxu0 0
    %9893 = vmatpush1.bf16.msra.mxu0 0
    %9894 = vmatprep.subr.bf16.mxu0 0
    %9895 = vmatpush1.bf16.msra.mxu0 0
    %9896 = vmatprep.mubr.bf16.mxu0 0
    %9897 = vmatmul.mubr.bf16.gmra.mrb[0].mxu0 %v9859
    %v9898 = vpop.f32.mrb[0].mxu0
    %v9899 = vadd.f32 0.0, %v9898
    %v9900 = vpop.f32.mrb[0].mxu0
    %v9901 = vpop.f32.mrb[0].mxu0
    %v9902 = vpop.f32.mrb[0].mxu0
    %9903 = vdwg.mxu0
    %9904 = vrot.lane.b32.xlu0 %v9338, 56
    %v9905 = vpop.permute.xlu0 %9904
    %v9907 = vsel %vm1959, %v9854, 0
    %v9910 = vsel %vm7637, %v9905, 0
    %9912 = vmatprep.subr.bf16.mxu0 0
    %9913 = vmatpush1.bf16.msra.mxu0 %v9910
    %9914 = vmatprep.subr.bf16.mxu0 0
    %9915 = vmatpush1.bf16.msra.mxu0 0
    %9916 = vmatprep.subr.bf16.mxu0 0
    %9917 = vmatpush1.bf16.msra.mxu0 0
    %9918 = vmatprep.subr.bf16.mxu0 0
    %9919 = vmatpush1.bf16.msra.mxu0 0
    %9920 = vmatprep.subr.bf16.mxu0 0
    %9921 = vmatpush1.bf16.msra.mxu0 0
    %9922 = vmatprep.subr.bf16.mxu0 0
    %9923 = vmatpush1.bf16.msra.mxu0 0
    %9924 = vmatprep.subr.bf16.mxu0 0
    %9925 = vmatpush1.bf16.msra.mxu0 0
    %9926 = vmatprep.subr.bf16.mxu0 0
    %9927 = vmatpush1.bf16.msra.mxu0 0
    %9928 = vmatprep.subr.bf16.mxu0 0
    %9929 = vmatpush1.bf16.msra.mxu0 0
    %9930 = vmatprep.subr.bf16.mxu0 0
    %9931 = vmatpush1.bf16.msra.mxu0 0
    %9932 = vmatprep.subr.bf16.mxu0 0
    %9933 = vmatpush1.bf16.msra.mxu0 0
    %9934 = vmatprep.subr.bf16.mxu0 0
    %9935 = vmatpush1.bf16.msra.mxu0 0
    %9936 = vmatprep.subr.bf16.mxu0 0
    %9937 = vmatpush1.bf16.msra.mxu0 0
    %9938 = vmatprep.subr.bf16.mxu0 0
    %9939 = vmatpush1.bf16.msra.mxu0 0
    %9940 = vmatprep.subr.bf16.mxu0 0
    %9941 = vmatpush1.bf16.msra.mxu0 0
    %9942 = vmatprep.subr.bf16.mxu0 0
    %9943 = vmatpush1.bf16.msra.mxu0 0
    %9944 = vmatprep.mubr.bf16.mxu0 0
    %9945 = vmatmul.mubr.bf16.gmra.mrb[0].mxu0 %v9907
    %v9946 = vpop.f32.mrb[0].mxu0
    %v9947 = vadd.f32 0.0, %v9946
    %v9948 = vpop.f32.mrb[0].mxu0
    %v9949 = vpop.f32.mrb[0].mxu0
    %v9950 = vpop.f32.mrb[0].mxu0
    %9951 = vdwg.mxu0
    %9952 = vrot.lane.b32.xlu0 %v9339, 56
    %v9953 = vpop.permute.xlu0 %9952
    %v9955 = vsel %vm1959, %v9855, 0
    %v9958 = vsel %vm7637, %v9953, 0
    %9960 = vmatprep.subr.bf16.mxu0 0
    %9961 = vmatpush1.bf16.msra.mxu0 %v9958
    %9962 = vmatprep.subr.bf16.mxu0 0
    %9963 = vmatpush1.bf16.msra.mxu0 0
    %9964 = vmatprep.subr.bf16.mxu0 0
    %9965 = vmatpush1.bf16.msra.mxu0 0
    %9966 = vmatprep.subr.bf16.mxu0 0
    %9967 = vmatpush1.bf16.msra.mxu0 0
    %9968 = vmatprep.subr.bf16.mxu0 0
    %9969 = vmatpush1.bf16.msra.mxu0 0
    %9970 = vmatprep.subr.bf16.mxu0 0
    %9971 = vmatpush1.bf16.msra.mxu0 0
    %9972 = vmatprep.subr.bf16.mxu0 0
    %9973 = vmatpush1.bf16.msra.mxu0 0
    %9974 = vmatprep.subr.bf16.mxu0 0
    %9975 = vmatpush1.bf16.msra.mxu0 0
    %9976 = vmatprep.subr.bf16.mxu0 0
    %9977 = vmatpush1.bf16.msra.mxu0 0
    %9978 = vmatprep.subr.bf16.mxu0 0
    %9979 = vmatpush1.bf16.msra.mxu0 0
    %9980 = vmatprep.subr.bf16.mxu0 0
    %9981 = vmatpush1.bf16.msra.mxu0 0
    %9982 = vmatprep.subr.bf16.mxu0 0
    %9983 = vmatpush1.bf16.msra.mxu0 0
    %9984 = vmatprep.subr.bf16.mxu0 0
    %9985 = vmatpush1.bf16.msra.mxu0 0
    %9986 = vmatprep.subr.bf16.mxu0 0
    %9987 = vmatpush1.bf16.msra.mxu0 0
    %9988 = vmatprep.subr.bf16.mxu0 0
    %9989 = vmatpush1.bf16.msra.mxu0 0
    %9990 = vmatprep.subr.bf16.mxu0 0
    %9991 = vmatpush1.bf16.msra.mxu0 0
    %9992 = vmatprep.mubr.bf16.mxu0 0
    %9993 = vmatmul.mubr.bf16.gmra.mrb[0].mxu0 %v9955
    %v9994 = vpop.f32.mrb[0].mxu0
    %v9995 = vadd.f32 0.0, %v9994
    %v9996 = vpop.f32.mrb[0].mxu0
    %v9997 = vpop.f32.mrb[0].mxu0
    %v9998 = vpop.f32.mrb[0].mxu0
    %9999 = vdwg.mxu0
    %10000 = vrot.lane.b32.xlu0 %v9334, 112
    %v10001 = vpop.permute.xlu0 %10000
    %10002 = vrot.lane.b32.xlu0 %v9337, 80
    %v10003 = vpop.permute.xlu0 %10002
    %v10005 = vsel %vm1959, %v10001, 0
    %v10008 = vsel %vm1959, %v10003, 0
    %10010 = vmatprep.subr.bf16.mxu0 0
    %10011 = vmatpush1.bf16.xpose.msra.mxu0 %v10008
    %10012 = vmatprep.subr.bf16.mxu0 0
    %10013 = vmatpush1.bf16.xpose.msra.mxu0 0
    %10014 = vmatprep.subr.bf16.mxu0 0
    %10015 = vmatpush1.bf16.xpose.msra.mxu0 0
    %10016 = vmatprep.subr.bf16.mxu0 0
    %10017 = vmatpush1.bf16.xpose.msra.mxu0 0
    %10018 = vmatprep.subr.bf16.mxu0 0
    %10019 = vmatpush1.bf16.xpose.msra.mxu0 0
    %10020 = vmatprep.subr.bf16.mxu0 0
    %10021 = vmatpush1.bf16.xpose.msra.mxu0 0
    %10022 = vmatprep.subr.bf16.mxu0 0
    %10023 = vmatpush1.bf16.xpose.msra.mxu0 0
    %10024 = vmatprep.subr.bf16.mxu0 0
    %10025 = vmatpush1.bf16.xpose.msra.mxu0 0
    %10026 = vmatprep.subr.bf16.mxu0 0
    %10027 = vmatpush1.bf16.xpose.msra.mxu0 0
    %10028 = vmatprep.subr.bf16.mxu0 0
    %10029 = vmatpush1.bf16.xpose.msra.mxu0 0
    %10030 = vmatprep.subr.bf16.mxu0 0
    %10031 = vmatpush1.bf16.xpose.msra.mxu0 0
    %10032 = vmatprep.subr.bf16.mxu0 0
    %10033 = vmatpush1.bf16.xpose.msra.mxu0 0
    %10034 = vmatprep.subr.bf16.mxu0 0
    %10035 = vmatpush1.bf16.xpose.msra.mxu0 0
    %10036 = vmatprep.subr.bf16.mxu0 0
    %10037 = vmatpush1.bf16.xpose.msra.mxu0 0
    %10038 = vmatprep.subr.bf16.mxu0 0
    %10039 = vmatpush1.bf16.xpose.msra.mxu0 0
    %10040 = vmatprep.subr.bf16.mxu0 0
    %10041 = vmatpush1.bf16.xpose.msra.mxu0 0
    %10042 = vmatprep.mubr.bf16.mxu0 0
    %10043 = vmatmul.mubr.bf16.gmra.mrb[0].mxu0 %v10005
    %v10044 = vpop.f32.mrb[0].mxu0
    %v10045 = vadd.f32 %v7301, %v10044
    %v10046 = vpop.f32.mrb[0].mxu0
    %v10047 = vpop.f32.mrb[0].mxu0
    %v10048 = vpop.f32.mrb[0].mxu0
    %10049 = vdwg.mxu0
    %10050 = vrot.lane.b32.xlu0 %v9335, 112
    %v10051 = vpop.permute.xlu0 %10050
    %10052 = vrot.lane.b32.xlu0 %v9338, 80
    %v10053 = vpop.permute.xlu0 %10052
    %v10055 = vsel %vm1959, %v10051, 0
    %v10058 = vsel %vm1959, %v10053, 0
    %10060 = vmatprep.subr.bf16.mxu0 0
    %10061 = vmatpush1.bf16.xpose.msra.mxu0 %v10058
    %10062 = vmatprep.subr.bf16.mxu0 0
    %10063 = vmatpush1.bf16.xpose.msra.mxu0 0
    %10064 = vmatprep.subr.bf16.mxu0 0
    %10065 = vmatpush1.bf16.xpose.msra.mxu0 0
    %10066 = vmatprep.subr.bf16.mxu0 0
    %10067 = vmatpush1.bf16.xpose.msra.mxu0 0
    %10068 = vmatprep.subr.bf16.mxu0 0
    %10069 = vmatpush1.bf16.xpose.msra.mxu0 0
    %10070 = vmatprep.subr.bf16.mxu0 0
    %10071 = vmatpush1.bf16.xpose.msra.mxu0 0
    %10072 = vmatprep.subr.bf16.mxu0 0
    %10073 = vmatpush1.bf16.xpose.msra.mxu0 0
    %10074 = vmatprep.subr.bf16.mxu0 0
    %10075 = vmatpush1.bf16.xpose.msra.mxu0 0
    %10076 = vmatprep.subr.bf16.mxu0 0
    %10077 = vmatpush1.bf16.xpose.msra.mxu0 0
    %10078 = vmatprep.subr.bf16.mxu0 0
    %10079 = vmatpush1.bf16.xpose.msra.mxu0 0
    %10080 = vmatprep.subr.bf16.mxu0 0
    %10081 = vmatpush1.bf16.xpose.msra.mxu0 0
    %10082 = vmatprep.subr.bf16.mxu0 0
    %10083 = vmatpush1.bf16.xpose.msra.mxu0 0
    %10084 = vmatprep.subr.bf16.mxu0 0
    %10085 = vmatpush1.bf16.xpose.msra.mxu0 0
    %10086 = vmatprep.subr.bf16.mxu0 0
    %10087 = vmatpush1.bf16.xpose.msra.mxu0 0
    %10088 = vmatprep.subr.bf16.mxu0 0
    %10089 = vmatpush1.bf16.xpose.msra.mxu0 0
    %10090 = vmatprep.subr.bf16.mxu0 0
    %10091 = vmatpush1.bf16.xpose.msra.mxu0 0
    %10092 = vmatprep.mubr.bf16.mxu0 0
    %10093 = vmatmul.mubr.bf16.gmra.mrb[0].mxu0 %v10055
    %v10094 = vpop.f32.mrb[0].mxu0
    %v10095 = vadd.f32 %v7301, %v10094
    %v10096 = vpop.f32.mrb[0].mxu0
    %v10097 = vpop.f32.mrb[0].mxu0
    %v10098 = vpop.f32.mrb[0].mxu0
    %10099 = vdwg.mxu0
    %10100 = vrot.lane.b32.xlu0 %v9336, 112
    %v10101 = vpop.permute.xlu0 %10100
    %10102 = vrot.lane.b32.xlu0 %v9339, 80
    %v10103 = vpop.permute.xlu0 %10102
    %v10105 = vsel %vm1959, %v10101, 0
    %v10108 = vsel %vm1959, %v10103, 0
    %10110 = vmatprep.subr.bf16.mxu0 0
    %10111 = vmatpush1.bf16.xpose.msra.mxu0 %v10108
    %10112 = vmatprep.subr.bf16.mxu0 0
    %10113 = vmatpush1.bf16.xpose.msra.mxu0 0
    %10114 = vmatprep.subr.bf16.mxu0 0
    %10115 = vmatpush1.bf16.xpose.msra.mxu0 0
    %10116 = vmatprep.subr.bf16.mxu0 0
    %10117 = vmatpush1.bf16.xpose.msra.mxu0 0
    %10118 = vmatprep.subr.bf16.mxu0 0
    %10119 = vmatpush1.bf16.xpose.msra.mxu0 0
    %10120 = vmatprep.subr.bf16.mxu0 0
    %10121 = vmatpush1.bf16.xpose.msra.mxu0 0
    %10122 = vmatprep.subr.bf16.mxu0 0
    %10123 = vmatpush1.bf16.xpose.msra.mxu0 0
    %10124 = vmatprep.subr.bf16.mxu0 0
    %10125 = vmatpush1.bf16.xpose.msra.mxu0 0
    %10126 = vmatprep.subr.bf16.mxu0 0
    %10127 = vmatpush1.bf16.xpose.msra.mxu0 0
    %10128 = vmatprep.subr.bf16.mxu0 0
    %10129 = vmatpush1.bf16.xpose.msra.mxu0 0
    %10130 = vmatprep.subr.bf16.mxu0 0
    %10131 = vmatpush1.bf16.xpose.msra.mxu0 0
    %10132 = vmatprep.subr.bf16.mxu0 0
    %10133 = vmatpush1.bf16.xpose.msra.mxu0 0
    %10134 = vmatprep.subr.bf16.mxu0 0
    %10135 = vmatpush1.bf16.xpose.msra.mxu0 0
    %10136 = vmatprep.subr.bf16.mxu0 0
    %10137 = vmatpush1.bf16.xpose.msra.mxu0 0
    %10138 = vmatprep.subr.bf16.mxu0 0
    %10139 = vmatpush1.bf16.xpose.msra.mxu0 0
    %10140 = vmatprep.subr.bf16.mxu0 0
    %10141 = vmatpush1.bf16.xpose.msra.mxu0 0
    %10142 = vmatprep.mubr.bf16.mxu0 0
    %10143 = vmatmul.mubr.bf16.gmra.mrb[0].mxu0 %v10105
    %v10144 = vpop.f32.mrb[0].mxu0
    %v10145 = vadd.f32 %v7301, %v10144
    %v10146 = vpop.f32.mrb[0].mxu0
    %v10147 = vpop.f32.mrb[0].mxu0
    %v10148 = vpop.f32.mrb[0].mxu0
    %10149 = vdwg.mxu0
    %v10150 = vsel %vm1959, %v10045, -inf
    %10151 = vmax.xlane.f32.xlu0 %v10150
    %v10152 = vpop.xlane.xlu0 %10151
    %v10153 = vsel %vm1959, %v10095, -inf
    %10154 = vmax.xlane.f32.xlu0 %v10153
    %v10155 = vpop.xlane.xlu0 %10154
    %v10156 = vsel %vm1959, %v10145, -inf
    %10157 = vmax.xlane.f32.xlu0 %v10156
    %v10158 = vpop.xlane.xlu0 %10157
    %v10159 = vsub.f32 %v10045, %v10152
    %v10160 = vsub.f32 %v10095, %v10155
    %v10161 = vsub.f32 %v10145, %v10158
    %v10162 = vmul.f32 %v10159, 1.442695
    %v10163 = vpow.pop %v10162
    %v10164 = vmul.f32 %v10160, 1.442695
    %v10165 = vpow.pop %v10164
    %v10166 = vmul.f32 %v10161, 1.442695
    %v10167 = vpow.pop %v10166
    %v10168 = vsel %vm1959, %v10163, 0.0
    %10169 = vadd.xlane.f32.xlu0 %v10168
    %v10170 = vpop.xlane.xlu0 %10169
    %v10171 = vsel %vm1959, %v10165, 0.0
    %10172 = vadd.xlane.f32.xlu0 %v10171
    %v10173 = vpop.xlane.xlu0 %10172
    %v10174 = vsel %vm1959, %v10167, 0.0
    %10175 = vadd.xlane.f32.xlu0 %v10174
    %v10176 = vpop.xlane.xlu0 %10175
    %v10177 = vrcp.pop %v10170
    %v10178 = vrcp.pop %v10173
    %v10179 = vrcp.pop %v10176
    %v10180 = vmul.f32 %v10163, %v10177
    %v10181 = vmul.f32 %v10165, %v10178
    %v10182 = vmul.f32 %v10167, %v10179
    %v10183 = vpack.c.bf16 %v10180, %v10180
    %v10184 = vpack.c.bf16 %v10181, %v10181
    %v10185 = vpack.c.bf16 %v10182, %v10182
    %10186 = vrot.lane.b32.xlu0 %v9337, 48
    %v10187 = vpop.permute.xlu0 %10186
    %v10189 = vsel %vm1959, %v10183, 0
    %v10192 = vsel %vm7637, %v10187, 0
    %10194 = vmatprep.subr.bf16.mxu0 0
    %10195 = vmatpush1.bf16.msra.mxu0 %v10192
    %10196 = vmatprep.subr.bf16.mxu0 0
    %10197 = vmatpush1.bf16.msra.mxu0 0
    %10198 = vmatprep.subr.bf16.mxu0 0
    %10199 = vmatpush1.bf16.msra.mxu0 0
    %10200 = vmatprep.subr.bf16.mxu0 0
    %10201 = vmatpush1.bf16.msra.mxu0 0
    %10202 = vmatprep.subr.bf16.mxu0 0
    %10203 = vmatpush1.bf16.msra.mxu0 0
    %10204 = vmatprep.subr.bf16.mxu0 0
    %10205 = vmatpush1.bf16.msra.mxu0 0
    %10206 = vmatprep.subr.bf16.mxu0 0
    %10207 = vmatpush1.bf16.msra.mxu0 0
    %10208 = vmatprep.subr.bf16.mxu0 0
    %10209 = vmatpush1.bf16.msra.mxu0 0
    %10210 = vmatprep.subr.bf16.mxu0 0
    %10211 = vmatpush1.bf16.msra.mxu0 0
    %10212 = vmatprep.subr.bf16.mxu0 0
    %10213 = vmatpush1.bf16.msra.mxu0 0
    %10214 = vmatprep.subr.bf16.mxu0 0
    %10215 = vmatpush1.bf16.msra.mxu0 0
    %10216 = vmatprep.subr.bf16.mxu0 0
    %10217 = vmatpush1.bf16.msra.mxu0 0
    %10218 = vmatprep.subr.bf16.mxu0 0
    %10219 = vmatpush1.bf16.msra.mxu0 0
    %10220 = vmatprep.subr.bf16.mxu0 0
    %10221 = vmatpush1.bf16.msra.mxu0 0
    %10222 = vmatprep.subr.bf16.mxu0 0
    %10223 = vmatpush1.bf16.msra.mxu0 0
    %10224 = vmatprep.subr.bf16.mxu0 0
    %10225 = vmatpush1.bf16.msra.mxu0 0
    %10226 = vmatprep.mubr.bf16.mxu0 0
    %10227 = vmatmul.mubr.bf16.gmra.mrb[0].mxu0 %v10189
    %v10228 = vpop.f32.mrb[0].mxu0
    %v10229 = vadd.f32 0.0, %v10228
    %v10230 = vpop.f32.mrb[0].mxu0
    %v10231 = vpop.f32.mrb[0].mxu0
    %v10232 = vpop.f32.mrb[0].mxu0
    %10233 = vdwg.mxu0
    %10234 = vrot.lane.b32.xlu0 %v9338, 48
    %v10235 = vpop.permute.xlu0 %10234
    %v10237 = vsel %vm1959, %v10184, 0
    %v10240 = vsel %vm7637, %v10235, 0
    %10242 = vmatprep.subr.bf16.mxu0 0
    %10243 = vmatpush1.bf16.msra.mxu0 %v10240
    %10244 = vmatprep.subr.bf16.mxu0 0
    %10245 = vmatpush1.bf16.msra.mxu0 0
    %10246 = vmatprep.subr.bf16.mxu0 0
    %10247 = vmatpush1.bf16.msra.mxu0 0
    %10248 = vmatprep.subr.bf16.mxu0 0
    %10249 = vmatpush1.bf16.msra.mxu0 0
    %10250 = vmatprep.subr.bf16.mxu0 0
    %10251 = vmatpush1.bf16.msra.mxu0 0
    %10252 = vmatprep.subr.bf16.mxu0 0
    %10253 = vmatpush1.bf16.msra.mxu0 0
    %10254 = vmatprep.subr.bf16.mxu0 0
    %10255 = vmatpush1.bf16.msra.mxu0 0
    %10256 = vmatprep.subr.bf16.mxu0 0
    %10257 = vmatpush1.bf16.msra.mxu0 0
    %10258 = vmatprep.subr.bf16.mxu0 0
    %10259 = vmatpush1.bf16.msra.mxu0 0
    %10260 = vmatprep.subr.bf16.mxu0 0
    %10261 = vmatpush1.bf16.msra.mxu0 0
    %10262 = vmatprep.subr.bf16.mxu0 0
    %10263 = vmatpush1.bf16.msra.mxu0 0
    %10264 = vmatprep.subr.bf16.mxu0 0
    %10265 = vmatpush1.bf16.msra.mxu0 0
    %10266 = vmatprep.subr.bf16.mxu0 0
    %10267 = vmatpush1.bf16.msra.mxu0 0
    %10268 = vmatprep.subr.bf16.mxu0 0
    %10269 = vmatpush1.bf16.msra.mxu0 0
    %10270 = vmatprep.subr.bf16.mxu0 0
    %10271 = vmatpush1.bf16.msra.mxu0 0
    %10272 = vmatprep.subr.bf16.mxu0 0
    %10273 = vmatpush1.bf16.msra.mxu0 0
    %10274 = vmatprep.mubr.bf16.mxu0 0
    %10275 = vmatmul.mubr.bf16.gmra.mrb[0].mxu0 %v10237
    %v10276 = vpop.f32.mrb[0].mxu0
    %v10277 = vadd.f32 0.0, %v10276
    %v10278 = vpop.f32.mrb[0].mxu0
    %v10279 = vpop.f32.mrb[0].mxu0
    %v10280 = vpop.f32.mrb[0].mxu0
    %10281 = vdwg.mxu0
    %10282 = vrot.lane.b32.xlu0 %v9339, 48
    %v10283 = vpop.permute.xlu0 %10282
    %v10285 = vsel %vm1959, %v10185, 0
    %v10288 = vsel %vm7637, %v10283, 0
    %10290 = vmatprep.subr.bf16.mxu0 0
    %10291 = vmatpush1.bf16.msra.mxu0 %v10288
    %10292 = vmatprep.subr.bf16.mxu0 0
    %10293 = vmatpush1.bf16.msra.mxu0 0
    %10294 = vmatprep.subr.bf16.mxu0 0
    %10295 = vmatpush1.bf16.msra.mxu0 0
    %10296 = vmatprep.subr.bf16.mxu0 0
    %10297 = vmatpush1.bf16.msra.mxu0 0
    %10298 = vmatprep.subr.bf16.mxu0 0
    %10299 = vmatpush1.bf16.msra.mxu0 0
    %10300 = vmatprep.subr.bf16.mxu0 0
    %10301 = vmatpush1.bf16.msra.mxu0 0
    %10302 = vmatprep.subr.bf16.mxu0 0
    %10303 = vmatpush1.bf16.msra.mxu0 0
    %10304 = vmatprep.subr.bf16.mxu0 0
    %10305 = vmatpush1.bf16.msra.mxu0 0
    %10306 = vmatprep.subr.bf16.mxu0 0
    %10307 = vmatpush1.bf16.msra.mxu0 0
    %10308 = vmatprep.subr.bf16.mxu0 0
    %10309 = vmatpush1.bf16.msra.mxu0 0
    %10310 = vmatprep.subr.bf16.mxu0 0
    %10311 = vmatpush1.bf16.msra.mxu0 0
    %10312 = vmatprep.subr.bf16.mxu0 0
    %10313 = vmatpush1.bf16.msra.mxu0 0
    %10314 = vmatprep.subr.bf16.mxu0 0
    %10315 = vmatpush1.bf16.msra.mxu0 0
    %10316 = vmatprep.subr.bf16.mxu0 0
    %10317 = vmatpush1.bf16.msra.mxu0 0
    %10318 = vmatprep.subr.bf16.mxu0 0
    %10319 = vmatpush1.bf16.msra.mxu0 0
    %10320 = vmatprep.subr.bf16.mxu0 0
    %10321 = vmatpush1.bf16.msra.mxu0 0
    %10322 = vmatprep.mubr.bf16.mxu0 0
    %10323 = vmatmul.mubr.bf16.gmra.mrb[0].mxu0 %v10285
    %v10324 = vpop.f32.mrb[0].mxu0
    %v10325 = vadd.f32 0.0, %v10324
    %v10326 = vpop.f32.mrb[0].mxu0
    %v10327 = vpop.f32.mrb[0].mxu0
    %v10328 = vpop.f32.mrb[0].mxu0
    %10329 = vdwg.mxu0
    %10330 = vrot.lane.b32.xlu0 %v9334, 104
    %v10331 = vpop.permute.xlu0 %10330
    %10332 = vrot.lane.b32.xlu0 %v9337, 72
    %v10333 = vpop.permute.xlu0 %10332
    %v10335 = vsel %vm1959, %v10331, 0
    %v10338 = vsel %vm1959, %v10333, 0
    %10340 = vmatprep.subr.bf16.mxu0 0
    %10341 = vmatpush1.bf16.xpose.msra.mxu0 %v10338
    %10342 = vmatprep.subr.bf16.mxu0 0
    %10343 = vmatpush1.bf16.xpose.msra.mxu0 0
    %10344 = vmatprep.subr.bf16.mxu0 0
    %10345 = vmatpush1.bf16.xpose.msra.mxu0 0
    %10346 = vmatprep.subr.bf16.mxu0 0
    %10347 = vmatpush1.bf16.xpose.msra.mxu0 0
    %10348 = vmatprep.subr.bf16.mxu0 0
    %10349 = vmatpush1.bf16.xpose.msra.mxu0 0
    %10350 = vmatprep.subr.bf16.mxu0 0
    %10351 = vmatpush1.bf16.xpose.msra.mxu0 0
    %10352 = vmatprep.subr.bf16.mxu0 0
    %10353 = vmatpush1.bf16.xpose.msra.mxu0 0
    %10354 = vmatprep.subr.bf16.mxu0 0
    %10355 = vmatpush1.bf16.xpose.msra.mxu0 0
    %10356 = vmatprep.subr.bf16.mxu0 0
    %10357 = vmatpush1.bf16.xpose.msra.mxu0 0
    %10358 = vmatprep.subr.bf16.mxu0 0
    %10359 = vmatpush1.bf16.xpose.msra.mxu0 0
    %10360 = vmatprep.subr.bf16.mxu0 0
    %10361 = vmatpush1.bf16.xpose.msra.mxu0 0
    %10362 = vmatprep.subr.bf16.mxu0 0
    %10363 = vmatpush1.bf16.xpose.msra.mxu0 0
    %10364 = vmatprep.subr.bf16.mxu0 0
    %10365 = vmatpush1.bf16.xpose.msra.mxu0 0
    %10366 = vmatprep.subr.bf16.mxu0 0
    %10367 = vmatpush1.bf16.xpose.msra.mxu0 0
    %10368 = vmatprep.subr.bf16.mxu0 0
    %10369 = vmatpush1.bf16.xpose.msra.mxu0 0
    %10370 = vmatprep.subr.bf16.mxu0 0
    %10371 = vmatpush1.bf16.xpose.msra.mxu0 0
    %10372 = vmatprep.mubr.bf16.mxu0 0
    %10373 = vmatmul.mubr.bf16.gmra.mrb[0].mxu0 %v10335
    %v10374 = vpop.f32.mrb[0].mxu0
    %v10375 = vadd.f32 %v7301, %v10374
    %v10376 = vpop.f32.mrb[0].mxu0
    %v10377 = vpop.f32.mrb[0].mxu0
    %v10378 = vpop.f32.mrb[0].mxu0
    %10379 = vdwg.mxu0
    %10380 = vrot.lane.b32.xlu0 %v9335, 104
    %v10381 = vpop.permute.xlu0 %10380
    %10382 = vrot.lane.b32.xlu0 %v9338, 72
    %v10383 = vpop.permute.xlu0 %10382
    %v10385 = vsel %vm1959, %v10381, 0
    %v10388 = vsel %vm1959, %v10383, 0
    %10390 = vmatprep.subr.bf16.mxu0 0
    %10391 = vmatpush1.bf16.xpose.msra.mxu0 %v10388
    %10392 = vmatprep.subr.bf16.mxu0 0
    %10393 = vmatpush1.bf16.xpose.msra.mxu0 0
    %10394 = vmatprep.subr.bf16.mxu0 0
    %10395 = vmatpush1.bf16.xpose.msra.mxu0 0
    %10396 = vmatprep.subr.bf16.mxu0 0
    %10397 = vmatpush1.bf16.xpose.msra.mxu0 0
    %10398 = vmatprep.subr.bf16.mxu0 0
    %10399 = vmatpush1.bf16.xpose.msra.mxu0 0
    %10400 = vmatprep.subr.bf16.mxu0 0
    %10401 = vmatpush1.bf16.xpose.msra.mxu0 0
    %10402 = vmatprep.subr.bf16.mxu0 0
    %10403 = vmatpush1.bf16.xpose.msra.mxu0 0
    %10404 = vmatprep.subr.bf16.mxu0 0
    %10405 = vmatpush1.bf16.xpose.msra.mxu0 0
    %10406 = vmatprep.subr.bf16.mxu0 0
    %10407 = vmatpush1.bf16.xpose.msra.mxu0 0
    %10408 = vmatprep.subr.bf16.mxu0 0
    %10409 = vmatpush1.bf16.xpose.msra.mxu0 0
    %10410 = vmatprep.subr.bf16.mxu0 0
    %10411 = vmatpush1.bf16.xpose.msra.mxu0 0
    %10412 = vmatprep.subr.bf16.mxu0 0
    %10413 = vmatpush1.bf16.xpose.msra.mxu0 0
    %10414 = vmatprep.subr.bf16.mxu0 0
    %10415 = vmatpush1.bf16.xpose.msra.mxu0 0
    %10416 = vmatprep.subr.bf16.mxu0 0
    %10417 = vmatpush1.bf16.xpose.msra.mxu0 0
    %10418 = vmatprep.subr.bf16.mxu0 0
    %10419 = vmatpush1.bf16.xpose.msra.mxu0 0
    %10420 = vmatprep.subr.bf16.mxu0 0
    %10421 = vmatpush1.bf16.xpose.msra.mxu0 0
    %10422 = vmatprep.mubr.bf16.mxu0 0
    %10423 = vmatmul.mubr.bf16.gmra.mrb[0].mxu0 %v10385
    %v10424 = vpop.f32.mrb[0].mxu0
    %v10425 = vadd.f32 %v7301, %v10424
    %v10426 = vpop.f32.mrb[0].mxu0
    %v10427 = vpop.f32.mrb[0].mxu0
    %v10428 = vpop.f32.mrb[0].mxu0
    %10429 = vdwg.mxu0
    %10430 = vrot.lane.b32.xlu0 %v9336, 104
    %v10431 = vpop.permute.xlu0 %10430
    %10432 = vrot.lane.b32.xlu0 %v9339, 72
    %v10433 = vpop.permute.xlu0 %10432
    %v10435 = vsel %vm1959, %v10431, 0
    %v10438 = vsel %vm1959, %v10433, 0
    %10440 = vmatprep.subr.bf16.mxu0 0
    %10441 = vmatpush1.bf16.xpose.msra.mxu0 %v10438
    %10442 = vmatprep.subr.bf16.mxu0 0
    %10443 = vmatpush1.bf16.xpose.msra.mxu0 0
    %10444 = vmatprep.subr.bf16.mxu0 0
    %10445 = vmatpush1.bf16.xpose.msra.mxu0 0
    %10446 = vmatprep.subr.bf16.mxu0 0
    %10447 = vmatpush1.bf16.xpose.msra.mxu0 0
    %10448 = vmatprep.subr.bf16.mxu0 0
    %10449 = vmatpush1.bf16.xpose.msra.mxu0 0
    %10450 = vmatprep.subr.bf16.mxu0 0
    %10451 = vmatpush1.bf16.xpose.msra.mxu0 0
    %10452 = vmatprep.subr.bf16.mxu0 0
    %10453 = vmatpush1.bf16.xpose.msra.mxu0 0
    %10454 = vmatprep.subr.bf16.mxu0 0
    %10455 = vmatpush1.bf16.xpose.msra.mxu0 0
    %10456 = vmatprep.subr.bf16.mxu0 0
    %10457 = vmatpush1.bf16.xpose.msra.mxu0 0
    %10458 = vmatprep.subr.bf16.mxu0 0
    %10459 = vmatpush1.bf16.xpose.msra.mxu0 0
    %10460 = vmatprep.subr.bf16.mxu0 0
    %10461 = vmatpush1.bf16.xpose.msra.mxu0 0
    %10462 = vmatprep.subr.bf16.mxu0 0
    %10463 = vmatpush1.bf16.xpose.msra.mxu0 0
    %10464 = vmatprep.subr.bf16.mxu0 0
    %10465 = vmatpush1.bf16.xpose.msra.mxu0 0
    %10466 = vmatprep.subr.bf16.mxu0 0
    %10467 = vmatpush1.bf16.xpose.msra.mxu0 0
    %10468 = vmatprep.subr.bf16.mxu0 0
    %10469 = vmatpush1.bf16.xpose.msra.mxu0 0
    %10470 = vmatprep.subr.bf16.mxu0 0
    %10471 = vmatpush1.bf16.xpose.msra.mxu0 0
    %10472 = vmatprep.mubr.bf16.mxu0 0
    %10473 = vmatmul.mubr.bf16.gmra.mrb[0].mxu0 %v10435
    %v10474 = vpop.f32.mrb[0].mxu0
    %v10475 = vadd.f32 %v7301, %v10474
    %v10476 = vpop.f32.mrb[0].mxu0
    %v10477 = vpop.f32.mrb[0].mxu0
    %v10478 = vpop.f32.mrb[0].mxu0
    %10479 = vdwg.mxu0
    %v10480 = vsel %vm1959, %v10375, -inf
    %10481 = vmax.xlane.f32.xlu0 %v10480
    %v10482 = vpop.xlane.xlu0 %10481
    %v10483 = vsel %vm1959, %v10425, -inf
    %10484 = vmax.xlane.f32.xlu0 %v10483
    %v10485 = vpop.xlane.xlu0 %10484
    %v10486 = vsel %vm1959, %v10475, -inf
    %10487 = vmax.xlane.f32.xlu0 %v10486
    %v10488 = vpop.xlane.xlu0 %10487
    %v10489 = vsub.f32 %v10375, %v10482
    %v10490 = vsub.f32 %v10425, %v10485
    %v10491 = vsub.f32 %v10475, %v10488
    %v10492 = vmul.f32 %v10489, 1.442695
    %v10493 = vpow.pop %v10492
    %v10494 = vmul.f32 %v10490, 1.442695
    %v10495 = vpow.pop %v10494
    %v10496 = vmul.f32 %v10491, 1.442695
    %v10497 = vpow.pop %v10496
    %v10498 = vsel %vm1959, %v10493, 0.0
    %10499 = vadd.xlane.f32.xlu0 %v10498
    %v10500 = vpop.xlane.xlu0 %10499
    %v10501 = vsel %vm1959, %v10495, 0.0
    %10502 = vadd.xlane.f32.xlu0 %v10501
    %v10503 = vpop.xlane.xlu0 %10502
    %v10504 = vsel %vm1959, %v10497, 0.0
    %10505 = vadd.xlane.f32.xlu0 %v10504
    %v10506 = vpop.xlane.xlu0 %10505
    %v10507 = vrcp.pop %v10500
    %v10508 = vrcp.pop %v10503
    %v10509 = vrcp.pop %v10506
    %v10510 = vmul.f32 %v10493, %v10507
    %v10511 = vmul.f32 %v10495, %v10508
    %v10512 = vmul.f32 %v10497, %v10509
    %v10513 = vpack.c.bf16 %v10510, %v10510
    %v10514 = vpack.c.bf16 %v10511, %v10511
    %v10515 = vpack.c.bf16 %v10512, %v10512
    %10516 = vrot.lane.b32.xlu0 %v9337, 40
    %v10517 = vpop.permute.xlu0 %10516
    %v10519 = vsel %vm1959, %v10513, 0
    %v10522 = vsel %vm7637, %v10517, 0
    %10524 = vmatprep.subr.bf16.mxu0 0
    %10525 = vmatpush1.bf16.msra.mxu0 %v10522
    %10526 = vmatprep.subr.bf16.mxu0 0
    %10527 = vmatpush1.bf16.msra.mxu0 0
    %10528 = vmatprep.subr.bf16.mxu0 0
    %10529 = vmatpush1.bf16.msra.mxu0 0
    %10530 = vmatprep.subr.bf16.mxu0 0
    %10531 = vmatpush1.bf16.msra.mxu0 0
    %10532 = vmatprep.subr.bf16.mxu0 0
    %10533 = vmatpush1.bf16.msra.mxu0 0
    %10534 = vmatprep.subr.bf16.mxu0 0
    %10535 = vmatpush1.bf16.msra.mxu0 0
    %10536 = vmatprep.subr.bf16.mxu0 0
    %10537 = vmatpush1.bf16.msra.mxu0 0
    %10538 = vmatprep.subr.bf16.mxu0 0
    %10539 = vmatpush1.bf16.msra.mxu0 0
    %10540 = vmatprep.subr.bf16.mxu0 0
    %10541 = vmatpush1.bf16.msra.mxu0 0
    %10542 = vmatprep.subr.bf16.mxu0 0
    %10543 = vmatpush1.bf16.msra.mxu0 0
    %10544 = vmatprep.subr.bf16.mxu0 0
    %10545 = vmatpush1.bf16.msra.mxu0 0
    %10546 = vmatprep.subr.bf16.mxu0 0
    %10547 = vmatpush1.bf16.msra.mxu0 0
    %10548 = vmatprep.subr.bf16.mxu0 0
    %10549 = vmatpush1.bf16.msra.mxu0 0
    %10550 = vmatprep.subr.bf16.mxu0 0
    %10551 = vmatpush1.bf16.msra.mxu0 0
    %10552 = vmatprep.subr.bf16.mxu0 0
    %10553 = vmatpush1.bf16.msra.mxu0 0
    %10554 = vmatprep.subr.bf16.mxu0 0
    %10555 = vmatpush1.bf16.msra.mxu0 0
    %10556 = vmatprep.mubr.bf16.mxu0 0
    %10557 = vmatmul.mubr.bf16.gmra.mrb[0].mxu0 %v10519
    %v10558 = vpop.f32.mrb[0].mxu0
    %v10559 = vadd.f32 0.0, %v10558
    %v10560 = vpop.f32.mrb[0].mxu0
    %v10561 = vpop.f32.mrb[0].mxu0
    %v10562 = vpop.f32.mrb[0].mxu0
    %10563 = vdwg.mxu0
    %10564 = vrot.lane.b32.xlu0 %v9338, 40
    %v10565 = vpop.permute.xlu0 %10564
    %v10567 = vsel %vm1959, %v10514, 0
    %v10570 = vsel %vm7637, %v10565, 0
    %10572 = vmatprep.subr.bf16.mxu0 0
    %10573 = vmatpush1.bf16.msra.mxu0 %v10570
    %10574 = vmatprep.subr.bf16.mxu0 0
    %10575 = vmatpush1.bf16.msra.mxu0 0
    %10576 = vmatprep.subr.bf16.mxu0 0
    %10577 = vmatpush1.bf16.msra.mxu0 0
    %10578 = vmatprep.subr.bf16.mxu0 0
    %10579 = vmatpush1.bf16.msra.mxu0 0
    %10580 = vmatprep.subr.bf16.mxu0 0
    %10581 = vmatpush1.bf16.msra.mxu0 0
    %10582 = vmatprep.subr.bf16.mxu0 0
    %10583 = vmatpush1.bf16.msra.mxu0 0
    %10584 = vmatprep.subr.bf16.mxu0 0
    %10585 = vmatpush1.bf16.msra.mxu0 0
    %10586 = vmatprep.subr.bf16.mxu0 0
    %10587 = vmatpush1.bf16.msra.mxu0 0
    %10588 = vmatprep.subr.bf16.mxu0 0
    %10589 = vmatpush1.bf16.msra.mxu0 0
    %10590 = vmatprep.subr.bf16.mxu0 0
    %10591 = vmatpush1.bf16.msra.mxu0 0
    %10592 = vmatprep.subr.bf16.mxu0 0
    %10593 = vmatpush1.bf16.msra.mxu0 0
    %10594 = vmatprep.subr.bf16.mxu0 0
    %10595 = vmatpush1.bf16.msra.mxu0 0
    %10596 = vmatprep.subr.bf16.mxu0 0
    %10597 = vmatpush1.bf16.msra.mxu0 0
    %10598 = vmatprep.subr.bf16.mxu0 0
    %10599 = vmatpush1.bf16.msra.mxu0 0
    %10600 = vmatprep.subr.bf16.mxu0 0
    %10601 = vmatpush1.bf16.msra.mxu0 0
    %10602 = vmatprep.subr.bf16.mxu0 0
    %10603 = vmatpush1.bf16.msra.mxu0 0
    %10604 = vmatprep.mubr.bf16.mxu0 0
    %10605 = vmatmul.mubr.bf16.gmra.mrb[0].mxu0 %v10567
    %v10606 = vpop.f32.mrb[0].mxu0
    %v10607 = vadd.f32 0.0, %v10606
    %v10608 = vpop.f32.mrb[0].mxu0
    %v10609 = vpop.f32.mrb[0].mxu0
    %v10610 = vpop.f32.mrb[0].mxu0
    %10611 = vdwg.mxu0
    %10612 = vrot.lane.b32.xlu0 %v9339, 40
    %v10613 = vpop.permute.xlu0 %10612
    %v10615 = vsel %vm1959, %v10515, 0
    %v10618 = vsel %vm7637, %v10613, 0
    %10620 = vmatprep.subr.bf16.mxu0 0
    %10621 = vmatpush1.bf16.msra.mxu0 %v10618
    %10622 = vmatprep.subr.bf16.mxu0 0
    %10623 = vmatpush1.bf16.msra.mxu0 0
    %10624 = vmatprep.subr.bf16.mxu0 0
    %10625 = vmatpush1.bf16.msra.mxu0 0
    %10626 = vmatprep.subr.bf16.mxu0 0
    %10627 = vmatpush1.bf16.msra.mxu0 0
    %10628 = vmatprep.subr.bf16.mxu0 0
    %10629 = vmatpush1.bf16.msra.mxu0 0
    %10630 = vmatprep.subr.bf16.mxu0 0
    %10631 = vmatpush1.bf16.msra.mxu0 0
    %10632 = vmatprep.subr.bf16.mxu0 0
    %10633 = vmatpush1.bf16.msra.mxu0 0
    %10634 = vmatprep.subr.bf16.mxu0 0
    %10635 = vmatpush1.bf16.msra.mxu0 0
    %10636 = vmatprep.subr.bf16.mxu0 0
    %10637 = vmatpush1.bf16.msra.mxu0 0
    %10638 = vmatprep.subr.bf16.mxu0 0
    %10639 = vmatpush1.bf16.msra.mxu0 0
    %10640 = vmatprep.subr.bf16.mxu0 0
    %10641 = vmatpush1.bf16.msra.mxu0 0
    %10642 = vmatprep.subr.bf16.mxu0 0
    %10643 = vmatpush1.bf16.msra.mxu0 0
    %10644 = vmatprep.subr.bf16.mxu0 0
    %10645 = vmatpush1.bf16.msra.mxu0 0
    %10646 = vmatprep.subr.bf16.mxu0 0
    %10647 = vmatpush1.bf16.msra.mxu0 0
    %10648 = vmatprep.subr.bf16.mxu0 0
    %10649 = vmatpush1.bf16.msra.mxu0 0
    %10650 = vmatprep.subr.bf16.mxu0 0
    %10651 = vmatpush1.bf16.msra.mxu0 0
    %10652 = vmatprep.mubr.bf16.mxu0 0
    %10653 = vmatmul.mubr.bf16.gmra.mrb[0].mxu0 %v10615
    %v10654 = vpop.f32.mrb[0].mxu0
    %v10655 = vadd.f32 0.0, %v10654
    %v10656 = vpop.f32.mrb[0].mxu0
    %v10657 = vpop.f32.mrb[0].mxu0
    %v10658 = vpop.f32.mrb[0].mxu0
    %10659 = vdwg.mxu0
    %10663 = vrot.lane.b32.xlu0 %v9899, 8
    %v10664 = vpop.permute.xlu0 %10663
    %10665 = vrot.lane.b32.xlu0 %v9947, 8
    %v10666 = vpop.permute.xlu0 %10665
    %10667 = vrot.lane.b32.xlu0 %v9995, 8
    %v10668 = vpop.permute.xlu0 %10667
    %10675 = vrot.lane.b32.xlu0 %v10229, 16
    %v10676 = vpop.permute.xlu0 %10675
    %10677 = vrot.lane.b32.xlu0 %v10277, 16
    %v10678 = vpop.permute.xlu0 %10677
    %10679 = vrot.lane.b32.xlu0 %v10325, 16
    %v10680 = vpop.permute.xlu0 %10679
    %10687 = vrot.lane.b32.xlu0 %v10559, 24
    %v10688 = vpop.permute.xlu0 %10687
    %10689 = vrot.lane.b32.xlu0 %v10607, 24
    %v10690 = vpop.permute.xlu0 %10689
    %10691 = vrot.lane.b32.xlu0 %v10655, 24
    %v10692 = vpop.permute.xlu0 %10691
    %v10696 = vsel %vm1959, %v9566, %v10664
    %v10697 = vsel %vm1959, %v9614, %v10666
    %v10698 = vsel %vm1959, %v9662, %v10668
    %v10699 = vsel %vm2869, %v10696, %v10676
    %v10700 = vsel %vm2869, %v10697, %v10678
    %v10701 = vsel %vm2869, %v10698, %v10680
    %v10702 = vsel %vm2872, %v10699, %v10688
    %v10703 = vsel %vm2872, %v10700, %v10690
    %v10704 = vsel %vm2872, %v10701, %v10692
    %v10705 = vpack.c.bf16 %v10703, %v10702
    %v10706 = vpack.c.bf16 %v10704, %v10704
    %s10707 = scalar_lea.vmem %s51, 16
    %v10708 = vld [vmem:[%s10707] sm:$0xf]
    %v10709 = vld [vmem:[%s10707 + $0x4] sm:$0xf]
    %v10710 = vld [vmem:[%s10707 + $0x8] sm:$0xf]
    %v10711 = vld [vmem:[%s10707 + $0xc] sm:$0xf]
    %v10716 = vunpack.c.l.b16 %v10708
    %v10717 = vunpack.c.l.b16 %v10709
    %v10718 = vunpack.c.l.b16 %v10710
    %v10719 = vunpack.c.l.b16 %v10711
    %v10720 = vpack.c.b16 %v10717, %v10716
    %v10721 = vpack.c.b16 %v10719, %v10718
    %v10725 = vsel %vm716, %v10705, 0
    %v10728 = vsel %vm716, %v10706, 0
    %10730 = vmatprep.subr.bf16.mxu0 0
    %10731 = vmatpush1.bf16.msra.mxu0 %v10720
    %10732 = vmatprep.subr.bf16.mxu0 0
    %10733 = vmatpush1.bf16.msra.mxu0 %v10721
    %10734 = vmatprep.subr.bf16.mxu0 0
    %10735 = vmatpush1.bf16.msra.mxu0 0
    %10736 = vmatprep.subr.bf16.mxu0 0
    %10737 = vmatpush1.bf16.msra.mxu0 0
    %10738 = vmatprep.subr.bf16.mxu0 0
    %10739 = vmatpush1.bf16.msra.mxu0 0
    %10740 = vmatprep.subr.bf16.mxu0 0
    %10741 = vmatpush1.bf16.msra.mxu0 0
    %10742 = vmatprep.subr.bf16.mxu0 0
    %10743 = vmatpush1.bf16.msra.mxu0 0
    %10744 = vmatprep.subr.bf16.mxu0 0
    %10745 = vmatpush1.bf16.msra.mxu0 0
    %10746 = vmatprep.subr.bf16.mxu0 0
    %10747 = vmatpush1.bf16.msra.mxu0 0
    %10748 = vmatprep.subr.bf16.mxu0 0
    %10749 = vmatpush1.bf16.msra.mxu0 0
    %10750 = vmatprep.subr.bf16.mxu0 0
    %10751 = vmatpush1.bf16.msra.mxu0 0
    %10752 = vmatprep.subr.bf16.mxu0 0
    %10753 = vmatpush1.bf16.msra.mxu0 0
    %10754 = vmatprep.subr.bf16.mxu0 0
    %10755 = vmatpush1.bf16.msra.mxu0 0
    %10756 = vmatprep.subr.bf16.mxu0 0
    %10757 = vmatpush1.bf16.msra.mxu0 0
    %10758 = vmatprep.subr.bf16.mxu0 0
    %10759 = vmatpush1.bf16.msra.mxu0 0
    %10760 = vmatprep.subr.bf16.mxu0 0
    %10761 = vmatpush1.bf16.msra.mxu0 0
    %10762 = vmatprep.mubr.bf16.mxu0 0
    %10763 = vmatmul.mubr.bf16.gmra.mrb[0].mxu0 %v10725
    %v10764 = vpop.f32.mrb[0].mxu0
    %v10765 = vadd.f32 0.0, %v10764
    %v10766 = vpop.f32.mrb[0].mxu0
    %v10767 = vpop.f32.mrb[0].mxu0
    %v10768 = vadd.f32 0.0, %v10767
    %v10769 = vpop.f32.mrb[0].mxu0
    %10770 = vmatprep.mubr.bf16.mxu0 0
    %10771 = vmatmul.mubr.bf16.gmra.mrb[0].mxu0 %v10728
    %v10772 = vpop.f32.mrb[0].mxu0
    %v10773 = vadd.f32 0.0, %v10772
    %v10774 = vpop.f32.mrb[0].mxu0
    %v10775 = vpop.f32.mrb[0].mxu0
    %v10776 = vpop.f32.mrb[0].mxu0
    %10777 = vdwg.mxu0
    %v10778 = vadd.f32 %v9186, %v10765
    %v10779 = vadd.f32 %v9187, %v10768
    %v10780 = vadd.f32 %v9188, %v10773
    %s10781 = scalar_lea.vmem %s53, 1
    %v10782 = vld [vmem:[%s10781] sm:$0x1]
    %v10784 = vlaneseq
    %v10785 = vshrl.u32 %v10784, 7
    %v10786 = vsub.s32 0, %v10785
    %v10787 = vrot.slane %v10782, %v10786
    %v10789 = vadd.f32 %v10778, %v10787
    %v10790 = vadd.f32 %v10779, %v10787
    %v10791 = vadd.f32 %v10780, %v10787
    %s10792 = scalar_lea.vmem %s59, 1
    %v10793 = vld [vmem:[%s10792] sm:$0x1]
    %s10794 = scalar_lea.vmem %s61, 1
    %v10795 = vld [vmem:[%s10794] sm:$0x1]
    %v10796 = vsel %vm716, %v10789, 0.0
    %10797 = vadd.xlane.f32.xlu0 %v10796
    %v10798 = vpop.xlane.xlu0 %10797
    %v10799 = vsel %vm716, %v10790, 0.0
    %10800 = vadd.xlane.f32.xlu0 %v10799
    %v10801 = vpop.xlane.xlu0 %10800
    %v10802 = vsel %vm716, %v10791, 0.0
    %10803 = vadd.xlane.f32.xlu0 %v10802
    %v10804 = vpop.xlane.xlu0 %10803
    %v10805 = vmul.f32 %v10798, %v724
    %v10806 = vmul.f32 %v10801, %v724
    %v10807 = vmul.f32 %v10804, %v724
    %v10808 = vsub.f32 %v10789, %v10805
    %v10809 = vsub.f32 %v10790, %v10806
    %v10810 = vsub.f32 %v10791, %v10807
    %v10811 = vmul.f32 %v10808, %v10808
    %v10812 = vmul.f32 %v10809, %v10809
    %v10813 = vmul.f32 %v10810, %v10810
    %v10814 = vsel %vm716, %v10811, 0.0
    %10815 = vadd.xlane.f32.xlu0 %v10814
    %v10816 = vpop.xlane.xlu0 %10815
    %v10817 = vsel %vm716, %v10812, 0.0
    %10818 = vadd.xlane.f32.xlu0 %v10817
    %v10819 = vpop.xlane.xlu0 %10818
    %v10820 = vsel %vm716, %v10813, 0.0
    %10821 = vadd.xlane.f32.xlu0 %v10820
    %v10822 = vpop.xlane.xlu0 %10821
    %v10823 = vmul.f32 %v10816, %v724
    %v10824 = vmul.f32 %v10819, %v724
    %v10825 = vmul.f32 %v10822, %v724
    %v10826 = vadd.f32 %v10823, 1e-05
    %v10827 = vadd.f32 %v10824, 1e-05
    %v10828 = vadd.f32 %v10825, 1e-05
    %v10829 = vrsqrt.pop %v10826
    %v10830 = vrsqrt.pop %v10827
    %v10831 = vrsqrt.pop %v10828
    %v10832 = vmul.f32 %v10808, %v10829
    %v10833 = vmul.f32 %v10809, %v10830
    %v10834 = vmul.f32 %v10810, %v10831
    %v10836 = vlaneseq
    %v10837 = vshrl.u32 %v10836, 7
    %v10838 = vsub.s32 0, %v10837
    %v10839 = vrot.slane %v10793, %v10838
    %v10841 = vmul.f32 %v10832, %v10839
    %v10842 = vmul.f32 %v10833, %v10839
    %v10843 = vmul.f32 %v10834, %v10839
    %v10845 = vlaneseq
    %v10846 = vshrl.u32 %v10845, 7
    %v10847 = vsub.s32 0, %v10846
    %v10848 = vrot.slane %v10795, %v10847
    %v10850 = vadd.f32 %v10841, %v10848
    %v10851 = vadd.f32 %v10842, %v10848
    %v10852 = vadd.f32 %v10843, %v10848
    %v10853 = vpack.c.bf16 %v10851, %v10850
    %v10854 = vpack.c.bf16 %v10852, %v10852
    %s10855 = scalar_lea.vmem %s63, 16
    %v10856 = vld [vmem:[%s10855] sm:$0xf]
    %v10857 = vld [vmem:[%s10855 + $0x4] sm:$0xf]
    %v10858 = vld [vmem:[%s10855 + $0x8] sm:$0xf]
    %v10859 = vld [vmem:[%s10855 + $0xc] sm:$0xf]
    %s10860 = scalar_lea.vmem %s65, 1
    %v10861 = vld [vmem:[%s10860] sm:$0x1]
    %v10863 = vlaneseq
    %v10864 = vshrl.u32 %v10863, 7
    %v10865 = vsub.s32 0, %v10864
    %v10866 = vrot.slane %v10861, %v10865
    %v10872 = vunpack.c.l.b16 %v10856
    %v10873 = vunpack.c.l.b16 %v10857
    %v10874 = vunpack.c.l.b16 %v10858
    %v10875 = vunpack.c.l.b16 %v10859
    %v10876 = vpack.c.b16 %v10873, %v10872
    %v10877 = vpack.c.b16 %v10875, %v10874
    %v10881 = vsel %vm716, %v10853, 0
    %v10884 = vsel %vm716, %v10854, 0
    %10886 = vmatprep.subr.bf16.mxu0 0
    %10887 = vmatpush1.bf16.msra.mxu0 %v10876
    %10888 = vmatprep.subr.bf16.mxu0 0
    %10889 = vmatpush1.bf16.msra.mxu0 %v10877
    %10890 = vmatprep.subr.bf16.mxu0 0
    %10891 = vmatpush1.bf16.msra.mxu0 0
    %10892 = vmatprep.subr.bf16.mxu0 0
    %10893 = vmatpush1.bf16.msra.mxu0 0
    %10894 = vmatprep.subr.bf16.mxu0 0
    %10895 = vmatpush1.bf16.msra.mxu0 0
    %10896 = vmatprep.subr.bf16.mxu0 0
    %10897 = vmatpush1.bf16.msra.mxu0 0
    %10898 = vmatprep.subr.bf16.mxu0 0
    %10899 = vmatpush1.bf16.msra.mxu0 0
    %10900 = vmatprep.subr.bf16.mxu0 0
    %10901 = vmatpush1.bf16.msra.mxu0 0
    %10902 = vmatprep.subr.bf16.mxu0 0
    %10903 = vmatpush1.bf16.msra.mxu0 0
    %10904 = vmatprep.subr.bf16.mxu0 0
    %10905 = vmatpush1.bf16.msra.mxu0 0
    %10906 = vmatprep.subr.bf16.mxu0 0
    %10907 = vmatpush1.bf16.msra.mxu0 0
    %10908 = vmatprep.subr.bf16.mxu0 0
    %10909 = vmatpush1.bf16.msra.mxu0 0
    %10910 = vmatprep.subr.bf16.mxu0 0
    %10911 = vmatpush1.bf16.msra.mxu0 0
    %10912 = vmatprep.subr.bf16.mxu0 0
    %10913 = vmatpush1.bf16.msra.mxu0 0
    %10914 = vmatprep.subr.bf16.mxu0 0
    %10915 = vmatpush1.bf16.msra.mxu0 0
    %10916 = vmatprep.subr.bf16.mxu0 0
    %10917 = vmatpush1.bf16.msra.mxu0 0
    %10918 = vmatprep.mubr.bf16.mxu0 0
    %10919 = vmatmul.mubr.bf16.gmra.mrb[0].mxu0 %v10881
    %v10920 = vpop.f32.mrb[0].mxu0
    %v10921 = vadd.f32 %v10866, %v10920
    %v10922 = vpop.f32.mrb[0].mxu0
    %v10923 = vpop.f32.mrb[0].mxu0
    %v10924 = vadd.f32 %v10866, %v10923
    %v10925 = vpop.f32.mrb[0].mxu0
    %10926 = vmatprep.mubr.bf16.mxu0 0
    %10927 = vmatmul.mubr.bf16.gmra.mrb[0].mxu0 %v10884
    %v10928 = vpop.f32.mrb[0].mxu0
    %v10929 = vadd.f32 %v10866, %v10928
    %v10930 = vpop.f32.mrb[0].mxu0
    %v10931 = vpop.f32.mrb[0].mxu0
    %v10932 = vpop.f32.mrb[0].mxu0
    %10933 = vdwg.mxu0
    %v10934 = vmul.f32 %v10921, 1.702
    %v10935 = vmul.f32 %v10924, 1.702
    %v10936 = vmul.f32 %v10929, 1.702
    %v10937 = vxor.u32 %v10934, 2147483648
    %v10938 = vxor.u32 %v10935, 2147483648
    %v10939 = vxor.u32 %v10936, 2147483648
    %v10940 = vmul.f32 %v10937, 1.442695
    %v10941 = vpow.pop %v10940
    %v10942 = vmul.f32 %v10938, 1.442695
    %v10943 = vpow.pop %v10942
    %v10944 = vmul.f32 %v10939, 1.442695
    %v10945 = vpow.pop %v10944
    %v10946 = vadd.f32 %v10941, 1.0
    %v10947 = vadd.f32 %v10943, 1.0
    %v10948 = vadd.f32 %v10945, 1.0
    %v10949 = vrcp.pop %v10946
    %v10950 = vmul.f32 1.0, %v10949
    %v10951 = vrcp.pop %v10947
    %v10952 = vmul.f32 1.0, %v10951
    %v10953 = vrcp.pop %v10948
    %v10954 = vmul.f32 1.0, %v10953
    %v10955 = vmul.f32 %v10921, %v10950
    %v10956 = vmul.f32 %v10924, %v10952
    %v10957 = vmul.f32 %v10929, %v10954
    %v10958 = vpack.c.bf16 %v10956, %v10955
    %v10959 = vpack.c.bf16 %v10957, %v10957
    %s10960 = scalar_lea.vmem %s67, 64
    %v10961 = vld [vmem:[%s10960] sm:$0xf]
    %v10962 = vld [vmem:[%s10960 + $0x4] sm:$0xf]
    %v10963 = vld [vmem:[%s10960 + $0x8] sm:$0xf]
    %v10964 = vld [vmem:[%s10960 + $0xc] sm:$0xf]
    %v10965 = vld [vmem:[%s10960 + $0x10] sm:$0xf]
    %v10966 = vld [vmem:[%s10960 + $0x14] sm:$0xf]
    %v10967 = vld [vmem:[%s10960 + $0x18] sm:$0xf]
    %v10968 = vld [vmem:[%s10960 + $0x1c] sm:$0xf]
    %v10969 = vld [vmem:[%s10960 + $0x20] sm:$0xf]
    %v10970 = vld [vmem:[%s10960 + $0x24] sm:$0xf]
    %v10971 = vld [vmem:[%s10960 + $0x28] sm:$0xf]
    %v10972 = vld [vmem:[%s10960 + $0x2c] sm:$0xf]
    %v10973 = vld [vmem:[%s10960 + $0x30] sm:$0xf]
    %v10974 = vld [vmem:[%s10960 + $0x34] sm:$0xf]
    %v10975 = vld [vmem:[%s10960 + $0x38] sm:$0xf]
    %v10976 = vld [vmem:[%s10960 + $0x3c] sm:$0xf]
    %v10993 = vunpack.c.l.b16 %v10961
    %v10994 = vunpack.c.l.b16 %v10962
    %v10995 = vunpack.c.l.b16 %v10963
    %v10996 = vunpack.c.l.b16 %v10964
    %v10997 = vunpack.c.l.b16 %v10965
    %v10998 = vunpack.c.l.b16 %v10966
    %v10999 = vunpack.c.l.b16 %v10967
    %v11000 = vunpack.c.l.b16 %v10968
    %v11001 = vunpack.c.l.b16 %v10969
    %v11002 = vunpack.c.l.b16 %v10970
    %v11003 = vunpack.c.l.b16 %v10971
    %v11004 = vunpack.c.l.b16 %v10972
    %v11005 = vunpack.c.l.b16 %v10973
    %v11006 = vunpack.c.l.b16 %v10974
    %v11007 = vunpack.c.l.b16 %v10975
    %v11008 = vunpack.c.l.b16 %v10976
    %v11009 = vpack.c.b16 %v10994, %v10993
    %v11010 = vpack.c.b16 %v10996, %v10995
    %v11011 = vpack.c.b16 %v10998, %v10997
    %v11012 = vpack.c.b16 %v11000, %v10999
    %v11013 = vpack.c.b16 %v11002, %v11001
    %v11014 = vpack.c.b16 %v11004, %v11003
    %v11015 = vpack.c.b16 %v11006, %v11005
    %v11016 = vpack.c.b16 %v11008, %v11007
    %11025 = vmatprep.subr.bf16.mxu0 0
    %11026 = vmatpush1.bf16.msra.mxu0 %v11009
    %11027 = vmatprep.subr.bf16.mxu0 0
    %11028 = vmatpush1.bf16.msra.mxu0 %v11010
    %11029 = vmatprep.subr.bf16.mxu0 0
    %11030 = vmatpush1.bf16.msra.mxu0 %v11011
    %11031 = vmatprep.subr.bf16.mxu0 0
    %11032 = vmatpush1.bf16.msra.mxu0 %v11012
    %11033 = vmatprep.subr.bf16.mxu0 0
    %11034 = vmatpush1.bf16.msra.mxu0 %v11013
    %11035 = vmatprep.subr.bf16.mxu0 0
    %11036 = vmatpush1.bf16.msra.mxu0 %v11014
    %11037 = vmatprep.subr.bf16.mxu0 0
    %11038 = vmatpush1.bf16.msra.mxu0 %v11015
    %11039 = vmatprep.subr.bf16.mxu0 0
    %11040 = vmatpush1.bf16.msra.mxu0 %v11016
    %11041 = vmatprep.subr.bf16.mxu0 0
    %11042 = vmatpush1.bf16.msra.mxu0 0
    %11043 = vmatprep.subr.bf16.mxu0 0
    %11044 = vmatpush1.bf16.msra.mxu0 0
    %11045 = vmatprep.subr.bf16.mxu0 0
    %11046 = vmatpush1.bf16.msra.mxu0 0
    %11047 = vmatprep.subr.bf16.mxu0 0
    %11048 = vmatpush1.bf16.msra.mxu0 0
    %11049 = vmatprep.subr.bf16.mxu0 0
    %11050 = vmatpush1.bf16.msra.mxu0 0
    %11051 = vmatprep.subr.bf16.mxu0 0
    %11052 = vmatpush1.bf16.msra.mxu0 0
    %11053 = vmatprep.subr.bf16.mxu0 0
    %11054 = vmatpush1.bf16.msra.mxu0 0
    %11055 = vmatprep.subr.bf16.mxu0 0
    %11056 = vmatpush1.bf16.msra.mxu0 0
    %11057 = vmatprep.mubr.bf16.mxu0 0
    %11058 = vmatmul.mubr.bf16.gmra.mrb[0].mxu0 %v10958
    %v11059 = vpop.f32.mrb[0].mxu0
    %v11060 = vadd.f32 0.0, %v11059
    %v11061 = vpop.f32.mrb[0].mxu0
    %v11062 = vpop.f32.mrb[0].mxu0
    %v11063 = vadd.f32 0.0, %v11062
    %v11064 = vpop.f32.mrb[0].mxu0
    %11065 = vmatprep.mubr.bf16.mxu0 0
    %11066 = vmatmul.mubr.bf16.gmra.mrb[0].mxu0 %v10959
    %v11067 = vpop.f32.mrb[0].mxu0
    %v11068 = vadd.f32 0.0, %v11067
    %v11069 = vpop.f32.mrb[0].mxu0
    %v11070 = vpop.f32.mrb[0].mxu0
    %v11071 = vpop.f32.mrb[0].mxu0
    %11072 = vdwg.mxu0
    %v11073 = vadd.f32 %v10789, %v11060
    %v11074 = vadd.f32 %v10790, %v11063
    %v11075 = vadd.f32 %v10791, %v11068
    %s11076 = scalar_lea.vmem %s69, 1
    %v11077 = vld [vmem:[%s11076] sm:$0x1]
    %v11079 = vlaneseq
    %v11080 = vshrl.u32 %v11079, 7
    %v11081 = vsub.s32 0, %v11080
    %v11082 = vrot.slane %v11077, %v11081
    %v11084 = vadd.f32 %v11073, %v11082
    %v11085 = vadd.f32 %v11074, %v11082
    %v11086 = vadd.f32 %v11075, %v11082
    %v11087 = vld [vmem:[%s71] sm:$0x1]
    %v11088 = vld [vmem:[%s73] sm:$0x1]
    %v11089 = vsel %vm716, %v11084, 0.0
    %11090 = vadd.xlane.f32.xlu0 %v11089
    %v11091 = vpop.xlane.xlu0 %11090
    %v11092 = vsel %vm716, %v11085, 0.0
    %11093 = vadd.xlane.f32.xlu0 %v11092
    %v11094 = vpop.xlane.xlu0 %11093
    %v11095 = vsel %vm716, %v11086, 0.0
    %11096 = vadd.xlane.f32.xlu0 %v11095
    %v11097 = vpop.xlane.xlu0 %11096
    %v11098 = vmul.f32 %v11091, %v724
    %v11099 = vmul.f32 %v11094, %v724
    %v11100 = vmul.f32 %v11097, %v724
    %v11101 = vsub.f32 %v11084, %v11098
    %v11102 = vsub.f32 %v11085, %v11099
    %v11103 = vsub.f32 %v11086, %v11100
    %v11104 = vmul.f32 %v11101, %v11101
    %v11105 = vmul.f32 %v11102, %v11102
    %v11106 = vmul.f32 %v11103, %v11103
    %v11107 = vsel %vm716, %v11104, 0.0
    %11108 = vadd.xlane.f32.xlu0 %v11107
    %v11109 = vpop.xlane.xlu0 %11108
    %v11110 = vsel %vm716, %v11105, 0.0
    %11111 = vadd.xlane.f32.xlu0 %v11110
    %v11112 = vpop.xlane.xlu0 %11111
    %v11113 = vsel %vm716, %v11106, 0.0
    %11114 = vadd.xlane.f32.xlu0 %v11113
    %v11115 = vpop.xlane.xlu0 %11114
    %v11116 = vmul.f32 %v11109, %v724
    %v11117 = vmul.f32 %v11112, %v724
    %v11118 = vmul.f32 %v11115, %v724
    %v11119 = vadd.f32 %v11116, 1e-05
    %v11120 = vadd.f32 %v11117, 1e-05
    %v11121 = vadd.f32 %v11118, 1e-05
    %v11122 = vrsqrt.pop %v11119
    %v11123 = vrsqrt.pop %v11120
    %v11124 = vrsqrt.pop %v11121
    %v11125 = vmul.f32 %v11101, %v11122
    %v11126 = vmul.f32 %v11102, %v11123
    %v11127 = vmul.f32 %v11103, %v11124
    %v11129 = vlaneseq
    %v11130 = vshrl.u32 %v11129, 7
    %v11131 = vsub.s32 0, %v11130
    %v11132 = vrot.slane %v11087, %v11131
    %v11134 = vmul.f32 %v11125, %v11132
    %v11135 = vmul.f32 %v11126, %v11132
    %v11136 = vmul.f32 %v11127, %v11132
    %v11138 = vlaneseq
    %v11139 = vshrl.u32 %v11138, 7
    %v11140 = vsub.s32 0, %v11139
    %v11141 = vrot.slane %v11088, %v11140
    %v11143 = vadd.f32 %v11134, %v11141
    %v11144 = vadd.f32 %v11135, %v11141
    %v11145 = vadd.f32 %v11136, %v11141
    %v11146 = vld [vmem:[%s5] sm:$0xff]
    %v11147 = vld [vmem:[%s5 + $0x8] sm:$0xff]
    %v11148 = vld [vmem:[%s5 + $0x10] sm:$0xff]
    %11150 = vset.pattern.permute.xlu0 0
    %11151 = vperm.xlu0 %11150, %v11146
    %v11152 = vpop.permute.xlu0 %11151
    %11155 = vset.pattern.permute.xlu0 0
    %11156 = vperm.xlu0 %11155, %v11147
    %v11157 = vpop.permute.xlu0 %11156
    %11160 = vset.pattern.permute.xlu0 0
    %11161 = vperm.xlu0 %11160, %v11148
    %v11162 = vpop.permute.xlu0 %11161
    %v11164 = vmul.f32 %v11143, %v11152
    %v11165 = vmul.f32 %v11144, %v11157
    %v11166 = vmul.f32 %v11145, %v11162
    %v11167 = vsel %vm716, %v11164, 0.0
    %v11168 = vrot.slane %v11167, 4
    %v11169 = vadd.f32 %v11167, %v11168
    %v11170 = vrot.slane %v11169, 2
    %v11171 = vadd.f32 %v11169, %v11170
    %v11172 = vrot.slane %v11171, 1
    %v11173 = vadd.f32 %v11171, %v11172
    %v11174 = vsel %vm716, %v11165, 0.0
    %v11175 = vrot.slane %v11174, 4
    %v11176 = vadd.f32 %v11174, %v11175
    %v11177 = vrot.slane %v11176, 2
    %v11178 = vadd.f32 %v11176, %v11177
    %v11179 = vrot.slane %v11178, 1
    %v11180 = vadd.f32 %v11178, %v11179
    %v11181 = vsel %vm716, %v11166, 0.0
    %v11182 = vrot.slane %v11181, 4
    %v11183 = vadd.f32 %v11181, %v11182
    %v11184 = vrot.slane %v11183, 2
    %v11185 = vadd.f32 %v11183, %v11184
    %v11186 = vrot.slane %v11185, 1
    %v11187 = vadd.f32 %v11185, %v11186
    %v11188 = vpack.c.bf16 %v11173, %v11173
    %v11189 = vpack.c.bf16 %v11180, %v11180
    %v11190 = vpack.c.bf16 %v11187, %v11187
    %v11191 = vld [vmem:[%s75] sm:$0xf]
    %v11192 = vld [vmem:[%s75 + $0x4] sm:$0xf]
    %v11193 = vld [vmem:[%s75 + $0x8] sm:$0xf]
    %v11194 = vld [vmem:[%s75 + $0xc] sm:$0xf]
    %v11198 = vunpack.c.l.b16 %v11188
    %v11199 = vunpack.c.l.b16 %v11189
    %v11200 = vunpack.c.l.b16 %v11190
    %v11201 = vsel %vm7231, %v11199, %v11198
    %vm11202 = vcmask 1042434
    %v11203 = vsel %vm11202, %v11200, %v11201
    %v11204 = vpack.c.b16 %v11203, %v11203
    %v11209 = vunpack.c.l.b16 %v11191
    %v11210 = vunpack.c.l.b16 %v11192
    %v11211 = vunpack.c.l.b16 %v11193
    %v11212 = vunpack.c.l.b16 %v11194
    %v11213 = vpack.c.b16 %v11210, %v11209
    %v11214 = vpack.c.b16 %v11212, %v11211
    %v11218 = vsel %vm716, %v11204, 0
    %11220 = vmatprep.subr.bf16.mxu0 0
    %11221 = vmatpush1.bf16.msra.mxu0 %v11213
    %11222 = vmatprep.subr.bf16.mxu0 0
    %11223 = vmatpush1.bf16.msra.mxu0 %v11214
    %11224 = vmatprep.subr.bf16.mxu0 0
    %11225 = vmatpush1.bf16.msra.mxu0 0
    %11226 = vmatprep.subr.bf16.mxu0 0
    %11227 = vmatpush1.bf16.msra.mxu0 0
    %11228 = vmatprep.subr.bf16.mxu0 0
    %11229 = vmatpush1.bf16.msra.mxu0 0
    %11230 = vmatprep.subr.bf16.mxu0 0
    %11231 = vmatpush1.bf16.msra.mxu0 0
    %11232 = vmatprep.subr.bf16.mxu0 0
    %11233 = vmatpush1.bf16.msra.mxu0 0
    %11234 = vmatprep.subr.bf16.mxu0 0
    %11235 = vmatpush1.bf16.msra.mxu0 0
    %11236 = vmatprep.subr.bf16.mxu0 0
    %11237 = vmatpush1.bf16.msra.mxu0 0
    %11238 = vmatprep.subr.bf16.mxu0 0
    %11239 = vmatpush1.bf16.msra.mxu0 0
    %11240 = vmatprep.subr.bf16.mxu0 0
    %11241 = vmatpush1.bf16.msra.mxu0 0
    %11242 = vmatprep.subr.bf16.mxu0 0
    %11243 = vmatpush1.bf16.msra.mxu0 0
    %11244 = vmatprep.subr.bf16.mxu0 0
    %11245 = vmatpush1.bf16.msra.mxu0 0
    %11246 = vmatprep.subr.bf16.mxu0 0
    %11247 = vmatpush1.bf16.msra.mxu0 0
    %11248 = vmatprep.subr.bf16.mxu0 0
    %11249 = vmatpush1.bf16.msra.mxu0 0
    %11250 = vmatprep.subr.bf16.mxu0 0
    %11251 = vmatpush1.bf16.msra.mxu0 0
    %11252 = vmatprep.mubr.bf16.mxu0 0
    %11253 = vmatmul.mubr.bf16.gmra.mrb[0].mxu0 %v11218
    %v11254 = vpop.f32.mrb[0].mxu0
    %v11255 = vadd.f32 0.0, %v11254
    %v11256 = vpop.f32.mrb[0].mxu0
    %v11257 = vpop.f32.mrb[0].mxu0
    %v11258 = vpop.f32.mrb[0].mxu0
    %11259 = vdwg.mxu0
    %v11260 = vmul.f32 %v7284, %v7284
    %v11261 = vsel %vm720, %v11260, 0.0
    %11262 = vadd.xlane.f32.xlu0 %v11261
    %v11263 = vpop.xlane.xlu0 %11262
    %v11264 = vadd.f32 %v11263, 1e-12
    %v11265 = vrsqrt.pop %v11264
    %v11266 = vmul.f32 %v7284, %v11265
    %v11267 = vmul.f32 %v11255, %v11255
    %vm11268 = vcmask 256000
    %v11269 = vsel %vm11268, %v11267, 0.0
    %11270 = vadd.xlane.f32.xlu0 %v11269
    %v11271 = vpop.xlane.xlu0 %11270
    %v11272 = vadd.f32 %v11271, 1e-12
    %v11273 = vrsqrt.pop %v11272
    %v11274 = vmul.f32 %v11255, %v11273
    %v11276 = vsel %vm716, %v11266, 0
    %v11279 = vsel %vm716, %v11274, 0
    %11281 = vmatprep.subr.mxu0 0.0
    %11282 = vmatpush1.xpose.msra.mxu0 %v11279
    %11283 = vmatprep.subr.mxu0 0.0
    %11284 = vmatpush1.xpose.msra.mxu0 0.0
    %11285 = vmatprep.subr.mxu0 0.0
    %11286 = vmatpush1.xpose.msra.mxu0 0.0
    %11287 = vmatprep.subr.mxu0 0.0
    %11288 = vmatpush1.xpose.msra.mxu0 0.0
    %11289 = vmatprep.subr.mxu0 0.0
    %11290 = vmatpush1.xpose.msra.mxu0 0.0
    %11291 = vmatprep.subr.mxu0 0.0
    %11292 = vmatpush1.xpose.msra.mxu0 0.0
    %11293 = vmatprep.subr.mxu0 0.0
    %11294 = vmatpush1.xpose.msra.mxu0 0.0
    %11295 = vmatprep.subr.mxu0 0.0
    %11296 = vmatpush1.xpose.msra.mxu0 0.0
    %11297 = vmatprep.subr.mxu0 0.0
    %11298 = vmatpush1.xpose.msra.mxu0 0.0
    %11299 = vmatprep.subr.mxu0 0.0
    %11300 = vmatpush1.xpose.msra.mxu0 0.0
    %11301 = vmatprep.subr.mxu0 0.0
    %11302 = vmatpush1.xpose.msra.mxu0 0.0
    %11303 = vmatprep.subr.mxu0 0.0
    %11304 = vmatpush1.xpose.msra.mxu0 0.0
    %11305 = vmatprep.subr.mxu0 0.0
    %11306 = vmatpush1.xpose.msra.mxu0 0.0
    %11307 = vmatprep.subr.mxu0 0.0
    %11308 = vmatpush1.xpose.msra.mxu0 0.0
    %11309 = vmatprep.subr.mxu0 0.0
    %11310 = vmatpush1.xpose.msra.mxu0 0.0
    %11311 = vmatprep.subr.mxu0 0.0
    %11312 = vmatpush1.xpose.msra.mxu0 0.0
    %11313 = vmatprep.subr.mxu0 0.0
    %11314 = vmatpush1.xpose.msra.mxu0 0.0
    %11315 = vmatprep.subr.mxu0 0.0
    %11316 = vmatpush1.xpose.msra.mxu0 0.0
    %11317 = vmatprep.subr.mxu0 0.0
    %11318 = vmatpush1.xpose.msra.mxu0 0.0
    %11319 = vmatprep.subr.mxu0 0.0
    %11320 = vmatpush1.xpose.msra.mxu0 0.0
    %11321 = vmatprep.subr.mxu0 0.0
    %11322 = vmatpush1.xpose.msra.mxu0 0.0
    %11323 = vmatprep.subr.mxu0 0.0
    %11324 = vmatpush1.xpose.msra.mxu0 0.0
    %11325 = vmatprep.subr.mxu0 0.0
    %11326 = vmatpush1.xpose.msra.mxu0 0.0
    %11327 = vmatprep.subr.mxu0 0.0
    %11328 = vmatpush1.xpose.msra.mxu0 0.0
    %11329 = vmatprep.subr.mxu0 0.0
    %11330 = vmatpush1.xpose.msra.mxu0 0.0
    %11331 = vmatprep.subr.mxu0 0.0
    %11332 = vmatpush1.xpose.msra.mxu0 0.0
    %11333 = vmatprep.subr.mxu0 0.0
    %11334 = vmatpush1.xpose.msra.mxu0 0.0
    %11335 = vmatprep.subr.mxu0 0.0
    %11336 = vmatpush1.xpose.msra.mxu0 0.0
    %11337 = vmatprep.subr.mxu0 0.0
    %11338 = vmatpush1.xpose.msra.mxu0 0.0
    %11339 = vmatprep.subr.mxu0 0.0
    %11340 = vmatpush1.xpose.msra.mxu0 0.0
    %11341 = vmatprep.subr.mxu0 0.0
    %11342 = vmatpush1.xpose.msra.mxu0 0.0
    %11343 = vmatprep.subr.mxu0 0.0
    %11344 = vmatpush1.xpose.msra.mxu0 0.0
    %11345 = vmatprep.mubr.f32.mxu0 0.0
    %11346 = vmatmul.mubr.f32.gmra.mrb[0].mxu0 %v11276
    %v11347 = vpop.f32.mrb[0].mxu0
    %v11348 = vadd.f32 0.0, %v11347
    %v11349 = vpop.f32.mrb[0].mxu0
    %11350 = vdwg.mxu0
    %s11351 = sld [smem:[#allocation2]]
    %v11352 = vstv %s11351
    %v11353 = vmul.f32 %v11352, %v11348
    %vm11354 = vcmask 17408
    %11355 = vst.msk [vmem:[#allocation3] sm:$0x3] %vm11354, %v11353
    // Predicated region
    $region158: #{custom_clip_forward.1} parent=1 // pred_check
      _
    $region159: #{custom_clip_forward.1} parent=1 // pred_check_branch
      %11357 = sbr.rel (0) target = $region161
    $region160: #{custom_clip_forward.1} parent=1 // pred_region
      %s11359 = ssub.s32 32, 32
      %11360 = vsyncadd [#allocation4], %s11359
      %s11362 = sshll.u32 [#allocation3], 4
      %s11363 = int_to_ptr.vmem [resolvable:$true] %s11362
      %11365 = dma.vmem_to_hbm [thread:$0]  %s11363, 32, %s79, [#allocation4]
    $region161: #{custom_clip_forward.1} parent=1 // pred_fallthru
      _
    // Predicated region
    $region162: #{custom_clip_forward.1} parent=1 // pred_check
      _
    $region163: #{custom_clip_forward.1} parent=1 // pred_check_branch
      %11367 = sbr.rel (0) target = $region165
    $region164: #{custom_clip_forward.1} parent=1 // pred_region
      %11368 = dma.done [#allocation4], 32
    $region165: #{custom_clip_forward.1} parent=1 // pred_fallthru
      _
    %11369 = vsyncpa [#allocation4], 1

</llo_original>
